<compile_context>
chip_gen: v6e
topology: v6e:2x2x1
jax: 0.10.0
libtpu: 0.0.40
codegen_flags: <defaults>
</compile_context>

<pallas_src>
import functools

import jax
import jax.numpy as jnp
from jax.experimental import pallas as pl
from jax.experimental.pallas import tpu as pltpu

_EPS = 1e-5
_VMEM_LIMIT = 48 * 1024 * 1024


# ----------------------------------------------------------------------------
# im2col build: zero-halo slab -> (HW, 9*Cin) bf16 operand, masking folded in.
# ----------------------------------------------------------------------------
def _build_patch(x_rows_f32, xpad, patch, H, W, cin):
    """xpad : f32 VMEM (HW + 2*(W+1), Cin) zero-halo slab (scratch).
    patch  : bf16 VMEM (HW, 9*Cin) im2col operand (scratch).
    x_rows_f32 : f32 (HW, Cin) activation rows for this image."""
    HW = H * W
    halo = W + 1

    zeros_halo = jnp.zeros((halo, cin), xpad.dtype)
    xpad[0:halo, :] = zeros_halo                       # top halo
    xpad[halo + HW:halo + HW + halo, :] = zeros_halo   # bottom halo
    xpad[halo:halo + HW, :] = x_rows_f32               # interior

    # Column index of every flattened output pixel (left/right border masks).
    col = jax.lax.broadcasted_iota(jnp.int32, (HW, 1), 0) % W
    not_left = col != 0
    not_right = col != (W - 1)

    for t in range(9):
        dy, dx = t // 3 - 1, t % 3 - 1
        start = halo + dy * W + dx                     # static sublane offset
        xs = xpad[start:start + HW, :]                 # (HW, Cin) f32
        if dx == 1:
            xs = jnp.where(not_right, xs, 0.0)
        elif dx == -1:
            xs = jnp.where(not_left, xs, 0.0)
        patch[:, t * cin:(t + 1) * cin] = xs.astype(patch.dtype)


def _conv_and_stats(patch, w_ref, b_ref, y_ref, stats_ref):
    """One MXU matmul (K = 9*Cin) + bias; store y and per-step BN partials."""
    acc = jnp.dot(patch[...], w_ref[...], preferred_element_type=jnp.float32)
    acc = acc + b_ref[...]
    y_ref[...] = acc.astype(y_ref.dtype)
    ssum = jnp.sum(acc, axis=0, keepdims=True)
    ssq = jnp.sum(acc * acc, axis=0, keepdims=True)
    stats_ref[...] = jnp.concatenate([ssum, ssq], axis=0)


# ----------------------------------------------------------------------------
# Kernels
# ----------------------------------------------------------------------------
def _conv_stats_kernel(x_ref, w_ref, b_ref, y_ref, stats_ref, xpad, patch,
                       *, H, W, cin):
    """conv1 + bias; writes raw conv output and this step's BN1 partials."""
    _build_patch(x_ref[...].astype(jnp.float32), xpad, patch, H, W, cin)
    _conv_and_stats(patch, w_ref, b_ref, y_ref, stats_ref)


def _bn_relu_conv_stats_kernel(y1_ref, sc_ref, sh_ref, w_ref, b_ref,
                               y2_ref, stats_ref, xpad, patch, *, H, W, cin):
    """BN1+ReLU prologue (precomputed scale/shift) -> conv2 + bias -> BN2 partials."""
    a = jnp.maximum(
        y1_ref[...].astype(jnp.float32) * sc_ref[...] + sh_ref[...], 0.0)
    _build_patch(a, xpad, patch, H, W, cin)
    _conv_and_stats(patch, w_ref, b_ref, y2_ref, stats_ref)


def _bn_relu_kernel(y_ref, sc_ref, sh_ref, o_ref):
    """Final BN2 + ReLU epilogue with precomputed scale/shift."""
    o_ref[...] = jnp.maximum(
        y_ref[...].astype(jnp.float32) * sc_ref[...] + sh_ref[...],
        0.0).astype(o_ref.dtype)


# ----------------------------------------------------------------------------
# Host-side BN parameter fold (tiny, runs once per stage in XLA).
# ----------------------------------------------------------------------------
def _bn_scale_shift(partial_stats, gamma, beta, count):
    s = jnp.sum(partial_stats, axis=0)              # (2, C) f32
    mean = s[0:1, :] * (1.0 / count)
    # TODO(synk): single-pass variance (E[x^2]-E[x]^2) can lose precision for
    # channels with very large means; acceptable at these magnitudes.
    var = s[1:2, :] * (1.0 / count) - mean * mean
    scale = gamma * jax.lax.rsqrt(var + _EPS)
    shift = beta - mean * scale
    return scale, shift


# ----------------------------------------------------------------------------
# Forward wrapper
# ----------------------------------------------------------------------------
def double_conv_fwd(x_nchw, params):
    n, cin, h, w = x_nchw.shape
    hw = h * w                       # must be a multiple of 8 (row-tile rule)
    count = float(n * hw)

    w1, b1, g1, bt1 = params["w1"], params["b1"], params["g1"], params["bt1"]
    w2, b2, g2, bt2 = params["w2"], params["b2"], params["g2"], params["bt2"]
    c1 = w1.shape[-1]
    c2 = w2.shape[-1]
    w1r = w1.reshape(9 * cin, c1)    # im2col weight layout (9*Cin, Cout)
    w2r = w2.reshape(9 * c1, c2)

    # NCHW -> (N*H*W, C) channels-last rows, bf16 matmul operand in HBM.
    x = jnp.transpose(x_nchw, (0, 2, 3, 1)).reshape(n * hw, cin)
    x = x.astype(jnp.bfloat16)

    cp = pltpu.CompilerParams(dimension_semantics=("parallel",),
                              vmem_limit_bytes=_VMEM_LIMIT)

    # Stage 1: conv1 + bias, per-image partial BN1 sum/sumsq.
    y1, ps1 = pl.pallas_call(
        functools.partial(_conv_stats_kernel, H=h, W=w, cin=cin),
        grid=(n,),
        in_specs=[
            pl.BlockSpec((hw, cin), lambda i: (i, 0)),
            pl.BlockSpec((9 * cin, c1), lambda i: (0, 0)),
            pl.BlockSpec((1, c1), lambda i: (0, 0)),
        ],
        out_specs=[
            pl.BlockSpec((hw, c1), lambda i: (i, 0)),
            pl.BlockSpec((None, 2, c1), lambda i: (i, 0, 0)),
        ],
        out_shape=[
            jax.ShapeDtypeStruct((n * hw, c1), jnp.bfloat16),
            jax.ShapeDtypeStruct((n, 2, c1), jnp.float32),
        ],
        scratch_shapes=[pltpu.VMEM((hw + 2 * (w + 1), cin), jnp.float32),
                        pltpu.VMEM((hw, 9 * cin), jnp.bfloat16)],
        compiler_params=cp,
    )(x, w1r, b1)

    scale1, shift1 = _bn_scale_shift(ps1, g1, bt1, count)

    # Stage 2: BN1+ReLU prologue, conv2 + bias, per-image partial BN2 stats.
    y2, ps2 = pl.pallas_call(
        functools.partial(_bn_relu_conv_stats_kernel, H=h, W=w, cin=c1),
        grid=(n,),
        in_specs=[
            pl.BlockSpec((hw, c1), lambda i: (i, 0)),
            pl.BlockSpec((1, c1), lambda i: (0, 0)),
            pl.BlockSpec((1, c1), lambda i: (0, 0)),
            pl.BlockSpec((9 * c1, c2), lambda i: (0, 0)),
            pl.BlockSpec((1, c2), lambda i: (0, 0)),
        ],
        out_specs=[
            pl.BlockSpec((hw, c2), lambda i: (i, 0)),
            pl.BlockSpec((None, 2, c2), lambda i: (i, 0, 0)),
        ],
        out_shape=[
            jax.ShapeDtypeStruct((n * hw, c2), jnp.bfloat16),
            jax.ShapeDtypeStruct((n, 2, c2), jnp.float32),
        ],
        scratch_shapes=[pltpu.VMEM((hw + 2 * (w + 1), c1), jnp.float32),
                        pltpu.VMEM((hw, 9 * c1), jnp.bfloat16)],
        compiler_params=cp,
    )(y1, scale1, shift1, w2r, b2)

    scale2, shift2 = _bn_scale_shift(ps2, g2, bt2, count)

    # Stage 3: BN2 + ReLU epilogue.  (At toy shapes this could be plain XLA;
    # kept as a Pallas pass so large shapes stay a single fused sweep.)
    out = pl.pallas_call(
        _bn_relu_kernel,
        grid=(n,),
        in_specs=[
            pl.BlockSpec((hw, c2), lambda i: (i, 0)),
            pl.BlockSpec((1, c2), lambda i: (0, 0)),
            pl.BlockSpec((1, c2), lambda i: (0, 0)),
        ],
        out_specs=pl.BlockSpec((hw, c2), lambda i: (i, 0)),
        out_shape=jax.ShapeDtypeStruct((n * hw, c2), jnp.float32),
        compiler_params=cp,
    )(y2, scale2, shift2)

    return jnp.transpose(out.reshape(n, h, w, c2), (0, 3, 1, 2))


# ----------------------------------------------------------------------------
# Pure-JAX reference (same tap convention / same bf16-quantized weights).
# ----------------------------------------------------------------------------
def _double_conv_ref(x_nchw, params):
    x = jnp.transpose(x_nchw, (0, 2, 3, 1)).astype(jnp.bfloat16)
    x = x.astype(jnp.float32)

    def conv3x3(a, w9, b):
        nn_, hh, ww, _ = a.shape
        cout = w9.shape[-1]
        ap = jnp.pad(a, ((0, 0), (1, 1), (1, 1), (0, 0)))
        acc = jnp.zeros((nn_, hh, ww, cout), jnp.float32) + b.reshape(1, 1, 1, cout)
        for t in range(9):
            kh, kw = t // 3, t % 3
            acc = acc + jnp.einsum(
                "nhwc,co->nhwo",
                ap[:, kh:kh + hh, kw:kw + ww, :],
                w9[t].astype(jnp.float32))
        return acc

    def bn_relu(y, g, bt):
        mean = jnp.mean(y, axis=(0, 1, 2), keepdims=True)
        var = jnp.mean(jnp.square(y - mean), axis=(0, 1, 2), keepdims=True)
        yhat = (y - mean) * jax.lax.rsqrt(var + _EPS)
        return jnp.maximum(yhat * g.reshape(1, 1, 1, -1) + bt.reshape(1, 1, 1, -1),
                           0.0)

    y = conv3x3(x, params["w1"], params["b1"].astype(jnp.float32))
    y = bn_relu(y, params["g1"], params["bt1"])
    y = conv3x3(y, params["w2"], params["b2"].astype(jnp.float32))
    y = bn_relu(y, params["g2"], params["bt2"])
    return jnp.transpose(y, (0, 3, 1, 2))


# ----------------------------------------------------------------------------
# Deterministic synthetic parameters (PyTorch defaults: gamma=1, beta=0).
# ----------------------------------------------------------------------------
def init_params(key, in_ch, out_ch):
    k = jax.random.split(key, 4)
    w1 = (0.1 * jax.random.normal(k[0], (9, in_ch, out_ch), jnp.float32)
          ).astype(jnp.bfloat16)
    b1 = 0.1 * jax.random.normal(k[1], (1, out_ch), jnp.float32)
    w2 = (0.1 * jax.random.normal(k[2], (9, out_ch, out_ch), jnp.float32)
          ).astype(jnp.bfloat16)
    b2 = 0.1 * jax.random.normal(k[3], (1, out_ch), jnp.float32)
    ones = jnp.ones((1, out_ch), jnp.float32)
    zeros = jnp.zeros((1, out_ch), jnp.float32)
    return dict(w1=w1, b1=b1, g1=ones, bt1=zeros,
                w2=w2, b2=b2, g2=ones, bt2=zeros)


# ----------------------------------------------------------------------------
if __name__ == "__main__":
    in_ch, out_ch = 4, 32
    batch, spatial = 2, 16

    key = jax.random.PRNGKey(0)
    k_params, k_x = jax.random.split(key)
    params = init_params(k_params, in_ch, out_ch)
    x = jax.random.normal(k_x, (batch, in_ch, spatial, spatial), jnp.float32)

    fwd = jax.jit(double_conv_fwd)
    out = jax.block_until_ready(fwd(x, params))

    assert out.shape == (batch, out_ch, spatial, spatial), out.shape
    assert bool(jnp.all(jnp.isfinite(out)))

    # Loose-tolerance check against an f32 reference (bf16 activation storage
    # is the only approximation in the Pallas path).
    ref = _double_conv_ref(x, params)
    max_err = float(jnp.max(jnp.abs(out - ref)))
    assert max_err < 0.1, f"max abs error vs reference: {max_err}"

    print("KERNEL_OK")
</pallas_src>

<mosaic_0001>
module attributes {stable_mosaic.version = 11 : i64} {
  func.func @_conv_stats_kernel(%arg0: i32, %arg1: memref<256x4xbf16, #tpu.memory_space<vmem>>, %arg2: memref<36x32xbf16, #tpu.memory_space<vmem>>, %arg3: memref<1x32xf32, #tpu.memory_space<vmem>>, %arg4: memref<256x32xbf16, #tpu.memory_space<vmem>>, %arg5: memref<1x2x32xf32, #tpu.memory_space<vmem>>, %arg6: memref<290x4xf32, #tpu.memory_space<vmem>>, %arg7: memref<256x36xbf16, #tpu.memory_space<vmem>>) attributes {dimension_semantics = [#tpu.dimension_semantics<parallel>], iteration_bounds = array<i64: 2>, scalar_prefetch = 0 : i64, scratch_operands = 2 : i64, tpu.core_type = #tpu.core_type<tc>, window_params = [{transform_indices = @transform_0, window_bounds = array<i64: 256, 4>}, {pipeline_mode = #tpu.pipeline_mode<synchronous>, transform_indices = @transform_1, window_bounds = array<i64: 36, 32>}, {pipeline_mode = #tpu.pipeline_mode<synchronous>, transform_indices = @transform_2, window_bounds = array<i64: 1, 32>}, {transform_indices = @transform_3, window_bounds = array<i64: 256, 32>}, {transform_indices = @transform_4, window_bounds = array<i64: 1, 2, 32>}]} {
    %c0 = arith.constant 0 : index
    %c0_0 = arith.constant 0 : index
    %0 = vector.load %arg1[%c0, %c0_0] : memref<256x4xbf16, #tpu.memory_space<vmem>>, vector<256x4xbf16>
    %1 = arith.extf %0 : vector<256x4xbf16> to vector<256x4xf32>
    %cst = arith.constant 0.000000e+00 : f32
    %2 = vector.broadcast %cst : f32 to vector<17x4xf32>
    %c0_1 = arith.constant 0 : index
    %c0_2 = arith.constant 0 : index
    %3 = vector.load %arg6[%c0_1, %c0_2] : memref<290x4xf32, #tpu.memory_space<vmem>>, vector<17x4xf32>
    tpu.vector_store %arg6[%c0_1, %c0_2], %2 {strides = array<i32>} : memref<290x4xf32, #tpu.memory_space<vmem>>, vector<17x4xf32>,
    %c273 = arith.constant 273 : index
    %c0_3 = arith.constant 0 : index
    %4 = vector.load %arg6[%c273, %c0_3] : memref<290x4xf32, #tpu.memory_space<vmem>>, vector<17x4xf32>
    tpu.vector_store %arg6[%c273, %c0_3], %2 {strides = array<i32>} : memref<290x4xf32, #tpu.memory_space<vmem>>, vector<17x4xf32>,
    %c17 = arith.constant 17 : index
    %c0_4 = arith.constant 0 : index
    %5 = vector.load %arg6[%c17, %c0_4] : memref<290x4xf32, #tpu.memory_space<vmem>>, vector<256x4xf32>
    tpu.vector_store %arg6[%c17, %c0_4], %1 {strides = array<i32>} : memref<290x4xf32, #tpu.memory_space<vmem>>, vector<256x4xf32>,
    %6 = tpu.iota {dimensions = array<i32: 0>} : vector<256x1xi32>
    %c16_i32 = arith.constant 16 : i32
    %c0_i32 = arith.constant 0 : i32
    %7 = arith.cmpi eq, %c16_i32, %c0_i32 : i32
    %c1_i32 = arith.constant 1 : i32
    %8 = arith.select %7, %c1_i32, %c16_i32 : i32
    %9 = vector.broadcast %8 : i32 to vector<256x1xi32>
    %10 = arith.remsi %6, %9 : vector<256x1xi32>
    %c0_i32_5 = arith.constant 0 : i32
    %11 = vector.broadcast %c0_i32_5 : i32 to vector<256x1xi32>
    %12 = arith.cmpi ne, %10, %11 : vector<256x1xi32>
    %c0_i32_6 = arith.constant 0 : i32
    %13 = vector.broadcast %c0_i32_6 : i32 to vector<256x1xi32>
    %14 = arith.cmpi slt, %10, %13 : vector<256x1xi32>
    %c0_i32_7 = arith.constant 0 : i32
    %15 = arith.cmpi slt, %8, %c0_i32_7 : i32
    %16 = vector.broadcast %15 : i1 to vector<256x1xi1>
    %17 = vector.broadcast %16 : vector<256x1xi1> to vector<256x1xi1>
    %18 = arith.xori %14, %17 : vector<256x1xi1>
    %19 = arith.andi %18, %12 : vector<256x1xi1>
    %20 = vector.broadcast %8 : i32 to vector<256x1xi32>
    %21 = arith.addi %10, %20 : vector<256x1xi32>
    %22 = arith.select %19, %21, %10 : vector<256x1xi1>, vector<256x1xi32>
    %c0_i32_8 = arith.constant 0 : i32
    %23 = vector.broadcast %c0_i32_8 : i32 to vector<256x1xi32>
    %24 = arith.cmpi ne, %22, %23 : vector<256x1xi32>
    %c15_i32 = arith.constant 15 : i32
    %25 = vector.broadcast %c15_i32 : i32 to vector<256x1xi32>
    %26 = arith.cmpi ne, %22, %25 : vector<256x1xi32>
    %c0_9 = arith.constant 0 : index
    %c0_10 = arith.constant 0 : index
    %27 = vector.load %arg6[%c0_9, %c0_10] : memref<290x4xf32, #tpu.memory_space<vmem>>, vector<256x4xf32>
    %cst_11 = arith.constant 0.000000e+00 : f32
    %28 = vector.shape_cast %24 : vector<256x1xi1> to vector<256x1xi1>
    %29 = vector.broadcast %28 : vector<256x1xi1> to vector<256x4xi1>
    %30 = vector.broadcast %cst_11 : f32 to vector<256x4xf32>
    %31 = arith.select %29, %27, %30 : vector<256x4xi1>, vector<256x4xf32>
    %32 = arith.truncf %31 : vector<256x4xf32> to vector<256x4xbf16>
    %c0_12 = arith.constant 0 : index
    %c0_13 = arith.constant 0 : index
    %33 = vector.load %arg7[%c0_12, %c0_13] : memref<256x36xbf16, #tpu.memory_space<vmem>>, vector<256x4xbf16>
    tpu.vector_store %arg7[%c0_12, %c0_13], %32 {strides = array<i32>} : memref<256x36xbf16, #tpu.memory_space<vmem>>, vector<256x4xbf16>,
    %c1 = arith.constant 1 : index
    %c0_14 = arith.constant 0 : index
    %34 = vector.load %arg6[%c1, %c0_14] : memref<290x4xf32, #tpu.memory_space<vmem>>, vector<256x4xf32>
    %35 = arith.truncf %34 : vector<256x4xf32> to vector<256x4xbf16>
    %c0_15 = arith.constant 0 : index
    %c4 = arith.constant 4 : index
    %36 = vector.load %arg7[%c0_15, %c4] : memref<256x36xbf16, #tpu.memory_space<vmem>>, vector<256x4xbf16>
    tpu.vector_store %arg7[%c0_15, %c4], %35 {strides = array<i32>} : memref<256x36xbf16, #tpu.memory_space<vmem>>, vector<256x4xbf16>,
    %c2 = arith.constant 2 : index
    %c0_16 = arith.constant 0 : index
    %37 = vector.load %arg6[%c2, %c0_16] : memref<290x4xf32, #tpu.memory_space<vmem>>, vector<256x4xf32>
    %cst_17 = arith.constant 0.000000e+00 : f32
    %38 = vector.shape_cast %26 : vector<256x1xi1> to vector<256x1xi1>
    %39 = vector.broadcast %38 : vector<256x1xi1> to vector<256x4xi1>
    %40 = vector.broadcast %cst_17 : f32 to vector<256x4xf32>
    %41 = arith.select %39, %37, %40 : vector<256x4xi1>, vector<256x4xf32>
    %42 = arith.truncf %41 : vector<256x4xf32> to vector<256x4xbf16>
    %c0_18 = arith.constant 0 : index
    %c8 = arith.constant 8 : index
    %43 = vector.load %arg7[%c0_18, %c8] : memref<256x36xbf16, #tpu.memory_space<vmem>>, vector<256x4xbf16>
    tpu.vector_store %arg7[%c0_18, %c8], %42 {strides = array<i32>} : memref<256x36xbf16, #tpu.memory_space<vmem>>, vector<256x4xbf16>,
    %c16 = arith.constant 16 : index
    %c0_19 = arith.constant 0 : index
    %44 = vector.load %arg6[%c16, %c0_19] : memref<290x4xf32, #tpu.memory_space<vmem>>, vector<256x4xf32>
    %cst_20 = arith.constant 0.000000e+00 : f32
    %45 = vector.shape_cast %24 : vector<256x1xi1> to vector<256x1xi1>
    %46 = vector.broadcast %45 : vector<256x1xi1> to vector<256x4xi1>
    %47 = vector.broadcast %cst_20 : f32 to vector<256x4xf32>
    %48 = arith.select %46, %44, %47 : vector<256x4xi1>, vector<256x4xf32>
    %49 = arith.truncf %48 : vector<256x4xf32> to vector<256x4xbf16>
    %c0_21 = arith.constant 0 : index
    %c12 = arith.constant 12 : index
    %50 = vector.load %arg7[%c0_21, %c12] : memref<256x36xbf16, #tpu.memory_space<vmem>>, vector<256x4xbf16>
    tpu.vector_store %arg7[%c0_21, %c12], %49 {strides = array<i32>} : memref<256x36xbf16, #tpu.memory_space<vmem>>, vector<256x4xbf16>,
    %c17_22 = arith.constant 17 : index
    %c0_23 = arith.constant 0 : index
    %51 = vector.load %arg6[%c17_22, %c0_23] : memref<290x4xf32, #tpu.memory_space<vmem>>, vector<256x4xf32>
    %52 = arith.truncf %51 : vector<256x4xf32> to vector<256x4xbf16>
    %c0_24 = arith.constant 0 : index
    %c16_25 = arith.constant 16 : index
    %53 = vector.load %arg7[%c0_24, %c16_25] : memref<256x36xbf16, #tpu.memory_space<vmem>>, vector<256x4xbf16>
    tpu.vector_store %arg7[%c0_24, %c16_25], %52 {strides = array<i32>} : memref<256x36xbf16, #tpu.memory_space<vmem>>, vector<256x4xbf16>,
    %c18 = arith.constant 18 : index
    %c0_26 = arith.constant 0 : index
    %54 = vector.load %arg6[%c18, %c0_26] : memref<290x4xf32, #tpu.memory_space<vmem>>, vector<256x4xf32>
    %cst_27 = arith.constant 0.000000e+00 : f32
    %55 = vector.shape_cast %26 : vector<256x1xi1> to vector<256x1xi1>
    %56 = vector.broadcast %55 : vector<256x1xi1> to vector<256x4xi1>
    %57 = vector.broadcast %cst_27 : f32 to vector<256x4xf32>
    %58 = arith.select %56, %54, %57 : vector<256x4xi1>, vector<256x4xf32>
    %59 = arith.truncf %58 : vector<256x4xf32> to vector<256x4xbf16>
    %c0_28 = arith.constant 0 : index
    %c20 = arith.constant 20 : index
    %60 = vector.load %arg7[%c0_28, %c20] : memref<256x36xbf16, #tpu.memory_space<vmem>>, vector<256x4xbf16>
    tpu.vector_store %arg7[%c0_28, %c20], %59 {strides = array<i32>} : memref<256x36xbf16, #tpu.memory_space<vmem>>, vector<256x4xbf16>,
    %c32 = arith.constant 32 : index
    %c0_29 = arith.constant 0 : index
    %61 = vector.load %arg6[%c32, %c0_29] : memref<290x4xf32, #tpu.memory_space<vmem>>, vector<256x4xf32>
    %cst_30 = arith.constant 0.000000e+00 : f32
    %62 = vector.shape_cast %24 : vector<256x1xi1> to vector<256x1xi1>
    %63 = vector.broadcast %62 : vector<256x1xi1> to vector<256x4xi1>
    %64 = vector.broadcast %cst_30 : f32 to vector<256x4xf32>
    %65 = arith.select %63, %61, %64 : vector<256x4xi1>, vector<256x4xf32>
    %66 = arith.truncf %65 : vector<256x4xf32> to vector<256x4xbf16>
    %c0_31 = arith.constant 0 : index
    %c24 = arith.constant 24 : index
    %67 = vector.load %arg7[%c0_31, %c24] : memref<256x36xbf16, #tpu.memory_space<vmem>>, vector<256x4xbf16>
    tpu.vector_store %arg7[%c0_31, %c24], %66 {strides = array<i32>} : memref<256x36xbf16, #tpu.memory_space<vmem>>, vector<256x4xbf16>,
    %c33 = arith.constant 33 : index
    %c0_32 = arith.constant 0 : index
    %68 = vector.load %arg6[%c33, %c0_32] : memref<290x4xf32, #tpu.memory_space<vmem>>, vector<256x4xf32>
    %69 = arith.truncf %68 : vector<256x4xf32> to vector<256x4xbf16>
    %c0_33 = arith.constant 0 : index
    %c28 = arith.constant 28 : index
    %70 = vector.load %arg7[%c0_33, %c28] : memref<256x36xbf16, #tpu.memory_space<vmem>>, vector<256x4xbf16>
    tpu.vector_store %arg7[%c0_33, %c28], %69 {strides = array<i32>} : memref<256x36xbf16, #tpu.memory_space<vmem>>, vector<256x4xbf16>,
    %c34 = arith.constant 34 : index
    %c0_34 = arith.constant 0 : index
    %71 = vector.load %arg6[%c34, %c0_34] : memref<290x4xf32, #tpu.memory_space<vmem>>, vector<256x4xf32>
    %cst_35 = arith.constant 0.000000e+00 : f32
    %72 = vector.shape_cast %26 : vector<256x1xi1> to vector<256x1xi1>
    %73 = vector.broadcast %72 : vector<256x1xi1> to vector<256x4xi1>
    %74 = vector.broadcast %cst_35 : f32 to vector<256x4xf32>
    %75 = arith.select %73, %71, %74 : vector<256x4xi1>, vector<256x4xf32>
    %76 = arith.truncf %75 : vector<256x4xf32> to vector<256x4xbf16>
    %c0_36 = arith.constant 0 : index
    %c32_37 = arith.constant 32 : index
    %77 = vector.load %arg7[%c0_36, %c32_37] : memref<256x36xbf16, #tpu.memory_space<vmem>>, vector<256x4xbf16>
    tpu.vector_store %arg7[%c0_36, %c32_37], %76 {strides = array<i32>} : memref<256x36xbf16, #tpu.memory_space<vmem>>, vector<256x4xbf16>,
    %c0_38 = arith.constant 0 : index
    %c0_39 = arith.constant 0 : index
    %78 = vector.load %arg7[%c0_38, %c0_39] : memref<256x36xbf16, #tpu.memory_space<vmem>>, vector<256x36xbf16>
    %c0_40 = arith.constant 0 : index
    %c0_41 = arith.constant 0 : index
    %79 = vector.load %arg2[%c0_40, %c0_41] : memref<36x32xbf16, #tpu.memory_space<vmem>>, vector<36x32xbf16>
    %cst_42 = arith.constant dense<0.000000e+00> : vector<256x32xf32>
    %80 = tpu.matmul %78, %79, %cst_42 {dimension_numbers = #tpu.dot_dimension_numbers<[1], [0], [0], [1], [0, 0, 1, 1], [], []>} : vector<256x36xbf16>, vector<36x32xbf16>, vector<256x32xf32> -> vector<256x32xf32>
    %c0_43 = arith.constant 0 : index
    %c0_44 = arith.constant 0 : index
    %81 = vector.load %arg3[%c0_43, %c0_44] : memref<1x32xf32, #tpu.memory_space<vmem>>, vector<1x32xf32>
    %82 = vector.broadcast %81 : vector<1x32xf32> to vector<256x32xf32>
    %83 = arith.addf %80, %82 : vector<256x32xf32>
    %84 = arith.truncf %83 : vector<256x32xf32> to vector<256x32xbf16>
    %c0_45 = arith.constant 0 : index
    %c0_46 = arith.constant 0 : index
    %85 = vector.load %arg4[%c0_45, %c0_46] : memref<256x32xbf16, #tpu.memory_space<vmem>>, vector<256x32xbf16>
    tpu.vector_store %arg4[%c0_45, %c0_46], %84 {strides = array<i32>} : memref<256x32xbf16, #tpu.memory_space<vmem>>, vector<256x32xbf16>,
    %cst_47 = arith.constant dense<0.000000e+00> : vector<32xf32>
    %86 = vector.multi_reduction <add>, %83, %cst_47 [0] : vector<256x32xf32> to vector<32xf32>
    %87 = vector.shape_cast %86 : vector<32xf32> to vector<1x32xf32>
    %88 = arith.mulf %83, %83 : vector<256x32xf32>
    %cst_48 = arith.constant dense<0.000000e+00> : vector<32xf32>
    %89 = vector.multi_reduction <add>, %88, %cst_48 [0] : vector<256x32xf32> to vector<32xf32>
    %90 = vector.shape_cast %89 : vector<32xf32> to vector<1x32xf32>
    %91 = tpu.concatenate %87, %90 in 0 : vector<1x32xf32>, vector<1x32xf32> -> vector<2x32xf32>
    %c0_49 = arith.constant 0 : index
    %c0_50 = arith.constant 0 : index
    %c0_51 = arith.constant 0 : index
    %92 = vector.load %arg5[%c0_49, %c0_50, %c0_51] : memref<1x2x32xf32, #tpu.memory_space<vmem>>, vector<1x2x32xf32>
    %93 = vector.shape_cast %92 : vector<1x2x32xf32> to vector<2x32xf32>
    %94 = vector.shape_cast %91 : vector<2x32xf32> to vector<1x2x32xf32>
    tpu.vector_store %arg5[%c0_49, %c0_50, %c0_51], %94 {strides = array<i32>} : memref<1x2x32xf32, #tpu.memory_space<vmem>>, vector<1x2x32xf32>,
    return
  }
  func.func @transform_0(%arg0: i32) -> (i32, i32) {
    %c0_i32 = arith.constant 0 : i32
    %c0_i32_0 = arith.constant 0 : i32
    return %arg0, %c0_i32 : i32, i32
  }
  func.func @transform_1(%arg0: i32) -> (i32, i32) {
    %c0_i32 = arith.constant 0 : i32
    %c0_i32_0 = arith.constant 0 : i32
    %c0_i32_1 = arith.constant 0 : i32
    return %c0_i32, %c0_i32_0 : i32, i32
  }
  func.func @transform_2(%arg0: i32) -> (i32, i32) {
    %c0_i32 = arith.constant 0 : i32
    %c0_i32_0 = arith.constant 0 : i32
    %c0_i32_1 = arith.constant 0 : i32
    return %c0_i32, %c0_i32_0 : i32, i32
  }
  func.func @transform_3(%arg0: i32) -> (i32, i32) {
    %c0_i32 = arith.constant 0 : i32
    %c0_i32_0 = arith.constant 0 : i32
    return %arg0, %c0_i32 : i32, i32
  }
  func.func @transform_4(%arg0: i32) -> (i32, i32, i32) {
    %c0_i32 = arith.constant 0 : i32
    %c0_i32_0 = arith.constant 0 : i32
    %c0_i32_1 = arith.constant 0 : i32
    return %arg0, %c0_i32, %c0_i32_0 : i32, i32, i32
  }
}

module attributes {stable_mosaic.version = 11 : i64} {
  func.func @_bn_relu_conv_stats_kernel(%arg0: i32, %arg1: memref<256x32xbf16, #tpu.memory_space<vmem>>, %arg2: memref<1x32xf32, #tpu.memory_space<vmem>>, %arg3: memref<1x32xf32, #tpu.memory_space<vmem>>, %arg4: memref<288x32xbf16, #tpu.memory_space<vmem>>, %arg5: memref<1x32xf32, #tpu.memory_space<vmem>>, %arg6: memref<256x32xbf16, #tpu.memory_space<vmem>>, %arg7: memref<1x2x32xf32, #tpu.memory_space<vmem>>, %arg8: memref<290x32xf32, #tpu.memory_space<vmem>>, %arg9: memref<256x288xbf16, #tpu.memory_space<vmem>>) attributes {dimension_semantics = [#tpu.dimension_semantics<parallel>], iteration_bounds = array<i64: 2>, scalar_prefetch = 0 : i64, scratch_operands = 2 : i64, tpu.core_type = #tpu.core_type<tc>, window_params = [{transform_indices = @transform_0, window_bounds = array<i64: 256, 32>}, {pipeline_mode = #tpu.pipeline_mode<synchronous>, transform_indices = @transform_1, window_bounds = array<i64: 1, 32>}, {pipeline_mode = #tpu.pipeline_mode<synchronous>, transform_indices = @transform_2, window_bounds = array<i64: 1, 32>}, {pipeline_mode = #tpu.pipeline_mode<synchronous>, transform_indices = @transform_3, window_bounds = array<i64: 288, 32>}, {pipeline_mode = #tpu.pipeline_mode<synchronous>, transform_indices = @transform_4, window_bounds = array<i64: 1, 32>}, {transform_indices = @transform_5, window_bounds = array<i64: 256, 32>}, {transform_indices = @transform_6, window_bounds = array<i64: 1, 2, 32>}]} {
    %c0 = arith.constant 0 : index
    %c0_0 = arith.constant 0 : index
    %0 = vector.load %arg1[%c0, %c0_0] : memref<256x32xbf16, #tpu.memory_space<vmem>>, vector<256x32xbf16>
    %1 = arith.extf %0 : vector<256x32xbf16> to vector<256x32xf32>
    %c0_1 = arith.constant 0 : index
    %c0_2 = arith.constant 0 : index
    %2 = vector.load %arg2[%c0_1, %c0_2] : memref<1x32xf32, #tpu.memory_space<vmem>>, vector<1x32xf32>
    %3 = vector.broadcast %2 : vector<1x32xf32> to vector<256x32xf32>
    %4 = arith.mulf %1, %3 : vector<256x32xf32>
    %c0_3 = arith.constant 0 : index
    %c0_4 = arith.constant 0 : index
    %5 = vector.load %arg3[%c0_3, %c0_4] : memref<1x32xf32, #tpu.memory_space<vmem>>, vector<1x32xf32>
    %6 = vector.broadcast %5 : vector<1x32xf32> to vector<256x32xf32>
    %7 = arith.addf %4, %6 : vector<256x32xf32>
    %cst = arith.constant 0.000000e+00 : f32
    %8 = vector.broadcast %cst : f32 to vector<256x32xf32>
    %9 = arith.maximumf %7, %8 : vector<256x32xf32>
    %cst_5 = arith.constant 0.000000e+00 : f32
    %10 = vector.broadcast %cst_5 : f32 to vector<17x32xf32>
    %c0_6 = arith.constant 0 : index
    %c0_7 = arith.constant 0 : index
    %11 = vector.load %arg8[%c0_6, %c0_7] : memref<290x32xf32, #tpu.memory_space<vmem>>, vector<17x32xf32>
    tpu.vector_store %arg8[%c0_6, %c0_7], %10 {strides = array<i32>} : memref<290x32xf32, #tpu.memory_space<vmem>>, vector<17x32xf32>,
    %c273 = arith.constant 273 : index
    %c0_8 = arith.constant 0 : index
    %12 = vector.load %arg8[%c273, %c0_8] : memref<290x32xf32, #tpu.memory_space<vmem>>, vector<17x32xf32>
    tpu.vector_store %arg8[%c273, %c0_8], %10 {strides = array<i32>} : memref<290x32xf32, #tpu.memory_space<vmem>>, vector<17x32xf32>,
    %c17 = arith.constant 17 : index
    %c0_9 = arith.constant 0 : index
    %13 = vector.load %arg8[%c17, %c0_9] : memref<290x32xf32, #tpu.memory_space<vmem>>, vector<256x32xf32>
    tpu.vector_store %arg8[%c17, %c0_9], %9 {strides = array<i32>} : memref<290x32xf32, #tpu.memory_space<vmem>>, vector<256x32xf32>,
    %14 = tpu.iota {dimensions = array<i32: 0>} : vector<256x1xi32>
    %c16_i32 = arith.constant 16 : i32
    %c0_i32 = arith.constant 0 : i32
    %15 = arith.cmpi eq, %c16_i32, %c0_i32 : i32
    %c1_i32 = arith.constant 1 : i32
    %16 = arith.select %15, %c1_i32, %c16_i32 : i32
    %17 = vector.broadcast %16 : i32 to vector<256x1xi32>
    %18 = arith.remsi %14, %17 : vector<256x1xi32>
    %c0_i32_10 = arith.constant 0 : i32
    %19 = vector.broadcast %c0_i32_10 : i32 to vector<256x1xi32>
    %20 = arith.cmpi ne, %18, %19 : vector<256x1xi32>
    %c0_i32_11 = arith.constant 0 : i32
    %21 = vector.broadcast %c0_i32_11 : i32 to vector<256x1xi32>
    %22 = arith.cmpi slt, %18, %21 : vector<256x1xi32>
    %c0_i32_12 = arith.constant 0 : i32
    %23 = arith.cmpi slt, %16, %c0_i32_12 : i32
    %24 = vector.broadcast %23 : i1 to vector<256x1xi1>
    %25 = vector.broadcast %24 : vector<256x1xi1> to vector<256x1xi1>
    %26 = arith.xori %22, %25 : vector<256x1xi1>
    %27 = arith.andi %26, %20 : vector<256x1xi1>
    %28 = vector.broadcast %16 : i32 to vector<256x1xi32>
    %29 = arith.addi %18, %28 : vector<256x1xi32>
    %30 = arith.select %27, %29, %18 : vector<256x1xi1>, vector<256x1xi32>
    %c0_i32_13 = arith.constant 0 : i32
    %31 = vector.broadcast %c0_i32_13 : i32 to vector<256x1xi32>
    %32 = arith.cmpi ne, %30, %31 : vector<256x1xi32>
    %c15_i32 = arith.constant 15 : i32
    %33 = vector.broadcast %c15_i32 : i32 to vector<256x1xi32>
    %34 = arith.cmpi ne, %30, %33 : vector<256x1xi32>
    %c0_14 = arith.constant 0 : index
    %c0_15 = arith.constant 0 : index
    %35 = vector.load %arg8[%c0_14, %c0_15] : memref<290x32xf32, #tpu.memory_space<vmem>>, vector<256x32xf32>
    %cst_16 = arith.constant 0.000000e+00 : f32
    %36 = vector.shape_cast %32 : vector<256x1xi1> to vector<256x1xi1>
    %37 = vector.broadcast %36 : vector<256x1xi1> to vector<256x32xi1>
    %38 = vector.broadcast %cst_16 : f32 to vector<256x32xf32>
    %39 = arith.select %37, %35, %38 : vector<256x32xi1>, vector<256x32xf32>
    %40 = arith.truncf %39 : vector<256x32xf32> to vector<256x32xbf16>
    %c0_17 = arith.constant 0 : index
    %c0_18 = arith.constant 0 : index
    %41 = vector.load %arg9[%c0_17, %c0_18] : memref<256x288xbf16, #tpu.memory_space<vmem>>, vector<256x32xbf16>
    tpu.vector_store %arg9[%c0_17, %c0_18], %40 {strides = array<i32>} : memref<256x288xbf16, #tpu.memory_space<vmem>>, vector<256x32xbf16>,
    %c1 = arith.constant 1 : index
    %c0_19 = arith.constant 0 : index
    %42 = vector.load %arg8[%c1, %c0_19] : memref<290x32xf32, #tpu.memory_space<vmem>>, vector<256x32xf32>
    %43 = arith.truncf %42 : vector<256x32xf32> to vector<256x32xbf16>
    %c0_20 = arith.constant 0 : index
    %c32 = arith.constant 32 : index
    %44 = vector.load %arg9[%c0_20, %c32] : memref<256x288xbf16, #tpu.memory_space<vmem>>, vector<256x32xbf16>
    tpu.vector_store %arg9[%c0_20, %c32], %43 {strides = array<i32>} : memref<256x288xbf16, #tpu.memory_space<vmem>>, vector<256x32xbf16>,
    %c2 = arith.constant 2 : index
    %c0_21 = arith.constant 0 : index
    %45 = vector.load %arg8[%c2, %c0_21] : memref<290x32xf32, #tpu.memory_space<vmem>>, vector<256x32xf32>
    %cst_22 = arith.constant 0.000000e+00 : f32
    %46 = vector.shape_cast %34 : vector<256x1xi1> to vector<256x1xi1>
    %47 = vector.broadcast %46 : vector<256x1xi1> to vector<256x32xi1>
    %48 = vector.broadcast %cst_22 : f32 to vector<256x32xf32>
    %49 = arith.select %47, %45, %48 : vector<256x32xi1>, vector<256x32xf32>
    %50 = arith.truncf %49 : vector<256x32xf32> to vector<256x32xbf16>
    %c0_23 = arith.constant 0 : index
    %c64 = arith.constant 64 : index
    %51 = vector.load %arg9[%c0_23, %c64] : memref<256x288xbf16, #tpu.memory_space<vmem>>, vector<256x32xbf16>
    tpu.vector_store %arg9[%c0_23, %c64], %50 {strides = array<i32>} : memref<256x288xbf16, #tpu.memory_space<vmem>>, vector<256x32xbf16>,
    %c16 = arith.constant 16 : index
    %c0_24 = arith.constant 0 : index
    %52 = vector.load %arg8[%c16, %c0_24] : memref<290x32xf32, #tpu.memory_space<vmem>>, vector<256x32xf32>
    %cst_25 = arith.constant 0.000000e+00 : f32
    %53 = vector.shape_cast %32 : vector<256x1xi1> to vector<256x1xi1>
    %54 = vector.broadcast %53 : vector<256x1xi1> to vector<256x32xi1>
    %55 = vector.broadcast %cst_25 : f32 to vector<256x32xf32>
    %56 = arith.select %54, %52, %55 : vector<256x32xi1>, vector<256x32xf32>
    %57 = arith.truncf %56 : vector<256x32xf32> to vector<256x32xbf16>
    %c0_26 = arith.constant 0 : index
    %c96 = arith.constant 96 : index
    %58 = vector.load %arg9[%c0_26, %c96] : memref<256x288xbf16, #tpu.memory_space<vmem>>, vector<256x32xbf16>
    tpu.vector_store %arg9[%c0_26, %c96], %57 {strides = array<i32>} : memref<256x288xbf16, #tpu.memory_space<vmem>>, vector<256x32xbf16>,
    %c17_27 = arith.constant 17 : index
    %c0_28 = arith.constant 0 : index
    %59 = vector.load %arg8[%c17_27, %c0_28] : memref<290x32xf32, #tpu.memory_space<vmem>>, vector<256x32xf32>
    %60 = arith.truncf %59 : vector<256x32xf32> to vector<256x32xbf16>
    %c0_29 = arith.constant 0 : index
    %c128 = arith.constant 128 : index
    %61 = vector.load %arg9[%c0_29, %c128] : memref<256x288xbf16, #tpu.memory_space<vmem>>, vector<256x32xbf16>
    tpu.vector_store %arg9[%c0_29, %c128], %60 {strides = array<i32>} : memref<256x288xbf16, #tpu.memory_space<vmem>>, vector<256x32xbf16>,
    %c18 = arith.constant 18 : index
    %c0_30 = arith.constant 0 : index
    %62 = vector.load %arg8[%c18, %c0_30] : memref<290x32xf32, #tpu.memory_space<vmem>>, vector<256x32xf32>
    %cst_31 = arith.constant 0.000000e+00 : f32
    %63 = vector.shape_cast %34 : vector<256x1xi1> to vector<256x1xi1>
    %64 = vector.broadcast %63 : vector<256x1xi1> to vector<256x32xi1>
    %65 = vector.broadcast %cst_31 : f32 to vector<256x32xf32>
    %66 = arith.select %64, %62, %65 : vector<256x32xi1>, vector<256x32xf32>
    %67 = arith.truncf %66 : vector<256x32xf32> to vector<256x32xbf16>
    %c0_32 = arith.constant 0 : index
    %c160 = arith.constant 160 : index
    %68 = vector.load %arg9[%c0_32, %c160] : memref<256x288xbf16, #tpu.memory_space<vmem>>, vector<256x32xbf16>
    tpu.vector_store %arg9[%c0_32, %c160], %67 {strides = array<i32>} : memref<256x288xbf16, #tpu.memory_space<vmem>>, vector<256x32xbf16>,
    %c32_33 = arith.constant 32 : index
    %c0_34 = arith.constant 0 : index
    %69 = vector.load %arg8[%c32_33, %c0_34] : memref<290x32xf32, #tpu.memory_space<vmem>>, vector<256x32xf32>
    %cst_35 = arith.constant 0.000000e+00 : f32
    %70 = vector.shape_cast %32 : vector<256x1xi1> to vector<256x1xi1>
    %71 = vector.broadcast %70 : vector<256x1xi1> to vector<256x32xi1>
    %72 = vector.broadcast %cst_35 : f32 to vector<256x32xf32>
    %73 = arith.select %71, %69, %72 : vector<256x32xi1>, vector<256x32xf32>
    %74 = arith.truncf %73 : vector<256x32xf32> to vector<256x32xbf16>
    %c0_36 = arith.constant 0 : index
    %c192 = arith.constant 192 : index
    %75 = vector.load %arg9[%c0_36, %c192] : memref<256x288xbf16, #tpu.memory_space<vmem>>, vector<256x32xbf16>
    tpu.vector_store %arg9[%c0_36, %c192], %74 {strides = array<i32>} : memref<256x288xbf16, #tpu.memory_space<vmem>>, vector<256x32xbf16>,
    %c33 = arith.constant 33 : index
    %c0_37 = arith.constant 0 : index
    %76 = vector.load %arg8[%c33, %c0_37] : memref<290x32xf32, #tpu.memory_space<vmem>>, vector<256x32xf32>
    %77 = arith.truncf %76 : vector<256x32xf32> to vector<256x32xbf16>
    %c0_38 = arith.constant 0 : index
    %c224 = arith.constant 224 : index
    %78 = vector.load %arg9[%c0_38, %c224] : memref<256x288xbf16, #tpu.memory_space<vmem>>, vector<256x32xbf16>
    tpu.vector_store %arg9[%c0_38, %c224], %77 {strides = array<i32>} : memref<256x288xbf16, #tpu.memory_space<vmem>>, vector<256x32xbf16>,
    %c34 = arith.constant 34 : index
    %c0_39 = arith.constant 0 : index
    %79 = vector.load %arg8[%c34, %c0_39] : memref<290x32xf32, #tpu.memory_space<vmem>>, vector<256x32xf32>
    %cst_40 = arith.constant 0.000000e+00 : f32
    %80 = vector.shape_cast %34 : vector<256x1xi1> to vector<256x1xi1>
    %81 = vector.broadcast %80 : vector<256x1xi1> to vector<256x32xi1>
    %82 = vector.broadcast %cst_40 : f32 to vector<256x32xf32>
    %83 = arith.select %81, %79, %82 : vector<256x32xi1>, vector<256x32xf32>
    %84 = arith.truncf %83 : vector<256x32xf32> to vector<256x32xbf16>
    %c0_41 = arith.constant 0 : index
    %c256 = arith.constant 256 : index
    %85 = vector.load %arg9[%c0_41, %c256] : memref<256x288xbf16, #tpu.memory_space<vmem>>, vector<256x32xbf16>
    tpu.vector_store %arg9[%c0_41, %c256], %84 {strides = array<i32>} : memref<256x288xbf16, #tpu.memory_space<vmem>>, vector<256x32xbf16>,
    %c0_42 = arith.constant 0 : index
    %c0_43 = arith.constant 0 : index
    %86 = vector.load %arg9[%c0_42, %c0_43] : memref<256x288xbf16, #tpu.memory_space<vmem>>, vector<256x288xbf16>
    %c0_44 = arith.constant 0 : index
    %c0_45 = arith.constant 0 : index
    %87 = vector.load %arg4[%c0_44, %c0_45] : memref<288x32xbf16, #tpu.memory_space<vmem>>, vector<288x32xbf16>
    %cst_46 = arith.constant dense<0.000000e+00> : vector<256x32xf32>
    %88 = tpu.matmul %86, %87, %cst_46 {dimension_numbers = #tpu.dot_dimension_numbers<[1], [0], [0], [1], [0, 0, 1, 1], [], []>} : vector<256x288xbf16>, vector<288x32xbf16>, vector<256x32xf32> -> vector<256x32xf32>
    %c0_47 = arith.constant 0 : index
    %c0_48 = arith.constant 0 : index
    %89 = vector.load %arg5[%c0_47, %c0_48] : memref<1x32xf32, #tpu.memory_space<vmem>>, vector<1x32xf32>
    %90 = vector.broadcast %89 : vector<1x32xf32> to vector<256x32xf32>
    %91 = arith.addf %88, %90 : vector<256x32xf32>
    %92 = arith.truncf %91 : vector<256x32xf32> to vector<256x32xbf16>
    %c0_49 = arith.constant 0 : index
    %c0_50 = arith.constant 0 : index
    %93 = vector.load %arg6[%c0_49, %c0_50] : memref<256x32xbf16, #tpu.memory_space<vmem>>, vector<256x32xbf16>
    tpu.vector_store %arg6[%c0_49, %c0_50], %92 {strides = array<i32>} : memref<256x32xbf16, #tpu.memory_space<vmem>>, vector<256x32xbf16>,
    %cst_51 = arith.constant dense<0.000000e+00> : vector<32xf32>
    %94 = vector.multi_reduction <add>, %91, %cst_51 [0] : vector<256x32xf32> to vector<32xf32>
    %95 = vector.shape_cast %94 : vector<32xf32> to vector<1x32xf32>
    %96 = arith.mulf %91, %91 : vector<256x32xf32>
    %cst_52 = arith.constant dense<0.000000e+00> : vector<32xf32>
    %97 = vector.multi_reduction <add>, %96, %cst_52 [0] : vector<256x32xf32> to vector<32xf32>
    %98 = vector.shape_cast %97 : vector<32xf32> to vector<1x32xf32>
    %99 = tpu.concatenate %95, %98 in 0 : vector<1x32xf32>, vector<1x32xf32> -> vector<2x32xf32>
    %c0_53 = arith.constant 0 : index
    %c0_54 = arith.constant 0 : index
    %c0_55 = arith.constant 0 : index
    %100 = vector.load %arg7[%c0_53, %c0_54, %c0_55] : memref<1x2x32xf32, #tpu.memory_space<vmem>>, vector<1x2x32xf32>
    %101 = vector.shape_cast %100 : vector<1x2x32xf32> to vector<2x32xf32>
    %102 = vector.shape_cast %99 : vector<2x32xf32> to vector<1x2x32xf32>
    tpu.vector_store %arg7[%c0_53, %c0_54, %c0_55], %102 {strides = array<i32>} : memref<1x2x32xf32, #tpu.memory_space<vmem>>, vector<1x2x32xf32>,
    return
  }
  func.func @transform_0(%arg0: i32) -> (i32, i32) {
    %c0_i32 = arith.constant 0 : i32
    %c0_i32_0 = arith.constant 0 : i32
    return %arg0, %c0_i32 : i32, i32
  }
  func.func @transform_1(%arg0: i32) -> (i32, i32) {
    %c0_i32 = arith.constant 0 : i32
    %c0_i32_0 = arith.constant 0 : i32
    %c0_i32_1 = arith.constant 0 : i32
    return %c0_i32, %c0_i32_0 : i32, i32
  }
  func.func @transform_2(%arg0: i32) -> (i32, i32) {
    %c0_i32 = arith.constant 0 : i32
    %c0_i32_0 = arith.constant 0 : i32
    %c0_i32_1 = arith.constant 0 : i32
    return %c0_i32, %c0_i32_0 : i32, i32
  }
  func.func @transform_3(%arg0: i32) -> (i32, i32) {
    %c0_i32 = arith.constant 0 : i32
    %c0_i32_0 = arith.constant 0 : i32
    %c0_i32_1 = arith.constant 0 : i32
    return %c0_i32, %c0_i32_0 : i32, i32
  }
  func.func @transform_4(%arg0: i32) -> (i32, i32) {
    %c0_i32 = arith.constant 0 : i32
    %c0_i32_0 = arith.constant 0 : i32
    %c0_i32_1 = arith.constant 0 : i32
    return %c0_i32, %c0_i32_0 : i32, i32
  }
  func.func @transform_5(%arg0: i32) -> (i32, i32) {
    %c0_i32 = arith.constant 0 : i32
    %c0_i32_0 = arith.constant 0 : i32
    return %arg0, %c0_i32 : i32, i32
  }
  func.func @transform_6(%arg0: i32) -> (i32, i32, i32) {
    %c0_i32 = arith.constant 0 : i32
    %c0_i32_0 = arith.constant 0 : i32
    %c0_i32_1 = arith.constant 0 : i32
    return %arg0, %c0_i32, %c0_i32_0 : i32, i32, i32
  }
}

module attributes {stable_mosaic.version = 11 : i64} {
  func.func @_bn_relu_kernel(%arg0: i32, %arg1: memref<256x32xbf16, #tpu.memory_space<vmem>>, %arg2: memref<1x32xf32, #tpu.memory_space<vmem>>, %arg3: memref<1x32xf32, #tpu.memory_space<vmem>>, %arg4: memref<256x32xf32, #tpu.memory_space<vmem>>) attributes {dimension_semantics = [#tpu.dimension_semantics<parallel>], iteration_bounds = array<i64: 2>, scalar_prefetch = 0 : i64, scratch_operands = 0 : i64, tpu.core_type = #tpu.core_type<tc>, window_params = [{transform_indices = @transform_0, window_bounds = array<i64: 256, 32>}, {pipeline_mode = #tpu.pipeline_mode<synchronous>, transform_indices = @transform_1, window_bounds = array<i64: 1, 32>}, {pipeline_mode = #tpu.pipeline_mode<synchronous>, transform_indices = @transform_2, window_bounds = array<i64: 1, 32>}, {transform_indices = @transform_3, window_bounds = array<i64: 256, 32>}]} {
    %c0 = arith.constant 0 : index
    %c0_0 = arith.constant 0 : index
    %0 = vector.load %arg1[%c0, %c0_0] : memref<256x32xbf16, #tpu.memory_space<vmem>>, vector<256x32xbf16>
    %1 = arith.extf %0 : vector<256x32xbf16> to vector<256x32xf32>
    %c0_1 = arith.constant 0 : index
    %c0_2 = arith.constant 0 : index
    %2 = vector.load %arg2[%c0_1, %c0_2] : memref<1x32xf32, #tpu.memory_space<vmem>>, vector<1x32xf32>
    %3 = vector.broadcast %2 : vector<1x32xf32> to vector<256x32xf32>
    %4 = arith.mulf %1, %3 : vector<256x32xf32>
    %c0_3 = arith.constant 0 : index
    %c0_4 = arith.constant 0 : index
    %5 = vector.load %arg3[%c0_3, %c0_4] : memref<1x32xf32, #tpu.memory_space<vmem>>, vector<1x32xf32>
    %6 = vector.broadcast %5 : vector<1x32xf32> to vector<256x32xf32>
    %7 = arith.addf %4, %6 : vector<256x32xf32>
    %cst = arith.constant 0.000000e+00 : f32
    %8 = vector.broadcast %cst : f32 to vector<256x32xf32>
    %9 = arith.maximumf %7, %8 : vector<256x32xf32>
    %c0_5 = arith.constant 0 : index
    %c0_6 = arith.constant 0 : index
    %10 = vector.load %arg4[%c0_5, %c0_6] : memref<256x32xf32, #tpu.memory_space<vmem>>, vector<256x32xf32>
    tpu.vector_store %arg4[%c0_5, %c0_6], %9 {strides = array<i32>} : memref<256x32xf32, #tpu.memory_space<vmem>>, vector<256x32xf32>,
    return
  }
  func.func @transform_0(%arg0: i32) -> (i32, i32) {
    %c0_i32 = arith.constant 0 : i32
    %c0_i32_0 = arith.constant 0 : i32
    return %arg0, %c0_i32 : i32, i32
  }
  func.func @transform_1(%arg0: i32) -> (i32, i32) {
    %c0_i32 = arith.constant 0 : i32
    %c0_i32_0 = arith.constant 0 : i32
    %c0_i32_1 = arith.constant 0 : i32
    return %c0_i32, %c0_i32_0 : i32, i32
  }
  func.func @transform_2(%arg0: i32) -> (i32, i32) {
    %c0_i32 = arith.constant 0 : i32
    %c0_i32_0 = arith.constant 0 : i32
    %c0_i32_1 = arith.constant 0 : i32
    return %c0_i32, %c0_i32_0 : i32, i32
  }
  func.func @transform_3(%arg0: i32) -> (i32, i32) {
    %c0_i32 = arith.constant 0 : i32
    %c0_i32_0 = arith.constant 0 : i32
    return %arg0, %c0_i32 : i32, i32
  }
}

</mosaic_0001>

<llo_original>
// kernel: double_conv_fwd.5
$region0: #{double_conv_fwd.5}
  #allocation0 [shape = 'u32[]', space=smem, size = 0x4, offset = 0x4, fixed_abs, tag = 'smem constant byte address 0x4 - core index']
  #allocation1 [shape = 'u32[144,128]{1,0:T(1,128)}', space=vmem, size = 0x12000, scoped, tag = 'internal scratch']
  %s0 = inlined_call_operand.vmem [shape: bf16[512,32], index: 0, kind: input, shape index: {}]
  %s1 = inlined_call_operand.vmem [shape: f32[1,32], index: 1, kind: input, shape index: {}]
  %s2 = inlined_call_operand.vmem [shape: f32[1,32], index: 2, kind: input, shape index: {}]
  %s3 = inlined_call_operand.hbm [shape: f32[512,32], index: 3, kind: output, shape index: {}]
  %s4 = sld [smem:[#allocation0]]
  $region45: #{double_conv_fwd.5} parent=0
    _
  %s6 = ssub.s32 1, %s4
  %s7 = scalar_select 0, %s6, %s4
  $region1: #{double_conv_fwd.5} parent=0
    #allocation2 [shape = 'u8[262144]{0}', space=vmem, size = 0x40000, scoped, tag = 'output window, operand 0']
    #allocation3 [shape = 's32[2]{0}', space=sflag, size = 0x8, scoped, tag = 'scoped memory for double_conv_fwd.5']
    %8 = vsyncpa [#allocation3], 0
    %s9 = scalar_lea.sflag [#allocation3], 1
    %10 = vsyncpa %s9, 0
    loop: start=0, step=1, limit=4
    $region2: #{double_conv_fwd.5} parent=1 // loop_pre_header
      _
    $region3: #{double_conv_fwd.5} parent=1 // loop_header
      %s12 = sphi 0, %s16
      %p13 = scmp.ge.s32.totalorder %s12, 4
      %s22 = sphi 0, %s24
      %s25 = sphi 0, %s22
      %s26 = sphi 0, %s25
      %s42 = sphi 0, %s26
      %s46 = sphi 0, %s46
      %s48 = sphi 0, %s46
      %s49 = sphi 0, %s48
      %s63 = sphi 0, %s49
      %s67 = sphi 0, %s67
      %s69 = sphi 0, %s67
      %s70 = sphi 0, %s69
      %s84 = sphi 0, %s70
      %s90 = sphi 0, %s92
      %s93 = sphi 0, %s90
      %s94 = sphi 0, %s93
      %s110 = sphi 0, %s94
    $region4: #{double_conv_fwd.5} parent=1 // loop_header_branch
      %15 = sbr.rel (%p13) target = $region8
    $region5: #{double_conv_fwd.5} parent=1 // loop_body
      %s17 = ssub.s32 %s12, 1
      %s18 = ssub.s32 %s12, 2
      %s19 = sadd.s32 %s12, 1
      %s20 = ssub.s32 %s12, %s19
      %p21 = scmp.eq.s32.totalorder %s20, 0
      %s23 = sadd.s32 %s22, 1
      %s24 = scalar_select %p21, %s22, %s23
      %p27 = pneg %p21
      %p28 = scmp.eq.s32.totalorder %s12, 1
      %p29 = por %p27, %p28
      %p30 = scmp.ne.s32.totalorder %s22, %s25
      %p31 = scmp.eq.s32.totalorder %s12, 0
      %p32 = por %p30, %p31
      %p33 = scmp.ne.s32.totalorder %s22, %s25
      %p34 = scmp.eq.s32.totalorder %s17, 1
      %p35 = por %p33, %p34
      %p36 = scmp.ne.s32.totalorder %s25, %s26
      %p37 = scmp.eq.s32.totalorder %s17, 0
      %p38 = por %p36, %p37
      %p39 = scmp.ne.s32.totalorder %s25, %s26
      %p40 = scmp.eq.s32.totalorder %s18, 1
      %p41 = por %p39, %p40
      %p43 = scmp.ne.s32.totalorder %s26, %s42
      %p44 = scmp.eq.s32.totalorder %s18, 0
      %p45 = por %p43, %p44
      %s47 = sadd.s32 %s46, 1
      %p50 = scmp.eq.s32.totalorder %s12, 1
      %p51 = scmp.ne.s32.totalorder %s46, %s48
      %p52 = scmp.eq.s32.totalorder %s12, 0
      %p53 = por %p51, %p52
      %p54 = scmp.ne.s32.totalorder %s46, %s48
      %p55 = scmp.eq.s32.totalorder %s17, 1
      %p56 = por %p54, %p55
      %p57 = scmp.ne.s32.totalorder %s48, %s49
      %p58 = scmp.eq.s32.totalorder %s17, 0
      %p59 = por %p57, %p58
      %p60 = scmp.ne.s32.totalorder %s48, %s49
      %p61 = scmp.eq.s32.totalorder %s18, 1
      %p62 = por %p60, %p61
      %p64 = scmp.ne.s32.totalorder %s49, %s63
      %p65 = scmp.eq.s32.totalorder %s18, 0
      %p66 = por %p64, %p65
      %s68 = sadd.s32 %s67, 1
      %p71 = scmp.eq.s32.totalorder %s12, 1
      %p72 = scmp.ne.s32.totalorder %s67, %s69
      %p73 = scmp.eq.s32.totalorder %s12, 0
      %p74 = por %p72, %p73
      %p75 = scmp.ne.s32.totalorder %s67, %s69
      %p76 = scmp.eq.s32.totalorder %s17, 1
      %p77 = por %p75, %p76
      %p78 = scmp.ne.s32.totalorder %s69, %s70
      %p79 = scmp.eq.s32.totalorder %s17, 0
      %p80 = por %p78, %p79
      %p81 = scmp.ne.s32.totalorder %s69, %s70
      %p82 = scmp.eq.s32.totalorder %s18, 1
      %p83 = por %p81, %p82
      %p85 = scmp.ne.s32.totalorder %s70, %s84
      %p86 = scmp.eq.s32.totalorder %s18, 0
      %p87 = por %p85, %p86
      %s88 = ssub.s32 %s12, %s19
      %p89 = scmp.eq.s32.totalorder %s88, 0
      %s91 = sadd.s32 %s90, 1
      %s92 = scalar_select %p89, %s90, %s91
      %p95 = pneg %p89
      %p96 = scmp.eq.s32.totalorder %s12, 1
      %p97 = por %p95, %p96
      %p98 = scmp.ne.s32.totalorder %s90, %s93
      %p99 = scmp.eq.s32.totalorder %s12, 0
      %p100 = por %p98, %p99
      %p101 = scmp.ne.s32.totalorder %s90, %s93
      %p102 = scmp.eq.s32.totalorder %s17, 1
      %p103 = por %p101, %p102
      %p104 = scmp.ne.s32.totalorder %s93, %s94
      %p105 = scmp.eq.s32.totalorder %s17, 0
      %p106 = por %p104, %p105
      %p107 = scmp.ne.s32.totalorder %s93, %s94
      %p108 = scmp.eq.s32.totalorder %s18, 1
      %p109 = por %p107, %p108
      %p111 = scmp.ne.s32.totalorder %s94, %s110
      %p112 = scmp.eq.s32.totalorder %s18, 0
      %p113 = por %p111, %p112
      %p114 = scmp.le.s32.totalorder 1, %s12
      %p115 = scmp.lt.s32.totalorder %s12, 3
      %p116 = pnand %p114, %p115
      %p117 = pneg %p116
      // Predicated region
      $region9: #{double_conv_fwd.5} parent=5 // pred_check
        _
      $region10: #{double_conv_fwd.5} parent=5 // pred_check_branch
        %119 = sbr.rel (%p116) target = $region12
      $region11: #{double_conv_fwd.5} parent=5 // pred_region
        %s120 = ssub.s32 %s12, 1
        // Predicated region
        $region13: #{double_conv_fwd.5} parent=11 // pred_check
          %p121 = pneg %p59
        $region14: #{double_conv_fwd.5} parent=11 // pred_check_branch
          %123 = sbr.rel (%p121) target = $region16
        $region15: #{double_conv_fwd.5} parent=11 // pred_region
          _
        $region16: #{double_conv_fwd.5} parent=11 // pred_fallthru
          _
        // Predicated region
        $region17: #{double_conv_fwd.5} parent=11 // pred_check
          %p124 = pneg %p80
        $region18: #{double_conv_fwd.5} parent=11 // pred_check_branch
          %126 = sbr.rel (%p124) target = $region20
        $region19: #{double_conv_fwd.5} parent=11 // pred_region
          _
        $region20: #{double_conv_fwd.5} parent=11 // pred_fallthru
          _
      $region12: #{double_conv_fwd.5} parent=5 // pred_fallthru
        _
      %p127 = scmp.lt.s32.totalorder %s12, 2
      // Predicated region
      $region21: #{double_conv_fwd.5} parent=5 // pred_check
        %p128 = pneg %p127
      $region22: #{double_conv_fwd.5} parent=5 // pred_check_branch
        %130 = sbr.rel (%p128) target = $region24
      $region23: #{double_conv_fwd.5} parent=5 // pred_region
        // Predicated region
        $region25: #{double_conv_fwd.5} parent=23 // pred_check
          %p131 = pneg %p32
        $region26: #{double_conv_fwd.5} parent=23 // pred_check_branch
          %133 = sbr.rel (%p131) target = $region28
        $region27: #{double_conv_fwd.5} parent=23 // pred_region
          %s134 = smul.u32 32, %s12
          %p135 = scmp.lt.s32.totalorder %s134, 63
          %s136 = scalar_select %p135, %s134, 63
          %s137 = smul.addr %s136, 4
          %s138 = scalar_lea.vmem %s0, %s137
          %s139 = smul.u32 32, %s12
        $region28: #{double_conv_fwd.5} parent=23 // pred_fallthru
          _
      $region24: #{double_conv_fwd.5} parent=5 // pred_fallthru
        _
      %p140 = scmp.le.s32.totalorder 1, %s12
      %p141 = scmp.lt.s32.totalorder %s12, 3
      %p142 = pnand %p140, %p141
      %p143 = pneg %p142
      // Predicated region
      $region29: #{double_conv_fwd.5} parent=5 // pred_check
        _
      $region30: #{double_conv_fwd.5} parent=5 // pred_check_branch
        %145 = sbr.rel (%p142) target = $region32
      $region31: #{double_conv_fwd.5} parent=5 // pred_region
        %s146 = ssub.s32 %s12, 1
        %s147 = smul.u32 32, %s17
        %p148 = scmp.lt.s32.totalorder %s147, 63
        %s149 = scalar_select %p148, %s147, 63
        %s150 = smul.addr %s149, 4
        %s151 = scalar_lea.vmem %s0, %s150
        %p152 = pneg %p38
        %p153 = pneg %p35
        %p154 = pneg %p59
        %p155 = pneg %p56
        %p156 = pneg %p80
        %p157 = pneg %p77
        %p158 = pneg %p106
        %p159 = pneg %p103
        %s160 = sand.u32 %s93, 1
        %s161 = scalar_lea.sflag [#allocation3], %s160
        %s162 = sand.u32 %s93, 1
        %s163 = smul.addr %s162, 256
        %s164 = scalar_lea.vmem [#allocation2], %s163
        %s165 = smul.u32 32, %s17
        %p166 = scmp.lt.s32.totalorder %s165, 63
        %s167 = scalar_select %p166, %s165, 63
        %s168 = smul.addr %s167, 4
        %s169 = scalar_lea.vmem %s0, %s168
        %s170 = smul.u32 32, %s17
        %s171 = smul.u32 32, %s17
        %v172 = vld [vmem:[%s169] sm:$0xf]
        %v173 = vld [vmem:[%s169 + $0x4] sm:$0xf]
        %v174 = vld [vmem:[%s169 + $0x8] sm:$0xf]
        %v175 = vld [vmem:[%s169 + $0xc] sm:$0xf]
        %v176 = vld [vmem:[%s169 + $0x10] sm:$0xf]
        %v177 = vld [vmem:[%s169 + $0x14] sm:$0xf]
        %v178 = vld [vmem:[%s169 + $0x18] sm:$0xf]
        %v179 = vld [vmem:[%s169 + $0x1c] sm:$0xf]
        %v180 = vld [vmem:[%s169 + $0x20] sm:$0xf]
        %v181 = vld [vmem:[%s169 + $0x24] sm:$0xf]
        %v182 = vld [vmem:[%s169 + $0x28] sm:$0xf]
        %v183 = vld [vmem:[%s169 + $0x2c] sm:$0xf]
        %v184 = vld [vmem:[%s169 + $0x30] sm:$0xf]
        %v185 = vld [vmem:[%s169 + $0x34] sm:$0xf]
        %v186 = vld [vmem:[%s169 + $0x38] sm:$0xf]
        %v187 = vld [vmem:[%s169 + $0x3c] sm:$0xf]
        %v188 = vld [vmem:[%s169 + $0x40] sm:$0xf]
        %v189 = vld [vmem:[%s169 + $0x44] sm:$0xf]
        %v190 = vld [vmem:[%s169 + $0x48] sm:$0xf]
        %v191 = vld [vmem:[%s169 + $0x4c] sm:$0xf]
        %v192 = vld [vmem:[%s169 + $0x50] sm:$0xf]
        %v193 = vld [vmem:[%s169 + $0x54] sm:$0xf]
        %v194 = vld [vmem:[%s169 + $0x58] sm:$0xf]
        %v195 = vld [vmem:[%s169 + $0x5c] sm:$0xf]
        %v196 = vld [vmem:[%s169 + $0x60] sm:$0xf]
        %v197 = vld [vmem:[%s169 + $0x64] sm:$0xf]
        %v198 = vld [vmem:[%s169 + $0x68] sm:$0xf]
        %v199 = vld [vmem:[%s169 + $0x6c] sm:$0xf]
        %v200 = vld [vmem:[%s169 + $0x70] sm:$0xf]
        %v201 = vld [vmem:[%s169 + $0x74] sm:$0xf]
        %v202 = vld [vmem:[%s169 + $0x78] sm:$0xf]
        %v203 = vld [vmem:[%s169 + $0x7c] sm:$0xf]
        %v204 = vunpack.c.l.bf16 %v172
        %v205 = vunpack.c.l.bf16 %v173
        %v206 = vunpack.c.l.bf16 %v174
        %v207 = vunpack.c.l.bf16 %v175
        %v208 = vunpack.c.l.bf16 %v176
        %v209 = vunpack.c.l.bf16 %v177
        %v210 = vunpack.c.l.bf16 %v178
        %v211 = vunpack.c.l.bf16 %v179
        %v212 = vunpack.c.l.bf16 %v180
        %v213 = vunpack.c.l.bf16 %v181
        %v214 = vunpack.c.l.bf16 %v182
        %v215 = vunpack.c.l.bf16 %v183
        %v216 = vunpack.c.l.bf16 %v184
        %v217 = vunpack.c.l.bf16 %v185
        %v218 = vunpack.c.l.bf16 %v186
        %v219 = vunpack.c.l.bf16 %v187
        %v220 = vunpack.c.l.bf16 %v188
        %v221 = vunpack.c.l.bf16 %v189
        %v222 = vunpack.c.l.bf16 %v190
        %v223 = vunpack.c.l.bf16 %v191
        %v224 = vunpack.c.l.bf16 %v192
        %v225 = vunpack.c.l.bf16 %v193
        %v226 = vunpack.c.l.bf16 %v194
        %v227 = vunpack.c.l.bf16 %v195
        %v228 = vunpack.c.l.bf16 %v196
        %v229 = vunpack.c.l.bf16 %v197
        %v230 = vunpack.c.l.bf16 %v198
        %v231 = vunpack.c.l.bf16 %v199
        %v232 = vunpack.c.l.bf16 %v200
        %v233 = vunpack.c.l.bf16 %v201
        %v234 = vunpack.c.l.bf16 %v202
        %v235 = vunpack.c.l.bf16 %v203
        %v236 = vld [vmem:[%s1] sm:$0x1]
        %v238 = vlaneseq
        %v239 = vshrl.u32 %v238, 7
        %v240 = vsub.s32 0, %v239
        %v241 = vrot.slane %v236, %v240
        %v243 = vmul.f32 %v204, %v241
        %v244 = vmul.f32 %v205, %v241
        %v245 = vmul.f32 %v206, %v241
        %v246 = vmul.f32 %v207, %v241
        %v247 = vmul.f32 %v208, %v241
        %v248 = vmul.f32 %v209, %v241
        %v249 = vmul.f32 %v210, %v241
        %v250 = vmul.f32 %v211, %v241
        %v251 = vmul.f32 %v212, %v241
        %v252 = vmul.f32 %v213, %v241
        %v253 = vmul.f32 %v214, %v241
        %v254 = vmul.f32 %v215, %v241
        %v255 = vmul.f32 %v216, %v241
        %v256 = vmul.f32 %v217, %v241
        %v257 = vmul.f32 %v218, %v241
        %v258 = vmul.f32 %v219, %v241
        %v259 = vmul.f32 %v220, %v241
        %v260 = vmul.f32 %v221, %v241
        %v261 = vmul.f32 %v222, %v241
        %v262 = vmul.f32 %v223, %v241
        %v263 = vmul.f32 %v224, %v241
        %v264 = vmul.f32 %v225, %v241
        %v265 = vmul.f32 %v226, %v241
        %v266 = vmul.f32 %v227, %v241
        %v267 = vmul.f32 %v228, %v241
        %v268 = vmul.f32 %v229, %v241
        %v269 = vmul.f32 %v230, %v241
        %v270 = vmul.f32 %v231, %v241
        %v271 = vmul.f32 %v232, %v241
        %v272 = vmul.f32 %v233, %v241
        %v273 = vmul.f32 %v234, %v241
        %v274 = vmul.f32 %v235, %v241
        %v275 = vld [vmem:[%s2] sm:$0x1]
        %v277 = vlaneseq
        %v278 = vshrl.u32 %v277, 7
        %v279 = vsub.s32 0, %v278
        %v280 = vrot.slane %v275, %v279
        %v282 = vadd.f32 %v243, %v280
        %v283 = vadd.f32 %v244, %v280
        %v284 = vadd.f32 %v245, %v280
        %v285 = vadd.f32 %v246, %v280
        %v286 = vadd.f32 %v247, %v280
        %v287 = vadd.f32 %v248, %v280
        %v288 = vadd.f32 %v249, %v280
        %v289 = vadd.f32 %v250, %v280
        %v290 = vadd.f32 %v251, %v280
        %v291 = vadd.f32 %v252, %v280
        %v292 = vadd.f32 %v253, %v280
        %v293 = vadd.f32 %v254, %v280
        %v294 = vadd.f32 %v255, %v280
        %v295 = vadd.f32 %v256, %v280
        %v296 = vadd.f32 %v257, %v280
        %v297 = vadd.f32 %v258, %v280
        %v298 = vadd.f32 %v259, %v280
        %v299 = vadd.f32 %v260, %v280
        %v300 = vadd.f32 %v261, %v280
        %v301 = vadd.f32 %v262, %v280
        %v302 = vadd.f32 %v263, %v280
        %v303 = vadd.f32 %v264, %v280
        %v304 = vadd.f32 %v265, %v280
        %v305 = vadd.f32 %v266, %v280
        %v306 = vadd.f32 %v267, %v280
        %v307 = vadd.f32 %v268, %v280
        %v308 = vadd.f32 %v269, %v280
        %v309 = vadd.f32 %v270, %v280
        %v310 = vadd.f32 %v271, %v280
        %v311 = vadd.f32 %v272, %v280
        %v312 = vadd.f32 %v273, %v280
        %v313 = vadd.f32 %v274, %v280
        %v314 = vmax.f32 %v282, 0.0
        %v315 = vmax.f32 %v283, 0.0
        %v316 = vmax.f32 %v284, 0.0
        %v317 = vmax.f32 %v285, 0.0
        %v318 = vmax.f32 %v286, 0.0
        %v319 = vmax.f32 %v287, 0.0
        %v320 = vmax.f32 %v288, 0.0
        %v321 = vmax.f32 %v289, 0.0
        %v322 = vmax.f32 %v290, 0.0
        %v323 = vmax.f32 %v291, 0.0
        %v324 = vmax.f32 %v292, 0.0
        %v325 = vmax.f32 %v293, 0.0
        %v326 = vmax.f32 %v294, 0.0
        %v327 = vmax.f32 %v295, 0.0
        %v328 = vmax.f32 %v296, 0.0
        %v329 = vmax.f32 %v297, 0.0
        %v330 = vmax.f32 %v298, 0.0
        %v331 = vmax.f32 %v299, 0.0
        %v332 = vmax.f32 %v300, 0.0
        %v333 = vmax.f32 %v301, 0.0
        %v334 = vmax.f32 %v302, 0.0
        %v335 = vmax.f32 %v303, 0.0
        %v336 = vmax.f32 %v304, 0.0
        %v337 = vmax.f32 %v305, 0.0
        %v338 = vmax.f32 %v306, 0.0
        %v339 = vmax.f32 %v307, 0.0
        %v340 = vmax.f32 %v308, 0.0
        %v341 = vmax.f32 %v309, 0.0
        %v342 = vmax.f32 %v310, 0.0
        %v343 = vmax.f32 %v311, 0.0
        %v344 = vmax.f32 %v312, 0.0
        %v345 = vmax.f32 %v313, 0.0
        %vm346 = vcmask 261120
        %347 = vst.msk [vmem:[%s164] sm:$0xff] %vm346, %v314
        %348 = vst.msk [vmem:[%s164 + $0x8] sm:$0xff] %vm346, %v315
        %349 = vst.msk [vmem:[%s164 + $0x10] sm:$0xff] %vm346, %v316
        %350 = vst.msk [vmem:[%s164 + $0x18] sm:$0xff] %vm346, %v317
        %351 = vst.msk [vmem:[%s164 + $0x20] sm:$0xff] %vm346, %v318
        %352 = vst.msk [vmem:[%s164 + $0x28] sm:$0xff] %vm346, %v319
        %353 = vst.msk [vmem:[%s164 + $0x30] sm:$0xff] %vm346, %v320
        %354 = vst.msk [vmem:[%s164 + $0x38] sm:$0xff] %vm346, %v321
        %355 = vst.msk [vmem:[%s164 + $0x40] sm:$0xff] %vm346, %v322
        %356 = vst.msk [vmem:[%s164 + $0x48] sm:$0xff] %vm346, %v323
        %357 = vst.msk [vmem:[%s164 + $0x50] sm:$0xff] %vm346, %v324
        %358 = vst.msk [vmem:[%s164 + $0x58] sm:$0xff] %vm346, %v325
        %359 = vst.msk [vmem:[%s164 + $0x60] sm:$0xff] %vm346, %v326
        %360 = vst.msk [vmem:[%s164 + $0x68] sm:$0xff] %vm346, %v327
        %361 = vst.msk [vmem:[%s164 + $0x70] sm:$0xff] %vm346, %v328
        %362 = vst.msk [vmem:[%s164 + $0x78] sm:$0xff] %vm346, %v329
        %363 = vst.msk [vmem:[%s164 + $0x80] sm:$0xff] %vm346, %v330
        %364 = vst.msk [vmem:[%s164 + $0x88] sm:$0xff] %vm346, %v331
        %365 = vst.msk [vmem:[%s164 + $0x90] sm:$0xff] %vm346, %v332
        %366 = vst.msk [vmem:[%s164 + $0x98] sm:$0xff] %vm346, %v333
        %367 = vst.msk [vmem:[%s164 + $0xa0] sm:$0xff] %vm346, %v334
        %368 = vst.msk [vmem:[%s164 + $0xa8] sm:$0xff] %vm346, %v335
        %369 = vst.msk [vmem:[%s164 + $0xb0] sm:$0xff] %vm346, %v336
        %370 = vst.msk [vmem:[%s164 + $0xb8] sm:$0xff] %vm346, %v337
        %371 = vst.msk [vmem:[%s164 + $0xc0] sm:$0xff] %vm346, %v338
        %372 = vst.msk [vmem:[%s164 + $0xc8] sm:$0xff] %vm346, %v339
        %373 = vst.msk [vmem:[%s164 + $0xd0] sm:$0xff] %vm346, %v340
        %374 = vst.msk [vmem:[%s164 + $0xd8] sm:$0xff] %vm346, %v341
        %375 = vst.msk [vmem:[%s164 + $0xe0] sm:$0xff] %vm346, %v342
        %376 = vst.msk [vmem:[%s164 + $0xe8] sm:$0xff] %vm346, %v343
        %377 = vst.msk [vmem:[%s164 + $0xf0] sm:$0xff] %vm346, %v344
        %378 = vst.msk [vmem:[%s164 + $0xf8] sm:$0xff] %vm346, %v345
        %s379 = sand.u32 %s93, 1
        %s380 = scalar_lea.sflag [#allocation3], %s379
        %s381 = sand.u32 %s93, 1
        %s382 = smul.addr %s381, 256
        %s383 = scalar_lea.vmem [#allocation2], %s382
        // Predicated region
        $region33: #{double_conv_fwd.5} parent=31 // pred_check
          %p384 = pneg %p103
        $region34: #{double_conv_fwd.5} parent=31 // pred_check_branch
          %386 = sbr.rel (%p384) target = $region36
        $region35: #{double_conv_fwd.5} parent=31 // pred_region
          %s387 = smul.u32 32, %s17
          %s389 = ssub.s32 4096, 4096
          %390 = vsyncadd %s380, %s389
          %s391 = smul.addr %s387, 128
          %s392 = scalar_lea.hbm %s3, %s391
          %s393 = sshll.u32 %s383, 4
          %s394 = int_to_ptr.vmem [resolvable:$true] %s393
          %399 = dma.vmem_to_hbm [thread:$0]  %s394, 4096, %s392, %s380, 128, 128, 8
        $region36: #{double_conv_fwd.5} parent=31 // pred_fallthru
          _
      $region32: #{double_conv_fwd.5} parent=5 // pred_fallthru
        _
      %p400 = scmp.le.s32.totalorder 2, %s12
      // Predicated region
      $region37: #{double_conv_fwd.5} parent=5 // pred_check
        %p401 = pneg %p400
      $region38: #{double_conv_fwd.5} parent=5 // pred_check_branch
        %403 = sbr.rel (%p401) target = $region40
      $region39: #{double_conv_fwd.5} parent=5 // pred_region
        %s404 = ssub.s32 %s12, 2
        // Predicated region
        $region41: #{double_conv_fwd.5} parent=39 // pred_check
          %p405 = pneg %p109
        $region42: #{double_conv_fwd.5} parent=39 // pred_check_branch
          %407 = sbr.rel (%p405) target = $region44
        $region43: #{double_conv_fwd.5} parent=39 // pred_region
          %s408 = sand.u32 %s94, 1
          %s409 = scalar_lea.sflag [#allocation3], %s408
          %s410 = sand.u32 %s94, 1
          %s411 = smul.addr %s410, 256
          %s412 = scalar_lea.vmem [#allocation2], %s411
          %413 = dma.done %s409, 4096
        $region44: #{double_conv_fwd.5} parent=39 // pred_fallthru
          _
      $region40: #{double_conv_fwd.5} parent=5 // pred_fallthru
        _
    $region6: #{double_conv_fwd.5} parent=1 // loop_footer
      %s16 = sadd.s32 1, %s12
    $region7: #{double_conv_fwd.5} parent=1 // loop_footer_branch
      %11 = sbr.rel target = $region3
    $region8: #{double_conv_fwd.5} parent=1 // loop_exit
      _
    %414 = vsyncpa [#allocation3], 1
    %s415 = scalar_lea.sflag [#allocation3], 1
    %416 = vsyncpa %s415, 1

// kernel: double_conv_fwd.3
$region0: #{double_conv_fwd.3}
  #allocation0 [shape = 'u32[]', space=smem, size = 0x4, offset = 0x4, fixed_abs, tag = 'smem constant byte address 0x4 - core index']
  #allocation1 [shape = 'u32[144,128]{1,0:T(1,128)}', space=vmem, size = 0x12000, scoped, tag = 'internal scratch']
  #allocation2 [shape = 'f32[290,4]{1,0:T(8,128)}', space=vmem, size = 0x25000, scoped, tag = 'scratch operand']
  #allocation3 [shape = 'bf16[256,36]{1,0:T(8,128)(2,1)}', space=vmem, size = 0x10000, scoped, tag = 'scratch operand']
  %s0 = inlined_call_operand.vmem [shape: bf16[512,4], index: 0, kind: input, shape index: {}]
  %s1 = inlined_call_operand.vmem [shape: bf16[36,32], index: 1, kind: input, shape index: {}]
  %s2 = inlined_call_operand.vmem [shape: f32[1,32], index: 2, kind: input, shape index: {}]
  %s3 = inlined_call_operand.vmem [shape: bf16[512,32], index: 3, kind: output, shape index: {0}]
  %s4 = inlined_call_operand.vmem [shape: f32[2,2,32], index: 4, kind: output, shape index: {1}]
  %5 = xla_tuple %s3, %s4
  %s6 = sld [smem:[#allocation0]]
  $region53: #{double_conv_fwd.3} parent=0
    _
  %s8 = ssub.s32 1, %s6
  %s9 = scalar_select 0, %s8, %s6
  loop: start=0, step=1, limit=4
  $region2: #{double_conv_fwd.3} parent=0 // loop_pre_header
    _
  $region3: #{double_conv_fwd.3} parent=0 // loop_header
    %s11 = sphi 0, %s15
    %p12 = scmp.ge.s32.totalorder %s11, 4
    %s21 = sphi 0, %s23
    %s24 = sphi 0, %s21
    %s25 = sphi 0, %s24
    %s41 = sphi 0, %s25
    %s45 = sphi 0, %s45
    %s47 = sphi 0, %s45
    %s48 = sphi 0, %s47
    %s62 = sphi 0, %s48
    %s66 = sphi 0, %s66
    %s68 = sphi 0, %s66
    %s69 = sphi 0, %s68
    %s83 = sphi 0, %s69
    %s89 = sphi 0, %s91
    %s92 = sphi 0, %s89
    %s93 = sphi 0, %s92
    %s109 = sphi 0, %s93
    %s115 = sphi 0, %s117
    %s118 = sphi 0, %s115
    %s119 = sphi 0, %s118
    %s135 = sphi 0, %s119
  $region4: #{double_conv_fwd.3} parent=0 // loop_header_branch
    %14 = sbr.rel (%p12) target = $region8
  $region5: #{double_conv_fwd.3} parent=0 // loop_body
    %s16 = ssub.s32 %s11, 1
    %s17 = ssub.s32 %s11, 2
    %s18 = sadd.s32 %s11, 1
    %s19 = ssub.s32 %s11, %s18
    %p20 = scmp.eq.s32.totalorder %s19, 0
    %s22 = sadd.s32 %s21, 1
    %s23 = scalar_select %p20, %s21, %s22
    %p26 = pneg %p20
    %p27 = scmp.eq.s32.totalorder %s11, 1
    %p28 = por %p26, %p27
    %p29 = scmp.ne.s32.totalorder %s21, %s24
    %p30 = scmp.eq.s32.totalorder %s11, 0
    %p31 = por %p29, %p30
    %p32 = scmp.ne.s32.totalorder %s21, %s24
    %p33 = scmp.eq.s32.totalorder %s16, 1
    %p34 = por %p32, %p33
    %p35 = scmp.ne.s32.totalorder %s24, %s25
    %p36 = scmp.eq.s32.totalorder %s16, 0
    %p37 = por %p35, %p36
    %p38 = scmp.ne.s32.totalorder %s24, %s25
    %p39 = scmp.eq.s32.totalorder %s17, 1
    %p40 = por %p38, %p39
    %p42 = scmp.ne.s32.totalorder %s25, %s41
    %p43 = scmp.eq.s32.totalorder %s17, 0
    %p44 = por %p42, %p43
    %s46 = sadd.s32 %s45, 1
    %p49 = scmp.eq.s32.totalorder %s11, 1
    %p50 = scmp.ne.s32.totalorder %s45, %s47
    %p51 = scmp.eq.s32.totalorder %s11, 0
    %p52 = por %p50, %p51
    %p53 = scmp.ne.s32.totalorder %s45, %s47
    %p54 = scmp.eq.s32.totalorder %s16, 1
    %p55 = por %p53, %p54
    %p56 = scmp.ne.s32.totalorder %s47, %s48
    %p57 = scmp.eq.s32.totalorder %s16, 0
    %p58 = por %p56, %p57
    %p59 = scmp.ne.s32.totalorder %s47, %s48
    %p60 = scmp.eq.s32.totalorder %s17, 1
    %p61 = por %p59, %p60
    %p63 = scmp.ne.s32.totalorder %s48, %s62
    %p64 = scmp.eq.s32.totalorder %s17, 0
    %p65 = por %p63, %p64
    %s67 = sadd.s32 %s66, 1
    %p70 = scmp.eq.s32.totalorder %s11, 1
    %p71 = scmp.ne.s32.totalorder %s66, %s68
    %p72 = scmp.eq.s32.totalorder %s11, 0
    %p73 = por %p71, %p72
    %p74 = scmp.ne.s32.totalorder %s66, %s68
    %p75 = scmp.eq.s32.totalorder %s16, 1
    %p76 = por %p74, %p75
    %p77 = scmp.ne.s32.totalorder %s68, %s69
    %p78 = scmp.eq.s32.totalorder %s16, 0
    %p79 = por %p77, %p78
    %p80 = scmp.ne.s32.totalorder %s68, %s69
    %p81 = scmp.eq.s32.totalorder %s17, 1
    %p82 = por %p80, %p81
    %p84 = scmp.ne.s32.totalorder %s69, %s83
    %p85 = scmp.eq.s32.totalorder %s17, 0
    %p86 = por %p84, %p85
    %s87 = ssub.s32 %s11, %s18
    %p88 = scmp.eq.s32.totalorder %s87, 0
    %s90 = sadd.s32 %s89, 1
    %s91 = scalar_select %p88, %s89, %s90
    %p94 = pneg %p88
    %p95 = scmp.eq.s32.totalorder %s11, 1
    %p96 = por %p94, %p95
    %p97 = scmp.ne.s32.totalorder %s89, %s92
    %p98 = scmp.eq.s32.totalorder %s11, 0
    %p99 = por %p97, %p98
    %p100 = scmp.ne.s32.totalorder %s89, %s92
    %p101 = scmp.eq.s32.totalorder %s16, 1
    %p102 = por %p100, %p101
    %p103 = scmp.ne.s32.totalorder %s92, %s93
    %p104 = scmp.eq.s32.totalorder %s16, 0
    %p105 = por %p103, %p104
    %p106 = scmp.ne.s32.totalorder %s92, %s93
    %p107 = scmp.eq.s32.totalorder %s17, 1
    %p108 = por %p106, %p107
    %p110 = scmp.ne.s32.totalorder %s93, %s109
    %p111 = scmp.eq.s32.totalorder %s17, 0
    %p112 = por %p110, %p111
    %s113 = ssub.s32 %s11, %s18
    %p114 = scmp.eq.s32.totalorder %s113, 0
    %s116 = sadd.s32 %s115, 1
    %s117 = scalar_select %p114, %s115, %s116
    %p120 = pneg %p114
    %p121 = scmp.eq.s32.totalorder %s11, 1
    %p122 = por %p120, %p121
    %p123 = scmp.ne.s32.totalorder %s115, %s118
    %p124 = scmp.eq.s32.totalorder %s11, 0
    %p125 = por %p123, %p124
    %p126 = scmp.ne.s32.totalorder %s115, %s118
    %p127 = scmp.eq.s32.totalorder %s16, 1
    %p128 = por %p126, %p127
    %p129 = scmp.ne.s32.totalorder %s118, %s119
    %p130 = scmp.eq.s32.totalorder %s16, 0
    %p131 = por %p129, %p130
    %p132 = scmp.ne.s32.totalorder %s118, %s119
    %p133 = scmp.eq.s32.totalorder %s17, 1
    %p134 = por %p132, %p133
    %p136 = scmp.ne.s32.totalorder %s119, %s135
    %p137 = scmp.eq.s32.totalorder %s17, 0
    %p138 = por %p136, %p137
    %p139 = scmp.le.s32.totalorder 1, %s11
    %p140 = scmp.lt.s32.totalorder %s11, 3
    %p141 = pnand %p139, %p140
    %p142 = pneg %p141
    // Predicated region
    $region9: #{double_conv_fwd.3} parent=5 // pred_check
      _
    $region10: #{double_conv_fwd.3} parent=5 // pred_check_branch
      %144 = sbr.rel (%p141) target = $region12
    $region11: #{double_conv_fwd.3} parent=5 // pred_region
      %s145 = ssub.s32 %s11, 1
      // Predicated region
      $region13: #{double_conv_fwd.3} parent=11 // pred_check
        %p146 = pneg %p58
      $region14: #{double_conv_fwd.3} parent=11 // pred_check_branch
        %148 = sbr.rel (%p146) target = $region16
      $region15: #{double_conv_fwd.3} parent=11 // pred_region
        _
      $region16: #{double_conv_fwd.3} parent=11 // pred_fallthru
        _
      // Predicated region
      $region17: #{double_conv_fwd.3} parent=11 // pred_check
        %p149 = pneg %p79
      $region18: #{double_conv_fwd.3} parent=11 // pred_check_branch
        %151 = sbr.rel (%p149) target = $region20
      $region19: #{double_conv_fwd.3} parent=11 // pred_region
        _
      $region20: #{double_conv_fwd.3} parent=11 // pred_fallthru
        _
    $region12: #{double_conv_fwd.3} parent=5 // pred_fallthru
      _
    %p152 = scmp.lt.s32.totalorder %s11, 2
    // Predicated region
    $region21: #{double_conv_fwd.3} parent=5 // pred_check
      %p153 = pneg %p152
    $region22: #{double_conv_fwd.3} parent=5 // pred_check_branch
      %155 = sbr.rel (%p153) target = $region24
    $region23: #{double_conv_fwd.3} parent=5 // pred_region
      // Predicated region
      $region25: #{double_conv_fwd.3} parent=23 // pred_check
        %p156 = pneg %p31
      $region26: #{double_conv_fwd.3} parent=23 // pred_check_branch
        %158 = sbr.rel (%p156) target = $region28
      $region27: #{double_conv_fwd.3} parent=23 // pred_region
        %s159 = smul.u32 32, %s11
        %p160 = scmp.lt.s32.totalorder %s159, 63
        %s161 = scalar_select %p160, %s159, 63
        %s162 = smul.addr %s161, 4
        %s163 = scalar_lea.vmem %s0, %s162
        %s164 = smul.u32 32, %s11
      $region28: #{double_conv_fwd.3} parent=23 // pred_fallthru
        _
    $region24: #{double_conv_fwd.3} parent=5 // pred_fallthru
      _
    %p165 = scmp.le.s32.totalorder 1, %s11
    %p166 = scmp.lt.s32.totalorder %s11, 3
    %p167 = pnand %p165, %p166
    %p168 = pneg %p167
    // Predicated region
    $region29: #{double_conv_fwd.3} parent=5 // pred_check
      _
    $region30: #{double_conv_fwd.3} parent=5 // pred_check_branch
      %170 = sbr.rel (%p167) target = $region32
    $region31: #{double_conv_fwd.3} parent=5 // pred_region
      %s171 = ssub.s32 %s11, 1
      %s172 = smul.u32 32, %s16
      %p173 = scmp.lt.s32.totalorder %s172, 63
      %s174 = scalar_select %p173, %s172, 63
      %s175 = smul.addr %s174, 4
      %s176 = scalar_lea.vmem %s0, %s175
      %p177 = pneg %p37
      %p178 = pneg %p34
      %p179 = pneg %p58
      %p180 = pneg %p55
      %p181 = pneg %p79
      %p182 = pneg %p76
      %p183 = pneg %p105
      %p184 = pneg %p102
      %s185 = smul.u32 32, %s16
      %p186 = scmp.lt.s32.totalorder %s185, 63
      %s187 = scalar_select %p186, %s185, 63
      %s188 = smul.addr %s187, 4
      %s189 = scalar_lea.vmem %s3, %s188
      %p190 = pneg %p131
      %p191 = pneg %p128
      %p192 = scmp.lt.s32.totalorder %s16, 1
      %s193 = scalar_select %p192, %s16, 1
      %s194 = smul.addr %s193, 2
      %s195 = scalar_lea.vmem %s4, %s194
      %s196 = smul.u32 32, %s16
      %p197 = scmp.lt.s32.totalorder %s196, 63
      %s198 = scalar_select %p197, %s196, 63
      %s199 = smul.addr %s198, 4
      %s200 = scalar_lea.vmem %s0, %s199
      %s201 = smul.u32 32, %s16
      %s202 = smul.u32 32, %s16
      %p203 = scmp.lt.s32.totalorder %s202, 63
      %s204 = scalar_select %p203, %s202, 63
      %s205 = smul.addr %s204, 4
      %s206 = scalar_lea.vmem %s3, %s205
      %s207 = smul.u32 32, %s16
      %p208 = scmp.lt.s32.totalorder %s16, 1
      %s209 = scalar_select %p208, %s16, 1
      %s210 = smul.addr %s209, 2
      %s211 = scalar_lea.vmem %s4, %s210
      %v213 = vld [vmem:[%s200] sm:$0xf]
      %v214 = vld [vmem:[%s200 + $0x4] sm:$0xf]
      %v215 = vld [vmem:[%s200 + $0x8] sm:$0xf]
      %v216 = vld [vmem:[%s200 + $0xc] sm:$0xf]
      %v217 = vld [vmem:[%s200 + $0x10] sm:$0xf]
      %v218 = vld [vmem:[%s200 + $0x14] sm:$0xf]
      %v219 = vld [vmem:[%s200 + $0x18] sm:$0xf]
      %v220 = vld [vmem:[%s200 + $0x1c] sm:$0xf]
      %v221 = vld [vmem:[%s200 + $0x20] sm:$0xf]
      %v222 = vld [vmem:[%s200 + $0x24] sm:$0xf]
      %v223 = vld [vmem:[%s200 + $0x28] sm:$0xf]
      %v224 = vld [vmem:[%s200 + $0x2c] sm:$0xf]
      %v225 = vld [vmem:[%s200 + $0x30] sm:$0xf]
      %v226 = vld [vmem:[%s200 + $0x34] sm:$0xf]
      %v227 = vld [vmem:[%s200 + $0x38] sm:$0xf]
      %v228 = vld [vmem:[%s200 + $0x3c] sm:$0xf]
      %v229 = vld [vmem:[%s200 + $0x40] sm:$0xf]
      %v230 = vld [vmem:[%s200 + $0x44] sm:$0xf]
      %v231 = vld [vmem:[%s200 + $0x48] sm:$0xf]
      %v232 = vld [vmem:[%s200 + $0x4c] sm:$0xf]
      %v233 = vld [vmem:[%s200 + $0x50] sm:$0xf]
      %v234 = vld [vmem:[%s200 + $0x54] sm:$0xf]
      %v235 = vld [vmem:[%s200 + $0x58] sm:$0xf]
      %v236 = vld [vmem:[%s200 + $0x5c] sm:$0xf]
      %v237 = vld [vmem:[%s200 + $0x60] sm:$0xf]
      %v238 = vld [vmem:[%s200 + $0x64] sm:$0xf]
      %v239 = vld [vmem:[%s200 + $0x68] sm:$0xf]
      %v240 = vld [vmem:[%s200 + $0x6c] sm:$0xf]
      %v241 = vld [vmem:[%s200 + $0x70] sm:$0xf]
      %v242 = vld [vmem:[%s200 + $0x74] sm:$0xf]
      %v243 = vld [vmem:[%s200 + $0x78] sm:$0xf]
      %v244 = vld [vmem:[%s200 + $0x7c] sm:$0xf]
      %v245 = vunpack.c.l.bf16 %v213
      %v246 = vunpack.c.l.bf16 %v214
      %v247 = vunpack.c.l.bf16 %v215
      %v248 = vunpack.c.l.bf16 %v216
      %v249 = vunpack.c.l.bf16 %v217
      %v250 = vunpack.c.l.bf16 %v218
      %v251 = vunpack.c.l.bf16 %v219
      %v252 = vunpack.c.l.bf16 %v220
      %v253 = vunpack.c.l.bf16 %v221
      %v254 = vunpack.c.l.bf16 %v222
      %v255 = vunpack.c.l.bf16 %v223
      %v256 = vunpack.c.l.bf16 %v224
      %v257 = vunpack.c.l.bf16 %v225
      %v258 = vunpack.c.l.bf16 %v226
      %v259 = vunpack.c.l.bf16 %v227
      %v260 = vunpack.c.l.bf16 %v228
      %v261 = vunpack.c.l.bf16 %v229
      %v262 = vunpack.c.l.bf16 %v230
      %v263 = vunpack.c.l.bf16 %v231
      %v264 = vunpack.c.l.bf16 %v232
      %v265 = vunpack.c.l.bf16 %v233
      %v266 = vunpack.c.l.bf16 %v234
      %v267 = vunpack.c.l.bf16 %v235
      %v268 = vunpack.c.l.bf16 %v236
      %v269 = vunpack.c.l.bf16 %v237
      %v270 = vunpack.c.l.bf16 %v238
      %v271 = vunpack.c.l.bf16 %v239
      %v272 = vunpack.c.l.bf16 %v240
      %v273 = vunpack.c.l.bf16 %v241
      %v274 = vunpack.c.l.bf16 %v242
      %v275 = vunpack.c.l.bf16 %v243
      %v276 = vunpack.c.l.bf16 %v244
      %vm277 = vcmask 31744
      %278 = vst.msk [vmem:[#allocation2] sm:$0xff] %vm277, 0.0
      %279 = vst.msk [vmem:[#allocation2 + $0x8] sm:$0xff] %vm277, 0.0
      %vm280 = vcmask 24576
      %281 = vst.msk [vmem:[#allocation2 + $0x10] sm:$0x1] %vm280, 0.0
      %282 = vst.msk [vmem:[#allocation2 + $0x111] sm:$0xff] %vm277, 0.0
      %283 = vst.msk [vmem:[#allocation2 + $0x119] sm:$0xff] %vm277, 0.0
      %284 = vst.msk [vmem:[#allocation2 + $0x121] sm:$0x1] %vm280, 0.0
      %285 = vst.msk [vmem:[#allocation2 + $0x11] sm:$0xff] %vm277, %v245
      %286 = vst.msk [vmem:[#allocation2 + $0x19] sm:$0xff] %vm277, %v246
      %287 = vst.msk [vmem:[#allocation2 + $0x21] sm:$0xff] %vm277, %v247
      %288 = vst.msk [vmem:[#allocation2 + $0x29] sm:$0xff] %vm277, %v248
      %289 = vst.msk [vmem:[#allocation2 + $0x31] sm:$0xff] %vm277, %v249
      %290 = vst.msk [vmem:[#allocation2 + $0x39] sm:$0xff] %vm277, %v250
      %291 = vst.msk [vmem:[#allocation2 + $0x41] sm:$0xff] %vm277, %v251
      %292 = vst.msk [vmem:[#allocation2 + $0x49] sm:$0xff] %vm277, %v252
      %293 = vst.msk [vmem:[#allocation2 + $0x51] sm:$0xff] %vm277, %v253
      %294 = vst.msk [vmem:[#allocation2 + $0x59] sm:$0xff] %vm277, %v254
      %295 = vst.msk [vmem:[#allocation2 + $0x61] sm:$0xff] %vm277, %v255
      %296 = vst.msk [vmem:[#allocation2 + $0x69] sm:$0xff] %vm277, %v256
      %297 = vst.msk [vmem:[#allocation2 + $0x71] sm:$0xff] %vm277, %v257
      %298 = vst.msk [vmem:[#allocation2 + $0x79] sm:$0xff] %vm277, %v258
      %299 = vst.msk [vmem:[#allocation2 + $0x81] sm:$0xff] %vm277, %v259
      %300 = vst.msk [vmem:[#allocation2 + $0x89] sm:$0xff] %vm277, %v260
      %301 = vst.msk [vmem:[#allocation2 + $0x91] sm:$0xff] %vm277, %v261
      %302 = vst.msk [vmem:[#allocation2 + $0x99] sm:$0xff] %vm277, %v262
      %303 = vst.msk [vmem:[#allocation2 + $0xa1] sm:$0xff] %vm277, %v263
      %304 = vst.msk [vmem:[#allocation2 + $0xa9] sm:$0xff] %vm277, %v264
      %305 = vst.msk [vmem:[#allocation2 + $0xb1] sm:$0xff] %vm277, %v265
      %306 = vst.msk [vmem:[#allocation2 + $0xb9] sm:$0xff] %vm277, %v266
      %307 = vst.msk [vmem:[#allocation2 + $0xc1] sm:$0xff] %vm277, %v267
      %308 = vst.msk [vmem:[#allocation2 + $0xc9] sm:$0xff] %vm277, %v268
      %309 = vst.msk [vmem:[#allocation2 + $0xd1] sm:$0xff] %vm277, %v269
      %310 = vst.msk [vmem:[#allocation2 + $0xd9] sm:$0xff] %vm277, %v270
      %311 = vst.msk [vmem:[#allocation2 + $0xe1] sm:$0xff] %vm277, %v271
      %312 = vst.msk [vmem:[#allocation2 + $0xe9] sm:$0xff] %vm277, %v272
      %313 = vst.msk [vmem:[#allocation2 + $0xf1] sm:$0xff] %vm277, %v273
      %314 = vst.msk [vmem:[#allocation2 + $0xf9] sm:$0xff] %vm277, %v274
      %315 = vst.msk [vmem:[#allocation2 + $0x101] sm:$0xff] %vm277, %v275
      %316 = vst.msk [vmem:[#allocation2 + $0x109] sm:$0xff] %vm277, %v276
      %v317 = vlaneseq
      %v318 = vshrl.u32 %v317, 7
      %v319 = vadd.s32 %v318, 8
      %v320 = vadd.s32 %v318, 16
      %v321 = vadd.s32 %v318, 24
      %v322 = vadd.s32 %v318, 32
      %v323 = vadd.s32 %v318, 40
      %v324 = vadd.s32 %v318, 48
      %v325 = vadd.s32 %v318, 56
      %v326 = vadd.s32 %v318, 64
      %v327 = vadd.s32 %v318, 72
      %v328 = vadd.s32 %v318, 80
      %v329 = vadd.s32 %v318, 88
      %v330 = vadd.s32 %v318, 96
      %v331 = vadd.s32 %v318, 104
      %v332 = vadd.s32 %v318, 112
      %v333 = vadd.s32 %v318, 120
      %v334 = vadd.s32 %v318, 128
      %v335 = vadd.s32 %v318, 136
      %v336 = vadd.s32 %v318, 144
      %v337 = vadd.s32 %v318, 152
      %v338 = vadd.s32 %v318, 160
      %v339 = vadd.s32 %v318, 168
      %v340 = vadd.s32 %v318, 176
      %v341 = vadd.s32 %v318, 184
      %v342 = vadd.s32 %v318, 192
      %v343 = vadd.s32 %v318, 200
      %v344 = vadd.s32 %v318, 208
      %v345 = vadd.s32 %v318, 216
      %v346 = vadd.s32 %v318, 224
      %v347 = vadd.s32 %v318, 232
      %v348 = vadd.s32 %v318, 240
      %v349 = vadd.s32 %v318, 248
      %vm350 = vcmp.lt.s32.totalorder %v318, 0
      %v351 = vsub.s32 0, %v318
      %v352 = vsel %vm350, %v351, %v318
      %v353 = vshrl.u32 %v352, 4
      %v354 = vand.u32 %v352, 15
      %v355 = vsub.s32 0, %v354
      %v356 = vsel %vm350, %v355, %v354
      %vm357 = vcmp.lt.s32.totalorder %v319, 0
      %v358 = vsub.s32 0, %v319
      %v359 = vsel %vm357, %v358, %v319
      %v360 = vshrl.u32 %v359, 4
      %v361 = vand.u32 %v359, 15
      %v362 = vsub.s32 0, %v361
      %v363 = vsel %vm357, %v362, %v361
      %vm364 = vcmp.lt.s32.totalorder %v320, 0
      %v365 = vsub.s32 0, %v320
      %v366 = vsel %vm364, %v365, %v320
      %v367 = vshrl.u32 %v366, 4
      %v368 = vand.u32 %v366, 15
      %v369 = vsub.s32 0, %v368
      %v370 = vsel %vm364, %v369, %v368
      %vm371 = vcmp.lt.s32.totalorder %v321, 0
      %v372 = vsub.s32 0, %v321
      %v373 = vsel %vm371, %v372, %v321
      %v374 = vshrl.u32 %v373, 4
      %v375 = vand.u32 %v373, 15
      %v376 = vsub.s32 0, %v375
      %v377 = vsel %vm371, %v376, %v375
      %vm378 = vcmp.lt.s32.totalorder %v322, 0
      %v379 = vsub.s32 0, %v322
      %v380 = vsel %vm378, %v379, %v322
      %v381 = vshrl.u32 %v380, 4
      %v382 = vand.u32 %v380, 15
      %v383 = vsub.s32 0, %v382
      %v384 = vsel %vm378, %v383, %v382
      %vm385 = vcmp.lt.s32.totalorder %v323, 0
      %v386 = vsub.s32 0, %v323
      %v387 = vsel %vm385, %v386, %v323
      %v388 = vshrl.u32 %v387, 4
      %v389 = vand.u32 %v387, 15
      %v390 = vsub.s32 0, %v389
      %v391 = vsel %vm385, %v390, %v389
      %vm392 = vcmp.lt.s32.totalorder %v324, 0
      %v393 = vsub.s32 0, %v324
      %v394 = vsel %vm392, %v393, %v324
      %v395 = vshrl.u32 %v394, 4
      %v396 = vand.u32 %v394, 15
      %v397 = vsub.s32 0, %v396
      %v398 = vsel %vm392, %v397, %v396
      %vm399 = vcmp.lt.s32.totalorder %v325, 0
      %v400 = vsub.s32 0, %v325
      %v401 = vsel %vm399, %v400, %v325
      %v402 = vshrl.u32 %v401, 4
      %v403 = vand.u32 %v401, 15
      %v404 = vsub.s32 0, %v403
      %v405 = vsel %vm399, %v404, %v403
      %vm406 = vcmp.lt.s32.totalorder %v326, 0
      %v407 = vsub.s32 0, %v326
      %v408 = vsel %vm406, %v407, %v326
      %v409 = vshrl.u32 %v408, 4
      %v410 = vand.u32 %v408, 15
      %v411 = vsub.s32 0, %v410
      %v412 = vsel %vm406, %v411, %v410
      %vm413 = vcmp.lt.s32.totalorder %v327, 0
      %v414 = vsub.s32 0, %v327
      %v415 = vsel %vm413, %v414, %v327
      %v416 = vshrl.u32 %v415, 4
      %v417 = vand.u32 %v415, 15
      %v418 = vsub.s32 0, %v417
      %v419 = vsel %vm413, %v418, %v417
      %vm420 = vcmp.lt.s32.totalorder %v328, 0
      %v421 = vsub.s32 0, %v328
      %v422 = vsel %vm420, %v421, %v328
      %v423 = vshrl.u32 %v422, 4
      %v424 = vand.u32 %v422, 15
      %v425 = vsub.s32 0, %v424
      %v426 = vsel %vm420, %v425, %v424
      %vm427 = vcmp.lt.s32.totalorder %v329, 0
      %v428 = vsub.s32 0, %v329
      %v429 = vsel %vm427, %v428, %v329
      %v430 = vshrl.u32 %v429, 4
      %v431 = vand.u32 %v429, 15
      %v432 = vsub.s32 0, %v431
      %v433 = vsel %vm427, %v432, %v431
      %vm434 = vcmp.lt.s32.totalorder %v330, 0
      %v435 = vsub.s32 0, %v330
      %v436 = vsel %vm434, %v435, %v330
      %v437 = vshrl.u32 %v436, 4
      %v438 = vand.u32 %v436, 15
      %v439 = vsub.s32 0, %v438
      %v440 = vsel %vm434, %v439, %v438
      %vm441 = vcmp.lt.s32.totalorder %v331, 0
      %v442 = vsub.s32 0, %v331
      %v443 = vsel %vm441, %v442, %v331
      %v444 = vshrl.u32 %v443, 4
      %v445 = vand.u32 %v443, 15
      %v446 = vsub.s32 0, %v445
      %v447 = vsel %vm441, %v446, %v445
      %vm448 = vcmp.lt.s32.totalorder %v332, 0
      %v449 = vsub.s32 0, %v332
      %v450 = vsel %vm448, %v449, %v332
      %v451 = vshrl.u32 %v450, 4
      %v452 = vand.u32 %v450, 15
      %v453 = vsub.s32 0, %v452
      %v454 = vsel %vm448, %v453, %v452
      %vm455 = vcmp.lt.s32.totalorder %v333, 0
      %v456 = vsub.s32 0, %v333
      %v457 = vsel %vm455, %v456, %v333
      %v458 = vshrl.u32 %v457, 4
      %v459 = vand.u32 %v457, 15
      %v460 = vsub.s32 0, %v459
      %v461 = vsel %vm455, %v460, %v459
      %vm462 = vcmp.lt.s32.totalorder %v334, 0
      %v463 = vsub.s32 0, %v334
      %v464 = vsel %vm462, %v463, %v334
      %v465 = vshrl.u32 %v464, 4
      %v466 = vand.u32 %v464, 15
      %v467 = vsub.s32 0, %v466
      %v468 = vsel %vm462, %v467, %v466
      %vm469 = vcmp.lt.s32.totalorder %v335, 0
      %v470 = vsub.s32 0, %v335
      %v471 = vsel %vm469, %v470, %v335
      %v472 = vshrl.u32 %v471, 4
      %v473 = vand.u32 %v471, 15
      %v474 = vsub.s32 0, %v473
      %v475 = vsel %vm469, %v474, %v473
      %vm476 = vcmp.lt.s32.totalorder %v336, 0
      %v477 = vsub.s32 0, %v336
      %v478 = vsel %vm476, %v477, %v336
      %v479 = vshrl.u32 %v478, 4
      %v480 = vand.u32 %v478, 15
      %v481 = vsub.s32 0, %v480
      %v482 = vsel %vm476, %v481, %v480
      %vm483 = vcmp.lt.s32.totalorder %v337, 0
      %v484 = vsub.s32 0, %v337
      %v485 = vsel %vm483, %v484, %v337
      %v486 = vshrl.u32 %v485, 4
      %v487 = vand.u32 %v485, 15
      %v488 = vsub.s32 0, %v487
      %v489 = vsel %vm483, %v488, %v487
      %vm490 = vcmp.lt.s32.totalorder %v338, 0
      %v491 = vsub.s32 0, %v338
      %v492 = vsel %vm490, %v491, %v338
      %v493 = vshrl.u32 %v492, 4
      %v494 = vand.u32 %v492, 15
      %v495 = vsub.s32 0, %v494
      %v496 = vsel %vm490, %v495, %v494
      %vm497 = vcmp.lt.s32.totalorder %v339, 0
      %v498 = vsub.s32 0, %v339
      %v499 = vsel %vm497, %v498, %v339
      %v500 = vshrl.u32 %v499, 4
      %v501 = vand.u32 %v499, 15
      %v502 = vsub.s32 0, %v501
      %v503 = vsel %vm497, %v502, %v501
      %vm504 = vcmp.lt.s32.totalorder %v340, 0
      %v505 = vsub.s32 0, %v340
      %v506 = vsel %vm504, %v505, %v340
      %v507 = vshrl.u32 %v506, 4
      %v508 = vand.u32 %v506, 15
      %v509 = vsub.s32 0, %v508
      %v510 = vsel %vm504, %v509, %v508
      %vm511 = vcmp.lt.s32.totalorder %v341, 0
      %v512 = vsub.s32 0, %v341
      %v513 = vsel %vm511, %v512, %v341
      %v514 = vshrl.u32 %v513, 4
      %v515 = vand.u32 %v513, 15
      %v516 = vsub.s32 0, %v515
      %v517 = vsel %vm511, %v516, %v515
      %vm518 = vcmp.lt.s32.totalorder %v342, 0
      %v519 = vsub.s32 0, %v342
      %v520 = vsel %vm518, %v519, %v342
      %v521 = vshrl.u32 %v520, 4
      %v522 = vand.u32 %v520, 15
      %v523 = vsub.s32 0, %v522
      %v524 = vsel %vm518, %v523, %v522
      %vm525 = vcmp.lt.s32.totalorder %v343, 0
      %v526 = vsub.s32 0, %v343
      %v527 = vsel %vm525, %v526, %v343
      %v528 = vshrl.u32 %v527, 4
      %v529 = vand.u32 %v527, 15
      %v530 = vsub.s32 0, %v529
      %v531 = vsel %vm525, %v530, %v529
      %vm532 = vcmp.lt.s32.totalorder %v344, 0
      %v533 = vsub.s32 0, %v344
      %v534 = vsel %vm532, %v533, %v344
      %v535 = vshrl.u32 %v534, 4
      %v536 = vand.u32 %v534, 15
      %v537 = vsub.s32 0, %v536
      %v538 = vsel %vm532, %v537, %v536
      %vm539 = vcmp.lt.s32.totalorder %v345, 0
      %v540 = vsub.s32 0, %v345
      %v541 = vsel %vm539, %v540, %v345
      %v542 = vshrl.u32 %v541, 4
      %v543 = vand.u32 %v541, 15
      %v544 = vsub.s32 0, %v543
      %v545 = vsel %vm539, %v544, %v543
      %vm546 = vcmp.lt.s32.totalorder %v346, 0
      %v547 = vsub.s32 0, %v346
      %v548 = vsel %vm546, %v547, %v346
      %v549 = vshrl.u32 %v548, 4
      %v550 = vand.u32 %v548, 15
      %v551 = vsub.s32 0, %v550
      %v552 = vsel %vm546, %v551, %v550
      %vm553 = vcmp.lt.s32.totalorder %v347, 0
      %v554 = vsub.s32 0, %v347
      %v555 = vsel %vm553, %v554, %v347
      %v556 = vshrl.u32 %v555, 4
      %v557 = vand.u32 %v555, 15
      %v558 = vsub.s32 0, %v557
      %v559 = vsel %vm553, %v558, %v557
      %vm560 = vcmp.lt.s32.totalorder %v348, 0
      %v561 = vsub.s32 0, %v348
      %v562 = vsel %vm560, %v561, %v348
      %v563 = vshrl.u32 %v562, 4
      %v564 = vand.u32 %v562, 15
      %v565 = vsub.s32 0, %v564
      %v566 = vsel %vm560, %v565, %v564
      %vm567 = vcmp.lt.s32.totalorder %v349, 0
      %v568 = vsub.s32 0, %v349
      %v569 = vsel %vm567, %v568, %v349
      %v570 = vshrl.u32 %v569, 4
      %v571 = vand.u32 %v569, 15
      %v572 = vsub.s32 0, %v571
      %v573 = vsel %vm567, %v572, %v571
      %vm574 = vcmp.ne.s32.totalorder %v356, 0
      %vm575 = vcmp.ne.s32.totalorder %v363, 0
      %vm576 = vcmp.ne.s32.totalorder %v370, 0
      %vm577 = vcmp.ne.s32.totalorder %v377, 0
      %vm578 = vcmp.ne.s32.totalorder %v384, 0
      %vm579 = vcmp.ne.s32.totalorder %v391, 0
      %vm580 = vcmp.ne.s32.totalorder %v398, 0
      %vm581 = vcmp.ne.s32.totalorder %v405, 0
      %vm582 = vcmp.ne.s32.totalorder %v412, 0
      %vm583 = vcmp.ne.s32.totalorder %v419, 0
      %vm584 = vcmp.ne.s32.totalorder %v426, 0
      %vm585 = vcmp.ne.s32.totalorder %v433, 0
      %vm586 = vcmp.ne.s32.totalorder %v440, 0
      %vm587 = vcmp.ne.s32.totalorder %v447, 0
      %vm588 = vcmp.ne.s32.totalorder %v454, 0
      %vm589 = vcmp.ne.s32.totalorder %v461, 0
      %vm590 = vcmp.ne.s32.totalorder %v468, 0
      %vm591 = vcmp.ne.s32.totalorder %v475, 0
      %vm592 = vcmp.ne.s32.totalorder %v482, 0
      %vm593 = vcmp.ne.s32.totalorder %v489, 0
      %vm594 = vcmp.ne.s32.totalorder %v496, 0
      %vm595 = vcmp.ne.s32.totalorder %v503, 0
      %vm596 = vcmp.ne.s32.totalorder %v510, 0
      %vm597 = vcmp.ne.s32.totalorder %v517, 0
      %vm598 = vcmp.ne.s32.totalorder %v524, 0
      %vm599 = vcmp.ne.s32.totalorder %v531, 0
      %vm600 = vcmp.ne.s32.totalorder %v538, 0
      %vm601 = vcmp.ne.s32.totalorder %v545, 0
      %vm602 = vcmp.ne.s32.totalorder %v552, 0
      %vm603 = vcmp.ne.s32.totalorder %v559, 0
      %vm604 = vcmp.ne.s32.totalorder %v566, 0
      %vm605 = vcmp.ne.s32.totalorder %v573, 0
      %vm606 = vcmp.lt.s32.totalorder %v356, 0
      %vm607 = vcmp.lt.s32.totalorder %v363, 0
      %vm608 = vcmp.lt.s32.totalorder %v370, 0
      %vm609 = vcmp.lt.s32.totalorder %v377, 0
      %vm610 = vcmp.lt.s32.totalorder %v384, 0
      %vm611 = vcmp.lt.s32.totalorder %v391, 0
      %vm612 = vcmp.lt.s32.totalorder %v398, 0
      %vm613 = vcmp.lt.s32.totalorder %v405, 0
      %vm614 = vcmp.lt.s32.totalorder %v412, 0
      %vm615 = vcmp.lt.s32.totalorder %v419, 0
      %vm616 = vcmp.lt.s32.totalorder %v426, 0
      %vm617 = vcmp.lt.s32.totalorder %v433, 0
      %vm618 = vcmp.lt.s32.totalorder %v440, 0
      %vm619 = vcmp.lt.s32.totalorder %v447, 0
      %vm620 = vcmp.lt.s32.totalorder %v454, 0
      %vm621 = vcmp.lt.s32.totalorder %v461, 0
      %vm622 = vcmp.lt.s32.totalorder %v468, 0
      %vm623 = vcmp.lt.s32.totalorder %v475, 0
      %vm624 = vcmp.lt.s32.totalorder %v482, 0
      %vm625 = vcmp.lt.s32.totalorder %v489, 0
      %vm626 = vcmp.lt.s32.totalorder %v496, 0
      %vm627 = vcmp.lt.s32.totalorder %v503, 0
      %vm628 = vcmp.lt.s32.totalorder %v510, 0
      %vm629 = vcmp.lt.s32.totalorder %v517, 0
      %vm630 = vcmp.lt.s32.totalorder %v524, 0
      %vm631 = vcmp.lt.s32.totalorder %v531, 0
      %vm632 = vcmp.lt.s32.totalorder %v538, 0
      %vm633 = vcmp.lt.s32.totalorder %v545, 0
      %vm634 = vcmp.lt.s32.totalorder %v552, 0
      %vm635 = vcmp.lt.s32.totalorder %v559, 0
      %vm636 = vcmp.lt.s32.totalorder %v566, 0
      %vm637 = vcmp.lt.s32.totalorder %v573, 0
      %vm638 = vmand %vm606, %vm574
      %vm639 = vmand %vm607, %vm575
      %vm640 = vmand %vm608, %vm576
      %vm641 = vmand %vm609, %vm577
      %vm642 = vmand %vm610, %vm578
      %vm643 = vmand %vm611, %vm579
      %vm644 = vmand %vm612, %vm580
      %vm645 = vmand %vm613, %vm581
      %vm646 = vmand %vm614, %vm582
      %vm647 = vmand %vm615, %vm583
      %vm648 = vmand %vm616, %vm584
      %vm649 = vmand %vm617, %vm585
      %vm650 = vmand %vm618, %vm586
      %vm651 = vmand %vm619, %vm587
      %vm652 = vmand %vm620, %vm588
      %vm653 = vmand %vm621, %vm589
      %vm654 = vmand %vm622, %vm590
      %vm655 = vmand %vm623, %vm591
      %vm656 = vmand %vm624, %vm592
      %vm657 = vmand %vm625, %vm593
      %vm658 = vmand %vm626, %vm594
      %vm659 = vmand %vm627, %vm595
      %vm660 = vmand %vm628, %vm596
      %vm661 = vmand %vm629, %vm597
      %vm662 = vmand %vm630, %vm598
      %vm663 = vmand %vm631, %vm599
      %vm664 = vmand %vm632, %vm600
      %vm665 = vmand %vm633, %vm601
      %vm666 = vmand %vm634, %vm602
      %vm667 = vmand %vm635, %vm603
      %vm668 = vmand %vm636, %vm604
      %vm669 = vmand %vm637, %vm605
      %v670 = vadd.s32 %v356, 16
      %v671 = vadd.s32 %v363, 16
      %v672 = vadd.s32 %v370, 16
      %v673 = vadd.s32 %v377, 16
      %v674 = vadd.s32 %v384, 16
      %v675 = vadd.s32 %v391, 16
      %v676 = vadd.s32 %v398, 16
      %v677 = vadd.s32 %v405, 16
      %v678 = vadd.s32 %v412, 16
      %v679 = vadd.s32 %v419, 16
      %v680 = vadd.s32 %v426, 16
      %v681 = vadd.s32 %v433, 16
      %v682 = vadd.s32 %v440, 16
      %v683 = vadd.s32 %v447, 16
      %v684 = vadd.s32 %v454, 16
      %v685 = vadd.s32 %v461, 16
      %v686 = vadd.s32 %v468, 16
      %v687 = vadd.s32 %v475, 16
      %v688 = vadd.s32 %v482, 16
      %v689 = vadd.s32 %v489, 16
      %v690 = vadd.s32 %v496, 16
      %v691 = vadd.s32 %v503, 16
      %v692 = vadd.s32 %v510, 16
      %v693 = vadd.s32 %v517, 16
      %v694 = vadd.s32 %v524, 16
      %v695 = vadd.s32 %v531, 16
      %v696 = vadd.s32 %v538, 16
      %v697 = vadd.s32 %v545, 16
      %v698 = vadd.s32 %v552, 16
      %v699 = vadd.s32 %v559, 16
      %v700 = vadd.s32 %v566, 16
      %v701 = vadd.s32 %v573, 16
      %v702 = vsel %vm638, %v670, %v356
      %v703 = vsel %vm639, %v671, %v363
      %v704 = vsel %vm640, %v672, %v370
      %v705 = vsel %vm641, %v673, %v377
      %v706 = vsel %vm642, %v674, %v384
      %v707 = vsel %vm643, %v675, %v391
      %v708 = vsel %vm644, %v676, %v398
      %v709 = vsel %vm645, %v677, %v405
      %v710 = vsel %vm646, %v678, %v412
      %v711 = vsel %vm647, %v679, %v419
      %v712 = vsel %vm648, %v680, %v426
      %v713 = vsel %vm649, %v681, %v433
      %v714 = vsel %vm650, %v682, %v440
      %v715 = vsel %vm651, %v683, %v447
      %v716 = vsel %vm652, %v684, %v454
      %v717 = vsel %vm653, %v685, %v461
      %v718 = vsel %vm654, %v686, %v468
      %v719 = vsel %vm655, %v687, %v475
      %v720 = vsel %vm656, %v688, %v482
      %v721 = vsel %vm657, %v689, %v489
      %v722 = vsel %vm658, %v690, %v496
      %v723 = vsel %vm659, %v691, %v503
      %v724 = vsel %vm660, %v692, %v510
      %v725 = vsel %vm661, %v693, %v517
      %v726 = vsel %vm662, %v694, %v524
      %v727 = vsel %vm663, %v695, %v531
      %v728 = vsel %vm664, %v696, %v538
      %v729 = vsel %vm665, %v697, %v545
      %v730 = vsel %vm666, %v698, %v552
      %v731 = vsel %vm667, %v699, %v559
      %v732 = vsel %vm668, %v700, %v566
      %v733 = vsel %vm669, %v701, %v573
      %vm734 = vcmp.ne.s32.totalorder %v702, 0
      %vm735 = vcmp.ne.s32.totalorder %v703, 0
      %vm736 = vcmp.ne.s32.totalorder %v704, 0
      %vm737 = vcmp.ne.s32.totalorder %v705, 0
      %vm738 = vcmp.ne.s32.totalorder %v706, 0
      %vm739 = vcmp.ne.s32.totalorder %v707, 0
      %vm740 = vcmp.ne.s32.totalorder %v708, 0
      %vm741 = vcmp.ne.s32.totalorder %v709, 0
      %vm742 = vcmp.ne.s32.totalorder %v710, 0
      %vm743 = vcmp.ne.s32.totalorder %v711, 0
      %vm744 = vcmp.ne.s32.totalorder %v712, 0
      %vm745 = vcmp.ne.s32.totalorder %v713, 0
      %vm746 = vcmp.ne.s32.totalorder %v714, 0
      %vm747 = vcmp.ne.s32.totalorder %v715, 0
      %vm748 = vcmp.ne.s32.totalorder %v716, 0
      %vm749 = vcmp.ne.s32.totalorder %v717, 0
      %vm750 = vcmp.ne.s32.totalorder %v718, 0
      %vm751 = vcmp.ne.s32.totalorder %v719, 0
      %vm752 = vcmp.ne.s32.totalorder %v720, 0
      %vm753 = vcmp.ne.s32.totalorder %v721, 0
      %vm754 = vcmp.ne.s32.totalorder %v722, 0
      %vm755 = vcmp.ne.s32.totalorder %v723, 0
      %vm756 = vcmp.ne.s32.totalorder %v724, 0
      %vm757 = vcmp.ne.s32.totalorder %v725, 0
      %vm758 = vcmp.ne.s32.totalorder %v726, 0
      %vm759 = vcmp.ne.s32.totalorder %v727, 0
      %vm760 = vcmp.ne.s32.totalorder %v728, 0
      %vm761 = vcmp.ne.s32.totalorder %v729, 0
      %vm762 = vcmp.ne.s32.totalorder %v730, 0
      %vm763 = vcmp.ne.s32.totalorder %v731, 0
      %vm764 = vcmp.ne.s32.totalorder %v732, 0
      %vm765 = vcmp.ne.s32.totalorder %v733, 0
      %vm766 = vcmp.ne.s32.totalorder %v702, 15
      %vm767 = vcmp.ne.s32.totalorder %v703, 15
      %vm768 = vcmp.ne.s32.totalorder %v704, 15
      %vm769 = vcmp.ne.s32.totalorder %v705, 15
      %vm770 = vcmp.ne.s32.totalorder %v706, 15
      %vm771 = vcmp.ne.s32.totalorder %v707, 15
      %vm772 = vcmp.ne.s32.totalorder %v708, 15
      %vm773 = vcmp.ne.s32.totalorder %v709, 15
      %vm774 = vcmp.ne.s32.totalorder %v710, 15
      %vm775 = vcmp.ne.s32.totalorder %v711, 15
      %vm776 = vcmp.ne.s32.totalorder %v712, 15
      %vm777 = vcmp.ne.s32.totalorder %v713, 15
      %vm778 = vcmp.ne.s32.totalorder %v714, 15
      %vm779 = vcmp.ne.s32.totalorder %v715, 15
      %vm780 = vcmp.ne.s32.totalorder %v716, 15
      %vm781 = vcmp.ne.s32.totalorder %v717, 15
      %vm782 = vcmp.ne.s32.totalorder %v718, 15
      %vm783 = vcmp.ne.s32.totalorder %v719, 15
      %vm784 = vcmp.ne.s32.totalorder %v720, 15
      %vm785 = vcmp.ne.s32.totalorder %v721, 15
      %vm786 = vcmp.ne.s32.totalorder %v722, 15
      %vm787 = vcmp.ne.s32.totalorder %v723, 15
      %vm788 = vcmp.ne.s32.totalorder %v724, 15
      %vm789 = vcmp.ne.s32.totalorder %v725, 15
      %vm790 = vcmp.ne.s32.totalorder %v726, 15
      %vm791 = vcmp.ne.s32.totalorder %v727, 15
      %vm792 = vcmp.ne.s32.totalorder %v728, 15
      %vm793 = vcmp.ne.s32.totalorder %v729, 15
      %vm794 = vcmp.ne.s32.totalorder %v730, 15
      %vm795 = vcmp.ne.s32.totalorder %v731, 15
      %vm796 = vcmp.ne.s32.totalorder %v732, 15
      %vm797 = vcmp.ne.s32.totalorder %v733, 15
      %v798 = vld [vmem:[#allocation2] sm:$0xff]
      %v799 = vld [vmem:[#allocation2 + $0x8] sm:$0xff]
      %v800 = vld [vmem:[#allocation2 + $0x10] sm:$0xff]
      %v801 = vld [vmem:[#allocation2 + $0x18] sm:$0xff]
      %v802 = vld [vmem:[#allocation2 + $0x20] sm:$0xff]
      %v803 = vld [vmem:[#allocation2 + $0x28] sm:$0xff]
      %v804 = vld [vmem:[#allocation2 + $0x30] sm:$0xff]
      %v805 = vld [vmem:[#allocation2 + $0x38] sm:$0xff]
      %v806 = vld [vmem:[#allocation2 + $0x40] sm:$0xff]
      %v807 = vld [vmem:[#allocation2 + $0x48] sm:$0xff]
      %v808 = vld [vmem:[#allocation2 + $0x50] sm:$0xff]
      %v809 = vld [vmem:[#allocation2 + $0x58] sm:$0xff]
      %v810 = vld [vmem:[#allocation2 + $0x60] sm:$0xff]
      %v811 = vld [vmem:[#allocation2 + $0x68] sm:$0xff]
      %v812 = vld [vmem:[#allocation2 + $0x70] sm:$0xff]
      %v813 = vld [vmem:[#allocation2 + $0x78] sm:$0xff]
      %v814 = vld [vmem:[#allocation2 + $0x80] sm:$0xff]
      %v815 = vld [vmem:[#allocation2 + $0x88] sm:$0xff]
      %v816 = vld [vmem:[#allocation2 + $0x90] sm:$0xff]
      %v817 = vld [vmem:[#allocation2 + $0x98] sm:$0xff]
      %v818 = vld [vmem:[#allocation2 + $0xa0] sm:$0xff]
      %v819 = vld [vmem:[#allocation2 + $0xa8] sm:$0xff]
      %v820 = vld [vmem:[#allocation2 + $0xb0] sm:$0xff]
      %v821 = vld [vmem:[#allocation2 + $0xb8] sm:$0xff]
      %v822 = vld [vmem:[#allocation2 + $0xc0] sm:$0xff]
      %v823 = vld [vmem:[#allocation2 + $0xc8] sm:$0xff]
      %v824 = vld [vmem:[#allocation2 + $0xd0] sm:$0xff]
      %v825 = vld [vmem:[#allocation2 + $0xd8] sm:$0xff]
      %v826 = vld [vmem:[#allocation2 + $0xe0] sm:$0xff]
      %v827 = vld [vmem:[#allocation2 + $0xe8] sm:$0xff]
      %v828 = vld [vmem:[#allocation2 + $0xf0] sm:$0xff]
      %v829 = vld [vmem:[#allocation2 + $0xf8] sm:$0xff]
      %v830 = vsel %vm734, 1, 0
      %v831 = vsel %vm735, 1, 0
      %v832 = vsel %vm736, 1, 0
      %v833 = vsel %vm737, 1, 0
      %v834 = vsel %vm738, 1, 0
      %v835 = vsel %vm739, 1, 0
      %v836 = vsel %vm740, 1, 0
      %v837 = vsel %vm741, 1, 0
      %v838 = vsel %vm742, 1, 0
      %v839 = vsel %vm743, 1, 0
      %v840 = vsel %vm744, 1, 0
      %v841 = vsel %vm745, 1, 0
      %v842 = vsel %vm746, 1, 0
      %v843 = vsel %vm747, 1, 0
      %v844 = vsel %vm748, 1, 0
      %v845 = vsel %vm749, 1, 0
      %v846 = vsel %vm750, 1, 0
      %v847 = vsel %vm751, 1, 0
      %v848 = vsel %vm752, 1, 0
      %v849 = vsel %vm753, 1, 0
      %v850 = vsel %vm754, 1, 0
      %v851 = vsel %vm755, 1, 0
      %v852 = vsel %vm756, 1, 0
      %v853 = vsel %vm757, 1, 0
      %v854 = vsel %vm758, 1, 0
      %v855 = vsel %vm759, 1, 0
      %v856 = vsel %vm760, 1, 0
      %v857 = vsel %vm761, 1, 0
      %v858 = vsel %vm762, 1, 0
      %v859 = vsel %vm763, 1, 0
      %v860 = vsel %vm764, 1, 0
      %v861 = vsel %vm765, 1, 0
      %vm862 = vcmp.eq.s32.totalorder %v830, 1
      %vm863 = vcmp.eq.s32.totalorder %v831, 1
      %vm864 = vcmp.eq.s32.totalorder %v832, 1
      %vm865 = vcmp.eq.s32.totalorder %v833, 1
      %vm866 = vcmp.eq.s32.totalorder %v834, 1
      %vm867 = vcmp.eq.s32.totalorder %v835, 1
      %vm868 = vcmp.eq.s32.totalorder %v836, 1
      %vm869 = vcmp.eq.s32.totalorder %v837, 1
      %vm870 = vcmp.eq.s32.totalorder %v838, 1
      %vm871 = vcmp.eq.s32.totalorder %v839, 1
      %vm872 = vcmp.eq.s32.totalorder %v840, 1
      %vm873 = vcmp.eq.s32.totalorder %v841, 1
      %vm874 = vcmp.eq.s32.totalorder %v842, 1
      %vm875 = vcmp.eq.s32.totalorder %v843, 1
      %vm876 = vcmp.eq.s32.totalorder %v844, 1
      %vm877 = vcmp.eq.s32.totalorder %v845, 1
      %vm878 = vcmp.eq.s32.totalorder %v846, 1
      %vm879 = vcmp.eq.s32.totalorder %v847, 1
      %vm880 = vcmp.eq.s32.totalorder %v848, 1
      %vm881 = vcmp.eq.s32.totalorder %v849, 1
      %vm882 = vcmp.eq.s32.totalorder %v850, 1
      %vm883 = vcmp.eq.s32.totalorder %v851, 1
      %vm884 = vcmp.eq.s32.totalorder %v852, 1
      %vm885 = vcmp.eq.s32.totalorder %v853, 1
      %vm886 = vcmp.eq.s32.totalorder %v854, 1
      %vm887 = vcmp.eq.s32.totalorder %v855, 1
      %vm888 = vcmp.eq.s32.totalorder %v856, 1
      %vm889 = vcmp.eq.s32.totalorder %v857, 1
      %vm890 = vcmp.eq.s32.totalorder %v858, 1
      %vm891 = vcmp.eq.s32.totalorder %v859, 1
      %vm892 = vcmp.eq.s32.totalorder %v860, 1
      %vm893 = vcmp.eq.s32.totalorder %v861, 1
      %v894 = vsel %vm862, %v798, 0.0
      %v895 = vsel %vm863, %v799, 0.0
      %v896 = vsel %vm864, %v800, 0.0
      %v897 = vsel %vm865, %v801, 0.0
      %v898 = vsel %vm866, %v802, 0.0
      %v899 = vsel %vm867, %v803, 0.0
      %v900 = vsel %vm868, %v804, 0.0
      %v901 = vsel %vm869, %v805, 0.0
      %v902 = vsel %vm870, %v806, 0.0
      %v903 = vsel %vm871, %v807, 0.0
      %v904 = vsel %vm872, %v808, 0.0
      %v905 = vsel %vm873, %v809, 0.0
      %v906 = vsel %vm874, %v810, 0.0
      %v907 = vsel %vm875, %v811, 0.0
      %v908 = vsel %vm876, %v812, 0.0
      %v909 = vsel %vm877, %v813, 0.0
      %v910 = vsel %vm878, %v814, 0.0
      %v911 = vsel %vm879, %v815, 0.0
      %v912 = vsel %vm880, %v816, 0.0
      %v913 = vsel %vm881, %v817, 0.0
      %v914 = vsel %vm882, %v818, 0.0
      %v915 = vsel %vm883, %v819, 0.0
      %v916 = vsel %vm884, %v820, 0.0
      %v917 = vsel %vm885, %v821, 0.0
      %v918 = vsel %vm886, %v822, 0.0
      %v919 = vsel %vm887, %v823, 0.0
      %v920 = vsel %vm888, %v824, 0.0
      %v921 = vsel %vm889, %v825, 0.0
      %v922 = vsel %vm890, %v826, 0.0
      %v923 = vsel %vm891, %v827, 0.0
      %v924 = vsel %vm892, %v828, 0.0
      %v925 = vsel %vm893, %v829, 0.0
      %v926 = vpack.c.bf16 %v895, %v894
      %v927 = vpack.c.bf16 %v897, %v896
      %v928 = vpack.c.bf16 %v899, %v898
      %v929 = vpack.c.bf16 %v901, %v900
      %v930 = vpack.c.bf16 %v903, %v902
      %v931 = vpack.c.bf16 %v905, %v904
      %v932 = vpack.c.bf16 %v907, %v906
      %v933 = vpack.c.bf16 %v909, %v908
      %v934 = vpack.c.bf16 %v911, %v910
      %v935 = vpack.c.bf16 %v913, %v912
      %v936 = vpack.c.bf16 %v915, %v914
      %v937 = vpack.c.bf16 %v917, %v916
      %v938 = vpack.c.bf16 %v919, %v918
      %v939 = vpack.c.bf16 %v921, %v920
      %v940 = vpack.c.bf16 %v923, %v922
      %v941 = vpack.c.bf16 %v925, %v924
      %v958 = vunpack.c.l.b16 %v926
      %v959 = vunpack.c.h.b16 %v926
      %v960 = vunpack.c.l.b16 %v927
      %v961 = vunpack.c.h.b16 %v927
      %v962 = vunpack.c.l.b16 %v928
      %v963 = vunpack.c.h.b16 %v928
      %v964 = vunpack.c.l.b16 %v929
      %v965 = vunpack.c.h.b16 %v929
      %v966 = vunpack.c.l.b16 %v930
      %v967 = vunpack.c.h.b16 %v930
      %v968 = vunpack.c.l.b16 %v931
      %v969 = vunpack.c.h.b16 %v931
      %v970 = vunpack.c.l.b16 %v932
      %v971 = vunpack.c.h.b16 %v932
      %v972 = vunpack.c.l.b16 %v933
      %v973 = vunpack.c.h.b16 %v933
      %v974 = vunpack.c.l.b16 %v934
      %v975 = vunpack.c.h.b16 %v934
      %v976 = vunpack.c.l.b16 %v935
      %v977 = vunpack.c.h.b16 %v935
      %v978 = vunpack.c.l.b16 %v936
      %v979 = vunpack.c.h.b16 %v936
      %v980 = vunpack.c.l.b16 %v937
      %v981 = vunpack.c.h.b16 %v937
      %v982 = vunpack.c.l.b16 %v938
      %v983 = vunpack.c.h.b16 %v938
      %v984 = vunpack.c.l.b16 %v939
      %v985 = vunpack.c.h.b16 %v939
      %v986 = vunpack.c.l.b16 %v940
      %v987 = vunpack.c.h.b16 %v940
      %v988 = vunpack.c.l.b16 %v941
      %v989 = vunpack.c.h.b16 %v941
      %v990 = vpack.c.b16 %v958, %v958
      %v991 = vpack.c.b16 %v959, %v959
      %v992 = vpack.c.b16 %v960, %v960
      %v993 = vpack.c.b16 %v961, %v961
      %v994 = vpack.c.b16 %v962, %v962
      %v995 = vpack.c.b16 %v963, %v963
      %v996 = vpack.c.b16 %v964, %v964
      %v997 = vpack.c.b16 %v965, %v965
      %v998 = vpack.c.b16 %v966, %v966
      %v999 = vpack.c.b16 %v967, %v967
      %v1000 = vpack.c.b16 %v968, %v968
      %v1001 = vpack.c.b16 %v969, %v969
      %v1002 = vpack.c.b16 %v970, %v970
      %v1003 = vpack.c.b16 %v971, %v971
      %v1004 = vpack.c.b16 %v972, %v972
      %v1005 = vpack.c.b16 %v973, %v973
      %v1006 = vpack.c.b16 %v974, %v974
      %v1007 = vpack.c.b16 %v975, %v975
      %v1008 = vpack.c.b16 %v976, %v976
      %v1009 = vpack.c.b16 %v977, %v977
      %v1010 = vpack.c.b16 %v978, %v978
      %v1011 = vpack.c.b16 %v979, %v979
      %v1012 = vpack.c.b16 %v980, %v980
      %v1013 = vpack.c.b16 %v981, %v981
      %v1014 = vpack.c.b16 %v982, %v982
      %v1015 = vpack.c.b16 %v983, %v983
      %v1016 = vpack.c.b16 %v984, %v984
      %v1017 = vpack.c.b16 %v985, %v985
      %v1018 = vpack.c.b16 %v986, %v986
      %v1019 = vpack.c.b16 %v987, %v987
      %v1020 = vpack.c.b16 %v988, %v988
      %v1021 = vpack.c.b16 %v989, %v989
      %vm1054 = vcmask 27648
      %1055 = vst.msk [vmem:[#allocation3] sm:$0xf] %vm1054, %v990
      %1056 = vst.msk [vmem:[#allocation3 + $0x4] sm:$0xf] %vm1054, %v991
      %1057 = vst.msk [vmem:[#allocation3 + $0x8] sm:$0xf] %vm1054, %v992
      %1058 = vst.msk [vmem:[#allocation3 + $0xc] sm:$0xf] %vm1054, %v993
      %1059 = vst.msk [vmem:[#allocation3 + $0x10] sm:$0xf] %vm1054, %v994
      %1060 = vst.msk [vmem:[#allocation3 + $0x14] sm:$0xf] %vm1054, %v995
      %1061 = vst.msk [vmem:[#allocation3 + $0x18] sm:$0xf] %vm1054, %v996
      %1062 = vst.msk [vmem:[#allocation3 + $0x1c] sm:$0xf] %vm1054, %v997
      %1063 = vst.msk [vmem:[#allocation3 + $0x20] sm:$0xf] %vm1054, %v998
      %1064 = vst.msk [vmem:[#allocation3 + $0x24] sm:$0xf] %vm1054, %v999
      %1065 = vst.msk [vmem:[#allocation3 + $0x28] sm:$0xf] %vm1054, %v1000
      %1066 = vst.msk [vmem:[#allocation3 + $0x2c] sm:$0xf] %vm1054, %v1001
      %1067 = vst.msk [vmem:[#allocation3 + $0x30] sm:$0xf] %vm1054, %v1002
      %1068 = vst.msk [vmem:[#allocation3 + $0x34] sm:$0xf] %vm1054, %v1003
      %1069 = vst.msk [vmem:[#allocation3 + $0x38] sm:$0xf] %vm1054, %v1004
      %1070 = vst.msk [vmem:[#allocation3 + $0x3c] sm:$0xf] %vm1054, %v1005
      %1071 = vst.msk [vmem:[#allocation3 + $0x40] sm:$0xf] %vm1054, %v1006
      %1072 = vst.msk [vmem:[#allocation3 + $0x44] sm:$0xf] %vm1054, %v1007
      %1073 = vst.msk [vmem:[#allocation3 + $0x48] sm:$0xf] %vm1054, %v1008
      %1074 = vst.msk [vmem:[#allocation3 + $0x4c] sm:$0xf] %vm1054, %v1009
      %1075 = vst.msk [vmem:[#allocation3 + $0x50] sm:$0xf] %vm1054, %v1010
      %1076 = vst.msk [vmem:[#allocation3 + $0x54] sm:$0xf] %vm1054, %v1011
      %1077 = vst.msk [vmem:[#allocation3 + $0x58] sm:$0xf] %vm1054, %v1012
      %1078 = vst.msk [vmem:[#allocation3 + $0x5c] sm:$0xf] %vm1054, %v1013
      %1079 = vst.msk [vmem:[#allocation3 + $0x60] sm:$0xf] %vm1054, %v1014
      %1080 = vst.msk [vmem:[#allocation3 + $0x64] sm:$0xf] %vm1054, %v1015
      %1081 = vst.msk [vmem:[#allocation3 + $0x68] sm:$0xf] %vm1054, %v1016
      %1082 = vst.msk [vmem:[#allocation3 + $0x6c] sm:$0xf] %vm1054, %v1017
      %1083 = vst.msk [vmem:[#allocation3 + $0x70] sm:$0xf] %vm1054, %v1018
      %1084 = vst.msk [vmem:[#allocation3 + $0x74] sm:$0xf] %vm1054, %v1019
      %1085 = vst.msk [vmem:[#allocation3 + $0x78] sm:$0xf] %vm1054, %v1020
      %1086 = vst.msk [vmem:[#allocation3 + $0x7c] sm:$0xf] %vm1054, %v1021
      %v1087 = vld [vmem:[#allocation2 + $0x1] sm:$0xff]
      %v1088 = vld [vmem:[#allocation2 + $0x9] sm:$0xff]
      %v1089 = vld [vmem:[#allocation2 + $0x11] sm:$0xff]
      %v1090 = vld [vmem:[#allocation2 + $0x19] sm:$0xff]
      %v1091 = vld [vmem:[#allocation2 + $0x21] sm:$0xff]
      %v1092 = vld [vmem:[#allocation2 + $0x29] sm:$0xff]
      %v1093 = vld [vmem:[#allocation2 + $0x31] sm:$0xff]
      %v1094 = vld [vmem:[#allocation2 + $0x39] sm:$0xff]
      %v1095 = vld [vmem:[#allocation2 + $0x41] sm:$0xff]
      %v1096 = vld [vmem:[#allocation2 + $0x49] sm:$0xff]
      %v1097 = vld [vmem:[#allocation2 + $0x51] sm:$0xff]
      %v1098 = vld [vmem:[#allocation2 + $0x59] sm:$0xff]
      %v1099 = vld [vmem:[#allocation2 + $0x61] sm:$0xff]
      %v1100 = vld [vmem:[#allocation2 + $0x69] sm:$0xff]
      %v1101 = vld [vmem:[#allocation2 + $0x71] sm:$0xff]
      %v1102 = vld [vmem:[#allocation2 + $0x79] sm:$0xff]
      %v1103 = vld [vmem:[#allocation2 + $0x81] sm:$0xff]
      %v1104 = vld [vmem:[#allocation2 + $0x89] sm:$0xff]
      %v1105 = vld [vmem:[#allocation2 + $0x91] sm:$0xff]
      %v1106 = vld [vmem:[#allocation2 + $0x99] sm:$0xff]
      %v1107 = vld [vmem:[#allocation2 + $0xa1] sm:$0xff]
      %v1108 = vld [vmem:[#allocation2 + $0xa9] sm:$0xff]
      %v1109 = vld [vmem:[#allocation2 + $0xb1] sm:$0xff]
      %v1110 = vld [vmem:[#allocation2 + $0xb9] sm:$0xff]
      %v1111 = vld [vmem:[#allocation2 + $0xc1] sm:$0xff]
      %v1112 = vld [vmem:[#allocation2 + $0xc9] sm:$0xff]
      %v1113 = vld [vmem:[#allocation2 + $0xd1] sm:$0xff]
      %v1114 = vld [vmem:[#allocation2 + $0xd9] sm:$0xff]
      %v1115 = vld [vmem:[#allocation2 + $0xe1] sm:$0xff]
      %v1116 = vld [vmem:[#allocation2 + $0xe9] sm:$0xff]
      %v1117 = vld [vmem:[#allocation2 + $0xf1] sm:$0xff]
      %v1118 = vld [vmem:[#allocation2 + $0xf9] sm:$0xff]
      %v1119 = vpack.c.bf16 %v1088, %v1087
      %v1120 = vpack.c.bf16 %v1090, %v1089
      %v1121 = vpack.c.bf16 %v1092, %v1091
      %v1122 = vpack.c.bf16 %v1094, %v1093
      %v1123 = vpack.c.bf16 %v1096, %v1095
      %v1124 = vpack.c.bf16 %v1098, %v1097
      %v1125 = vpack.c.bf16 %v1100, %v1099
      %v1126 = vpack.c.bf16 %v1102, %v1101
      %v1127 = vpack.c.bf16 %v1104, %v1103
      %v1128 = vpack.c.bf16 %v1106, %v1105
      %v1129 = vpack.c.bf16 %v1108, %v1107
      %v1130 = vpack.c.bf16 %v1110, %v1109
      %v1131 = vpack.c.bf16 %v1112, %v1111
      %v1132 = vpack.c.bf16 %v1114, %v1113
      %v1133 = vpack.c.bf16 %v1116, %v1115
      %v1134 = vpack.c.bf16 %v1118, %v1117
      %v1151 = vunpack.c.l.b16 %v1119
      %v1152 = vunpack.c.h.b16 %v1119
      %v1153 = vunpack.c.l.b16 %v1120
      %v1154 = vunpack.c.h.b16 %v1120
      %v1155 = vunpack.c.l.b16 %v1121
      %v1156 = vunpack.c.h.b16 %v1121
      %v1157 = vunpack.c.l.b16 %v1122
      %v1158 = vunpack.c.h.b16 %v1122
      %v1159 = vunpack.c.l.b16 %v1123
      %v1160 = vunpack.c.h.b16 %v1123
      %v1161 = vunpack.c.l.b16 %v1124
      %v1162 = vunpack.c.h.b16 %v1124
      %v1163 = vunpack.c.l.b16 %v1125
      %v1164 = vunpack.c.h.b16 %v1125
      %v1165 = vunpack.c.l.b16 %v1126
      %v1166 = vunpack.c.h.b16 %v1126
      %v1167 = vunpack.c.l.b16 %v1127
      %v1168 = vunpack.c.h.b16 %v1127
      %v1169 = vunpack.c.l.b16 %v1128
      %v1170 = vunpack.c.h.b16 %v1128
      %v1171 = vunpack.c.l.b16 %v1129
      %v1172 = vunpack.c.h.b16 %v1129
      %v1173 = vunpack.c.l.b16 %v1130
      %v1174 = vunpack.c.h.b16 %v1130
      %v1175 = vunpack.c.l.b16 %v1131
      %v1176 = vunpack.c.h.b16 %v1131
      %v1177 = vunpack.c.l.b16 %v1132
      %v1178 = vunpack.c.h.b16 %v1132
      %v1179 = vunpack.c.l.b16 %v1133
      %v1180 = vunpack.c.h.b16 %v1133
      %v1181 = vunpack.c.l.b16 %v1134
      %v1182 = vunpack.c.h.b16 %v1134
      %v1183 = vpack.c.b16 %v1151, %v1151
      %v1184 = vpack.c.b16 %v1152, %v1152
      %v1185 = vpack.c.b16 %v1153, %v1153
      %v1186 = vpack.c.b16 %v1154, %v1154
      %v1187 = vpack.c.b16 %v1155, %v1155
      %v1188 = vpack.c.b16 %v1156, %v1156
      %v1189 = vpack.c.b16 %v1157, %v1157
      %v1190 = vpack.c.b16 %v1158, %v1158
      %v1191 = vpack.c.b16 %v1159, %v1159
      %v1192 = vpack.c.b16 %v1160, %v1160
      %v1193 = vpack.c.b16 %v1161, %v1161
      %v1194 = vpack.c.b16 %v1162, %v1162
      %v1195 = vpack.c.b16 %v1163, %v1163
      %v1196 = vpack.c.b16 %v1164, %v1164
      %v1197 = vpack.c.b16 %v1165, %v1165
      %v1198 = vpack.c.b16 %v1166, %v1166
      %v1199 = vpack.c.b16 %v1167, %v1167
      %v1200 = vpack.c.b16 %v1168, %v1168
      %v1201 = vpack.c.b16 %v1169, %v1169
      %v1202 = vpack.c.b16 %v1170, %v1170
      %v1203 = vpack.c.b16 %v1171, %v1171
      %v1204 = vpack.c.b16 %v1172, %v1172
      %v1205 = vpack.c.b16 %v1173, %v1173
      %v1206 = vpack.c.b16 %v1174, %v1174
      %v1207 = vpack.c.b16 %v1175, %v1175
      %v1208 = vpack.c.b16 %v1176, %v1176
      %v1209 = vpack.c.b16 %v1177, %v1177
      %v1210 = vpack.c.b16 %v1178, %v1178
      %v1211 = vpack.c.b16 %v1179, %v1179
      %v1212 = vpack.c.b16 %v1180, %v1180
      %v1213 = vpack.c.b16 %v1181, %v1181
      %v1214 = vpack.c.b16 %v1182, %v1182
      %1215 = vrot.lane.b32.xlu0 %v1183, 4
      %v1216 = vpop.permute.xlu0 %1215
      %1217 = vrot.lane.b32.xlu0 %v1184, 4
      %v1218 = vpop.permute.xlu0 %1217
      %1219 = vrot.lane.b32.xlu0 %v1185, 4
      %v1220 = vpop.permute.xlu0 %1219
      %1221 = vrot.lane.b32.xlu0 %v1186, 4
      %v1222 = vpop.permute.xlu0 %1221
      %1223 = vrot.lane.b32.xlu0 %v1187, 4
      %v1224 = vpop.permute.xlu0 %1223
      %1225 = vrot.lane.b32.xlu0 %v1188, 4
      %v1226 = vpop.permute.xlu0 %1225
      %1227 = vrot.lane.b32.xlu0 %v1189, 4
      %v1228 = vpop.permute.xlu0 %1227
      %1229 = vrot.lane.b32.xlu0 %v1190, 4
      %v1230 = vpop.permute.xlu0 %1229
      %1231 = vrot.lane.b32.xlu0 %v1191, 4
      %v1232 = vpop.permute.xlu0 %1231
      %1233 = vrot.lane.b32.xlu0 %v1192, 4
      %v1234 = vpop.permute.xlu0 %1233
      %1235 = vrot.lane.b32.xlu0 %v1193, 4
      %v1236 = vpop.permute.xlu0 %1235
      %1237 = vrot.lane.b32.xlu0 %v1194, 4
      %v1238 = vpop.permute.xlu0 %1237
      %1239 = vrot.lane.b32.xlu0 %v1195, 4
      %v1240 = vpop.permute.xlu0 %1239
      %1241 = vrot.lane.b32.xlu0 %v1196, 4
      %v1242 = vpop.permute.xlu0 %1241
      %1243 = vrot.lane.b32.xlu0 %v1197, 4
      %v1244 = vpop.permute.xlu0 %1243
      %1245 = vrot.lane.b32.xlu0 %v1198, 4
      %v1246 = vpop.permute.xlu0 %1245
      %1247 = vrot.lane.b32.xlu0 %v1199, 4
      %v1248 = vpop.permute.xlu0 %1247
      %1249 = vrot.lane.b32.xlu0 %v1200, 4
      %v1250 = vpop.permute.xlu0 %1249
      %1251 = vrot.lane.b32.xlu0 %v1201, 4
      %v1252 = vpop.permute.xlu0 %1251
      %1253 = vrot.lane.b32.xlu0 %v1202, 4
      %v1254 = vpop.permute.xlu0 %1253
      %1255 = vrot.lane.b32.xlu0 %v1203, 4
      %v1256 = vpop.permute.xlu0 %1255
      %1257 = vrot.lane.b32.xlu0 %v1204, 4
      %v1258 = vpop.permute.xlu0 %1257
      %1259 = vrot.lane.b32.xlu0 %v1205, 4
      %v1260 = vpop.permute.xlu0 %1259
      %1261 = vrot.lane.b32.xlu0 %v1206, 4
      %v1262 = vpop.permute.xlu0 %1261
      %1263 = vrot.lane.b32.xlu0 %v1207, 4
      %v1264 = vpop.permute.xlu0 %1263
      %1265 = vrot.lane.b32.xlu0 %v1208, 4
      %v1266 = vpop.permute.xlu0 %1265
      %1267 = vrot.lane.b32.xlu0 %v1209, 4
      %v1268 = vpop.permute.xlu0 %1267
      %1269 = vrot.lane.b32.xlu0 %v1210, 4
      %v1270 = vpop.permute.xlu0 %1269
      %1271 = vrot.lane.b32.xlu0 %v1211, 4
      %v1272 = vpop.permute.xlu0 %1271
      %1273 = vrot.lane.b32.xlu0 %v1212, 4
      %v1274 = vpop.permute.xlu0 %1273
      %1275 = vrot.lane.b32.xlu0 %v1213, 4
      %v1276 = vpop.permute.xlu0 %1275
      %1277 = vrot.lane.b32.xlu0 %v1214, 4
      %v1278 = vpop.permute.xlu0 %1277
      %vm1311 = vcmask 60448
      %1312 = vst.msk [vmem:[#allocation3] sm:$0xf] %vm1311, %v1216
      %1313 = vst.msk [vmem:[#allocation3 + $0x4] sm:$0xf] %vm1311, %v1218
      %1314 = vst.msk [vmem:[#allocation3 + $0x8] sm:$0xf] %vm1311, %v1220
      %1315 = vst.msk [vmem:[#allocation3 + $0xc] sm:$0xf] %vm1311, %v1222
      %1316 = vst.msk [vmem:[#allocation3 + $0x10] sm:$0xf] %vm1311, %v1224
      %1317 = vst.msk [vmem:[#allocation3 + $0x14] sm:$0xf] %vm1311, %v1226
      %1318 = vst.msk [vmem:[#allocation3 + $0x18] sm:$0xf] %vm1311, %v1228
      %1319 = vst.msk [vmem:[#allocation3 + $0x1c] sm:$0xf] %vm1311, %v1230
      %1320 = vst.msk [vmem:[#allocation3 + $0x20] sm:$0xf] %vm1311, %v1232
      %1321 = vst.msk [vmem:[#allocation3 + $0x24] sm:$0xf] %vm1311, %v1234
      %1322 = vst.msk [vmem:[#allocation3 + $0x28] sm:$0xf] %vm1311, %v1236
      %1323 = vst.msk [vmem:[#allocation3 + $0x2c] sm:$0xf] %vm1311, %v1238
      %1324 = vst.msk [vmem:[#allocation3 + $0x30] sm:$0xf] %vm1311, %v1240
      %1325 = vst.msk [vmem:[#allocation3 + $0x34] sm:$0xf] %vm1311, %v1242
      %1326 = vst.msk [vmem:[#allocation3 + $0x38] sm:$0xf] %vm1311, %v1244
      %1327 = vst.msk [vmem:[#allocation3 + $0x3c] sm:$0xf] %vm1311, %v1246
      %1328 = vst.msk [vmem:[#allocation3 + $0x40] sm:$0xf] %vm1311, %v1248
      %1329 = vst.msk [vmem:[#allocation3 + $0x44] sm:$0xf] %vm1311, %v1250
      %1330 = vst.msk [vmem:[#allocation3 + $0x48] sm:$0xf] %vm1311, %v1252
      %1331 = vst.msk [vmem:[#allocation3 + $0x4c] sm:$0xf] %vm1311, %v1254
      %1332 = vst.msk [vmem:[#allocation3 + $0x50] sm:$0xf] %vm1311, %v1256
      %1333 = vst.msk [vmem:[#allocation3 + $0x54] sm:$0xf] %vm1311, %v1258
      %1334 = vst.msk [vmem:[#allocation3 + $0x58] sm:$0xf] %vm1311, %v1260
      %1335 = vst.msk [vmem:[#allocation3 + $0x5c] sm:$0xf] %vm1311, %v1262
      %1336 = vst.msk [vmem:[#allocation3 + $0x60] sm:$0xf] %vm1311, %v1264
      %1337 = vst.msk [vmem:[#allocation3 + $0x64] sm:$0xf] %vm1311, %v1266
      %1338 = vst.msk [vmem:[#allocation3 + $0x68] sm:$0xf] %vm1311, %v1268
      %1339 = vst.msk [vmem:[#allocation3 + $0x6c] sm:$0xf] %vm1311, %v1270
      %1340 = vst.msk [vmem:[#allocation3 + $0x70] sm:$0xf] %vm1311, %v1272
      %1341 = vst.msk [vmem:[#allocation3 + $0x74] sm:$0xf] %vm1311, %v1274
      %1342 = vst.msk [vmem:[#allocation3 + $0x78] sm:$0xf] %vm1311, %v1276
      %1343 = vst.msk [vmem:[#allocation3 + $0x7c] sm:$0xf] %vm1311, %v1278
      %v1344 = vld [vmem:[#allocation2 + $0x2] sm:$0xff]
      %v1345 = vld [vmem:[#allocation2 + $0xa] sm:$0xff]
      %v1346 = vld [vmem:[#allocation2 + $0x12] sm:$0xff]
      %v1347 = vld [vmem:[#allocation2 + $0x1a] sm:$0xff]
      %v1348 = vld [vmem:[#allocation2 + $0x22] sm:$0xff]
      %v1349 = vld [vmem:[#allocation2 + $0x2a] sm:$0xff]
      %v1350 = vld [vmem:[#allocation2 + $0x32] sm:$0xff]
      %v1351 = vld [vmem:[#allocation2 + $0x3a] sm:$0xff]
      %v1352 = vld [vmem:[#allocation2 + $0x42] sm:$0xff]
      %v1353 = vld [vmem:[#allocation2 + $0x4a] sm:$0xff]
      %v1354 = vld [vmem:[#allocation2 + $0x52] sm:$0xff]
      %v1355 = vld [vmem:[#allocation2 + $0x5a] sm:$0xff]
      %v1356 = vld [vmem:[#allocation2 + $0x62] sm:$0xff]
      %v1357 = vld [vmem:[#allocation2 + $0x6a] sm:$0xff]
      %v1358 = vld [vmem:[#allocation2 + $0x72] sm:$0xff]
      %v1359 = vld [vmem:[#allocation2 + $0x7a] sm:$0xff]
      %v1360 = vld [vmem:[#allocation2 + $0x82] sm:$0xff]
      %v1361 = vld [vmem:[#allocation2 + $0x8a] sm:$0xff]
      %v1362 = vld [vmem:[#allocation2 + $0x92] sm:$0xff]
      %v1363 = vld [vmem:[#allocation2 + $0x9a] sm:$0xff]
      %v1364 = vld [vmem:[#allocation2 + $0xa2] sm:$0xff]
      %v1365 = vld [vmem:[#allocation2 + $0xaa] sm:$0xff]
      %v1366 = vld [vmem:[#allocation2 + $0xb2] sm:$0xff]
      %v1367 = vld [vmem:[#allocation2 + $0xba] sm:$0xff]
      %v1368 = vld [vmem:[#allocation2 + $0xc2] sm:$0xff]
      %v1369 = vld [vmem:[#allocation2 + $0xca] sm:$0xff]
      %v1370 = vld [vmem:[#allocation2 + $0xd2] sm:$0xff]
      %v1371 = vld [vmem:[#allocation2 + $0xda] sm:$0xff]
      %v1372 = vld [vmem:[#allocation2 + $0xe2] sm:$0xff]
      %v1373 = vld [vmem:[#allocation2 + $0xea] sm:$0xff]
      %v1374 = vld [vmem:[#allocation2 + $0xf2] sm:$0xff]
      %v1375 = vld [vmem:[#allocation2 + $0xfa] sm:$0xff]
      %v1376 = vsel %vm766, 1, 0
      %v1377 = vsel %vm767, 1, 0
      %v1378 = vsel %vm768, 1, 0
      %v1379 = vsel %vm769, 1, 0
      %v1380 = vsel %vm770, 1, 0
      %v1381 = vsel %vm771, 1, 0
      %v1382 = vsel %vm772, 1, 0
      %v1383 = vsel %vm773, 1, 0
      %v1384 = vsel %vm774, 1, 0
      %v1385 = vsel %vm775, 1, 0
      %v1386 = vsel %vm776, 1, 0
      %v1387 = vsel %vm777, 1, 0
      %v1388 = vsel %vm778, 1, 0
      %v1389 = vsel %vm779, 1, 0
      %v1390 = vsel %vm780, 1, 0
      %v1391 = vsel %vm781, 1, 0
      %v1392 = vsel %vm782, 1, 0
      %v1393 = vsel %vm783, 1, 0
      %v1394 = vsel %vm784, 1, 0
      %v1395 = vsel %vm785, 1, 0
      %v1396 = vsel %vm786, 1, 0
      %v1397 = vsel %vm787, 1, 0
      %v1398 = vsel %vm788, 1, 0
      %v1399 = vsel %vm789, 1, 0
      %v1400 = vsel %vm790, 1, 0
      %v1401 = vsel %vm791, 1, 0
      %v1402 = vsel %vm792, 1, 0
      %v1403 = vsel %vm793, 1, 0
      %v1404 = vsel %vm794, 1, 0
      %v1405 = vsel %vm795, 1, 0
      %v1406 = vsel %vm796, 1, 0
      %v1407 = vsel %vm797, 1, 0
      %vm1408 = vcmp.eq.s32.totalorder %v1376, 1
      %vm1409 = vcmp.eq.s32.totalorder %v1377, 1
      %vm1410 = vcmp.eq.s32.totalorder %v1378, 1
      %vm1411 = vcmp.eq.s32.totalorder %v1379, 1
      %vm1412 = vcmp.eq.s32.totalorder %v1380, 1
      %vm1413 = vcmp.eq.s32.totalorder %v1381, 1
      %vm1414 = vcmp.eq.s32.totalorder %v1382, 1
      %vm1415 = vcmp.eq.s32.totalorder %v1383, 1
      %vm1416 = vcmp.eq.s32.totalorder %v1384, 1
      %vm1417 = vcmp.eq.s32.totalorder %v1385, 1
      %vm1418 = vcmp.eq.s32.totalorder %v1386, 1
      %vm1419 = vcmp.eq.s32.totalorder %v1387, 1
      %vm1420 = vcmp.eq.s32.totalorder %v1388, 1
      %vm1421 = vcmp.eq.s32.totalorder %v1389, 1
      %vm1422 = vcmp.eq.s32.totalorder %v1390, 1
      %vm1423 = vcmp.eq.s32.totalorder %v1391, 1
      %vm1424 = vcmp.eq.s32.totalorder %v1392, 1
      %vm1425 = vcmp.eq.s32.totalorder %v1393, 1
      %vm1426 = vcmp.eq.s32.totalorder %v1394, 1
      %vm1427 = vcmp.eq.s32.totalorder %v1395, 1
      %vm1428 = vcmp.eq.s32.totalorder %v1396, 1
      %vm1429 = vcmp.eq.s32.totalorder %v1397, 1
      %vm1430 = vcmp.eq.s32.totalorder %v1398, 1
      %vm1431 = vcmp.eq.s32.totalorder %v1399, 1
      %vm1432 = vcmp.eq.s32.totalorder %v1400, 1
      %vm1433 = vcmp.eq.s32.totalorder %v1401, 1
      %vm1434 = vcmp.eq.s32.totalorder %v1402, 1
      %vm1435 = vcmp.eq.s32.totalorder %v1403, 1
      %vm1436 = vcmp.eq.s32.totalorder %v1404, 1
      %vm1437 = vcmp.eq.s32.totalorder %v1405, 1
      %vm1438 = vcmp.eq.s32.totalorder %v1406, 1
      %vm1439 = vcmp.eq.s32.totalorder %v1407, 1
      %v1440 = vsel %vm1408, %v1344, 0.0
      %v1441 = vsel %vm1409, %v1345, 0.0
      %v1442 = vsel %vm1410, %v1346, 0.0
      %v1443 = vsel %vm1411, %v1347, 0.0
      %v1444 = vsel %vm1412, %v1348, 0.0
      %v1445 = vsel %vm1413, %v1349, 0.0
      %v1446 = vsel %vm1414, %v1350, 0.0
      %v1447 = vsel %vm1415, %v1351, 0.0
      %v1448 = vsel %vm1416, %v1352, 0.0
      %v1449 = vsel %vm1417, %v1353, 0.0
      %v1450 = vsel %vm1418, %v1354, 0.0
      %v1451 = vsel %vm1419, %v1355, 0.0
      %v1452 = vsel %vm1420, %v1356, 0.0
      %v1453 = vsel %vm1421, %v1357, 0.0
      %v1454 = vsel %vm1422, %v1358, 0.0
      %v1455 = vsel %vm1423, %v1359, 0.0
      %v1456 = vsel %vm1424, %v1360, 0.0
      %v1457 = vsel %vm1425, %v1361, 0.0
      %v1458 = vsel %vm1426, %v1362, 0.0
      %v1459 = vsel %vm1427, %v1363, 0.0
      %v1460 = vsel %vm1428, %v1364, 0.0
      %v1461 = vsel %vm1429, %v1365, 0.0
      %v1462 = vsel %vm1430, %v1366, 0.0
      %v1463 = vsel %vm1431, %v1367, 0.0
      %v1464 = vsel %vm1432, %v1368, 0.0
      %v1465 = vsel %vm1433, %v1369, 0.0
      %v1466 = vsel %vm1434, %v1370, 0.0
      %v1467 = vsel %vm1435, %v1371, 0.0
      %v1468 = vsel %vm1436, %v1372, 0.0
      %v1469 = vsel %vm1437, %v1373, 0.0
      %v1470 = vsel %vm1438, %v1374, 0.0
      %v1471 = vsel %vm1439, %v1375, 0.0
      %v1472 = vpack.c.bf16 %v1441, %v1440
      %v1473 = vpack.c.bf16 %v1443, %v1442
      %v1474 = vpack.c.bf16 %v1445, %v1444
      %v1475 = vpack.c.bf16 %v1447, %v1446
      %v1476 = vpack.c.bf16 %v1449, %v1448
      %v1477 = vpack.c.bf16 %v1451, %v1450
      %v1478 = vpack.c.bf16 %v1453, %v1452
      %v1479 = vpack.c.bf16 %v1455, %v1454
      %v1480 = vpack.c.bf16 %v1457, %v1456
      %v1481 = vpack.c.bf16 %v1459, %v1458
      %v1482 = vpack.c.bf16 %v1461, %v1460
      %v1483 = vpack.c.bf16 %v1463, %v1462
      %v1484 = vpack.c.bf16 %v1465, %v1464
      %v1485 = vpack.c.bf16 %v1467, %v1466
      %v1486 = vpack.c.bf16 %v1469, %v1468
      %v1487 = vpack.c.bf16 %v1471, %v1470
      %v1504 = vunpack.c.l.b16 %v1472
      %v1505 = vunpack.c.h.b16 %v1472
      %v1506 = vunpack.c.l.b16 %v1473
      %v1507 = vunpack.c.h.b16 %v1473
      %v1508 = vunpack.c.l.b16 %v1474
      %v1509 = vunpack.c.h.b16 %v1474
      %v1510 = vunpack.c.l.b16 %v1475
      %v1511 = vunpack.c.h.b16 %v1475
      %v1512 = vunpack.c.l.b16 %v1476
      %v1513 = vunpack.c.h.b16 %v1476
      %v1514 = vunpack.c.l.b16 %v1477
      %v1515 = vunpack.c.h.b16 %v1477
      %v1516 = vunpack.c.l.b16 %v1478
      %v1517 = vunpack.c.h.b16 %v1478
      %v1518 = vunpack.c.l.b16 %v1479
      %v1519 = vunpack.c.h.b16 %v1479
      %v1520 = vunpack.c.l.b16 %v1480
      %v1521 = vunpack.c.h.b16 %v1480
      %v1522 = vunpack.c.l.b16 %v1481
      %v1523 = vunpack.c.h.b16 %v1481
      %v1524 = vunpack.c.l.b16 %v1482
      %v1525 = vunpack.c.h.b16 %v1482
      %v1526 = vunpack.c.l.b16 %v1483
      %v1527 = vunpack.c.h.b16 %v1483
      %v1528 = vunpack.c.l.b16 %v1484
      %v1529 = vunpack.c.h.b16 %v1484
      %v1530 = vunpack.c.l.b16 %v1485
      %v1531 = vunpack.c.h.b16 %v1485
      %v1532 = vunpack.c.l.b16 %v1486
      %v1533 = vunpack.c.h.b16 %v1486
      %v1534 = vunpack.c.l.b16 %v1487
      %v1535 = vunpack.c.h.b16 %v1487
      %v1536 = vpack.c.b16 %v1504, %v1504
      %v1537 = vpack.c.b16 %v1505, %v1505
      %v1538 = vpack.c.b16 %v1506, %v1506
      %v1539 = vpack.c.b16 %v1507, %v1507
      %v1540 = vpack.c.b16 %v1508, %v1508
      %v1541 = vpack.c.b16 %v1509, %v1509
      %v1542 = vpack.c.b16 %v1510, %v1510
      %v1543 = vpack.c.b16 %v1511, %v1511
      %v1544 = vpack.c.b16 %v1512, %v1512
      %v1545 = vpack.c.b16 %v1513, %v1513
      %v1546 = vpack.c.b16 %v1514, %v1514
      %v1547 = vpack.c.b16 %v1515, %v1515
      %v1548 = vpack.c.b16 %v1516, %v1516
      %v1549 = vpack.c.b16 %v1517, %v1517
      %v1550 = vpack.c.b16 %v1518, %v1518
      %v1551 = vpack.c.b16 %v1519, %v1519
      %v1552 = vpack.c.b16 %v1520, %v1520
      %v1553 = vpack.c.b16 %v1521, %v1521
      %v1554 = vpack.c.b16 %v1522, %v1522
      %v1555 = vpack.c.b16 %v1523, %v1523
      %v1556 = vpack.c.b16 %v1524, %v1524
      %v1557 = vpack.c.b16 %v1525, %v1525
      %v1558 = vpack.c.b16 %v1526, %v1526
      %v1559 = vpack.c.b16 %v1527, %v1527
      %v1560 = vpack.c.b16 %v1528, %v1528
      %v1561 = vpack.c.b16 %v1529, %v1529
      %v1562 = vpack.c.b16 %v1530, %v1530
      %v1563 = vpack.c.b16 %v1531, %v1531
      %v1564 = vpack.c.b16 %v1532, %v1532
      %v1565 = vpack.c.b16 %v1533, %v1533
      %v1566 = vpack.c.b16 %v1534, %v1534
      %v1567 = vpack.c.b16 %v1535, %v1535
      %1568 = vrot.lane.b32.xlu0 %v1536, 8
      %v1569 = vpop.permute.xlu0 %1568
      %1570 = vrot.lane.b32.xlu0 %v1537, 8
      %v1571 = vpop.permute.xlu0 %1570
      %1572 = vrot.lane.b32.xlu0 %v1538, 8
      %v1573 = vpop.permute.xlu0 %1572
      %1574 = vrot.lane.b32.xlu0 %v1539, 8
      %v1575 = vpop.permute.xlu0 %1574
      %1576 = vrot.lane.b32.xlu0 %v1540, 8
      %v1577 = vpop.permute.xlu0 %1576
      %1578 = vrot.lane.b32.xlu0 %v1541, 8
      %v1579 = vpop.permute.xlu0 %1578
      %1580 = vrot.lane.b32.xlu0 %v1542, 8
      %v1581 = vpop.permute.xlu0 %1580
      %1582 = vrot.lane.b32.xlu0 %v1543, 8
      %v1583 = vpop.permute.xlu0 %1582
      %1584 = vrot.lane.b32.xlu0 %v1544, 8
      %v1585 = vpop.permute.xlu0 %1584
      %1586 = vrot.lane.b32.xlu0 %v1545, 8
      %v1587 = vpop.permute.xlu0 %1586
      %1588 = vrot.lane.b32.xlu0 %v1546, 8
      %v1589 = vpop.permute.xlu0 %1588
      %1590 = vrot.lane.b32.xlu0 %v1547, 8
      %v1591 = vpop.permute.xlu0 %1590
      %1592 = vrot.lane.b32.xlu0 %v1548, 8
      %v1593 = vpop.permute.xlu0 %1592
      %1594 = vrot.lane.b32.xlu0 %v1549, 8
      %v1595 = vpop.permute.xlu0 %1594
      %1596 = vrot.lane.b32.xlu0 %v1550, 8
      %v1597 = vpop.permute.xlu0 %1596
      %1598 = vrot.lane.b32.xlu0 %v1551, 8
      %v1599 = vpop.permute.xlu0 %1598
      %1600 = vrot.lane.b32.xlu0 %v1552, 8
      %v1601 = vpop.permute.xlu0 %1600
      %1602 = vrot.lane.b32.xlu0 %v1553, 8
      %v1603 = vpop.permute.xlu0 %1602
      %1604 = vrot.lane.b32.xlu0 %v1554, 8
      %v1605 = vpop.permute.xlu0 %1604
      %1606 = vrot.lane.b32.xlu0 %v1555, 8
      %v1607 = vpop.permute.xlu0 %1606
      %1608 = vrot.lane.b32.xlu0 %v1556, 8
      %v1609 = vpop.permute.xlu0 %1608
      %1610 = vrot.lane.b32.xlu0 %v1557, 8
      %v1611 = vpop.permute.xlu0 %1610
      %1612 = vrot.lane.b32.xlu0 %v1558, 8
      %v1613 = vpop.permute.xlu0 %1612
      %1614 = vrot.lane.b32.xlu0 %v1559, 8
      %v1615 = vpop.permute.xlu0 %1614
      %1616 = vrot.lane.b32.xlu0 %v1560, 8
      %v1617 = vpop.permute.xlu0 %1616
      %1618 = vrot.lane.b32.xlu0 %v1561, 8
      %v1619 = vpop.permute.xlu0 %1618
      %1620 = vrot.lane.b32.xlu0 %v1562, 8
      %v1621 = vpop.permute.xlu0 %1620
      %1622 = vrot.lane.b32.xlu0 %v1563, 8
      %v1623 = vpop.permute.xlu0 %1622
      %1624 = vrot.lane.b32.xlu0 %v1564, 8
      %v1625 = vpop.permute.xlu0 %1624
      %1626 = vrot.lane.b32.xlu0 %v1565, 8
      %v1627 = vpop.permute.xlu0 %1626
      %1628 = vrot.lane.b32.xlu0 %v1566, 8
      %v1629 = vpop.permute.xlu0 %1628
      %1630 = vrot.lane.b32.xlu0 %v1567, 8
      %v1631 = vpop.permute.xlu0 %1630
      %vm1664 = vcmask 93248
      %1665 = vst.msk [vmem:[#allocation3] sm:$0xf] %vm1664, %v1569
      %1666 = vst.msk [vmem:[#allocation3 + $0x4] sm:$0xf] %vm1664, %v1571
      %1667 = vst.msk [vmem:[#allocation3 + $0x8] sm:$0xf] %vm1664, %v1573
      %1668 = vst.msk [vmem:[#allocation3 + $0xc] sm:$0xf] %vm1664, %v1575
      %1669 = vst.msk [vmem:[#allocation3 + $0x10] sm:$0xf] %vm1664, %v1577
      %1670 = vst.msk [vmem:[#allocation3 + $0x14] sm:$0xf] %vm1664, %v1579
      %1671 = vst.msk [vmem:[#allocation3 + $0x18] sm:$0xf] %vm1664, %v1581
      %1672 = vst.msk [vmem:[#allocation3 + $0x1c] sm:$0xf] %vm1664, %v1583
      %1673 = vst.msk [vmem:[#allocation3 + $0x20] sm:$0xf] %vm1664, %v1585
      %1674 = vst.msk [vmem:[#allocation3 + $0x24] sm:$0xf] %vm1664, %v1587
      %1675 = vst.msk [vmem:[#allocation3 + $0x28] sm:$0xf] %vm1664, %v1589
      %1676 = vst.msk [vmem:[#allocation3 + $0x2c] sm:$0xf] %vm1664, %v1591
      %1677 = vst.msk [vmem:[#allocation3 + $0x30] sm:$0xf] %vm1664, %v1593
      %1678 = vst.msk [vmem:[#allocation3 + $0x34] sm:$0xf] %vm1664, %v1595
      %1679 = vst.msk [vmem:[#allocation3 + $0x38] sm:$0xf] %vm1664, %v1597
      %1680 = vst.msk [vmem:[#allocation3 + $0x3c] sm:$0xf] %vm1664, %v1599
      %1681 = vst.msk [vmem:[#allocation3 + $0x40] sm:$0xf] %vm1664, %v1601
      %1682 = vst.msk [vmem:[#allocation3 + $0x44] sm:$0xf] %vm1664, %v1603
      %1683 = vst.msk [vmem:[#allocation3 + $0x48] sm:$0xf] %vm1664, %v1605
      %1684 = vst.msk [vmem:[#allocation3 + $0x4c] sm:$0xf] %vm1664, %v1607
      %1685 = vst.msk [vmem:[#allocation3 + $0x50] sm:$0xf] %vm1664, %v1609
      %1686 = vst.msk [vmem:[#allocation3 + $0x54] sm:$0xf] %vm1664, %v1611
      %1687 = vst.msk [vmem:[#allocation3 + $0x58] sm:$0xf] %vm1664, %v1613
      %1688 = vst.msk [vmem:[#allocation3 + $0x5c] sm:$0xf] %vm1664, %v1615
      %1689 = vst.msk [vmem:[#allocation3 + $0x60] sm:$0xf] %vm1664, %v1617
      %1690 = vst.msk [vmem:[#allocation3 + $0x64] sm:$0xf] %vm1664, %v1619
      %1691 = vst.msk [vmem:[#allocation3 + $0x68] sm:$0xf] %vm1664, %v1621
      %1692 = vst.msk [vmem:[#allocation3 + $0x6c] sm:$0xf] %vm1664, %v1623
      %1693 = vst.msk [vmem:[#allocation3 + $0x70] sm:$0xf] %vm1664, %v1625
      %1694 = vst.msk [vmem:[#allocation3 + $0x74] sm:$0xf] %vm1664, %v1627
      %1695 = vst.msk [vmem:[#allocation3 + $0x78] sm:$0xf] %vm1664, %v1629
      %1696 = vst.msk [vmem:[#allocation3 + $0x7c] sm:$0xf] %vm1664, %v1631
      %v1697 = vld [vmem:[#allocation2 + $0x10] sm:$0xff]
      %v1698 = vld [vmem:[#allocation2 + $0x18] sm:$0xff]
      %v1699 = vld [vmem:[#allocation2 + $0x20] sm:$0xff]
      %v1700 = vld [vmem:[#allocation2 + $0x28] sm:$0xff]
      %v1701 = vld [vmem:[#allocation2 + $0x30] sm:$0xff]
      %v1702 = vld [vmem:[#allocation2 + $0x38] sm:$0xff]
      %v1703 = vld [vmem:[#allocation2 + $0x40] sm:$0xff]
      %v1704 = vld [vmem:[#allocation2 + $0x48] sm:$0xff]
      %v1705 = vld [vmem:[#allocation2 + $0x50] sm:$0xff]
      %v1706 = vld [vmem:[#allocation2 + $0x58] sm:$0xff]
      %v1707 = vld [vmem:[#allocation2 + $0x60] sm:$0xff]
      %v1708 = vld [vmem:[#allocation2 + $0x68] sm:$0xff]
      %v1709 = vld [vmem:[#allocation2 + $0x70] sm:$0xff]
      %v1710 = vld [vmem:[#allocation2 + $0x78] sm:$0xff]
      %v1711 = vld [vmem:[#allocation2 + $0x80] sm:$0xff]
      %v1712 = vld [vmem:[#allocation2 + $0x88] sm:$0xff]
      %v1713 = vld [vmem:[#allocation2 + $0x90] sm:$0xff]
      %v1714 = vld [vmem:[#allocation2 + $0x98] sm:$0xff]
      %v1715 = vld [vmem:[#allocation2 + $0xa0] sm:$0xff]
      %v1716 = vld [vmem:[#allocation2 + $0xa8] sm:$0xff]
      %v1717 = vld [vmem:[#allocation2 + $0xb0] sm:$0xff]
      %v1718 = vld [vmem:[#allocation2 + $0xb8] sm:$0xff]
      %v1719 = vld [vmem:[#allocation2 + $0xc0] sm:$0xff]
      %v1720 = vld [vmem:[#allocation2 + $0xc8] sm:$0xff]
      %v1721 = vld [vmem:[#allocation2 + $0xd0] sm:$0xff]
      %v1722 = vld [vmem:[#allocation2 + $0xd8] sm:$0xff]
      %v1723 = vld [vmem:[#allocation2 + $0xe0] sm:$0xff]
      %v1724 = vld [vmem:[#allocation2 + $0xe8] sm:$0xff]
      %v1725 = vld [vmem:[#allocation2 + $0xf0] sm:$0xff]
      %v1726 = vld [vmem:[#allocation2 + $0xf8] sm:$0xff]
      %v1727 = vld [vmem:[#allocation2 + $0x100] sm:$0xff]
      %v1728 = vld [vmem:[#allocation2 + $0x108] sm:$0xff]
      %v1729 = vsel %vm862, %v1697, 0.0
      %v1730 = vsel %vm863, %v1698, 0.0
      %v1731 = vsel %vm864, %v1699, 0.0
      %v1732 = vsel %vm865, %v1700, 0.0
      %v1733 = vsel %vm866, %v1701, 0.0
      %v1734 = vsel %vm867, %v1702, 0.0
      %v1735 = vsel %vm868, %v1703, 0.0
      %v1736 = vsel %vm869, %v1704, 0.0
      %v1737 = vsel %vm870, %v1705, 0.0
      %v1738 = vsel %vm871, %v1706, 0.0
      %v1739 = vsel %vm872, %v1707, 0.0
      %v1740 = vsel %vm873, %v1708, 0.0
      %v1741 = vsel %vm874, %v1709, 0.0
      %v1742 = vsel %vm875, %v1710, 0.0
      %v1743 = vsel %vm876, %v1711, 0.0
      %v1744 = vsel %vm877, %v1712, 0.0
      %v1745 = vsel %vm878, %v1713, 0.0
      %v1746 = vsel %vm879, %v1714, 0.0
      %v1747 = vsel %vm880, %v1715, 0.0
      %v1748 = vsel %vm881, %v1716, 0.0
      %v1749 = vsel %vm882, %v1717, 0.0
      %v1750 = vsel %vm883, %v1718, 0.0
      %v1751 = vsel %vm884, %v1719, 0.0
      %v1752 = vsel %vm885, %v1720, 0.0
      %v1753 = vsel %vm886, %v1721, 0.0
      %v1754 = vsel %vm887, %v1722, 0.0
      %v1755 = vsel %vm888, %v1723, 0.0
      %v1756 = vsel %vm889, %v1724, 0.0
      %v1757 = vsel %vm890, %v1725, 0.0
      %v1758 = vsel %vm891, %v1726, 0.0
      %v1759 = vsel %vm892, %v1727, 0.0
      %v1760 = vsel %vm893, %v1728, 0.0
      %v1761 = vpack.c.bf16 %v1730, %v1729
      %v1762 = vpack.c.bf16 %v1732, %v1731
      %v1763 = vpack.c.bf16 %v1734, %v1733
      %v1764 = vpack.c.bf16 %v1736, %v1735
      %v1765 = vpack.c.bf16 %v1738, %v1737
      %v1766 = vpack.c.bf16 %v1740, %v1739
      %v1767 = vpack.c.bf16 %v1742, %v1741
      %v1768 = vpack.c.bf16 %v1744, %v1743
      %v1769 = vpack.c.bf16 %v1746, %v1745
      %v1770 = vpack.c.bf16 %v1748, %v1747
      %v1771 = vpack.c.bf16 %v1750, %v1749
      %v1772 = vpack.c.bf16 %v1752, %v1751
      %v1773 = vpack.c.bf16 %v1754, %v1753
      %v1774 = vpack.c.bf16 %v1756, %v1755
      %v1775 = vpack.c.bf16 %v1758, %v1757
      %v1776 = vpack.c.bf16 %v1760, %v1759
      %v1793 = vunpack.c.l.b16 %v1761
      %v1794 = vunpack.c.h.b16 %v1761
      %v1795 = vunpack.c.l.b16 %v1762
      %v1796 = vunpack.c.h.b16 %v1762
      %v1797 = vunpack.c.l.b16 %v1763
      %v1798 = vunpack.c.h.b16 %v1763
      %v1799 = vunpack.c.l.b16 %v1764
      %v1800 = vunpack.c.h.b16 %v1764
      %v1801 = vunpack.c.l.b16 %v1765
      %v1802 = vunpack.c.h.b16 %v1765
      %v1803 = vunpack.c.l.b16 %v1766
      %v1804 = vunpack.c.h.b16 %v1766
      %v1805 = vunpack.c.l.b16 %v1767
      %v1806 = vunpack.c.h.b16 %v1767
      %v1807 = vunpack.c.l.b16 %v1768
      %v1808 = vunpack.c.h.b16 %v1768
      %v1809 = vunpack.c.l.b16 %v1769
      %v1810 = vunpack.c.h.b16 %v1769
      %v1811 = vunpack.c.l.b16 %v1770
      %v1812 = vunpack.c.h.b16 %v1770
      %v1813 = vunpack.c.l.b16 %v1771
      %v1814 = vunpack.c.h.b16 %v1771
      %v1815 = vunpack.c.l.b16 %v1772
      %v1816 = vunpack.c.h.b16 %v1772
      %v1817 = vunpack.c.l.b16 %v1773
      %v1818 = vunpack.c.h.b16 %v1773
      %v1819 = vunpack.c.l.b16 %v1774
      %v1820 = vunpack.c.h.b16 %v1774
      %v1821 = vunpack.c.l.b16 %v1775
      %v1822 = vunpack.c.h.b16 %v1775
      %v1823 = vunpack.c.l.b16 %v1776
      %v1824 = vunpack.c.h.b16 %v1776
      %v1825 = vpack.c.b16 %v1793, %v1793
      %v1826 = vpack.c.b16 %v1794, %v1794
      %v1827 = vpack.c.b16 %v1795, %v1795
      %v1828 = vpack.c.b16 %v1796, %v1796
      %v1829 = vpack.c.b16 %v1797, %v1797
      %v1830 = vpack.c.b16 %v1798, %v1798
      %v1831 = vpack.c.b16 %v1799, %v1799
      %v1832 = vpack.c.b16 %v1800, %v1800
      %v1833 = vpack.c.b16 %v1801, %v1801
      %v1834 = vpack.c.b16 %v1802, %v1802
      %v1835 = vpack.c.b16 %v1803, %v1803
      %v1836 = vpack.c.b16 %v1804, %v1804
      %v1837 = vpack.c.b16 %v1805, %v1805
      %v1838 = vpack.c.b16 %v1806, %v1806
      %v1839 = vpack.c.b16 %v1807, %v1807
      %v1840 = vpack.c.b16 %v1808, %v1808
      %v1841 = vpack.c.b16 %v1809, %v1809
      %v1842 = vpack.c.b16 %v1810, %v1810
      %v1843 = vpack.c.b16 %v1811, %v1811
      %v1844 = vpack.c.b16 %v1812, %v1812
      %v1845 = vpack.c.b16 %v1813, %v1813
      %v1846 = vpack.c.b16 %v1814, %v1814
      %v1847 = vpack.c.b16 %v1815, %v1815
      %v1848 = vpack.c.b16 %v1816, %v1816
      %v1849 = vpack.c.b16 %v1817, %v1817
      %v1850 = vpack.c.b16 %v1818, %v1818
      %v1851 = vpack.c.b16 %v1819, %v1819
      %v1852 = vpack.c.b16 %v1820, %v1820
      %v1853 = vpack.c.b16 %v1821, %v1821
      %v1854 = vpack.c.b16 %v1822, %v1822
      %v1855 = vpack.c.b16 %v1823, %v1823
      %v1856 = vpack.c.b16 %v1824, %v1824
      %1857 = vrot.lane.b32.xlu0 %v1825, 12
      %v1858 = vpop.permute.xlu0 %1857
      %1859 = vrot.lane.b32.xlu0 %v1826, 12
      %v1860 = vpop.permute.xlu0 %1859
      %1861 = vrot.lane.b32.xlu0 %v1827, 12
      %v1862 = vpop.permute.xlu0 %1861
      %1863 = vrot.lane.b32.xlu0 %v1828, 12
      %v1864 = vpop.permute.xlu0 %1863
      %1865 = vrot.lane.b32.xlu0 %v1829, 12
      %v1866 = vpop.permute.xlu0 %1865
      %1867 = vrot.lane.b32.xlu0 %v1830, 12
      %v1868 = vpop.permute.xlu0 %1867
      %1869 = vrot.lane.b32.xlu0 %v1831, 12
      %v1870 = vpop.permute.xlu0 %1869
      %1871 = vrot.lane.b32.xlu0 %v1832, 12
      %v1872 = vpop.permute.xlu0 %1871
      %1873 = vrot.lane.b32.xlu0 %v1833, 12
      %v1874 = vpop.permute.xlu0 %1873
      %1875 = vrot.lane.b32.xlu0 %v1834, 12
      %v1876 = vpop.permute.xlu0 %1875
      %1877 = vrot.lane.b32.xlu0 %v1835, 12
      %v1878 = vpop.permute.xlu0 %1877
      %1879 = vrot.lane.b32.xlu0 %v1836, 12
      %v1880 = vpop.permute.xlu0 %1879
      %1881 = vrot.lane.b32.xlu0 %v1837, 12
      %v1882 = vpop.permute.xlu0 %1881
      %1883 = vrot.lane.b32.xlu0 %v1838, 12
      %v1884 = vpop.permute.xlu0 %1883
      %1885 = vrot.lane.b32.xlu0 %v1839, 12
      %v1886 = vpop.permute.xlu0 %1885
      %1887 = vrot.lane.b32.xlu0 %v1840, 12
      %v1888 = vpop.permute.xlu0 %1887
      %1889 = vrot.lane.b32.xlu0 %v1841, 12
      %v1890 = vpop.permute.xlu0 %1889
      %1891 = vrot.lane.b32.xlu0 %v1842, 12
      %v1892 = vpop.permute.xlu0 %1891
      %1893 = vrot.lane.b32.xlu0 %v1843, 12
      %v1894 = vpop.permute.xlu0 %1893
      %1895 = vrot.lane.b32.xlu0 %v1844, 12
      %v1896 = vpop.permute.xlu0 %1895
      %1897 = vrot.lane.b32.xlu0 %v1845, 12
      %v1898 = vpop.permute.xlu0 %1897
      %1899 = vrot.lane.b32.xlu0 %v1846, 12
      %v1900 = vpop.permute.xlu0 %1899
      %1901 = vrot.lane.b32.xlu0 %v1847, 12
      %v1902 = vpop.permute.xlu0 %1901
      %1903 = vrot.lane.b32.xlu0 %v1848, 12
      %v1904 = vpop.permute.xlu0 %1903
      %1905 = vrot.lane.b32.xlu0 %v1849, 12
      %v1906 = vpop.permute.xlu0 %1905
      %1907 = vrot.lane.b32.xlu0 %v1850, 12
      %v1908 = vpop.permute.xlu0 %1907
      %1909 = vrot.lane.b32.xlu0 %v1851, 12
      %v1910 = vpop.permute.xlu0 %1909
      %1911 = vrot.lane.b32.xlu0 %v1852, 12
      %v1912 = vpop.permute.xlu0 %1911
      %1913 = vrot.lane.b32.xlu0 %v1853, 12
      %v1914 = vpop.permute.xlu0 %1913
      %1915 = vrot.lane.b32.xlu0 %v1854, 12
      %v1916 = vpop.permute.xlu0 %1915
      %1917 = vrot.lane.b32.xlu0 %v1855, 12
      %v1918 = vpop.permute.xlu0 %1917
      %1919 = vrot.lane.b32.xlu0 %v1856, 12
      %v1920 = vpop.permute.xlu0 %1919
      %vm1953 = vcmask 126048
      %1954 = vst.msk [vmem:[#allocation3] sm:$0xf] %vm1953, %v1858
      %1955 = vst.msk [vmem:[#allocation3 + $0x4] sm:$0xf] %vm1953, %v1860
      %1956 = vst.msk [vmem:[#allocation3 + $0x8] sm:$0xf] %vm1953, %v1862
      %1957 = vst.msk [vmem:[#allocation3 + $0xc] sm:$0xf] %vm1953, %v1864
      %1958 = vst.msk [vmem:[#allocation3 + $0x10] sm:$0xf] %vm1953, %v1866
      %1959 = vst.msk [vmem:[#allocation3 + $0x14] sm:$0xf] %vm1953, %v1868
      %1960 = vst.msk [vmem:[#allocation3 + $0x18] sm:$0xf] %vm1953, %v1870
      %1961 = vst.msk [vmem:[#allocation3 + $0x1c] sm:$0xf] %vm1953, %v1872
      %1962 = vst.msk [vmem:[#allocation3 + $0x20] sm:$0xf] %vm1953, %v1874
      %1963 = vst.msk [vmem:[#allocation3 + $0x24] sm:$0xf] %vm1953, %v1876
      %1964 = vst.msk [vmem:[#allocation3 + $0x28] sm:$0xf] %vm1953, %v1878
      %1965 = vst.msk [vmem:[#allocation3 + $0x2c] sm:$0xf] %vm1953, %v1880
      %1966 = vst.msk [vmem:[#allocation3 + $0x30] sm:$0xf] %vm1953, %v1882
      %1967 = vst.msk [vmem:[#allocation3 + $0x34] sm:$0xf] %vm1953, %v1884
      %1968 = vst.msk [vmem:[#allocation3 + $0x38] sm:$0xf] %vm1953, %v1886
      %1969 = vst.msk [vmem:[#allocation3 + $0x3c] sm:$0xf] %vm1953, %v1888
      %1970 = vst.msk [vmem:[#allocation3 + $0x40] sm:$0xf] %vm1953, %v1890
      %1971 = vst.msk [vmem:[#allocation3 + $0x44] sm:$0xf] %vm1953, %v1892
      %1972 = vst.msk [vmem:[#allocation3 + $0x48] sm:$0xf] %vm1953, %v1894
      %1973 = vst.msk [vmem:[#allocation3 + $0x4c] sm:$0xf] %vm1953, %v1896
      %1974 = vst.msk [vmem:[#allocation3 + $0x50] sm:$0xf] %vm1953, %v1898
      %1975 = vst.msk [vmem:[#allocation3 + $0x54] sm:$0xf] %vm1953, %v1900
      %1976 = vst.msk [vmem:[#allocation3 + $0x58] sm:$0xf] %vm1953, %v1902
      %1977 = vst.msk [vmem:[#allocation3 + $0x5c] sm:$0xf] %vm1953, %v1904
      %1978 = vst.msk [vmem:[#allocation3 + $0x60] sm:$0xf] %vm1953, %v1906
      %1979 = vst.msk [vmem:[#allocation3 + $0x64] sm:$0xf] %vm1953, %v1908
      %1980 = vst.msk [vmem:[#allocation3 + $0x68] sm:$0xf] %vm1953, %v1910
      %1981 = vst.msk [vmem:[#allocation3 + $0x6c] sm:$0xf] %vm1953, %v1912
      %1982 = vst.msk [vmem:[#allocation3 + $0x70] sm:$0xf] %vm1953, %v1914
      %1983 = vst.msk [vmem:[#allocation3 + $0x74] sm:$0xf] %vm1953, %v1916
      %1984 = vst.msk [vmem:[#allocation3 + $0x78] sm:$0xf] %vm1953, %v1918
      %1985 = vst.msk [vmem:[#allocation3 + $0x7c] sm:$0xf] %vm1953, %v1920
      %v1986 = vld [vmem:[#allocation2 + $0x11] sm:$0xff]
      %v1987 = vld [vmem:[#allocation2 + $0x19] sm:$0xff]
      %v1988 = vld [vmem:[#allocation2 + $0x21] sm:$0xff]
      %v1989 = vld [vmem:[#allocation2 + $0x29] sm:$0xff]
      %v1990 = vld [vmem:[#allocation2 + $0x31] sm:$0xff]
      %v1991 = vld [vmem:[#allocation2 + $0x39] sm:$0xff]
      %v1992 = vld [vmem:[#allocation2 + $0x41] sm:$0xff]
      %v1993 = vld [vmem:[#allocation2 + $0x49] sm:$0xff]
      %v1994 = vld [vmem:[#allocation2 + $0x51] sm:$0xff]
      %v1995 = vld [vmem:[#allocation2 + $0x59] sm:$0xff]
      %v1996 = vld [vmem:[#allocation2 + $0x61] sm:$0xff]
      %v1997 = vld [vmem:[#allocation2 + $0x69] sm:$0xff]
      %v1998 = vld [vmem:[#allocation2 + $0x71] sm:$0xff]
      %v1999 = vld [vmem:[#allocation2 + $0x79] sm:$0xff]
      %v2000 = vld [vmem:[#allocation2 + $0x81] sm:$0xff]
      %v2001 = vld [vmem:[#allocation2 + $0x89] sm:$0xff]
      %v2002 = vld [vmem:[#allocation2 + $0x91] sm:$0xff]
      %v2003 = vld [vmem:[#allocation2 + $0x99] sm:$0xff]
      %v2004 = vld [vmem:[#allocation2 + $0xa1] sm:$0xff]
      %v2005 = vld [vmem:[#allocation2 + $0xa9] sm:$0xff]
      %v2006 = vld [vmem:[#allocation2 + $0xb1] sm:$0xff]
      %v2007 = vld [vmem:[#allocation2 + $0xb9] sm:$0xff]
      %v2008 = vld [vmem:[#allocation2 + $0xc1] sm:$0xff]
      %v2009 = vld [vmem:[#allocation2 + $0xc9] sm:$0xff]
      %v2010 = vld [vmem:[#allocation2 + $0xd1] sm:$0xff]
      %v2011 = vld [vmem:[#allocation2 + $0xd9] sm:$0xff]
      %v2012 = vld [vmem:[#allocation2 + $0xe1] sm:$0xff]
      %v2013 = vld [vmem:[#allocation2 + $0xe9] sm:$0xff]
      %v2014 = vld [vmem:[#allocation2 + $0xf1] sm:$0xff]
      %v2015 = vld [vmem:[#allocation2 + $0xf9] sm:$0xff]
      %v2016 = vld [vmem:[#allocation2 + $0x101] sm:$0xff]
      %v2017 = vld [vmem:[#allocation2 + $0x109] sm:$0xff]
      %v2018 = vpack.c.bf16 %v1987, %v1986
      %v2019 = vpack.c.bf16 %v1989, %v1988
      %v2020 = vpack.c.bf16 %v1991, %v1990
      %v2021 = vpack.c.bf16 %v1993, %v1992
      %v2022 = vpack.c.bf16 %v1995, %v1994
      %v2023 = vpack.c.bf16 %v1997, %v1996
      %v2024 = vpack.c.bf16 %v1999, %v1998
      %v2025 = vpack.c.bf16 %v2001, %v2000
      %v2026 = vpack.c.bf16 %v2003, %v2002
      %v2027 = vpack.c.bf16 %v2005, %v2004
      %v2028 = vpack.c.bf16 %v2007, %v2006
      %v2029 = vpack.c.bf16 %v2009, %v2008
      %v2030 = vpack.c.bf16 %v2011, %v2010
      %v2031 = vpack.c.bf16 %v2013, %v2012
      %v2032 = vpack.c.bf16 %v2015, %v2014
      %v2033 = vpack.c.bf16 %v2017, %v2016
      %v2050 = vunpack.c.l.b16 %v2018
      %v2051 = vunpack.c.h.b16 %v2018
      %v2052 = vunpack.c.l.b16 %v2019
      %v2053 = vunpack.c.h.b16 %v2019
      %v2054 = vunpack.c.l.b16 %v2020
      %v2055 = vunpack.c.h.b16 %v2020
      %v2056 = vunpack.c.l.b16 %v2021
      %v2057 = vunpack.c.h.b16 %v2021
      %v2058 = vunpack.c.l.b16 %v2022
      %v2059 = vunpack.c.h.b16 %v2022
      %v2060 = vunpack.c.l.b16 %v2023
      %v2061 = vunpack.c.h.b16 %v2023
      %v2062 = vunpack.c.l.b16 %v2024
      %v2063 = vunpack.c.h.b16 %v2024
      %v2064 = vunpack.c.l.b16 %v2025
      %v2065 = vunpack.c.h.b16 %v2025
      %v2066 = vunpack.c.l.b16 %v2026
      %v2067 = vunpack.c.h.b16 %v2026
      %v2068 = vunpack.c.l.b16 %v2027
      %v2069 = vunpack.c.h.b16 %v2027
      %v2070 = vunpack.c.l.b16 %v2028
      %v2071 = vunpack.c.h.b16 %v2028
      %v2072 = vunpack.c.l.b16 %v2029
      %v2073 = vunpack.c.h.b16 %v2029
      %v2074 = vunpack.c.l.b16 %v2030
      %v2075 = vunpack.c.h.b16 %v2030
      %v2076 = vunpack.c.l.b16 %v2031
      %v2077 = vunpack.c.h.b16 %v2031
      %v2078 = vunpack.c.l.b16 %v2032
      %v2079 = vunpack.c.h.b16 %v2032
      %v2080 = vunpack.c.l.b16 %v2033
      %v2081 = vunpack.c.h.b16 %v2033
      %v2082 = vpack.c.b16 %v2050, %v2050
      %v2083 = vpack.c.b16 %v2051, %v2051
      %v2084 = vpack.c.b16 %v2052, %v2052
      %v2085 = vpack.c.b16 %v2053, %v2053
      %v2086 = vpack.c.b16 %v2054, %v2054
      %v2087 = vpack.c.b16 %v2055, %v2055
      %v2088 = vpack.c.b16 %v2056, %v2056
      %v2089 = vpack.c.b16 %v2057, %v2057
      %v2090 = vpack.c.b16 %v2058, %v2058
      %v2091 = vpack.c.b16 %v2059, %v2059
      %v2092 = vpack.c.b16 %v2060, %v2060
      %v2093 = vpack.c.b16 %v2061, %v2061
      %v2094 = vpack.c.b16 %v2062, %v2062
      %v2095 = vpack.c.b16 %v2063, %v2063
      %v2096 = vpack.c.b16 %v2064, %v2064
      %v2097 = vpack.c.b16 %v2065, %v2065
      %v2098 = vpack.c.b16 %v2066, %v2066
      %v2099 = vpack.c.b16 %v2067, %v2067
      %v2100 = vpack.c.b16 %v2068, %v2068
      %v2101 = vpack.c.b16 %v2069, %v2069
      %v2102 = vpack.c.b16 %v2070, %v2070
      %v2103 = vpack.c.b16 %v2071, %v2071
      %v2104 = vpack.c.b16 %v2072, %v2072
      %v2105 = vpack.c.b16 %v2073, %v2073
      %v2106 = vpack.c.b16 %v2074, %v2074
      %v2107 = vpack.c.b16 %v2075, %v2075
      %v2108 = vpack.c.b16 %v2076, %v2076
      %v2109 = vpack.c.b16 %v2077, %v2077
      %v2110 = vpack.c.b16 %v2078, %v2078
      %v2111 = vpack.c.b16 %v2079, %v2079
      %v2112 = vpack.c.b16 %v2080, %v2080
      %v2113 = vpack.c.b16 %v2081, %v2081
      %2114 = vrot.lane.b32.xlu0 %v2082, 16
      %v2115 = vpop.permute.xlu0 %2114
      %2116 = vrot.lane.b32.xlu0 %v2083, 16
      %v2117 = vpop.permute.xlu0 %2116
      %2118 = vrot.lane.b32.xlu0 %v2084, 16
      %v2119 = vpop.permute.xlu0 %2118
      %2120 = vrot.lane.b32.xlu0 %v2085, 16
      %v2121 = vpop.permute.xlu0 %2120
      %2122 = vrot.lane.b32.xlu0 %v2086, 16
      %v2123 = vpop.permute.xlu0 %2122
      %2124 = vrot.lane.b32.xlu0 %v2087, 16
      %v2125 = vpop.permute.xlu0 %2124
      %2126 = vrot.lane.b32.xlu0 %v2088, 16
      %v2127 = vpop.permute.xlu0 %2126
      %2128 = vrot.lane.b32.xlu0 %v2089, 16
      %v2129 = vpop.permute.xlu0 %2128
      %2130 = vrot.lane.b32.xlu0 %v2090, 16
      %v2131 = vpop.permute.xlu0 %2130
      %2132 = vrot.lane.b32.xlu0 %v2091, 16
      %v2133 = vpop.permute.xlu0 %2132
      %2134 = vrot.lane.b32.xlu0 %v2092, 16
      %v2135 = vpop.permute.xlu0 %2134
      %2136 = vrot.lane.b32.xlu0 %v2093, 16
      %v2137 = vpop.permute.xlu0 %2136
      %2138 = vrot.lane.b32.xlu0 %v2094, 16
      %v2139 = vpop.permute.xlu0 %2138
      %2140 = vrot.lane.b32.xlu0 %v2095, 16
      %v2141 = vpop.permute.xlu0 %2140
      %2142 = vrot.lane.b32.xlu0 %v2096, 16
      %v2143 = vpop.permute.xlu0 %2142
      %2144 = vrot.lane.b32.xlu0 %v2097, 16
      %v2145 = vpop.permute.xlu0 %2144
      %2146 = vrot.lane.b32.xlu0 %v2098, 16
      %v2147 = vpop.permute.xlu0 %2146
      %2148 = vrot.lane.b32.xlu0 %v2099, 16
      %v2149 = vpop.permute.xlu0 %2148
      %2150 = vrot.lane.b32.xlu0 %v2100, 16
      %v2151 = vpop.permute.xlu0 %2150
      %2152 = vrot.lane.b32.xlu0 %v2101, 16
      %v2153 = vpop.permute.xlu0 %2152
      %2154 = vrot.lane.b32.xlu0 %v2102, 16
      %v2155 = vpop.permute.xlu0 %2154
      %2156 = vrot.lane.b32.xlu0 %v2103, 16
      %v2157 = vpop.permute.xlu0 %2156
      %2158 = vrot.lane.b32.xlu0 %v2104, 16
      %v2159 = vpop.permute.xlu0 %2158
      %2160 = vrot.lane.b32.xlu0 %v2105, 16
      %v2161 = vpop.permute.xlu0 %2160
      %2162 = vrot.lane.b32.xlu0 %v2106, 16
      %v2163 = vpop.permute.xlu0 %2162
      %2164 = vrot.lane.b32.xlu0 %v2107, 16
      %v2165 = vpop.permute.xlu0 %2164
      %2166 = vrot.lane.b32.xlu0 %v2108, 16
      %v2167 = vpop.permute.xlu0 %2166
      %2168 = vrot.lane.b32.xlu0 %v2109, 16
      %v2169 = vpop.permute.xlu0 %2168
      %2170 = vrot.lane.b32.xlu0 %v2110, 16
      %v2171 = vpop.permute.xlu0 %2170
      %2172 = vrot.lane.b32.xlu0 %v2111, 16
      %v2173 = vpop.permute.xlu0 %2172
      %2174 = vrot.lane.b32.xlu0 %v2112, 16
      %v2175 = vpop.permute.xlu0 %2174
      %2176 = vrot.lane.b32.xlu0 %v2113, 16
      %v2177 = vpop.permute.xlu0 %2176
      %vm2210 = vcmask 158848
      %2211 = vst.msk [vmem:[#allocation3] sm:$0xf] %vm2210, %v2115
      %2212 = vst.msk [vmem:[#allocation3 + $0x4] sm:$0xf] %vm2210, %v2117
      %2213 = vst.msk [vmem:[#allocation3 + $0x8] sm:$0xf] %vm2210, %v2119
      %2214 = vst.msk [vmem:[#allocation3 + $0xc] sm:$0xf] %vm2210, %v2121
      %2215 = vst.msk [vmem:[#allocation3 + $0x10] sm:$0xf] %vm2210, %v2123
      %2216 = vst.msk [vmem:[#allocation3 + $0x14] sm:$0xf] %vm2210, %v2125
      %2217 = vst.msk [vmem:[#allocation3 + $0x18] sm:$0xf] %vm2210, %v2127
      %2218 = vst.msk [vmem:[#allocation3 + $0x1c] sm:$0xf] %vm2210, %v2129
      %2219 = vst.msk [vmem:[#allocation3 + $0x20] sm:$0xf] %vm2210, %v2131
      %2220 = vst.msk [vmem:[#allocation3 + $0x24] sm:$0xf] %vm2210, %v2133
      %2221 = vst.msk [vmem:[#allocation3 + $0x28] sm:$0xf] %vm2210, %v2135
      %2222 = vst.msk [vmem:[#allocation3 + $0x2c] sm:$0xf] %vm2210, %v2137
      %2223 = vst.msk [vmem:[#allocation3 + $0x30] sm:$0xf] %vm2210, %v2139
      %2224 = vst.msk [vmem:[#allocation3 + $0x34] sm:$0xf] %vm2210, %v2141
      %2225 = vst.msk [vmem:[#allocation3 + $0x38] sm:$0xf] %vm2210, %v2143
      %2226 = vst.msk [vmem:[#allocation3 + $0x3c] sm:$0xf] %vm2210, %v2145
      %2227 = vst.msk [vmem:[#allocation3 + $0x40] sm:$0xf] %vm2210, %v2147
      %2228 = vst.msk [vmem:[#allocation3 + $0x44] sm:$0xf] %vm2210, %v2149
      %2229 = vst.msk [vmem:[#allocation3 + $0x48] sm:$0xf] %vm2210, %v2151
      %2230 = vst.msk [vmem:[#allocation3 + $0x4c] sm:$0xf] %vm2210, %v2153
      %2231 = vst.msk [vmem:[#allocation3 + $0x50] sm:$0xf] %vm2210, %v2155
      %2232 = vst.msk [vmem:[#allocation3 + $0x54] sm:$0xf] %vm2210, %v2157
      %2233 = vst.msk [vmem:[#allocation3 + $0x58] sm:$0xf] %vm2210, %v2159
      %2234 = vst.msk [vmem:[#allocation3 + $0x5c] sm:$0xf] %vm2210, %v2161
      %2235 = vst.msk [vmem:[#allocation3 + $0x60] sm:$0xf] %vm2210, %v2163
      %2236 = vst.msk [vmem:[#allocation3 + $0x64] sm:$0xf] %vm2210, %v2165
      %2237 = vst.msk [vmem:[#allocation3 + $0x68] sm:$0xf] %vm2210, %v2167
      %2238 = vst.msk [vmem:[#allocation3 + $0x6c] sm:$0xf] %vm2210, %v2169
      %2239 = vst.msk [vmem:[#allocation3 + $0x70] sm:$0xf] %vm2210, %v2171
      %2240 = vst.msk [vmem:[#allocation3 + $0x74] sm:$0xf] %vm2210, %v2173
      %2241 = vst.msk [vmem:[#allocation3 + $0x78] sm:$0xf] %vm2210, %v2175
      %2242 = vst.msk [vmem:[#allocation3 + $0x7c] sm:$0xf] %vm2210, %v2177
      %v2243 = vld [vmem:[#allocation2 + $0x12] sm:$0xff]
      %v2244 = vld [vmem:[#allocation2 + $0x1a] sm:$0xff]
      %v2245 = vld [vmem:[#allocation2 + $0x22] sm:$0xff]
      %v2246 = vld [vmem:[#allocation2 + $0x2a] sm:$0xff]
      %v2247 = vld [vmem:[#allocation2 + $0x32] sm:$0xff]
      %v2248 = vld [vmem:[#allocation2 + $0x3a] sm:$0xff]
      %v2249 = vld [vmem:[#allocation2 + $0x42] sm:$0xff]
      %v2250 = vld [vmem:[#allocation2 + $0x4a] sm:$0xff]
      %v2251 = vld [vmem:[#allocation2 + $0x52] sm:$0xff]
      %v2252 = vld [vmem:[#allocation2 + $0x5a] sm:$0xff]
      %v2253 = vld [vmem:[#allocation2 + $0x62] sm:$0xff]
      %v2254 = vld [vmem:[#allocation2 + $0x6a] sm:$0xff]
      %v2255 = vld [vmem:[#allocation2 + $0x72] sm:$0xff]
      %v2256 = vld [vmem:[#allocation2 + $0x7a] sm:$0xff]
      %v2257 = vld [vmem:[#allocation2 + $0x82] sm:$0xff]
      %v2258 = vld [vmem:[#allocation2 + $0x8a] sm:$0xff]
      %v2259 = vld [vmem:[#allocation2 + $0x92] sm:$0xff]
      %v2260 = vld [vmem:[#allocation2 + $0x9a] sm:$0xff]
      %v2261 = vld [vmem:[#allocation2 + $0xa2] sm:$0xff]
      %v2262 = vld [vmem:[#allocation2 + $0xaa] sm:$0xff]
      %v2263 = vld [vmem:[#allocation2 + $0xb2] sm:$0xff]
      %v2264 = vld [vmem:[#allocation2 + $0xba] sm:$0xff]
      %v2265 = vld [vmem:[#allocation2 + $0xc2] sm:$0xff]
      %v2266 = vld [vmem:[#allocation2 + $0xca] sm:$0xff]
      %v2267 = vld [vmem:[#allocation2 + $0xd2] sm:$0xff]
      %v2268 = vld [vmem:[#allocation2 + $0xda] sm:$0xff]
      %v2269 = vld [vmem:[#allocation2 + $0xe2] sm:$0xff]
      %v2270 = vld [vmem:[#allocation2 + $0xea] sm:$0xff]
      %v2271 = vld [vmem:[#allocation2 + $0xf2] sm:$0xff]
      %v2272 = vld [vmem:[#allocation2 + $0xfa] sm:$0xff]
      %v2273 = vld [vmem:[#allocation2 + $0x102] sm:$0xff]
      %v2274 = vld [vmem:[#allocation2 + $0x10a] sm:$0xff]
      %v2275 = vsel %vm1408, %v2243, 0.0
      %v2276 = vsel %vm1409, %v2244, 0.0
      %v2277 = vsel %vm1410, %v2245, 0.0
      %v2278 = vsel %vm1411, %v2246, 0.0
      %v2279 = vsel %vm1412, %v2247, 0.0
      %v2280 = vsel %vm1413, %v2248, 0.0
      %v2281 = vsel %vm1414, %v2249, 0.0
      %v2282 = vsel %vm1415, %v2250, 0.0
      %v2283 = vsel %vm1416, %v2251, 0.0
      %v2284 = vsel %vm1417, %v2252, 0.0
      %v2285 = vsel %vm1418, %v2253, 0.0
      %v2286 = vsel %vm1419, %v2254, 0.0
      %v2287 = vsel %vm1420, %v2255, 0.0
      %v2288 = vsel %vm1421, %v2256, 0.0
      %v2289 = vsel %vm1422, %v2257, 0.0
      %v2290 = vsel %vm1423, %v2258, 0.0
      %v2291 = vsel %vm1424, %v2259, 0.0
      %v2292 = vsel %vm1425, %v2260, 0.0
      %v2293 = vsel %vm1426, %v2261, 0.0
      %v2294 = vsel %vm1427, %v2262, 0.0
      %v2295 = vsel %vm1428, %v2263, 0.0
      %v2296 = vsel %vm1429, %v2264, 0.0
      %v2297 = vsel %vm1430, %v2265, 0.0
      %v2298 = vsel %vm1431, %v2266, 0.0
      %v2299 = vsel %vm1432, %v2267, 0.0
      %v2300 = vsel %vm1433, %v2268, 0.0
      %v2301 = vsel %vm1434, %v2269, 0.0
      %v2302 = vsel %vm1435, %v2270, 0.0
      %v2303 = vsel %vm1436, %v2271, 0.0
      %v2304 = vsel %vm1437, %v2272, 0.0
      %v2305 = vsel %vm1438, %v2273, 0.0
      %v2306 = vsel %vm1439, %v2274, 0.0
      %v2307 = vpack.c.bf16 %v2276, %v2275
      %v2308 = vpack.c.bf16 %v2278, %v2277
      %v2309 = vpack.c.bf16 %v2280, %v2279
      %v2310 = vpack.c.bf16 %v2282, %v2281
      %v2311 = vpack.c.bf16 %v2284, %v2283
      %v2312 = vpack.c.bf16 %v2286, %v2285
      %v2313 = vpack.c.bf16 %v2288, %v2287
      %v2314 = vpack.c.bf16 %v2290, %v2289
      %v2315 = vpack.c.bf16 %v2292, %v2291
      %v2316 = vpack.c.bf16 %v2294, %v2293
      %v2317 = vpack.c.bf16 %v2296, %v2295
      %v2318 = vpack.c.bf16 %v2298, %v2297
      %v2319 = vpack.c.bf16 %v2300, %v2299
      %v2320 = vpack.c.bf16 %v2302, %v2301
      %v2321 = vpack.c.bf16 %v2304, %v2303
      %v2322 = vpack.c.bf16 %v2306, %v2305
      %v2339 = vunpack.c.l.b16 %v2307
      %v2340 = vunpack.c.h.b16 %v2307
      %v2341 = vunpack.c.l.b16 %v2308
      %v2342 = vunpack.c.h.b16 %v2308
      %v2343 = vunpack.c.l.b16 %v2309
      %v2344 = vunpack.c.h.b16 %v2309
      %v2345 = vunpack.c.l.b16 %v2310
      %v2346 = vunpack.c.h.b16 %v2310
      %v2347 = vunpack.c.l.b16 %v2311
      %v2348 = vunpack.c.h.b16 %v2311
      %v2349 = vunpack.c.l.b16 %v2312
      %v2350 = vunpack.c.h.b16 %v2312
      %v2351 = vunpack.c.l.b16 %v2313
      %v2352 = vunpack.c.h.b16 %v2313
      %v2353 = vunpack.c.l.b16 %v2314
      %v2354 = vunpack.c.h.b16 %v2314
      %v2355 = vunpack.c.l.b16 %v2315
      %v2356 = vunpack.c.h.b16 %v2315
      %v2357 = vunpack.c.l.b16 %v2316
      %v2358 = vunpack.c.h.b16 %v2316
      %v2359 = vunpack.c.l.b16 %v2317
      %v2360 = vunpack.c.h.b16 %v2317
      %v2361 = vunpack.c.l.b16 %v2318
      %v2362 = vunpack.c.h.b16 %v2318
      %v2363 = vunpack.c.l.b16 %v2319
      %v2364 = vunpack.c.h.b16 %v2319
      %v2365 = vunpack.c.l.b16 %v2320
      %v2366 = vunpack.c.h.b16 %v2320
      %v2367 = vunpack.c.l.b16 %v2321
      %v2368 = vunpack.c.h.b16 %v2321
      %v2369 = vunpack.c.l.b16 %v2322
      %v2370 = vunpack.c.h.b16 %v2322
      %v2371 = vpack.c.b16 %v2339, %v2339
      %v2372 = vpack.c.b16 %v2340, %v2340
      %v2373 = vpack.c.b16 %v2341, %v2341
      %v2374 = vpack.c.b16 %v2342, %v2342
      %v2375 = vpack.c.b16 %v2343, %v2343
      %v2376 = vpack.c.b16 %v2344, %v2344
      %v2377 = vpack.c.b16 %v2345, %v2345
      %v2378 = vpack.c.b16 %v2346, %v2346
      %v2379 = vpack.c.b16 %v2347, %v2347
      %v2380 = vpack.c.b16 %v2348, %v2348
      %v2381 = vpack.c.b16 %v2349, %v2349
      %v2382 = vpack.c.b16 %v2350, %v2350
      %v2383 = vpack.c.b16 %v2351, %v2351
      %v2384 = vpack.c.b16 %v2352, %v2352
      %v2385 = vpack.c.b16 %v2353, %v2353
      %v2386 = vpack.c.b16 %v2354, %v2354
      %v2387 = vpack.c.b16 %v2355, %v2355
      %v2388 = vpack.c.b16 %v2356, %v2356
      %v2389 = vpack.c.b16 %v2357, %v2357
      %v2390 = vpack.c.b16 %v2358, %v2358
      %v2391 = vpack.c.b16 %v2359, %v2359
      %v2392 = vpack.c.b16 %v2360, %v2360
      %v2393 = vpack.c.b16 %v2361, %v2361
      %v2394 = vpack.c.b16 %v2362, %v2362
      %v2395 = vpack.c.b16 %v2363, %v2363
      %v2396 = vpack.c.b16 %v2364, %v2364
      %v2397 = vpack.c.b16 %v2365, %v2365
      %v2398 = vpack.c.b16 %v2366, %v2366
      %v2399 = vpack.c.b16 %v2367, %v2367
      %v2400 = vpack.c.b16 %v2368, %v2368
      %v2401 = vpack.c.b16 %v2369, %v2369
      %v2402 = vpack.c.b16 %v2370, %v2370
      %2403 = vrot.lane.b32.xlu0 %v2371, 20
      %v2404 = vpop.permute.xlu0 %2403
      %2405 = vrot.lane.b32.xlu0 %v2372, 20
      %v2406 = vpop.permute.xlu0 %2405
      %2407 = vrot.lane.b32.xlu0 %v2373, 20
      %v2408 = vpop.permute.xlu0 %2407
      %2409 = vrot.lane.b32.xlu0 %v2374, 20
      %v2410 = vpop.permute.xlu0 %2409
      %2411 = vrot.lane.b32.xlu0 %v2375, 20
      %v2412 = vpop.permute.xlu0 %2411
      %2413 = vrot.lane.b32.xlu0 %v2376, 20
      %v2414 = vpop.permute.xlu0 %2413
      %2415 = vrot.lane.b32.xlu0 %v2377, 20
      %v2416 = vpop.permute.xlu0 %2415
      %2417 = vrot.lane.b32.xlu0 %v2378, 20
      %v2418 = vpop.permute.xlu0 %2417
      %2419 = vrot.lane.b32.xlu0 %v2379, 20
      %v2420 = vpop.permute.xlu0 %2419
      %2421 = vrot.lane.b32.xlu0 %v2380, 20
      %v2422 = vpop.permute.xlu0 %2421
      %2423 = vrot.lane.b32.xlu0 %v2381, 20
      %v2424 = vpop.permute.xlu0 %2423
      %2425 = vrot.lane.b32.xlu0 %v2382, 20
      %v2426 = vpop.permute.xlu0 %2425
      %2427 = vrot.lane.b32.xlu0 %v2383, 20
      %v2428 = vpop.permute.xlu0 %2427
      %2429 = vrot.lane.b32.xlu0 %v2384, 20
      %v2430 = vpop.permute.xlu0 %2429
      %2431 = vrot.lane.b32.xlu0 %v2385, 20
      %v2432 = vpop.permute.xlu0 %2431
      %2433 = vrot.lane.b32.xlu0 %v2386, 20
      %v2434 = vpop.permute.xlu0 %2433
      %2435 = vrot.lane.b32.xlu0 %v2387, 20
      %v2436 = vpop.permute.xlu0 %2435
      %2437 = vrot.lane.b32.xlu0 %v2388, 20
      %v2438 = vpop.permute.xlu0 %2437
      %2439 = vrot.lane.b32.xlu0 %v2389, 20
      %v2440 = vpop.permute.xlu0 %2439
      %2441 = vrot.lane.b32.xlu0 %v2390, 20
      %v2442 = vpop.permute.xlu0 %2441
      %2443 = vrot.lane.b32.xlu0 %v2391, 20
      %v2444 = vpop.permute.xlu0 %2443
      %2445 = vrot.lane.b32.xlu0 %v2392, 20
      %v2446 = vpop.permute.xlu0 %2445
      %2447 = vrot.lane.b32.xlu0 %v2393, 20
      %v2448 = vpop.permute.xlu0 %2447
      %2449 = vrot.lane.b32.xlu0 %v2394, 20
      %v2450 = vpop.permute.xlu0 %2449
      %2451 = vrot.lane.b32.xlu0 %v2395, 20
      %v2452 = vpop.permute.xlu0 %2451
      %2453 = vrot.lane.b32.xlu0 %v2396, 20
      %v2454 = vpop.permute.xlu0 %2453
      %2455 = vrot.lane.b32.xlu0 %v2397, 20
      %v2456 = vpop.permute.xlu0 %2455
      %2457 = vrot.lane.b32.xlu0 %v2398, 20
      %v2458 = vpop.permute.xlu0 %2457
      %2459 = vrot.lane.b32.xlu0 %v2399, 20
      %v2460 = vpop.permute.xlu0 %2459
      %2461 = vrot.lane.b32.xlu0 %v2400, 20
      %v2462 = vpop.permute.xlu0 %2461
      %2463 = vrot.lane.b32.xlu0 %v2401, 20
      %v2464 = vpop.permute.xlu0 %2463
      %2465 = vrot.lane.b32.xlu0 %v2402, 20
      %v2466 = vpop.permute.xlu0 %2465
      %vm2499 = vcmask 191648
      %2500 = vst.msk [vmem:[#allocation3] sm:$0xf] %vm2499, %v2404
      %2501 = vst.msk [vmem:[#allocation3 + $0x4] sm:$0xf] %vm2499, %v2406
      %2502 = vst.msk [vmem:[#allocation3 + $0x8] sm:$0xf] %vm2499, %v2408
      %2503 = vst.msk [vmem:[#allocation3 + $0xc] sm:$0xf] %vm2499, %v2410
      %2504 = vst.msk [vmem:[#allocation3 + $0x10] sm:$0xf] %vm2499, %v2412
      %2505 = vst.msk [vmem:[#allocation3 + $0x14] sm:$0xf] %vm2499, %v2414
      %2506 = vst.msk [vmem:[#allocation3 + $0x18] sm:$0xf] %vm2499, %v2416
      %2507 = vst.msk [vmem:[#allocation3 + $0x1c] sm:$0xf] %vm2499, %v2418
      %2508 = vst.msk [vmem:[#allocation3 + $0x20] sm:$0xf] %vm2499, %v2420
      %2509 = vst.msk [vmem:[#allocation3 + $0x24] sm:$0xf] %vm2499, %v2422
      %2510 = vst.msk [vmem:[#allocation3 + $0x28] sm:$0xf] %vm2499, %v2424
      %2511 = vst.msk [vmem:[#allocation3 + $0x2c] sm:$0xf] %vm2499, %v2426
      %2512 = vst.msk [vmem:[#allocation3 + $0x30] sm:$0xf] %vm2499, %v2428
      %2513 = vst.msk [vmem:[#allocation3 + $0x34] sm:$0xf] %vm2499, %v2430
      %2514 = vst.msk [vmem:[#allocation3 + $0x38] sm:$0xf] %vm2499, %v2432
      %2515 = vst.msk [vmem:[#allocation3 + $0x3c] sm:$0xf] %vm2499, %v2434
      %2516 = vst.msk [vmem:[#allocation3 + $0x40] sm:$0xf] %vm2499, %v2436
      %2517 = vst.msk [vmem:[#allocation3 + $0x44] sm:$0xf] %vm2499, %v2438
      %2518 = vst.msk [vmem:[#allocation3 + $0x48] sm:$0xf] %vm2499, %v2440
      %2519 = vst.msk [vmem:[#allocation3 + $0x4c] sm:$0xf] %vm2499, %v2442
      %2520 = vst.msk [vmem:[#allocation3 + $0x50] sm:$0xf] %vm2499, %v2444
      %2521 = vst.msk [vmem:[#allocation3 + $0x54] sm:$0xf] %vm2499, %v2446
      %2522 = vst.msk [vmem:[#allocation3 + $0x58] sm:$0xf] %vm2499, %v2448
      %2523 = vst.msk [vmem:[#allocation3 + $0x5c] sm:$0xf] %vm2499, %v2450
      %2524 = vst.msk [vmem:[#allocation3 + $0x60] sm:$0xf] %vm2499, %v2452
      %2525 = vst.msk [vmem:[#allocation3 + $0x64] sm:$0xf] %vm2499, %v2454
      %2526 = vst.msk [vmem:[#allocation3 + $0x68] sm:$0xf] %vm2499, %v2456
      %2527 = vst.msk [vmem:[#allocation3 + $0x6c] sm:$0xf] %vm2499, %v2458
      %2528 = vst.msk [vmem:[#allocation3 + $0x70] sm:$0xf] %vm2499, %v2460
      %2529 = vst.msk [vmem:[#allocation3 + $0x74] sm:$0xf] %vm2499, %v2462
      %2530 = vst.msk [vmem:[#allocation3 + $0x78] sm:$0xf] %vm2499, %v2464
      %2531 = vst.msk [vmem:[#allocation3 + $0x7c] sm:$0xf] %vm2499, %v2466
      %v2532 = vld [vmem:[#allocation2 + $0x20] sm:$0xff]
      %v2533 = vld [vmem:[#allocation2 + $0x28] sm:$0xff]
      %v2534 = vld [vmem:[#allocation2 + $0x30] sm:$0xff]
      %v2535 = vld [vmem:[#allocation2 + $0x38] sm:$0xff]
      %v2536 = vld [vmem:[#allocation2 + $0x40] sm:$0xff]
      %v2537 = vld [vmem:[#allocation2 + $0x48] sm:$0xff]
      %v2538 = vld [vmem:[#allocation2 + $0x50] sm:$0xff]
      %v2539 = vld [vmem:[#allocation2 + $0x58] sm:$0xff]
      %v2540 = vld [vmem:[#allocation2 + $0x60] sm:$0xff]
      %v2541 = vld [vmem:[#allocation2 + $0x68] sm:$0xff]
      %v2542 = vld [vmem:[#allocation2 + $0x70] sm:$0xff]
      %v2543 = vld [vmem:[#allocation2 + $0x78] sm:$0xff]
      %v2544 = vld [vmem:[#allocation2 + $0x80] sm:$0xff]
      %v2545 = vld [vmem:[#allocation2 + $0x88] sm:$0xff]
      %v2546 = vld [vmem:[#allocation2 + $0x90] sm:$0xff]
      %v2547 = vld [vmem:[#allocation2 + $0x98] sm:$0xff]
      %v2548 = vld [vmem:[#allocation2 + $0xa0] sm:$0xff]
      %v2549 = vld [vmem:[#allocation2 + $0xa8] sm:$0xff]
      %v2550 = vld [vmem:[#allocation2 + $0xb0] sm:$0xff]
      %v2551 = vld [vmem:[#allocation2 + $0xb8] sm:$0xff]
      %v2552 = vld [vmem:[#allocation2 + $0xc0] sm:$0xff]
      %v2553 = vld [vmem:[#allocation2 + $0xc8] sm:$0xff]
      %v2554 = vld [vmem:[#allocation2 + $0xd0] sm:$0xff]
      %v2555 = vld [vmem:[#allocation2 + $0xd8] sm:$0xff]
      %v2556 = vld [vmem:[#allocation2 + $0xe0] sm:$0xff]
      %v2557 = vld [vmem:[#allocation2 + $0xe8] sm:$0xff]
      %v2558 = vld [vmem:[#allocation2 + $0xf0] sm:$0xff]
      %v2559 = vld [vmem:[#allocation2 + $0xf8] sm:$0xff]
      %v2560 = vld [vmem:[#allocation2 + $0x100] sm:$0xff]
      %v2561 = vld [vmem:[#allocation2 + $0x108] sm:$0xff]
      %v2562 = vld [vmem:[#allocation2 + $0x110] sm:$0xff]
      %v2563 = vld [vmem:[#allocation2 + $0x118] sm:$0xff]
      %v2564 = vsel %vm862, %v2532, 0.0
      %v2565 = vsel %vm863, %v2533, 0.0
      %v2566 = vsel %vm864, %v2534, 0.0
      %v2567 = vsel %vm865, %v2535, 0.0
      %v2568 = vsel %vm866, %v2536, 0.0
      %v2569 = vsel %vm867, %v2537, 0.0
      %v2570 = vsel %vm868, %v2538, 0.0
      %v2571 = vsel %vm869, %v2539, 0.0
      %v2572 = vsel %vm870, %v2540, 0.0
      %v2573 = vsel %vm871, %v2541, 0.0
      %v2574 = vsel %vm872, %v2542, 0.0
      %v2575 = vsel %vm873, %v2543, 0.0
      %v2576 = vsel %vm874, %v2544, 0.0
      %v2577 = vsel %vm875, %v2545, 0.0
      %v2578 = vsel %vm876, %v2546, 0.0
      %v2579 = vsel %vm877, %v2547, 0.0
      %v2580 = vsel %vm878, %v2548, 0.0
      %v2581 = vsel %vm879, %v2549, 0.0
      %v2582 = vsel %vm880, %v2550, 0.0
      %v2583 = vsel %vm881, %v2551, 0.0
      %v2584 = vsel %vm882, %v2552, 0.0
      %v2585 = vsel %vm883, %v2553, 0.0
      %v2586 = vsel %vm884, %v2554, 0.0
      %v2587 = vsel %vm885, %v2555, 0.0
      %v2588 = vsel %vm886, %v2556, 0.0
      %v2589 = vsel %vm887, %v2557, 0.0
      %v2590 = vsel %vm888, %v2558, 0.0
      %v2591 = vsel %vm889, %v2559, 0.0
      %v2592 = vsel %vm890, %v2560, 0.0
      %v2593 = vsel %vm891, %v2561, 0.0
      %v2594 = vsel %vm892, %v2562, 0.0
      %v2595 = vsel %vm893, %v2563, 0.0
      %v2596 = vpack.c.bf16 %v2565, %v2564
      %v2597 = vpack.c.bf16 %v2567, %v2566
      %v2598 = vpack.c.bf16 %v2569, %v2568
      %v2599 = vpack.c.bf16 %v2571, %v2570
      %v2600 = vpack.c.bf16 %v2573, %v2572
      %v2601 = vpack.c.bf16 %v2575, %v2574
      %v2602 = vpack.c.bf16 %v2577, %v2576
      %v2603 = vpack.c.bf16 %v2579, %v2578
      %v2604 = vpack.c.bf16 %v2581, %v2580
      %v2605 = vpack.c.bf16 %v2583, %v2582
      %v2606 = vpack.c.bf16 %v2585, %v2584
      %v2607 = vpack.c.bf16 %v2587, %v2586
      %v2608 = vpack.c.bf16 %v2589, %v2588
      %v2609 = vpack.c.bf16 %v2591, %v2590
      %v2610 = vpack.c.bf16 %v2593, %v2592
      %v2611 = vpack.c.bf16 %v2595, %v2594
      %v2628 = vunpack.c.l.b16 %v2596
      %v2629 = vunpack.c.h.b16 %v2596
      %v2630 = vunpack.c.l.b16 %v2597
      %v2631 = vunpack.c.h.b16 %v2597
      %v2632 = vunpack.c.l.b16 %v2598
      %v2633 = vunpack.c.h.b16 %v2598
      %v2634 = vunpack.c.l.b16 %v2599
      %v2635 = vunpack.c.h.b16 %v2599
      %v2636 = vunpack.c.l.b16 %v2600
      %v2637 = vunpack.c.h.b16 %v2600
      %v2638 = vunpack.c.l.b16 %v2601
      %v2639 = vunpack.c.h.b16 %v2601
      %v2640 = vunpack.c.l.b16 %v2602
      %v2641 = vunpack.c.h.b16 %v2602
      %v2642 = vunpack.c.l.b16 %v2603
      %v2643 = vunpack.c.h.b16 %v2603
      %v2644 = vunpack.c.l.b16 %v2604
      %v2645 = vunpack.c.h.b16 %v2604
      %v2646 = vunpack.c.l.b16 %v2605
      %v2647 = vunpack.c.h.b16 %v2605
      %v2648 = vunpack.c.l.b16 %v2606
      %v2649 = vunpack.c.h.b16 %v2606
      %v2650 = vunpack.c.l.b16 %v2607
      %v2651 = vunpack.c.h.b16 %v2607
      %v2652 = vunpack.c.l.b16 %v2608
      %v2653 = vunpack.c.h.b16 %v2608
      %v2654 = vunpack.c.l.b16 %v2609
      %v2655 = vunpack.c.h.b16 %v2609
      %v2656 = vunpack.c.l.b16 %v2610
      %v2657 = vunpack.c.h.b16 %v2610
      %v2658 = vunpack.c.l.b16 %v2611
      %v2659 = vunpack.c.h.b16 %v2611
      %v2660 = vpack.c.b16 %v2628, %v2628
      %v2661 = vpack.c.b16 %v2629, %v2629
      %v2662 = vpack.c.b16 %v2630, %v2630
      %v2663 = vpack.c.b16 %v2631, %v2631
      %v2664 = vpack.c.b16 %v2632, %v2632
      %v2665 = vpack.c.b16 %v2633, %v2633
      %v2666 = vpack.c.b16 %v2634, %v2634
      %v2667 = vpack.c.b16 %v2635, %v2635
      %v2668 = vpack.c.b16 %v2636, %v2636
      %v2669 = vpack.c.b16 %v2637, %v2637
      %v2670 = vpack.c.b16 %v2638, %v2638
      %v2671 = vpack.c.b16 %v2639, %v2639
      %v2672 = vpack.c.b16 %v2640, %v2640
      %v2673 = vpack.c.b16 %v2641, %v2641
      %v2674 = vpack.c.b16 %v2642, %v2642
      %v2675 = vpack.c.b16 %v2643, %v2643
      %v2676 = vpack.c.b16 %v2644, %v2644
      %v2677 = vpack.c.b16 %v2645, %v2645
      %v2678 = vpack.c.b16 %v2646, %v2646
      %v2679 = vpack.c.b16 %v2647, %v2647
      %v2680 = vpack.c.b16 %v2648, %v2648
      %v2681 = vpack.c.b16 %v2649, %v2649
      %v2682 = vpack.c.b16 %v2650, %v2650
      %v2683 = vpack.c.b16 %v2651, %v2651
      %v2684 = vpack.c.b16 %v2652, %v2652
      %v2685 = vpack.c.b16 %v2653, %v2653
      %v2686 = vpack.c.b16 %v2654, %v2654
      %v2687 = vpack.c.b16 %v2655, %v2655
      %v2688 = vpack.c.b16 %v2656, %v2656
      %v2689 = vpack.c.b16 %v2657, %v2657
      %v2690 = vpack.c.b16 %v2658, %v2658
      %v2691 = vpack.c.b16 %v2659, %v2659
      %2692 = vrot.lane.b32.xlu0 %v2660, 24
      %v2693 = vpop.permute.xlu0 %2692
      %2694 = vrot.lane.b32.xlu0 %v2661, 24
      %v2695 = vpop.permute.xlu0 %2694
      %2696 = vrot.lane.b32.xlu0 %v2662, 24
      %v2697 = vpop.permute.xlu0 %2696
      %2698 = vrot.lane.b32.xlu0 %v2663, 24
      %v2699 = vpop.permute.xlu0 %2698
      %2700 = vrot.lane.b32.xlu0 %v2664, 24
      %v2701 = vpop.permute.xlu0 %2700
      %2702 = vrot.lane.b32.xlu0 %v2665, 24
      %v2703 = vpop.permute.xlu0 %2702
      %2704 = vrot.lane.b32.xlu0 %v2666, 24
      %v2705 = vpop.permute.xlu0 %2704
      %2706 = vrot.lane.b32.xlu0 %v2667, 24
      %v2707 = vpop.permute.xlu0 %2706
      %2708 = vrot.lane.b32.xlu0 %v2668, 24
      %v2709 = vpop.permute.xlu0 %2708
      %2710 = vrot.lane.b32.xlu0 %v2669, 24
      %v2711 = vpop.permute.xlu0 %2710
      %2712 = vrot.lane.b32.xlu0 %v2670, 24
      %v2713 = vpop.permute.xlu0 %2712
      %2714 = vrot.lane.b32.xlu0 %v2671, 24
      %v2715 = vpop.permute.xlu0 %2714
      %2716 = vrot.lane.b32.xlu0 %v2672, 24
      %v2717 = vpop.permute.xlu0 %2716
      %2718 = vrot.lane.b32.xlu0 %v2673, 24
      %v2719 = vpop.permute.xlu0 %2718
      %2720 = vrot.lane.b32.xlu0 %v2674, 24
      %v2721 = vpop.permute.xlu0 %2720
      %2722 = vrot.lane.b32.xlu0 %v2675, 24
      %v2723 = vpop.permute.xlu0 %2722
      %2724 = vrot.lane.b32.xlu0 %v2676, 24
      %v2725 = vpop.permute.xlu0 %2724
      %2726 = vrot.lane.b32.xlu0 %v2677, 24
      %v2727 = vpop.permute.xlu0 %2726
      %2728 = vrot.lane.b32.xlu0 %v2678, 24
      %v2729 = vpop.permute.xlu0 %2728
      %2730 = vrot.lane.b32.xlu0 %v2679, 24
      %v2731 = vpop.permute.xlu0 %2730
      %2732 = vrot.lane.b32.xlu0 %v2680, 24
      %v2733 = vpop.permute.xlu0 %2732
      %2734 = vrot.lane.b32.xlu0 %v2681, 24
      %v2735 = vpop.permute.xlu0 %2734
      %2736 = vrot.lane.b32.xlu0 %v2682, 24
      %v2737 = vpop.permute.xlu0 %2736
      %2738 = vrot.lane.b32.xlu0 %v2683, 24
      %v2739 = vpop.permute.xlu0 %2738
      %2740 = vrot.lane.b32.xlu0 %v2684, 24
      %v2741 = vpop.permute.xlu0 %2740
      %2742 = vrot.lane.b32.xlu0 %v2685, 24
      %v2743 = vpop.permute.xlu0 %2742
      %2744 = vrot.lane.b32.xlu0 %v2686, 24
      %v2745 = vpop.permute.xlu0 %2744
      %2746 = vrot.lane.b32.xlu0 %v2687, 24
      %v2747 = vpop.permute.xlu0 %2746
      %2748 = vrot.lane.b32.xlu0 %v2688, 24
      %v2749 = vpop.permute.xlu0 %2748
      %2750 = vrot.lane.b32.xlu0 %v2689, 24
      %v2751 = vpop.permute.xlu0 %2750
      %2752 = vrot.lane.b32.xlu0 %v2690, 24
      %v2753 = vpop.permute.xlu0 %2752
      %2754 = vrot.lane.b32.xlu0 %v2691, 24
      %v2755 = vpop.permute.xlu0 %2754
      %vm2788 = vcmask 224448
      %2789 = vst.msk [vmem:[#allocation3] sm:$0xf] %vm2788, %v2693
      %2790 = vst.msk [vmem:[#allocation3 + $0x4] sm:$0xf] %vm2788, %v2695
      %2791 = vst.msk [vmem:[#allocation3 + $0x8] sm:$0xf] %vm2788, %v2697
      %2792 = vst.msk [vmem:[#allocation3 + $0xc] sm:$0xf] %vm2788, %v2699
      %2793 = vst.msk [vmem:[#allocation3 + $0x10] sm:$0xf] %vm2788, %v2701
      %2794 = vst.msk [vmem:[#allocation3 + $0x14] sm:$0xf] %vm2788, %v2703
      %2795 = vst.msk [vmem:[#allocation3 + $0x18] sm:$0xf] %vm2788, %v2705
      %2796 = vst.msk [vmem:[#allocation3 + $0x1c] sm:$0xf] %vm2788, %v2707
      %2797 = vst.msk [vmem:[#allocation3 + $0x20] sm:$0xf] %vm2788, %v2709
      %2798 = vst.msk [vmem:[#allocation3 + $0x24] sm:$0xf] %vm2788, %v2711
      %2799 = vst.msk [vmem:[#allocation3 + $0x28] sm:$0xf] %vm2788, %v2713
      %2800 = vst.msk [vmem:[#allocation3 + $0x2c] sm:$0xf] %vm2788, %v2715
      %2801 = vst.msk [vmem:[#allocation3 + $0x30] sm:$0xf] %vm2788, %v2717
      %2802 = vst.msk [vmem:[#allocation3 + $0x34] sm:$0xf] %vm2788, %v2719
      %2803 = vst.msk [vmem:[#allocation3 + $0x38] sm:$0xf] %vm2788, %v2721
      %2804 = vst.msk [vmem:[#allocation3 + $0x3c] sm:$0xf] %vm2788, %v2723
      %2805 = vst.msk [vmem:[#allocation3 + $0x40] sm:$0xf] %vm2788, %v2725
      %2806 = vst.msk [vmem:[#allocation3 + $0x44] sm:$0xf] %vm2788, %v2727
      %2807 = vst.msk [vmem:[#allocation3 + $0x48] sm:$0xf] %vm2788, %v2729
      %2808 = vst.msk [vmem:[#allocation3 + $0x4c] sm:$0xf] %vm2788, %v2731
      %2809 = vst.msk [vmem:[#allocation3 + $0x50] sm:$0xf] %vm2788, %v2733
      %2810 = vst.msk [vmem:[#allocation3 + $0x54] sm:$0xf] %vm2788, %v2735
      %2811 = vst.msk [vmem:[#allocation3 + $0x58] sm:$0xf] %vm2788, %v2737
      %2812 = vst.msk [vmem:[#allocation3 + $0x5c] sm:$0xf] %vm2788, %v2739
      %2813 = vst.msk [vmem:[#allocation3 + $0x60] sm:$0xf] %vm2788, %v2741
      %2814 = vst.msk [vmem:[#allocation3 + $0x64] sm:$0xf] %vm2788, %v2743
      %2815 = vst.msk [vmem:[#allocation3 + $0x68] sm:$0xf] %vm2788, %v2745
      %2816 = vst.msk [vmem:[#allocation3 + $0x6c] sm:$0xf] %vm2788, %v2747
      %2817 = vst.msk [vmem:[#allocation3 + $0x70] sm:$0xf] %vm2788, %v2749
      %2818 = vst.msk [vmem:[#allocation3 + $0x74] sm:$0xf] %vm2788, %v2751
      %2819 = vst.msk [vmem:[#allocation3 + $0x78] sm:$0xf] %vm2788, %v2753
      %2820 = vst.msk [vmem:[#allocation3 + $0x7c] sm:$0xf] %vm2788, %v2755
      %v2821 = vld [vmem:[#allocation2 + $0x21] sm:$0xff]
      %v2822 = vld [vmem:[#allocation2 + $0x29] sm:$0xff]
      %v2823 = vld [vmem:[#allocation2 + $0x31] sm:$0xff]
      %v2824 = vld [vmem:[#allocation2 + $0x39] sm:$0xff]
      %v2825 = vld [vmem:[#allocation2 + $0x41] sm:$0xff]
      %v2826 = vld [vmem:[#allocation2 + $0x49] sm:$0xff]
      %v2827 = vld [vmem:[#allocation2 + $0x51] sm:$0xff]
      %v2828 = vld [vmem:[#allocation2 + $0x59] sm:$0xff]
      %v2829 = vld [vmem:[#allocation2 + $0x61] sm:$0xff]
      %v2830 = vld [vmem:[#allocation2 + $0x69] sm:$0xff]
      %v2831 = vld [vmem:[#allocation2 + $0x71] sm:$0xff]
      %v2832 = vld [vmem:[#allocation2 + $0x79] sm:$0xff]
      %v2833 = vld [vmem:[#allocation2 + $0x81] sm:$0xff]
      %v2834 = vld [vmem:[#allocation2 + $0x89] sm:$0xff]
      %v2835 = vld [vmem:[#allocation2 + $0x91] sm:$0xff]
      %v2836 = vld [vmem:[#allocation2 + $0x99] sm:$0xff]
      %v2837 = vld [vmem:[#allocation2 + $0xa1] sm:$0xff]
      %v2838 = vld [vmem:[#allocation2 + $0xa9] sm:$0xff]
      %v2839 = vld [vmem:[#allocation2 + $0xb1] sm:$0xff]
      %v2840 = vld [vmem:[#allocation2 + $0xb9] sm:$0xff]
      %v2841 = vld [vmem:[#allocation2 + $0xc1] sm:$0xff]
      %v2842 = vld [vmem:[#allocation2 + $0xc9] sm:$0xff]
      %v2843 = vld [vmem:[#allocation2 + $0xd1] sm:$0xff]
      %v2844 = vld [vmem:[#allocation2 + $0xd9] sm:$0xff]
      %v2845 = vld [vmem:[#allocation2 + $0xe1] sm:$0xff]
      %v2846 = vld [vmem:[#allocation2 + $0xe9] sm:$0xff]
      %v2847 = vld [vmem:[#allocation2 + $0xf1] sm:$0xff]
      %v2848 = vld [vmem:[#allocation2 + $0xf9] sm:$0xff]
      %v2849 = vld [vmem:[#allocation2 + $0x101] sm:$0xff]
      %v2850 = vld [vmem:[#allocation2 + $0x109] sm:$0xff]
      %v2851 = vld [vmem:[#allocation2 + $0x111] sm:$0xff]
      %v2852 = vld [vmem:[#allocation2 + $0x119] sm:$0xff]
      %v2853 = vpack.c.bf16 %v2822, %v2821
      %v2854 = vpack.c.bf16 %v2824, %v2823
      %v2855 = vpack.c.bf16 %v2826, %v2825
      %v2856 = vpack.c.bf16 %v2828, %v2827
      %v2857 = vpack.c.bf16 %v2830, %v2829
      %v2858 = vpack.c.bf16 %v2832, %v2831
      %v2859 = vpack.c.bf16 %v2834, %v2833
      %v2860 = vpack.c.bf16 %v2836, %v2835
      %v2861 = vpack.c.bf16 %v2838, %v2837
      %v2862 = vpack.c.bf16 %v2840, %v2839
      %v2863 = vpack.c.bf16 %v2842, %v2841
      %v2864 = vpack.c.bf16 %v2844, %v2843
      %v2865 = vpack.c.bf16 %v2846, %v2845
      %v2866 = vpack.c.bf16 %v2848, %v2847
      %v2867 = vpack.c.bf16 %v2850, %v2849
      %v2868 = vpack.c.bf16 %v2852, %v2851
      %v2885 = vunpack.c.l.b16 %v2853
      %v2886 = vunpack.c.h.b16 %v2853
      %v2887 = vunpack.c.l.b16 %v2854
      %v2888 = vunpack.c.h.b16 %v2854
      %v2889 = vunpack.c.l.b16 %v2855
      %v2890 = vunpack.c.h.b16 %v2855
      %v2891 = vunpack.c.l.b16 %v2856
      %v2892 = vunpack.c.h.b16 %v2856
      %v2893 = vunpack.c.l.b16 %v2857
      %v2894 = vunpack.c.h.b16 %v2857
      %v2895 = vunpack.c.l.b16 %v2858
      %v2896 = vunpack.c.h.b16 %v2858
      %v2897 = vunpack.c.l.b16 %v2859
      %v2898 = vunpack.c.h.b16 %v2859
      %v2899 = vunpack.c.l.b16 %v2860
      %v2900 = vunpack.c.h.b16 %v2860
      %v2901 = vunpack.c.l.b16 %v2861
      %v2902 = vunpack.c.h.b16 %v2861
      %v2903 = vunpack.c.l.b16 %v2862
      %v2904 = vunpack.c.h.b16 %v2862
      %v2905 = vunpack.c.l.b16 %v2863
      %v2906 = vunpack.c.h.b16 %v2863
      %v2907 = vunpack.c.l.b16 %v2864
      %v2908 = vunpack.c.h.b16 %v2864
      %v2909 = vunpack.c.l.b16 %v2865
      %v2910 = vunpack.c.h.b16 %v2865
      %v2911 = vunpack.c.l.b16 %v2866
      %v2912 = vunpack.c.h.b16 %v2866
      %v2913 = vunpack.c.l.b16 %v2867
      %v2914 = vunpack.c.h.b16 %v2867
      %v2915 = vunpack.c.l.b16 %v2868
      %v2916 = vunpack.c.h.b16 %v2868
      %v2917 = vpack.c.b16 %v2885, %v2885
      %v2918 = vpack.c.b16 %v2886, %v2886
      %v2919 = vpack.c.b16 %v2887, %v2887
      %v2920 = vpack.c.b16 %v2888, %v2888
      %v2921 = vpack.c.b16 %v2889, %v2889
      %v2922 = vpack.c.b16 %v2890, %v2890
      %v2923 = vpack.c.b16 %v2891, %v2891
      %v2924 = vpack.c.b16 %v2892, %v2892
      %v2925 = vpack.c.b16 %v2893, %v2893
      %v2926 = vpack.c.b16 %v2894, %v2894
      %v2927 = vpack.c.b16 %v2895, %v2895
      %v2928 = vpack.c.b16 %v2896, %v2896
      %v2929 = vpack.c.b16 %v2897, %v2897
      %v2930 = vpack.c.b16 %v2898, %v2898
      %v2931 = vpack.c.b16 %v2899, %v2899
      %v2932 = vpack.c.b16 %v2900, %v2900
      %v2933 = vpack.c.b16 %v2901, %v2901
      %v2934 = vpack.c.b16 %v2902, %v2902
      %v2935 = vpack.c.b16 %v2903, %v2903
      %v2936 = vpack.c.b16 %v2904, %v2904
      %v2937 = vpack.c.b16 %v2905, %v2905
      %v2938 = vpack.c.b16 %v2906, %v2906
      %v2939 = vpack.c.b16 %v2907, %v2907
      %v2940 = vpack.c.b16 %v2908, %v2908
      %v2941 = vpack.c.b16 %v2909, %v2909
      %v2942 = vpack.c.b16 %v2910, %v2910
      %v2943 = vpack.c.b16 %v2911, %v2911
      %v2944 = vpack.c.b16 %v2912, %v2912
      %v2945 = vpack.c.b16 %v2913, %v2913
      %v2946 = vpack.c.b16 %v2914, %v2914
      %v2947 = vpack.c.b16 %v2915, %v2915
      %v2948 = vpack.c.b16 %v2916, %v2916
      %2949 = vrot.lane.b32.xlu0 %v2917, 28
      %v2950 = vpop.permute.xlu0 %2949
      %2951 = vrot.lane.b32.xlu0 %v2918, 28
      %v2952 = vpop.permute.xlu0 %2951
      %2953 = vrot.lane.b32.xlu0 %v2919, 28
      %v2954 = vpop.permute.xlu0 %2953
      %2955 = vrot.lane.b32.xlu0 %v2920, 28
      %v2956 = vpop.permute.xlu0 %2955
      %2957 = vrot.lane.b32.xlu0 %v2921, 28
      %v2958 = vpop.permute.xlu0 %2957
      %2959 = vrot.lane.b32.xlu0 %v2922, 28
      %v2960 = vpop.permute.xlu0 %2959
      %2961 = vrot.lane.b32.xlu0 %v2923, 28
      %v2962 = vpop.permute.xlu0 %2961
      %2963 = vrot.lane.b32.xlu0 %v2924, 28
      %v2964 = vpop.permute.xlu0 %2963
      %2965 = vrot.lane.b32.xlu0 %v2925, 28
      %v2966 = vpop.permute.xlu0 %2965
      %2967 = vrot.lane.b32.xlu0 %v2926, 28
      %v2968 = vpop.permute.xlu0 %2967
      %2969 = vrot.lane.b32.xlu0 %v2927, 28
      %v2970 = vpop.permute.xlu0 %2969
      %2971 = vrot.lane.b32.xlu0 %v2928, 28
      %v2972 = vpop.permute.xlu0 %2971
      %2973 = vrot.lane.b32.xlu0 %v2929, 28
      %v2974 = vpop.permute.xlu0 %2973
      %2975 = vrot.lane.b32.xlu0 %v2930, 28
      %v2976 = vpop.permute.xlu0 %2975
      %2977 = vrot.lane.b32.xlu0 %v2931, 28
      %v2978 = vpop.permute.xlu0 %2977
      %2979 = vrot.lane.b32.xlu0 %v2932, 28
      %v2980 = vpop.permute.xlu0 %2979
      %2981 = vrot.lane.b32.xlu0 %v2933, 28
      %v2982 = vpop.permute.xlu0 %2981
      %2983 = vrot.lane.b32.xlu0 %v2934, 28
      %v2984 = vpop.permute.xlu0 %2983
      %2985 = vrot.lane.b32.xlu0 %v2935, 28
      %v2986 = vpop.permute.xlu0 %2985
      %2987 = vrot.lane.b32.xlu0 %v2936, 28
      %v2988 = vpop.permute.xlu0 %2987
      %2989 = vrot.lane.b32.xlu0 %v2937, 28
      %v2990 = vpop.permute.xlu0 %2989
      %2991 = vrot.lane.b32.xlu0 %v2938, 28
      %v2992 = vpop.permute.xlu0 %2991
      %2993 = vrot.lane.b32.xlu0 %v2939, 28
      %v2994 = vpop.permute.xlu0 %2993
      %2995 = vrot.lane.b32.xlu0 %v2940, 28
      %v2996 = vpop.permute.xlu0 %2995
      %2997 = vrot.lane.b32.xlu0 %v2941, 28
      %v2998 = vpop.permute.xlu0 %2997
      %2999 = vrot.lane.b32.xlu0 %v2942, 28
      %v3000 = vpop.permute.xlu0 %2999
      %3001 = vrot.lane.b32.xlu0 %v2943, 28
      %v3002 = vpop.permute.xlu0 %3001
      %3003 = vrot.lane.b32.xlu0 %v2944, 28
      %v3004 = vpop.permute.xlu0 %3003
      %3005 = vrot.lane.b32.xlu0 %v2945, 28
      %v3006 = vpop.permute.xlu0 %3005
      %3007 = vrot.lane.b32.xlu0 %v2946, 28
      %v3008 = vpop.permute.xlu0 %3007
      %3009 = vrot.lane.b32.xlu0 %v2947, 28
      %v3010 = vpop.permute.xlu0 %3009
      %3011 = vrot.lane.b32.xlu0 %v2948, 28
      %v3012 = vpop.permute.xlu0 %3011
      %vm3045 = vcmask 257248
      %3046 = vst.msk [vmem:[#allocation3] sm:$0xf] %vm3045, %v2950
      %3047 = vst.msk [vmem:[#allocation3 + $0x4] sm:$0xf] %vm3045, %v2952
      %3048 = vst.msk [vmem:[#allocation3 + $0x8] sm:$0xf] %vm3045, %v2954
      %3049 = vst.msk [vmem:[#allocation3 + $0xc] sm:$0xf] %vm3045, %v2956
      %3050 = vst.msk [vmem:[#allocation3 + $0x10] sm:$0xf] %vm3045, %v2958
      %3051 = vst.msk [vmem:[#allocation3 + $0x14] sm:$0xf] %vm3045, %v2960
      %3052 = vst.msk [vmem:[#allocation3 + $0x18] sm:$0xf] %vm3045, %v2962
      %3053 = vst.msk [vmem:[#allocation3 + $0x1c] sm:$0xf] %vm3045, %v2964
      %3054 = vst.msk [vmem:[#allocation3 + $0x20] sm:$0xf] %vm3045, %v2966
      %3055 = vst.msk [vmem:[#allocation3 + $0x24] sm:$0xf] %vm3045, %v2968
      %3056 = vst.msk [vmem:[#allocation3 + $0x28] sm:$0xf] %vm3045, %v2970
      %3057 = vst.msk [vmem:[#allocation3 + $0x2c] sm:$0xf] %vm3045, %v2972
      %3058 = vst.msk [vmem:[#allocation3 + $0x30] sm:$0xf] %vm3045, %v2974
      %3059 = vst.msk [vmem:[#allocation3 + $0x34] sm:$0xf] %vm3045, %v2976
      %3060 = vst.msk [vmem:[#allocation3 + $0x38] sm:$0xf] %vm3045, %v2978
      %3061 = vst.msk [vmem:[#allocation3 + $0x3c] sm:$0xf] %vm3045, %v2980
      %3062 = vst.msk [vmem:[#allocation3 + $0x40] sm:$0xf] %vm3045, %v2982
      %3063 = vst.msk [vmem:[#allocation3 + $0x44] sm:$0xf] %vm3045, %v2984
      %3064 = vst.msk [vmem:[#allocation3 + $0x48] sm:$0xf] %vm3045, %v2986
      %3065 = vst.msk [vmem:[#allocation3 + $0x4c] sm:$0xf] %vm3045, %v2988
      %3066 = vst.msk [vmem:[#allocation3 + $0x50] sm:$0xf] %vm3045, %v2990
      %3067 = vst.msk [vmem:[#allocation3 + $0x54] sm:$0xf] %vm3045, %v2992
      %3068 = vst.msk [vmem:[#allocation3 + $0x58] sm:$0xf] %vm3045, %v2994
      %3069 = vst.msk [vmem:[#allocation3 + $0x5c] sm:$0xf] %vm3045, %v2996
      %3070 = vst.msk [vmem:[#allocation3 + $0x60] sm:$0xf] %vm3045, %v2998
      %3071 = vst.msk [vmem:[#allocation3 + $0x64] sm:$0xf] %vm3045, %v3000
      %3072 = vst.msk [vmem:[#allocation3 + $0x68] sm:$0xf] %vm3045, %v3002
      %3073 = vst.msk [vmem:[#allocation3 + $0x6c] sm:$0xf] %vm3045, %v3004
      %3074 = vst.msk [vmem:[#allocation3 + $0x70] sm:$0xf] %vm3045, %v3006
      %3075 = vst.msk [vmem:[#allocation3 + $0x74] sm:$0xf] %vm3045, %v3008
      %3076 = vst.msk [vmem:[#allocation3 + $0x78] sm:$0xf] %vm3045, %v3010
      %3077 = vst.msk [vmem:[#allocation3 + $0x7c] sm:$0xf] %vm3045, %v3012
      %v3078 = vld [vmem:[#allocation2 + $0x22] sm:$0xff]
      %v3079 = vld [vmem:[#allocation2 + $0x2a] sm:$0xff]
      %v3080 = vld [vmem:[#allocation2 + $0x32] sm:$0xff]
      %v3081 = vld [vmem:[#allocation2 + $0x3a] sm:$0xff]
      %v3082 = vld [vmem:[#allocation2 + $0x42] sm:$0xff]
      %v3083 = vld [vmem:[#allocation2 + $0x4a] sm:$0xff]
      %v3084 = vld [vmem:[#allocation2 + $0x52] sm:$0xff]
      %v3085 = vld [vmem:[#allocation2 + $0x5a] sm:$0xff]
      %v3086 = vld [vmem:[#allocation2 + $0x62] sm:$0xff]
      %v3087 = vld [vmem:[#allocation2 + $0x6a] sm:$0xff]
      %v3088 = vld [vmem:[#allocation2 + $0x72] sm:$0xff]
      %v3089 = vld [vmem:[#allocation2 + $0x7a] sm:$0xff]
      %v3090 = vld [vmem:[#allocation2 + $0x82] sm:$0xff]
      %v3091 = vld [vmem:[#allocation2 + $0x8a] sm:$0xff]
      %v3092 = vld [vmem:[#allocation2 + $0x92] sm:$0xff]
      %v3093 = vld [vmem:[#allocation2 + $0x9a] sm:$0xff]
      %v3094 = vld [vmem:[#allocation2 + $0xa2] sm:$0xff]
      %v3095 = vld [vmem:[#allocation2 + $0xaa] sm:$0xff]
      %v3096 = vld [vmem:[#allocation2 + $0xb2] sm:$0xff]
      %v3097 = vld [vmem:[#allocation2 + $0xba] sm:$0xff]
      %v3098 = vld [vmem:[#allocation2 + $0xc2] sm:$0xff]
      %v3099 = vld [vmem:[#allocation2 + $0xca] sm:$0xff]
      %v3100 = vld [vmem:[#allocation2 + $0xd2] sm:$0xff]
      %v3101 = vld [vmem:[#allocation2 + $0xda] sm:$0xff]
      %v3102 = vld [vmem:[#allocation2 + $0xe2] sm:$0xff]
      %v3103 = vld [vmem:[#allocation2 + $0xea] sm:$0xff]
      %v3104 = vld [vmem:[#allocation2 + $0xf2] sm:$0xff]
      %v3105 = vld [vmem:[#allocation2 + $0xfa] sm:$0xff]
      %v3106 = vld [vmem:[#allocation2 + $0x102] sm:$0xff]
      %v3107 = vld [vmem:[#allocation2 + $0x10a] sm:$0xff]
      %v3108 = vld [vmem:[#allocation2 + $0x112] sm:$0xff]
      %v3109 = vld [vmem:[#allocation2 + $0x11a] sm:$0xff]
      %v3110 = vsel %vm1408, %v3078, 0.0
      %v3111 = vsel %vm1409, %v3079, 0.0
      %v3112 = vsel %vm1410, %v3080, 0.0
      %v3113 = vsel %vm1411, %v3081, 0.0
      %v3114 = vsel %vm1412, %v3082, 0.0
      %v3115 = vsel %vm1413, %v3083, 0.0
      %v3116 = vsel %vm1414, %v3084, 0.0
      %v3117 = vsel %vm1415, %v3085, 0.0
      %v3118 = vsel %vm1416, %v3086, 0.0
      %v3119 = vsel %vm1417, %v3087, 0.0
      %v3120 = vsel %vm1418, %v3088, 0.0
      %v3121 = vsel %vm1419, %v3089, 0.0
      %v3122 = vsel %vm1420, %v3090, 0.0
      %v3123 = vsel %vm1421, %v3091, 0.0
      %v3124 = vsel %vm1422, %v3092, 0.0
      %v3125 = vsel %vm1423, %v3093, 0.0
      %v3126 = vsel %vm1424, %v3094, 0.0
      %v3127 = vsel %vm1425, %v3095, 0.0
      %v3128 = vsel %vm1426, %v3096, 0.0
      %v3129 = vsel %vm1427, %v3097, 0.0
      %v3130 = vsel %vm1428, %v3098, 0.0
      %v3131 = vsel %vm1429, %v3099, 0.0
      %v3132 = vsel %vm1430, %v3100, 0.0
      %v3133 = vsel %vm1431, %v3101, 0.0
      %v3134 = vsel %vm1432, %v3102, 0.0
      %v3135 = vsel %vm1433, %v3103, 0.0
      %v3136 = vsel %vm1434, %v3104, 0.0
      %v3137 = vsel %vm1435, %v3105, 0.0
      %v3138 = vsel %vm1436, %v3106, 0.0
      %v3139 = vsel %vm1437, %v3107, 0.0
      %v3140 = vsel %vm1438, %v3108, 0.0
      %v3141 = vsel %vm1439, %v3109, 0.0
      %v3142 = vpack.c.bf16 %v3111, %v3110
      %v3143 = vpack.c.bf16 %v3113, %v3112
      %v3144 = vpack.c.bf16 %v3115, %v3114
      %v3145 = vpack.c.bf16 %v3117, %v3116
      %v3146 = vpack.c.bf16 %v3119, %v3118
      %v3147 = vpack.c.bf16 %v3121, %v3120
      %v3148 = vpack.c.bf16 %v3123, %v3122
      %v3149 = vpack.c.bf16 %v3125, %v3124
      %v3150 = vpack.c.bf16 %v3127, %v3126
      %v3151 = vpack.c.bf16 %v3129, %v3128
      %v3152 = vpack.c.bf16 %v3131, %v3130
      %v3153 = vpack.c.bf16 %v3133, %v3132
      %v3154 = vpack.c.bf16 %v3135, %v3134
      %v3155 = vpack.c.bf16 %v3137, %v3136
      %v3156 = vpack.c.bf16 %v3139, %v3138
      %v3157 = vpack.c.bf16 %v3141, %v3140
      %v3174 = vunpack.c.l.b16 %v3142
      %v3175 = vunpack.c.h.b16 %v3142
      %v3176 = vunpack.c.l.b16 %v3143
      %v3177 = vunpack.c.h.b16 %v3143
      %v3178 = vunpack.c.l.b16 %v3144
      %v3179 = vunpack.c.h.b16 %v3144
      %v3180 = vunpack.c.l.b16 %v3145
      %v3181 = vunpack.c.h.b16 %v3145
      %v3182 = vunpack.c.l.b16 %v3146
      %v3183 = vunpack.c.h.b16 %v3146
      %v3184 = vunpack.c.l.b16 %v3147
      %v3185 = vunpack.c.h.b16 %v3147
      %v3186 = vunpack.c.l.b16 %v3148
      %v3187 = vunpack.c.h.b16 %v3148
      %v3188 = vunpack.c.l.b16 %v3149
      %v3189 = vunpack.c.h.b16 %v3149
      %v3190 = vunpack.c.l.b16 %v3150
      %v3191 = vunpack.c.h.b16 %v3150
      %v3192 = vunpack.c.l.b16 %v3151
      %v3193 = vunpack.c.h.b16 %v3151
      %v3194 = vunpack.c.l.b16 %v3152
      %v3195 = vunpack.c.h.b16 %v3152
      %v3196 = vunpack.c.l.b16 %v3153
      %v3197 = vunpack.c.h.b16 %v3153
      %v3198 = vunpack.c.l.b16 %v3154
      %v3199 = vunpack.c.h.b16 %v3154
      %v3200 = vunpack.c.l.b16 %v3155
      %v3201 = vunpack.c.h.b16 %v3155
      %v3202 = vunpack.c.l.b16 %v3156
      %v3203 = vunpack.c.h.b16 %v3156
      %v3204 = vunpack.c.l.b16 %v3157
      %v3205 = vunpack.c.h.b16 %v3157
      %v3206 = vpack.c.b16 %v3174, %v3174
      %v3207 = vpack.c.b16 %v3175, %v3175
      %v3208 = vpack.c.b16 %v3176, %v3176
      %v3209 = vpack.c.b16 %v3177, %v3177
      %v3210 = vpack.c.b16 %v3178, %v3178
      %v3211 = vpack.c.b16 %v3179, %v3179
      %v3212 = vpack.c.b16 %v3180, %v3180
      %v3213 = vpack.c.b16 %v3181, %v3181
      %v3214 = vpack.c.b16 %v3182, %v3182
      %v3215 = vpack.c.b16 %v3183, %v3183
      %v3216 = vpack.c.b16 %v3184, %v3184
      %v3217 = vpack.c.b16 %v3185, %v3185
      %v3218 = vpack.c.b16 %v3186, %v3186
      %v3219 = vpack.c.b16 %v3187, %v3187
      %v3220 = vpack.c.b16 %v3188, %v3188
      %v3221 = vpack.c.b16 %v3189, %v3189
      %v3222 = vpack.c.b16 %v3190, %v3190
      %v3223 = vpack.c.b16 %v3191, %v3191
      %v3224 = vpack.c.b16 %v3192, %v3192
      %v3225 = vpack.c.b16 %v3193, %v3193
      %v3226 = vpack.c.b16 %v3194, %v3194
      %v3227 = vpack.c.b16 %v3195, %v3195
      %v3228 = vpack.c.b16 %v3196, %v3196
      %v3229 = vpack.c.b16 %v3197, %v3197
      %v3230 = vpack.c.b16 %v3198, %v3198
      %v3231 = vpack.c.b16 %v3199, %v3199
      %v3232 = vpack.c.b16 %v3200, %v3200
      %v3233 = vpack.c.b16 %v3201, %v3201
      %v3234 = vpack.c.b16 %v3202, %v3202
      %v3235 = vpack.c.b16 %v3203, %v3203
      %v3236 = vpack.c.b16 %v3204, %v3204
      %v3237 = vpack.c.b16 %v3205, %v3205
      %3238 = vrot.lane.b32.xlu0 %v3206, 32
      %v3239 = vpop.permute.xlu0 %3238
      %3240 = vrot.lane.b32.xlu0 %v3207, 32
      %v3241 = vpop.permute.xlu0 %3240
      %3242 = vrot.lane.b32.xlu0 %v3208, 32
      %v3243 = vpop.permute.xlu0 %3242
      %3244 = vrot.lane.b32.xlu0 %v3209, 32
      %v3245 = vpop.permute.xlu0 %3244
      %3246 = vrot.lane.b32.xlu0 %v3210, 32
      %v3247 = vpop.permute.xlu0 %3246
      %3248 = vrot.lane.b32.xlu0 %v3211, 32
      %v3249 = vpop.permute.xlu0 %3248
      %3250 = vrot.lane.b32.xlu0 %v3212, 32
      %v3251 = vpop.permute.xlu0 %3250
      %3252 = vrot.lane.b32.xlu0 %v3213, 32
      %v3253 = vpop.permute.xlu0 %3252
      %3254 = vrot.lane.b32.xlu0 %v3214, 32
      %v3255 = vpop.permute.xlu0 %3254
      %3256 = vrot.lane.b32.xlu0 %v3215, 32
      %v3257 = vpop.permute.xlu0 %3256
      %3258 = vrot.lane.b32.xlu0 %v3216, 32
      %v3259 = vpop.permute.xlu0 %3258
      %3260 = vrot.lane.b32.xlu0 %v3217, 32
      %v3261 = vpop.permute.xlu0 %3260
      %3262 = vrot.lane.b32.xlu0 %v3218, 32
      %v3263 = vpop.permute.xlu0 %3262
      %3264 = vrot.lane.b32.xlu0 %v3219, 32
      %v3265 = vpop.permute.xlu0 %3264
      %3266 = vrot.lane.b32.xlu0 %v3220, 32
      %v3267 = vpop.permute.xlu0 %3266
      %3268 = vrot.lane.b32.xlu0 %v3221, 32
      %v3269 = vpop.permute.xlu0 %3268
      %3270 = vrot.lane.b32.xlu0 %v3222, 32
      %v3271 = vpop.permute.xlu0 %3270
      %3272 = vrot.lane.b32.xlu0 %v3223, 32
      %v3273 = vpop.permute.xlu0 %3272
      %3274 = vrot.lane.b32.xlu0 %v3224, 32
      %v3275 = vpop.permute.xlu0 %3274
      %3276 = vrot.lane.b32.xlu0 %v3225, 32
      %v3277 = vpop.permute.xlu0 %3276
      %3278 = vrot.lane.b32.xlu0 %v3226, 32
      %v3279 = vpop.permute.xlu0 %3278
      %3280 = vrot.lane.b32.xlu0 %v3227, 32
      %v3281 = vpop.permute.xlu0 %3280
      %3282 = vrot.lane.b32.xlu0 %v3228, 32
      %v3283 = vpop.permute.xlu0 %3282
      %3284 = vrot.lane.b32.xlu0 %v3229, 32
      %v3285 = vpop.permute.xlu0 %3284
      %3286 = vrot.lane.b32.xlu0 %v3230, 32
      %v3287 = vpop.permute.xlu0 %3286
      %3288 = vrot.lane.b32.xlu0 %v3231, 32
      %v3289 = vpop.permute.xlu0 %3288
      %3290 = vrot.lane.b32.xlu0 %v3232, 32
      %v3291 = vpop.permute.xlu0 %3290
      %3292 = vrot.lane.b32.xlu0 %v3233, 32
      %v3293 = vpop.permute.xlu0 %3292
      %3294 = vrot.lane.b32.xlu0 %v3234, 32
      %v3295 = vpop.permute.xlu0 %3294
      %3296 = vrot.lane.b32.xlu0 %v3235, 32
      %v3297 = vpop.permute.xlu0 %3296
      %3298 = vrot.lane.b32.xlu0 %v3236, 32
      %v3299 = vpop.permute.xlu0 %3298
      %3300 = vrot.lane.b32.xlu0 %v3237, 32
      %v3301 = vpop.permute.xlu0 %3300
      %vm3334 = vcmask 290048
      %3335 = vst.msk [vmem:[#allocation3] sm:$0xf] %vm3334, %v3239
      %3336 = vst.msk [vmem:[#allocation3 + $0x4] sm:$0xf] %vm3334, %v3241
      %3337 = vst.msk [vmem:[#allocation3 + $0x8] sm:$0xf] %vm3334, %v3243
      %3338 = vst.msk [vmem:[#allocation3 + $0xc] sm:$0xf] %vm3334, %v3245
      %3339 = vst.msk [vmem:[#allocation3 + $0x10] sm:$0xf] %vm3334, %v3247
      %3340 = vst.msk [vmem:[#allocation3 + $0x14] sm:$0xf] %vm3334, %v3249
      %3341 = vst.msk [vmem:[#allocation3 + $0x18] sm:$0xf] %vm3334, %v3251
      %3342 = vst.msk [vmem:[#allocation3 + $0x1c] sm:$0xf] %vm3334, %v3253
      %3343 = vst.msk [vmem:[#allocation3 + $0x20] sm:$0xf] %vm3334, %v3255
      %3344 = vst.msk [vmem:[#allocation3 + $0x24] sm:$0xf] %vm3334, %v3257
      %3345 = vst.msk [vmem:[#allocation3 + $0x28] sm:$0xf] %vm3334, %v3259
      %3346 = vst.msk [vmem:[#allocation3 + $0x2c] sm:$0xf] %vm3334, %v3261
      %3347 = vst.msk [vmem:[#allocation3 + $0x30] sm:$0xf] %vm3334, %v3263
      %3348 = vst.msk [vmem:[#allocation3 + $0x34] sm:$0xf] %vm3334, %v3265
      %3349 = vst.msk [vmem:[#allocation3 + $0x38] sm:$0xf] %vm3334, %v3267
      %3350 = vst.msk [vmem:[#allocation3 + $0x3c] sm:$0xf] %vm3334, %v3269
      %3351 = vst.msk [vmem:[#allocation3 + $0x40] sm:$0xf] %vm3334, %v3271
      %3352 = vst.msk [vmem:[#allocation3 + $0x44] sm:$0xf] %vm3334, %v3273
      %3353 = vst.msk [vmem:[#allocation3 + $0x48] sm:$0xf] %vm3334, %v3275
      %3354 = vst.msk [vmem:[#allocation3 + $0x4c] sm:$0xf] %vm3334, %v3277
      %3355 = vst.msk [vmem:[#allocation3 + $0x50] sm:$0xf] %vm3334, %v3279
      %3356 = vst.msk [vmem:[#allocation3 + $0x54] sm:$0xf] %vm3334, %v3281
      %3357 = vst.msk [vmem:[#allocation3 + $0x58] sm:$0xf] %vm3334, %v3283
      %3358 = vst.msk [vmem:[#allocation3 + $0x5c] sm:$0xf] %vm3334, %v3285
      %3359 = vst.msk [vmem:[#allocation3 + $0x60] sm:$0xf] %vm3334, %v3287
      %3360 = vst.msk [vmem:[#allocation3 + $0x64] sm:$0xf] %vm3334, %v3289
      %3361 = vst.msk [vmem:[#allocation3 + $0x68] sm:$0xf] %vm3334, %v3291
      %3362 = vst.msk [vmem:[#allocation3 + $0x6c] sm:$0xf] %vm3334, %v3293
      %3363 = vst.msk [vmem:[#allocation3 + $0x70] sm:$0xf] %vm3334, %v3295
      %3364 = vst.msk [vmem:[#allocation3 + $0x74] sm:$0xf] %vm3334, %v3297
      %3365 = vst.msk [vmem:[#allocation3 + $0x78] sm:$0xf] %vm3334, %v3299
      %3366 = vst.msk [vmem:[#allocation3 + $0x7c] sm:$0xf] %vm3334, %v3301
      %v3367 = vld [vmem:[#allocation3] sm:$0xf]
      %v3368 = vld [vmem:[#allocation3 + $0x4] sm:$0xf]
      %v3369 = vld [vmem:[#allocation3 + $0x8] sm:$0xf]
      %v3370 = vld [vmem:[#allocation3 + $0xc] sm:$0xf]
      %v3371 = vld [vmem:[#allocation3 + $0x10] sm:$0xf]
      %v3372 = vld [vmem:[#allocation3 + $0x14] sm:$0xf]
      %v3373 = vld [vmem:[#allocation3 + $0x18] sm:$0xf]
      %v3374 = vld [vmem:[#allocation3 + $0x1c] sm:$0xf]
      %v3375 = vld [vmem:[#allocation3 + $0x20] sm:$0xf]
      %v3376 = vld [vmem:[#allocation3 + $0x24] sm:$0xf]
      %v3377 = vld [vmem:[#allocation3 + $0x28] sm:$0xf]
      %v3378 = vld [vmem:[#allocation3 + $0x2c] sm:$0xf]
      %v3379 = vld [vmem:[#allocation3 + $0x30] sm:$0xf]
      %v3380 = vld [vmem:[#allocation3 + $0x34] sm:$0xf]
      %v3381 = vld [vmem:[#allocation3 + $0x38] sm:$0xf]
      %v3382 = vld [vmem:[#allocation3 + $0x3c] sm:$0xf]
      %v3383 = vld [vmem:[#allocation3 + $0x40] sm:$0xf]
      %v3384 = vld [vmem:[#allocation3 + $0x44] sm:$0xf]
      %v3385 = vld [vmem:[#allocation3 + $0x48] sm:$0xf]
      %v3386 = vld [vmem:[#allocation3 + $0x4c] sm:$0xf]
      %v3387 = vld [vmem:[#allocation3 + $0x50] sm:$0xf]
      %v3388 = vld [vmem:[#allocation3 + $0x54] sm:$0xf]
      %v3389 = vld [vmem:[#allocation3 + $0x58] sm:$0xf]
      %v3390 = vld [vmem:[#allocation3 + $0x5c] sm:$0xf]
      %v3391 = vld [vmem:[#allocation3 + $0x60] sm:$0xf]
      %v3392 = vld [vmem:[#allocation3 + $0x64] sm:$0xf]
      %v3393 = vld [vmem:[#allocation3 + $0x68] sm:$0xf]
      %v3394 = vld [vmem:[#allocation3 + $0x6c] sm:$0xf]
      %v3395 = vld [vmem:[#allocation3 + $0x70] sm:$0xf]
      %v3396 = vld [vmem:[#allocation3 + $0x74] sm:$0xf]
      %v3397 = vld [vmem:[#allocation3 + $0x78] sm:$0xf]
      %v3398 = vld [vmem:[#allocation3 + $0x7c] sm:$0xf]
      %v3399 = vld [vmem:[%s1] sm:$0xf]
      %v3400 = vld [vmem:[%s1 + $0x4] sm:$0xf]
      %v3401 = vld [vmem:[%s1 + $0x8] sm:$0xf]
      %v3402 = vld [vmem:[%s1 + $0xc] sm:$0xf]
      %v3403 = vld [vmem:[%s1 + $0x10] sm:$0x3]
      %v3404 = vld [vmem:[%s2] sm:$0x1]
      %v3406 = vlaneseq
      %v3407 = vshrl.u32 %v3406, 7
      %v3408 = vsub.s32 0, %v3407
      %v3409 = vrot.slane %v3404, %v3408
      %v3443 = vunpack.c.l.b16 %v3367
      %v3444 = vunpack.c.l.b16 %v3368
      %v3445 = vunpack.c.l.b16 %v3369
      %v3446 = vunpack.c.l.b16 %v3370
      %v3447 = vunpack.c.l.b16 %v3371
      %v3448 = vunpack.c.l.b16 %v3372
      %v3449 = vunpack.c.l.b16 %v3373
      %v3450 = vunpack.c.l.b16 %v3374
      %v3451 = vunpack.c.l.b16 %v3375
      %v3452 = vunpack.c.l.b16 %v3376
      %v3453 = vunpack.c.l.b16 %v3377
      %v3454 = vunpack.c.l.b16 %v3378
      %v3455 = vunpack.c.l.b16 %v3379
      %v3456 = vunpack.c.l.b16 %v3380
      %v3457 = vunpack.c.l.b16 %v3381
      %v3458 = vunpack.c.l.b16 %v3382
      %v3459 = vunpack.c.l.b16 %v3383
      %v3460 = vunpack.c.l.b16 %v3384
      %v3461 = vunpack.c.l.b16 %v3385
      %v3462 = vunpack.c.l.b16 %v3386
      %v3463 = vunpack.c.l.b16 %v3387
      %v3464 = vunpack.c.l.b16 %v3388
      %v3465 = vunpack.c.l.b16 %v3389
      %v3466 = vunpack.c.l.b16 %v3390
      %v3467 = vunpack.c.l.b16 %v3391
      %v3468 = vunpack.c.l.b16 %v3392
      %v3469 = vunpack.c.l.b16 %v3393
      %v3470 = vunpack.c.l.b16 %v3394
      %v3471 = vunpack.c.l.b16 %v3395
      %v3472 = vunpack.c.l.b16 %v3396
      %v3473 = vunpack.c.l.b16 %v3397
      %v3474 = vunpack.c.l.b16 %v3398
      %v3475 = vpack.c.b16 %v3444, %v3443
      %v3476 = vpack.c.b16 %v3446, %v3445
      %v3477 = vpack.c.b16 %v3448, %v3447
      %v3478 = vpack.c.b16 %v3450, %v3449
      %v3479 = vpack.c.b16 %v3452, %v3451
      %v3480 = vpack.c.b16 %v3454, %v3453
      %v3481 = vpack.c.b16 %v3456, %v3455
      %v3482 = vpack.c.b16 %v3458, %v3457
      %v3483 = vpack.c.b16 %v3460, %v3459
      %v3484 = vpack.c.b16 %v3462, %v3461
      %v3485 = vpack.c.b16 %v3464, %v3463
      %v3486 = vpack.c.b16 %v3466, %v3465
      %v3487 = vpack.c.b16 %v3468, %v3467
      %v3488 = vpack.c.b16 %v3470, %v3469
      %v3489 = vpack.c.b16 %v3472, %v3471
      %v3490 = vpack.c.b16 %v3474, %v3473
      %v3496 = vunpack.c.l.b16 %v3399
      %v3497 = vunpack.c.l.b16 %v3400
      %v3498 = vunpack.c.l.b16 %v3401
      %v3499 = vunpack.c.l.b16 %v3402
      %v3500 = vunpack.c.l.b16 %v3403
      %v3501 = vpack.c.b16 %v3497, %v3496
      %v3502 = vpack.c.b16 %v3499, %v3498
      %v3503 = vpack.c.b16 %v3500, %v3500
      %vm3506 = vcmask 293888
      %v3508 = vsel %vm3506, %v3475, 0
      %v3511 = vsel %vm3506, %v3476, 0
      %v3514 = vsel %vm3506, %v3477, 0
      %v3517 = vsel %vm3506, %v3478, 0
      %v3520 = vsel %vm3506, %v3479, 0
      %v3523 = vsel %vm3506, %v3480, 0
      %v3526 = vsel %vm3506, %v3481, 0
      %v3529 = vsel %vm3506, %v3482, 0
      %v3532 = vsel %vm3506, %v3483, 0
      %v3535 = vsel %vm3506, %v3484, 0
      %v3538 = vsel %vm3506, %v3485, 0
      %v3541 = vsel %vm3506, %v3486, 0
      %v3544 = vsel %vm3506, %v3487, 0
      %v3547 = vsel %vm3506, %v3488, 0
      %v3550 = vsel %vm3506, %v3489, 0
      %v3553 = vsel %vm3506, %v3490, 0
      %vm3555 = vcmask 1041408
      %v3557 = vsel %vm3555, %v3503, 0
      %3559 = vmatprep.subr.bf16.mxu0 0
      %3560 = vmatpush1.bf16.msra.mxu0 0
      %3561 = vmatprep.subr.bf16.mxu0 0
      %3562 = vmatpush1.bf16.msra.mxu0 0
      %3563 = vmatprep.subr.bf16.mxu0 0
      %3564 = vmatpush1.bf16.msra.mxu0 0
      %3565 = vmatprep.subr.bf16.mxu0 0
      %3566 = vmatpush1.bf16.msra.mxu0 0
      %3567 = vmatprep.subr.bf16.mxu0 0
      %3568 = vmatpush1.bf16.msra.mxu0 0
      %3569 = vmatprep.subr.bf16.mxu0 0
      %3570 = vmatpush1.bf16.msra.mxu0 %v3557
      %3571 = vmatprep.subr.bf16.mxu0 0
      %3572 = vmatpush1.bf16.msra.mxu0 %v3502
      %3573 = vmatprep.subr.bf16.mxu0 0
      %3574 = vmatpush1.bf16.msra.mxu0 %v3501
      %3575 = vmatprep.subr.bf16.mxu0 0
      %3576 = vmatpush2.bf16.msra.mxu0 0
      %3577 = vmatprep.subr.bf16.mxu0 0
      %3578 = vmatpush2.bf16.msra.mxu0 0
      %3579 = vmatprep.subr.bf16.mxu0 0
      %3580 = vmatpush2.bf16.msra.mxu0 0
      %3581 = vmatprep.subr.bf16.mxu0 0
      %3582 = vmatpush2.bf16.msra.mxu0 0
      %3583 = vmatprep.subr.bf16.mxu0 0
      %3584 = vmatpush2.bf16.msra.mxu0 0
      %3585 = vmatprep.subr.bf16.mxu0 0
      %3586 = vmatpush2.bf16.msra.mxu0 0
      %3587 = vmatprep.subr.bf16.mxu0 0
      %3588 = vmatpush2.bf16.msra.mxu0 0
      %3589 = vmatprep.subr.bf16.mxu0 0
      %3590 = vmatpush2.bf16.msra.mxu0 0
      %3591 = vmatprep.mubr.bf16.mxu0 0
      %3592 = vmatmul.mubr.bf16.gmra.mxu0 %v3508
      %v3593 = vpop.f32.mrf.mxu0
      %v3594 = vadd.f32 %v3409, %v3593
      %v3595 = vpop.f32.mrf.mxu0
      %v3596 = vpop.f32.mrf.mxu0
      %v3597 = vadd.f32 %v3409, %v3596
      %v3598 = vpop.f32.mrf.mxu0
      %3599 = vmatprep.mubr.bf16.mxu0 0
      %3600 = vmatmul.mubr.bf16.gmra.mxu0 %v3511
      %v3601 = vpop.f32.mrf.mxu0
      %v3602 = vadd.f32 %v3409, %v3601
      %v3603 = vpop.f32.mrf.mxu0
      %v3604 = vpop.f32.mrf.mxu0
      %v3605 = vadd.f32 %v3409, %v3604
      %v3606 = vpop.f32.mrf.mxu0
      %3607 = vmatprep.mubr.bf16.mxu0 0
      %3608 = vmatmul.mubr.bf16.gmra.mxu0 %v3514
      %v3609 = vpop.f32.mrf.mxu0
      %v3610 = vadd.f32 %v3409, %v3609
      %v3611 = vpop.f32.mrf.mxu0
      %v3612 = vpop.f32.mrf.mxu0
      %v3613 = vadd.f32 %v3409, %v3612
      %v3614 = vpop.f32.mrf.mxu0
      %3615 = vmatprep.mubr.bf16.mxu0 0
      %3616 = vmatmul.mubr.bf16.gmra.mxu0 %v3517
      %v3617 = vpop.f32.mrf.mxu0
      %v3618 = vadd.f32 %v3409, %v3617
      %v3619 = vpop.f32.mrf.mxu0
      %v3620 = vpop.f32.mrf.mxu0
      %v3621 = vadd.f32 %v3409, %v3620
      %v3622 = vpop.f32.mrf.mxu0
      %3623 = vmatprep.mubr.bf16.mxu0 0
      %3624 = vmatmul.mubr.bf16.gmra.mxu0 %v3520
      %v3625 = vpop.f32.mrf.mxu0
      %v3626 = vadd.f32 %v3409, %v3625
      %v3627 = vpop.f32.mrf.mxu0
      %v3628 = vpop.f32.mrf.mxu0
      %v3629 = vadd.f32 %v3409, %v3628
      %v3630 = vpop.f32.mrf.mxu0
      %3631 = vmatprep.mubr.bf16.mxu0 0
      %3632 = vmatmul.mubr.bf16.gmra.mxu0 %v3523
      %v3633 = vpop.f32.mrf.mxu0
      %v3634 = vadd.f32 %v3409, %v3633
      %v3635 = vpop.f32.mrf.mxu0
      %v3636 = vpop.f32.mrf.mxu0
      %v3637 = vadd.f32 %v3409, %v3636
      %v3638 = vpop.f32.mrf.mxu0
      %3639 = vmatprep.mubr.bf16.mxu0 0
      %3640 = vmatmul.mubr.bf16.gmra.mxu0 %v3526
      %v3641 = vpop.f32.mrf.mxu0
      %v3642 = vadd.f32 %v3409, %v3641
      %v3643 = vpop.f32.mrf.mxu0
      %v3644 = vpop.f32.mrf.mxu0
      %v3645 = vadd.f32 %v3409, %v3644
      %v3646 = vpop.f32.mrf.mxu0
      %3647 = vmatprep.mubr.bf16.mxu0 0
      %3648 = vmatmul.mubr.bf16.gmra.mxu0 %v3529
      %v3649 = vpop.f32.mrf.mxu0
      %v3650 = vadd.f32 %v3409, %v3649
      %v3651 = vpop.f32.mrf.mxu0
      %v3652 = vpop.f32.mrf.mxu0
      %v3653 = vadd.f32 %v3409, %v3652
      %v3654 = vpop.f32.mrf.mxu0
      %3655 = vmatprep.mubr.bf16.mxu0 0
      %3656 = vmatmul.mubr.bf16.gmra.mxu0 %v3532
      %v3657 = vpop.f32.mrf.mxu0
      %v3658 = vadd.f32 %v3409, %v3657
      %v3659 = vpop.f32.mrf.mxu0
      %v3660 = vpop.f32.mrf.mxu0
      %v3661 = vadd.f32 %v3409, %v3660
      %v3662 = vpop.f32.mrf.mxu0
      %3663 = vmatprep.mubr.bf16.mxu0 0
      %3664 = vmatmul.mubr.bf16.gmra.mxu0 %v3535
      %v3665 = vpop.f32.mrf.mxu0
      %v3666 = vadd.f32 %v3409, %v3665
      %v3667 = vpop.f32.mrf.mxu0
      %v3668 = vpop.f32.mrf.mxu0
      %v3669 = vadd.f32 %v3409, %v3668
      %v3670 = vpop.f32.mrf.mxu0
      %3671 = vmatprep.mubr.bf16.mxu0 0
      %3672 = vmatmul.mubr.bf16.gmra.mxu0 %v3538
      %v3673 = vpop.f32.mrf.mxu0
      %v3674 = vadd.f32 %v3409, %v3673
      %v3675 = vpop.f32.mrf.mxu0
      %v3676 = vpop.f32.mrf.mxu0
      %v3677 = vadd.f32 %v3409, %v3676
      %v3678 = vpop.f32.mrf.mxu0
      %3679 = vmatprep.mubr.bf16.mxu0 0
      %3680 = vmatmul.mubr.bf16.gmra.mxu0 %v3541
      %v3681 = vpop.f32.mrf.mxu0
      %v3682 = vadd.f32 %v3409, %v3681
      %v3683 = vpop.f32.mrf.mxu0
      %v3684 = vpop.f32.mrf.mxu0
      %v3685 = vadd.f32 %v3409, %v3684
      %v3686 = vpop.f32.mrf.mxu0
      %3687 = vmatprep.mubr.bf16.mxu0 0
      %3688 = vmatmul.mubr.bf16.gmra.mxu0 %v3544
      %v3689 = vpop.f32.mrf.mxu0
      %v3690 = vadd.f32 %v3409, %v3689
      %v3691 = vpop.f32.mrf.mxu0
      %v3692 = vpop.f32.mrf.mxu0
      %v3693 = vadd.f32 %v3409, %v3692
      %v3694 = vpop.f32.mrf.mxu0
      %3695 = vmatprep.mubr.bf16.mxu0 0
      %3696 = vmatmul.mubr.bf16.gmra.mxu0 %v3547
      %v3697 = vpop.f32.mrf.mxu0
      %v3698 = vadd.f32 %v3409, %v3697
      %v3699 = vpop.f32.mrf.mxu0
      %v3700 = vpop.f32.mrf.mxu0
      %v3701 = vadd.f32 %v3409, %v3700
      %v3702 = vpop.f32.mrf.mxu0
      %3703 = vmatprep.mubr.bf16.mxu0 0
      %3704 = vmatmul.mubr.bf16.gmra.mxu0 %v3550
      %v3705 = vpop.f32.mrf.mxu0
      %v3706 = vadd.f32 %v3409, %v3705
      %v3707 = vpop.f32.mrf.mxu0
      %v3708 = vpop.f32.mrf.mxu0
      %v3709 = vadd.f32 %v3409, %v3708
      %v3710 = vpop.f32.mrf.mxu0
      %3711 = vmatprep.mubr.bf16.mxu0 0
      %3712 = vmatmul.mubr.bf16.gmra.mxu0 %v3553
      %v3713 = vpop.f32.mrf.mxu0
      %v3714 = vadd.f32 %v3409, %v3713
      %v3715 = vpop.f32.mrf.mxu0
      %v3716 = vpop.f32.mrf.mxu0
      %v3717 = vadd.f32 %v3409, %v3716
      %v3718 = vpop.f32.mrf.mxu0
      %3719 = vdwg.mxu0
      %v3720 = vpack.c.bf16 %v3597, %v3594
      %v3721 = vpack.c.bf16 %v3605, %v3602
      %v3722 = vpack.c.bf16 %v3613, %v3610
      %v3723 = vpack.c.bf16 %v3621, %v3618
      %v3724 = vpack.c.bf16 %v3629, %v3626
      %v3725 = vpack.c.bf16 %v3637, %v3634
      %v3726 = vpack.c.bf16 %v3645, %v3642
      %v3727 = vpack.c.bf16 %v3653, %v3650
      %v3728 = vpack.c.bf16 %v3661, %v3658
      %v3729 = vpack.c.bf16 %v3669, %v3666
      %v3730 = vpack.c.bf16 %v3677, %v3674
      %v3731 = vpack.c.bf16 %v3685, %v3682
      %v3732 = vpack.c.bf16 %v3693, %v3690
      %v3733 = vpack.c.bf16 %v3701, %v3698
      %v3734 = vpack.c.bf16 %v3709, %v3706
      %v3735 = vpack.c.bf16 %v3717, %v3714
      %v3752 = vunpack.c.l.b16 %v3720
      %v3753 = vunpack.c.h.b16 %v3720
      %v3754 = vunpack.c.l.b16 %v3721
      %v3755 = vunpack.c.h.b16 %v3721
      %v3756 = vunpack.c.l.b16 %v3722
      %v3757 = vunpack.c.h.b16 %v3722
      %v3758 = vunpack.c.l.b16 %v3723
      %v3759 = vunpack.c.h.b16 %v3723
      %v3760 = vunpack.c.l.b16 %v3724
      %v3761 = vunpack.c.h.b16 %v3724
      %v3762 = vunpack.c.l.b16 %v3725
      %v3763 = vunpack.c.h.b16 %v3725
      %v3764 = vunpack.c.l.b16 %v3726
      %v3765 = vunpack.c.h.b16 %v3726
      %v3766 = vunpack.c.l.b16 %v3727
      %v3767 = vunpack.c.h.b16 %v3727
      %v3768 = vunpack.c.l.b16 %v3728
      %v3769 = vunpack.c.h.b16 %v3728
      %v3770 = vunpack.c.l.b16 %v3729
      %v3771 = vunpack.c.h.b16 %v3729
      %v3772 = vunpack.c.l.b16 %v3730
      %v3773 = vunpack.c.h.b16 %v3730
      %v3774 = vunpack.c.l.b16 %v3731
      %v3775 = vunpack.c.h.b16 %v3731
      %v3776 = vunpack.c.l.b16 %v3732
      %v3777 = vunpack.c.h.b16 %v3732
      %v3778 = vunpack.c.l.b16 %v3733
      %v3779 = vunpack.c.h.b16 %v3733
      %v3780 = vunpack.c.l.b16 %v3734
      %v3781 = vunpack.c.h.b16 %v3734
      %v3782 = vunpack.c.l.b16 %v3735
      %v3783 = vunpack.c.h.b16 %v3735
      %v3784 = vpack.c.b16 %v3752, %v3752
      %v3785 = vpack.c.b16 %v3753, %v3753
      %v3786 = vpack.c.b16 %v3754, %v3754
      %v3787 = vpack.c.b16 %v3755, %v3755
      %v3788 = vpack.c.b16 %v3756, %v3756
      %v3789 = vpack.c.b16 %v3757, %v3757
      %v3790 = vpack.c.b16 %v3758, %v3758
      %v3791 = vpack.c.b16 %v3759, %v3759
      %v3792 = vpack.c.b16 %v3760, %v3760
      %v3793 = vpack.c.b16 %v3761, %v3761
      %v3794 = vpack.c.b16 %v3762, %v3762
      %v3795 = vpack.c.b16 %v3763, %v3763
      %v3796 = vpack.c.b16 %v3764, %v3764
      %v3797 = vpack.c.b16 %v3765, %v3765
      %v3798 = vpack.c.b16 %v3766, %v3766
      %v3799 = vpack.c.b16 %v3767, %v3767
      %v3800 = vpack.c.b16 %v3768, %v3768
      %v3801 = vpack.c.b16 %v3769, %v3769
      %v3802 = vpack.c.b16 %v3770, %v3770
      %v3803 = vpack.c.b16 %v3771, %v3771
      %v3804 = vpack.c.b16 %v3772, %v3772
      %v3805 = vpack.c.b16 %v3773, %v3773
      %v3806 = vpack.c.b16 %v3774, %v3774
      %v3807 = vpack.c.b16 %v3775, %v3775
      %v3808 = vpack.c.b16 %v3776, %v3776
      %v3809 = vpack.c.b16 %v3777, %v3777
      %v3810 = vpack.c.b16 %v3778, %v3778
      %v3811 = vpack.c.b16 %v3779, %v3779
      %v3812 = vpack.c.b16 %v3780, %v3780
      %v3813 = vpack.c.b16 %v3781, %v3781
      %v3814 = vpack.c.b16 %v3782, %v3782
      %v3815 = vpack.c.b16 %v3783, %v3783
      %vm3848 = vcmask 257024
      %3849 = vst.msk [vmem:[%s206] sm:$0xf] %vm3848, %v3784
      %3850 = vst.msk [vmem:[%s206 + $0x4] sm:$0xf] %vm3848, %v3785
      %3851 = vst.msk [vmem:[%s206 + $0x8] sm:$0xf] %vm3848, %v3786
      %3852 = vst.msk [vmem:[%s206 + $0xc] sm:$0xf] %vm3848, %v3787
      %3853 = vst.msk [vmem:[%s206 + $0x10] sm:$0xf] %vm3848, %v3788
      %3854 = vst.msk [vmem:[%s206 + $0x14] sm:$0xf] %vm3848, %v3789
      %3855 = vst.msk [vmem:[%s206 + $0x18] sm:$0xf] %vm3848, %v3790
      %3856 = vst.msk [vmem:[%s206 + $0x1c] sm:$0xf] %vm3848, %v3791
      %3857 = vst.msk [vmem:[%s206 + $0x20] sm:$0xf] %vm3848, %v3792
      %3858 = vst.msk [vmem:[%s206 + $0x24] sm:$0xf] %vm3848, %v3793
      %3859 = vst.msk [vmem:[%s206 + $0x28] sm:$0xf] %vm3848, %v3794
      %3860 = vst.msk [vmem:[%s206 + $0x2c] sm:$0xf] %vm3848, %v3795
      %3861 = vst.msk [vmem:[%s206 + $0x30] sm:$0xf] %vm3848, %v3796
      %3862 = vst.msk [vmem:[%s206 + $0x34] sm:$0xf] %vm3848, %v3797
      %3863 = vst.msk [vmem:[%s206 + $0x38] sm:$0xf] %vm3848, %v3798
      %3864 = vst.msk [vmem:[%s206 + $0x3c] sm:$0xf] %vm3848, %v3799
      %3865 = vst.msk [vmem:[%s206 + $0x40] sm:$0xf] %vm3848, %v3800
      %3866 = vst.msk [vmem:[%s206 + $0x44] sm:$0xf] %vm3848, %v3801
      %3867 = vst.msk [vmem:[%s206 + $0x48] sm:$0xf] %vm3848, %v3802
      %3868 = vst.msk [vmem:[%s206 + $0x4c] sm:$0xf] %vm3848, %v3803
      %3869 = vst.msk [vmem:[%s206 + $0x50] sm:$0xf] %vm3848, %v3804
      %3870 = vst.msk [vmem:[%s206 + $0x54] sm:$0xf] %vm3848, %v3805
      %3871 = vst.msk [vmem:[%s206 + $0x58] sm:$0xf] %vm3848, %v3806
      %3872 = vst.msk [vmem:[%s206 + $0x5c] sm:$0xf] %vm3848, %v3807
      %3873 = vst.msk [vmem:[%s206 + $0x60] sm:$0xf] %vm3848, %v3808
      %3874 = vst.msk [vmem:[%s206 + $0x64] sm:$0xf] %vm3848, %v3809
      %3875 = vst.msk [vmem:[%s206 + $0x68] sm:$0xf] %vm3848, %v3810
      %3876 = vst.msk [vmem:[%s206 + $0x6c] sm:$0xf] %vm3848, %v3811
      %3877 = vst.msk [vmem:[%s206 + $0x70] sm:$0xf] %vm3848, %v3812
      %3878 = vst.msk [vmem:[%s206 + $0x74] sm:$0xf] %vm3848, %v3813
      %3879 = vst.msk [vmem:[%s206 + $0x78] sm:$0xf] %vm3848, %v3814
      %3880 = vst.msk [vmem:[%s206 + $0x7c] sm:$0xf] %vm3848, %v3815
      %vm3881 = vcmask 261120
      %v3882 = vsel %vm3881, %v3594, 0.0
      %v3883 = vsel %vm3881, %v3597, 0.0
      %v3884 = vadd.f32 %v3882, %v3883
      %v3885 = vsel %vm3881, %v3602, 0.0
      %v3886 = vadd.f32 %v3884, %v3885
      %v3887 = vsel %vm3881, %v3605, 0.0
      %v3888 = vadd.f32 %v3886, %v3887
      %v3889 = vsel %vm3881, %v3610, 0.0
      %v3890 = vadd.f32 %v3888, %v3889
      %v3891 = vsel %vm3881, %v3613, 0.0
      %v3892 = vadd.f32 %v3890, %v3891
      %v3893 = vsel %vm3881, %v3618, 0.0
      %v3894 = vadd.f32 %v3892, %v3893
      %v3895 = vsel %vm3881, %v3621, 0.0
      %v3896 = vadd.f32 %v3894, %v3895
      %v3897 = vsel %vm3881, %v3626, 0.0
      %v3898 = vadd.f32 %v3896, %v3897
      %v3899 = vsel %vm3881, %v3629, 0.0
      %v3900 = vadd.f32 %v3898, %v3899
      %v3901 = vsel %vm3881, %v3634, 0.0
      %v3902 = vadd.f32 %v3900, %v3901
      %v3903 = vsel %vm3881, %v3637, 0.0
      %v3904 = vadd.f32 %v3902, %v3903
      %v3905 = vsel %vm3881, %v3642, 0.0
      %v3906 = vadd.f32 %v3904, %v3905
      %v3907 = vsel %vm3881, %v3645, 0.0
      %v3908 = vadd.f32 %v3906, %v3907
      %v3909 = vsel %vm3881, %v3650, 0.0
      %v3910 = vadd.f32 %v3908, %v3909
      %v3911 = vsel %vm3881, %v3653, 0.0
      %v3912 = vadd.f32 %v3910, %v3911
      %v3913 = vsel %vm3881, %v3658, 0.0
      %v3914 = vadd.f32 %v3912, %v3913
      %v3915 = vsel %vm3881, %v3661, 0.0
      %v3916 = vadd.f32 %v3914, %v3915
      %v3917 = vsel %vm3881, %v3666, 0.0
      %v3918 = vadd.f32 %v3916, %v3917
      %v3919 = vsel %vm3881, %v3669, 0.0
      %v3920 = vadd.f32 %v3918, %v3919
      %v3921 = vsel %vm3881, %v3674, 0.0
      %v3922 = vadd.f32 %v3920, %v3921
      %v3923 = vsel %vm3881, %v3677, 0.0
      %v3924 = vadd.f32 %v3922, %v3923
      %v3925 = vsel %vm3881, %v3682, 0.0
      %v3926 = vadd.f32 %v3924, %v3925
      %v3927 = vsel %vm3881, %v3685, 0.0
      %v3928 = vadd.f32 %v3926, %v3927
      %v3929 = vsel %vm3881, %v3690, 0.0
      %v3930 = vadd.f32 %v3928, %v3929
      %v3931 = vsel %vm3881, %v3693, 0.0
      %v3932 = vadd.f32 %v3930, %v3931
      %v3933 = vsel %vm3881, %v3698, 0.0
      %v3934 = vadd.f32 %v3932, %v3933
      %v3935 = vsel %vm3881, %v3701, 0.0
      %v3936 = vadd.f32 %v3934, %v3935
      %v3937 = vsel %vm3881, %v3706, 0.0
      %v3938 = vadd.f32 %v3936, %v3937
      %v3939 = vsel %vm3881, %v3709, 0.0
      %v3940 = vadd.f32 %v3938, %v3939
      %v3941 = vsel %vm3881, %v3714, 0.0
      %v3942 = vadd.f32 %v3940, %v3941
      %v3943 = vsel %vm3881, %v3717, 0.0
      %v3944 = vadd.f32 %v3942, %v3943
      %v3945 = vrot.slane %v3944, 4
      %v3946 = vadd.f32 %v3944, %v3945
      %v3947 = vrot.slane %v3946, 2
      %v3948 = vadd.f32 %v3946, %v3947
      %v3949 = vrot.slane %v3948, 1
      %v3950 = vadd.f32 %v3948, %v3949
      %v3951 = vmul.f32 %v3594, %v3594
      %v3952 = vmul.f32 %v3597, %v3597
      %v3953 = vmul.f32 %v3602, %v3602
      %v3954 = vmul.f32 %v3605, %v3605
      %v3955 = vmul.f32 %v3610, %v3610
      %v3956 = vmul.f32 %v3613, %v3613
      %v3957 = vmul.f32 %v3618, %v3618
      %v3958 = vmul.f32 %v3621, %v3621
      %v3959 = vmul.f32 %v3626, %v3626
      %v3960 = vmul.f32 %v3629, %v3629
      %v3961 = vmul.f32 %v3634, %v3634
      %v3962 = vmul.f32 %v3637, %v3637
      %v3963 = vmul.f32 %v3642, %v3642
      %v3964 = vmul.f32 %v3645, %v3645
      %v3965 = vmul.f32 %v3650, %v3650
      %v3966 = vmul.f32 %v3653, %v3653
      %v3967 = vmul.f32 %v3658, %v3658
      %v3968 = vmul.f32 %v3661, %v3661
      %v3969 = vmul.f32 %v3666, %v3666
      %v3970 = vmul.f32 %v3669, %v3669
      %v3971 = vmul.f32 %v3674, %v3674
      %v3972 = vmul.f32 %v3677, %v3677
      %v3973 = vmul.f32 %v3682, %v3682
      %v3974 = vmul.f32 %v3685, %v3685
      %v3975 = vmul.f32 %v3690, %v3690
      %v3976 = vmul.f32 %v3693, %v3693
      %v3977 = vmul.f32 %v3698, %v3698
      %v3978 = vmul.f32 %v3701, %v3701
      %v3979 = vmul.f32 %v3706, %v3706
      %v3980 = vmul.f32 %v3709, %v3709
      %v3981 = vmul.f32 %v3714, %v3714
      %v3982 = vmul.f32 %v3717, %v3717
      %v3983 = vsel %vm3881, %v3951, 0.0
      %v3984 = vsel %vm3881, %v3952, 0.0
      %v3985 = vadd.f32 %v3983, %v3984
      %v3986 = vsel %vm3881, %v3953, 0.0
      %v3987 = vadd.f32 %v3985, %v3986
      %v3988 = vsel %vm3881, %v3954, 0.0
      %v3989 = vadd.f32 %v3987, %v3988
      %v3990 = vsel %vm3881, %v3955, 0.0
      %v3991 = vadd.f32 %v3989, %v3990
      %v3992 = vsel %vm3881, %v3956, 0.0
      %v3993 = vadd.f32 %v3991, %v3992
      %v3994 = vsel %vm3881, %v3957, 0.0
      %v3995 = vadd.f32 %v3993, %v3994
      %v3996 = vsel %vm3881, %v3958, 0.0
      %v3997 = vadd.f32 %v3995, %v3996
      %v3998 = vsel %vm3881, %v3959, 0.0
      %v3999 = vadd.f32 %v3997, %v3998
      %v4000 = vsel %vm3881, %v3960, 0.0
      %v4001 = vadd.f32 %v3999, %v4000
      %v4002 = vsel %vm3881, %v3961, 0.0
      %v4003 = vadd.f32 %v4001, %v4002
      %v4004 = vsel %vm3881, %v3962, 0.0
      %v4005 = vadd.f32 %v4003, %v4004
      %v4006 = vsel %vm3881, %v3963, 0.0
      %v4007 = vadd.f32 %v4005, %v4006
      %v4008 = vsel %vm3881, %v3964, 0.0
      %v4009 = vadd.f32 %v4007, %v4008
      %v4010 = vsel %vm3881, %v3965, 0.0
      %v4011 = vadd.f32 %v4009, %v4010
      %v4012 = vsel %vm3881, %v3966, 0.0
      %v4013 = vadd.f32 %v4011, %v4012
      %v4014 = vsel %vm3881, %v3967, 0.0
      %v4015 = vadd.f32 %v4013, %v4014
      %v4016 = vsel %vm3881, %v3968, 0.0
      %v4017 = vadd.f32 %v4015, %v4016
      %v4018 = vsel %vm3881, %v3969, 0.0
      %v4019 = vadd.f32 %v4017, %v4018
      %v4020 = vsel %vm3881, %v3970, 0.0
      %v4021 = vadd.f32 %v4019, %v4020
      %v4022 = vsel %vm3881, %v3971, 0.0
      %v4023 = vadd.f32 %v4021, %v4022
      %v4024 = vsel %vm3881, %v3972, 0.0
      %v4025 = vadd.f32 %v4023, %v4024
      %v4026 = vsel %vm3881, %v3973, 0.0
      %v4027 = vadd.f32 %v4025, %v4026
      %v4028 = vsel %vm3881, %v3974, 0.0
      %v4029 = vadd.f32 %v4027, %v4028
      %v4030 = vsel %vm3881, %v3975, 0.0
      %v4031 = vadd.f32 %v4029, %v4030
      %v4032 = vsel %vm3881, %v3976, 0.0
      %v4033 = vadd.f32 %v4031, %v4032
      %v4034 = vsel %vm3881, %v3977, 0.0
      %v4035 = vadd.f32 %v4033, %v4034
      %v4036 = vsel %vm3881, %v3978, 0.0
      %v4037 = vadd.f32 %v4035, %v4036
      %v4038 = vsel %vm3881, %v3979, 0.0
      %v4039 = vadd.f32 %v4037, %v4038
      %v4040 = vsel %vm3881, %v3980, 0.0
      %v4041 = vadd.f32 %v4039, %v4040
      %v4042 = vsel %vm3881, %v3981, 0.0
      %v4043 = vadd.f32 %v4041, %v4042
      %v4044 = vsel %vm3881, %v3982, 0.0
      %v4045 = vadd.f32 %v4043, %v4044
      %v4046 = vrot.slane %v4045, 4
      %v4047 = vadd.f32 %v4045, %v4046
      %v4048 = vrot.slane %v4047, 2
      %v4049 = vadd.f32 %v4047, %v4048
      %v4050 = vrot.slane %v4049, 1
      %v4051 = vadd.f32 %v4049, %v4050
      %vm4052 = vcmask 1040384
      %v4053 = vsel %vm4052, %v3950, %v4051
      %vm4054 = vcmask 254976
      %4055 = vst.msk [vmem:[%s211] sm:$0x3] %vm4054, %v4053
      %s4056 = smul.u32 32, %s16
      %p4057 = scmp.lt.s32.totalorder %s4056, 63
      %s4058 = scalar_select %p4057, %s4056, 63
      %s4059 = smul.addr %s4058, 4
      %s4060 = scalar_lea.vmem %s3, %s4059
      %p4061 = scmp.lt.s32.totalorder %s16, 1
      %s4062 = scalar_select %p4061, %s16, 1
      %s4063 = smul.addr %s4062, 2
      %s4064 = scalar_lea.vmem %s4, %s4063
      // Predicated region
      $region33: #{double_conv_fwd.3} parent=31 // pred_check
        %p4065 = pneg %p102
      $region34: #{double_conv_fwd.3} parent=31 // pred_check_branch
        %4067 = sbr.rel (%p4065) target = $region36
      $region35: #{double_conv_fwd.3} parent=31 // pred_region
        %s4068 = smul.u32 32, %s16
      $region36: #{double_conv_fwd.3} parent=31 // pred_fallthru
        _
      // Predicated region
      $region37: #{double_conv_fwd.3} parent=31 // pred_check
        %p4069 = pneg %p128
      $region38: #{double_conv_fwd.3} parent=31 // pred_check_branch
        %4071 = sbr.rel (%p4069) target = $region40
      $region39: #{double_conv_fwd.3} parent=31 // pred_region
        _
      $region40: #{double_conv_fwd.3} parent=31 // pred_fallthru
        _
    $region32: #{double_conv_fwd.3} parent=5 // pred_fallthru
      _
    %p4072 = scmp.le.s32.totalorder 2, %s11
    // Predicated region
    $region41: #{double_conv_fwd.3} parent=5 // pred_check
      %p4073 = pneg %p4072
    $region42: #{double_conv_fwd.3} parent=5 // pred_check_branch
      %4075 = sbr.rel (%p4073) target = $region44
    $region43: #{double_conv_fwd.3} parent=5 // pred_region
      %s4076 = ssub.s32 %s11, 2
      // Predicated region
      $region45: #{double_conv_fwd.3} parent=43 // pred_check
        %p4077 = pneg %p108
      $region46: #{double_conv_fwd.3} parent=43 // pred_check_branch
        %4079 = sbr.rel (%p4077) target = $region48
      $region47: #{double_conv_fwd.3} parent=43 // pred_region
        %s4080 = smul.u32 32, %s17
        %p4081 = scmp.lt.s32.totalorder %s4080, 63
        %s4082 = scalar_select %p4081, %s4080, 63
        %s4083 = smul.addr %s4082, 4
        %s4084 = scalar_lea.vmem %s3, %s4083
      $region48: #{double_conv_fwd.3} parent=43 // pred_fallthru
        _
      // Predicated region
      $region49: #{double_conv_fwd.3} parent=43 // pred_check
        %p4085 = pneg %p134
      $region50: #{double_conv_fwd.3} parent=43 // pred_check_branch
        %4087 = sbr.rel (%p4085) target = $region52
      $region51: #{double_conv_fwd.3} parent=43 // pred_region
        %p4088 = scmp.lt.s32.totalorder %s17, 1
        %s4089 = scalar_select %p4088, %s17, 1
        %s4090 = smul.addr %s4089, 2
        %s4091 = scalar_lea.vmem %s4, %s4090
      $region52: #{double_conv_fwd.3} parent=43 // pred_fallthru
        _
    $region44: #{double_conv_fwd.3} parent=5 // pred_fallthru
      _
  $region6: #{double_conv_fwd.3} parent=0 // loop_footer
    %s15 = sadd.s32 1, %s11
  $region7: #{double_conv_fwd.3} parent=0 // loop_footer_branch
    %10 = sbr.rel target = $region3
  $region8: #{double_conv_fwd.3} parent=0 // loop_exit
    _

// kernel: double_conv_fwd.4
$region0: #{double_conv_fwd.4}
  #allocation0 [shape = 'u32[]', space=smem, size = 0x4, offset = 0x4, fixed_abs, tag = 'smem constant byte address 0x4 - core index']
  #allocation1 [shape = 'u32[144,128]{1,0:T(1,128)}', space=vmem, size = 0x12000, scoped, tag = 'internal scratch']
  #allocation2 [shape = 'f32[290,32]{1,0:T(8,128)}', space=vmem, size = 0x25000, scoped, tag = 'scratch operand']
  #allocation3 [shape = 'bf16[256,288]{1,0:T(8,128)(2,1)}', space=vmem, size = 0x30000, scoped, tag = 'scratch operand']
  %s0 = inlined_call_operand.vmem [shape: bf16[512,32], index: 0, kind: input, shape index: {}]
  %s1 = inlined_call_operand.vmem [shape: f32[1,32], index: 1, kind: input, shape index: {}]
  %s2 = inlined_call_operand.vmem [shape: f32[1,32], index: 2, kind: input, shape index: {}]
  %s3 = inlined_call_operand.vmem [shape: bf16[288,32], index: 3, kind: input, shape index: {}]
  %s4 = inlined_call_operand.vmem [shape: f32[1,32], index: 4, kind: input, shape index: {}]
  %s5 = inlined_call_operand.vmem [shape: bf16[512,32], index: 5, kind: output, shape index: {0}]
  %s6 = inlined_call_operand.vmem [shape: f32[2,2,32], index: 6, kind: output, shape index: {1}]
  %7 = xla_tuple %s5, %s6
  %s8 = sld [smem:[#allocation0]]
  $region61: #{double_conv_fwd.4} parent=0
    _
  %s10 = ssub.s32 1, %s8
  %s11 = scalar_select 0, %s10, %s8
  loop: start=0, step=1, limit=4
  $region2: #{double_conv_fwd.4} parent=0 // loop_pre_header
    _
  $region3: #{double_conv_fwd.4} parent=0 // loop_header
    %s13 = sphi 0, %s17
    %p14 = scmp.ge.s32.totalorder %s13, 4
    %s23 = sphi 0, %s25
    %s26 = sphi 0, %s23
    %s27 = sphi 0, %s26
    %s43 = sphi 0, %s27
    %s47 = sphi 0, %s47
    %s49 = sphi 0, %s47
    %s50 = sphi 0, %s49
    %s64 = sphi 0, %s50
    %s68 = sphi 0, %s68
    %s70 = sphi 0, %s68
    %s71 = sphi 0, %s70
    %s85 = sphi 0, %s71
    %s89 = sphi 0, %s89
    %s91 = sphi 0, %s89
    %s92 = sphi 0, %s91
    %s106 = sphi 0, %s92
    %s110 = sphi 0, %s110
    %s112 = sphi 0, %s110
    %s113 = sphi 0, %s112
    %s127 = sphi 0, %s113
    %s133 = sphi 0, %s135
    %s136 = sphi 0, %s133
    %s137 = sphi 0, %s136
    %s153 = sphi 0, %s137
    %s159 = sphi 0, %s161
    %s162 = sphi 0, %s159
    %s163 = sphi 0, %s162
    %s179 = sphi 0, %s163
  $region4: #{double_conv_fwd.4} parent=0 // loop_header_branch
    %16 = sbr.rel (%p14) target = $region8
  $region5: #{double_conv_fwd.4} parent=0 // loop_body
    %s18 = ssub.s32 %s13, 1
    %s19 = ssub.s32 %s13, 2
    %s20 = sadd.s32 %s13, 1
    %s21 = ssub.s32 %s13, %s20
    %p22 = scmp.eq.s32.totalorder %s21, 0
    %s24 = sadd.s32 %s23, 1
    %s25 = scalar_select %p22, %s23, %s24
    %p28 = pneg %p22
    %p29 = scmp.eq.s32.totalorder %s13, 1
    %p30 = por %p28, %p29
    %p31 = scmp.ne.s32.totalorder %s23, %s26
    %p32 = scmp.eq.s32.totalorder %s13, 0
    %p33 = por %p31, %p32
    %p34 = scmp.ne.s32.totalorder %s23, %s26
    %p35 = scmp.eq.s32.totalorder %s18, 1
    %p36 = por %p34, %p35
    %p37 = scmp.ne.s32.totalorder %s26, %s27
    %p38 = scmp.eq.s32.totalorder %s18, 0
    %p39 = por %p37, %p38
    %p40 = scmp.ne.s32.totalorder %s26, %s27
    %p41 = scmp.eq.s32.totalorder %s19, 1
    %p42 = por %p40, %p41
    %p44 = scmp.ne.s32.totalorder %s27, %s43
    %p45 = scmp.eq.s32.totalorder %s19, 0
    %p46 = por %p44, %p45
    %s48 = sadd.s32 %s47, 1
    %p51 = scmp.eq.s32.totalorder %s13, 1
    %p52 = scmp.ne.s32.totalorder %s47, %s49
    %p53 = scmp.eq.s32.totalorder %s13, 0
    %p54 = por %p52, %p53
    %p55 = scmp.ne.s32.totalorder %s47, %s49
    %p56 = scmp.eq.s32.totalorder %s18, 1
    %p57 = por %p55, %p56
    %p58 = scmp.ne.s32.totalorder %s49, %s50
    %p59 = scmp.eq.s32.totalorder %s18, 0
    %p60 = por %p58, %p59
    %p61 = scmp.ne.s32.totalorder %s49, %s50
    %p62 = scmp.eq.s32.totalorder %s19, 1
    %p63 = por %p61, %p62
    %p65 = scmp.ne.s32.totalorder %s50, %s64
    %p66 = scmp.eq.s32.totalorder %s19, 0
    %p67 = por %p65, %p66
    %s69 = sadd.s32 %s68, 1
    %p72 = scmp.eq.s32.totalorder %s13, 1
    %p73 = scmp.ne.s32.totalorder %s68, %s70
    %p74 = scmp.eq.s32.totalorder %s13, 0
    %p75 = por %p73, %p74
    %p76 = scmp.ne.s32.totalorder %s68, %s70
    %p77 = scmp.eq.s32.totalorder %s18, 1
    %p78 = por %p76, %p77
    %p79 = scmp.ne.s32.totalorder %s70, %s71
    %p80 = scmp.eq.s32.totalorder %s18, 0
    %p81 = por %p79, %p80
    %p82 = scmp.ne.s32.totalorder %s70, %s71
    %p83 = scmp.eq.s32.totalorder %s19, 1
    %p84 = por %p82, %p83
    %p86 = scmp.ne.s32.totalorder %s71, %s85
    %p87 = scmp.eq.s32.totalorder %s19, 0
    %p88 = por %p86, %p87
    %s90 = sadd.s32 %s89, 1
    %p93 = scmp.eq.s32.totalorder %s13, 1
    %p94 = scmp.ne.s32.totalorder %s89, %s91
    %p95 = scmp.eq.s32.totalorder %s13, 0
    %p96 = por %p94, %p95
    %p97 = scmp.ne.s32.totalorder %s89, %s91
    %p98 = scmp.eq.s32.totalorder %s18, 1
    %p99 = por %p97, %p98
    %p100 = scmp.ne.s32.totalorder %s91, %s92
    %p101 = scmp.eq.s32.totalorder %s18, 0
    %p102 = por %p100, %p101
    %p103 = scmp.ne.s32.totalorder %s91, %s92
    %p104 = scmp.eq.s32.totalorder %s19, 1
    %p105 = por %p103, %p104
    %p107 = scmp.ne.s32.totalorder %s92, %s106
    %p108 = scmp.eq.s32.totalorder %s19, 0
    %p109 = por %p107, %p108
    %s111 = sadd.s32 %s110, 1
    %p114 = scmp.eq.s32.totalorder %s13, 1
    %p115 = scmp.ne.s32.totalorder %s110, %s112
    %p116 = scmp.eq.s32.totalorder %s13, 0
    %p117 = por %p115, %p116
    %p118 = scmp.ne.s32.totalorder %s110, %s112
    %p119 = scmp.eq.s32.totalorder %s18, 1
    %p120 = por %p118, %p119
    %p121 = scmp.ne.s32.totalorder %s112, %s113
    %p122 = scmp.eq.s32.totalorder %s18, 0
    %p123 = por %p121, %p122
    %p124 = scmp.ne.s32.totalorder %s112, %s113
    %p125 = scmp.eq.s32.totalorder %s19, 1
    %p126 = por %p124, %p125
    %p128 = scmp.ne.s32.totalorder %s113, %s127
    %p129 = scmp.eq.s32.totalorder %s19, 0
    %p130 = por %p128, %p129
    %s131 = ssub.s32 %s13, %s20
    %p132 = scmp.eq.s32.totalorder %s131, 0
    %s134 = sadd.s32 %s133, 1
    %s135 = scalar_select %p132, %s133, %s134
    %p138 = pneg %p132
    %p139 = scmp.eq.s32.totalorder %s13, 1
    %p140 = por %p138, %p139
    %p141 = scmp.ne.s32.totalorder %s133, %s136
    %p142 = scmp.eq.s32.totalorder %s13, 0
    %p143 = por %p141, %p142
    %p144 = scmp.ne.s32.totalorder %s133, %s136
    %p145 = scmp.eq.s32.totalorder %s18, 1
    %p146 = por %p144, %p145
    %p147 = scmp.ne.s32.totalorder %s136, %s137
    %p148 = scmp.eq.s32.totalorder %s18, 0
    %p149 = por %p147, %p148
    %p150 = scmp.ne.s32.totalorder %s136, %s137
    %p151 = scmp.eq.s32.totalorder %s19, 1
    %p152 = por %p150, %p151
    %p154 = scmp.ne.s32.totalorder %s137, %s153
    %p155 = scmp.eq.s32.totalorder %s19, 0
    %p156 = por %p154, %p155
    %s157 = ssub.s32 %s13, %s20
    %p158 = scmp.eq.s32.totalorder %s157, 0
    %s160 = sadd.s32 %s159, 1
    %s161 = scalar_select %p158, %s159, %s160
    %p164 = pneg %p158
    %p165 = scmp.eq.s32.totalorder %s13, 1
    %p166 = por %p164, %p165
    %p167 = scmp.ne.s32.totalorder %s159, %s162
    %p168 = scmp.eq.s32.totalorder %s13, 0
    %p169 = por %p167, %p168
    %p170 = scmp.ne.s32.totalorder %s159, %s162
    %p171 = scmp.eq.s32.totalorder %s18, 1
    %p172 = por %p170, %p171
    %p173 = scmp.ne.s32.totalorder %s162, %s163
    %p174 = scmp.eq.s32.totalorder %s18, 0
    %p175 = por %p173, %p174
    %p176 = scmp.ne.s32.totalorder %s162, %s163
    %p177 = scmp.eq.s32.totalorder %s19, 1
    %p178 = por %p176, %p177
    %p180 = scmp.ne.s32.totalorder %s163, %s179
    %p181 = scmp.eq.s32.totalorder %s19, 0
    %p182 = por %p180, %p181
    %p183 = scmp.le.s32.totalorder 1, %s13
    %p184 = scmp.lt.s32.totalorder %s13, 3
    %p185 = pnand %p183, %p184
    %p186 = pneg %p185
    // Predicated region
    $region9: #{double_conv_fwd.4} parent=5 // pred_check
      _
    $region10: #{double_conv_fwd.4} parent=5 // pred_check_branch
      %188 = sbr.rel (%p185) target = $region12
    $region11: #{double_conv_fwd.4} parent=5 // pred_region
      %s189 = ssub.s32 %s13, 1
      // Predicated region
      $region13: #{double_conv_fwd.4} parent=11 // pred_check
        %p190 = pneg %p60
      $region14: #{double_conv_fwd.4} parent=11 // pred_check_branch
        %192 = sbr.rel (%p190) target = $region16
      $region15: #{double_conv_fwd.4} parent=11 // pred_region
        _
      $region16: #{double_conv_fwd.4} parent=11 // pred_fallthru
        _
      // Predicated region
      $region17: #{double_conv_fwd.4} parent=11 // pred_check
        %p193 = pneg %p81
      $region18: #{double_conv_fwd.4} parent=11 // pred_check_branch
        %195 = sbr.rel (%p193) target = $region20
      $region19: #{double_conv_fwd.4} parent=11 // pred_region
        _
      $region20: #{double_conv_fwd.4} parent=11 // pred_fallthru
        _
      // Predicated region
      $region21: #{double_conv_fwd.4} parent=11 // pred_check
        %p196 = pneg %p102
      $region22: #{double_conv_fwd.4} parent=11 // pred_check_branch
        %198 = sbr.rel (%p196) target = $region24
      $region23: #{double_conv_fwd.4} parent=11 // pred_region
        _
      $region24: #{double_conv_fwd.4} parent=11 // pred_fallthru
        _
      // Predicated region
      $region25: #{double_conv_fwd.4} parent=11 // pred_check
        %p199 = pneg %p123
      $region26: #{double_conv_fwd.4} parent=11 // pred_check_branch
        %201 = sbr.rel (%p199) target = $region28
      $region27: #{double_conv_fwd.4} parent=11 // pred_region
        _
      $region28: #{double_conv_fwd.4} parent=11 // pred_fallthru
        _
    $region12: #{double_conv_fwd.4} parent=5 // pred_fallthru
      _
    %p202 = scmp.lt.s32.totalorder %s13, 2
    // Predicated region
    $region29: #{double_conv_fwd.4} parent=5 // pred_check
      %p203 = pneg %p202
    $region30: #{double_conv_fwd.4} parent=5 // pred_check_branch
      %205 = sbr.rel (%p203) target = $region32
    $region31: #{double_conv_fwd.4} parent=5 // pred_region
      // Predicated region
      $region33: #{double_conv_fwd.4} parent=31 // pred_check
        %p206 = pneg %p33
      $region34: #{double_conv_fwd.4} parent=31 // pred_check_branch
        %208 = sbr.rel (%p206) target = $region36
      $region35: #{double_conv_fwd.4} parent=31 // pred_region
        %s209 = smul.u32 32, %s13
        %p210 = scmp.lt.s32.totalorder %s209, 63
        %s211 = scalar_select %p210, %s209, 63
        %s212 = smul.addr %s211, 4
        %s213 = scalar_lea.vmem %s0, %s212
        %s214 = smul.u32 32, %s13
      $region36: #{double_conv_fwd.4} parent=31 // pred_fallthru
        _
    $region32: #{double_conv_fwd.4} parent=5 // pred_fallthru
      _
    %p215 = scmp.le.s32.totalorder 1, %s13
    %p216 = scmp.lt.s32.totalorder %s13, 3
    %p217 = pnand %p215, %p216
    %p218 = pneg %p217
    // Predicated region
    $region37: #{double_conv_fwd.4} parent=5 // pred_check
      _
    $region38: #{double_conv_fwd.4} parent=5 // pred_check_branch
      %220 = sbr.rel (%p217) target = $region40
    $region39: #{double_conv_fwd.4} parent=5 // pred_region
      %s221 = ssub.s32 %s13, 1
      %s222 = smul.u32 32, %s18
      %p223 = scmp.lt.s32.totalorder %s222, 63
      %s224 = scalar_select %p223, %s222, 63
      %s225 = smul.addr %s224, 4
      %s226 = scalar_lea.vmem %s0, %s225
      %p227 = pneg %p39
      %p228 = pneg %p36
      %p229 = pneg %p60
      %p230 = pneg %p57
      %p231 = pneg %p81
      %p232 = pneg %p78
      %p233 = pneg %p102
      %p234 = pneg %p99
      %p235 = pneg %p123
      %p236 = pneg %p120
      %p237 = pneg %p149
      %p238 = pneg %p146
      %s239 = smul.u32 32, %s18
      %p240 = scmp.lt.s32.totalorder %s239, 63
      %s241 = scalar_select %p240, %s239, 63
      %s242 = smul.addr %s241, 4
      %s243 = scalar_lea.vmem %s5, %s242
      %p244 = pneg %p175
      %p245 = pneg %p172
      %p246 = scmp.lt.s32.totalorder %s18, 1
      %s247 = scalar_select %p246, %s18, 1
      %s248 = smul.addr %s247, 2
      %s249 = scalar_lea.vmem %s6, %s248
      %s250 = smul.u32 32, %s18
      %p251 = scmp.lt.s32.totalorder %s250, 63
      %s252 = scalar_select %p251, %s250, 63
      %s253 = smul.addr %s252, 4
      %s254 = scalar_lea.vmem %s0, %s253
      %s255 = smul.u32 32, %s18
      %s256 = smul.u32 32, %s18
      %p257 = scmp.lt.s32.totalorder %s256, 63
      %s258 = scalar_select %p257, %s256, 63
      %s259 = smul.addr %s258, 4
      %s260 = scalar_lea.vmem %s5, %s259
      %s261 = smul.u32 32, %s18
      %p262 = scmp.lt.s32.totalorder %s18, 1
      %s263 = scalar_select %p262, %s18, 1
      %s264 = smul.addr %s263, 2
      %s265 = scalar_lea.vmem %s6, %s264
      %v267 = vld [vmem:[%s254] sm:$0xf]
      %v268 = vld [vmem:[%s254 + $0x4] sm:$0xf]
      %v269 = vld [vmem:[%s254 + $0x8] sm:$0xf]
      %v270 = vld [vmem:[%s254 + $0xc] sm:$0xf]
      %v271 = vld [vmem:[%s254 + $0x10] sm:$0xf]
      %v272 = vld [vmem:[%s254 + $0x14] sm:$0xf]
      %v273 = vld [vmem:[%s254 + $0x18] sm:$0xf]
      %v274 = vld [vmem:[%s254 + $0x1c] sm:$0xf]
      %v275 = vld [vmem:[%s254 + $0x20] sm:$0xf]
      %v276 = vld [vmem:[%s254 + $0x24] sm:$0xf]
      %v277 = vld [vmem:[%s254 + $0x28] sm:$0xf]
      %v278 = vld [vmem:[%s254 + $0x2c] sm:$0xf]
      %v279 = vld [vmem:[%s254 + $0x30] sm:$0xf]
      %v280 = vld [vmem:[%s254 + $0x34] sm:$0xf]
      %v281 = vld [vmem:[%s254 + $0x38] sm:$0xf]
      %v282 = vld [vmem:[%s254 + $0x3c] sm:$0xf]
      %v283 = vld [vmem:[%s254 + $0x40] sm:$0xf]
      %v284 = vld [vmem:[%s254 + $0x44] sm:$0xf]
      %v285 = vld [vmem:[%s254 + $0x48] sm:$0xf]
      %v286 = vld [vmem:[%s254 + $0x4c] sm:$0xf]
      %v287 = vld [vmem:[%s254 + $0x50] sm:$0xf]
      %v288 = vld [vmem:[%s254 + $0x54] sm:$0xf]
      %v289 = vld [vmem:[%s254 + $0x58] sm:$0xf]
      %v290 = vld [vmem:[%s254 + $0x5c] sm:$0xf]
      %v291 = vld [vmem:[%s254 + $0x60] sm:$0xf]
      %v292 = vld [vmem:[%s254 + $0x64] sm:$0xf]
      %v293 = vld [vmem:[%s254 + $0x68] sm:$0xf]
      %v294 = vld [vmem:[%s254 + $0x6c] sm:$0xf]
      %v295 = vld [vmem:[%s254 + $0x70] sm:$0xf]
      %v296 = vld [vmem:[%s254 + $0x74] sm:$0xf]
      %v297 = vld [vmem:[%s254 + $0x78] sm:$0xf]
      %v298 = vld [vmem:[%s254 + $0x7c] sm:$0xf]
      %v299 = vunpack.c.l.bf16 %v267
      %v300 = vunpack.c.l.bf16 %v268
      %v301 = vunpack.c.l.bf16 %v269
      %v302 = vunpack.c.l.bf16 %v270
      %v303 = vunpack.c.l.bf16 %v271
      %v304 = vunpack.c.l.bf16 %v272
      %v305 = vunpack.c.l.bf16 %v273
      %v306 = vunpack.c.l.bf16 %v274
      %v307 = vunpack.c.l.bf16 %v275
      %v308 = vunpack.c.l.bf16 %v276
      %v309 = vunpack.c.l.bf16 %v277
      %v310 = vunpack.c.l.bf16 %v278
      %v311 = vunpack.c.l.bf16 %v279
      %v312 = vunpack.c.l.bf16 %v280
      %v313 = vunpack.c.l.bf16 %v281
      %v314 = vunpack.c.l.bf16 %v282
      %v315 = vunpack.c.l.bf16 %v283
      %v316 = vunpack.c.l.bf16 %v284
      %v317 = vunpack.c.l.bf16 %v285
      %v318 = vunpack.c.l.bf16 %v286
      %v319 = vunpack.c.l.bf16 %v287
      %v320 = vunpack.c.l.bf16 %v288
      %v321 = vunpack.c.l.bf16 %v289
      %v322 = vunpack.c.l.bf16 %v290
      %v323 = vunpack.c.l.bf16 %v291
      %v324 = vunpack.c.l.bf16 %v292
      %v325 = vunpack.c.l.bf16 %v293
      %v326 = vunpack.c.l.bf16 %v294
      %v327 = vunpack.c.l.bf16 %v295
      %v328 = vunpack.c.l.bf16 %v296
      %v329 = vunpack.c.l.bf16 %v297
      %v330 = vunpack.c.l.bf16 %v298
      %v331 = vld [vmem:[%s1] sm:$0x1]
      %v333 = vlaneseq
      %v334 = vshrl.u32 %v333, 7
      %v335 = vsub.s32 0, %v334
      %v336 = vrot.slane %v331, %v335
      %v338 = vmul.f32 %v299, %v336
      %v339 = vmul.f32 %v300, %v336
      %v340 = vmul.f32 %v301, %v336
      %v341 = vmul.f32 %v302, %v336
      %v342 = vmul.f32 %v303, %v336
      %v343 = vmul.f32 %v304, %v336
      %v344 = vmul.f32 %v305, %v336
      %v345 = vmul.f32 %v306, %v336
      %v346 = vmul.f32 %v307, %v336
      %v347 = vmul.f32 %v308, %v336
      %v348 = vmul.f32 %v309, %v336
      %v349 = vmul.f32 %v310, %v336
      %v350 = vmul.f32 %v311, %v336
      %v351 = vmul.f32 %v312, %v336
      %v352 = vmul.f32 %v313, %v336
      %v353 = vmul.f32 %v314, %v336
      %v354 = vmul.f32 %v315, %v336
      %v355 = vmul.f32 %v316, %v336
      %v356 = vmul.f32 %v317, %v336
      %v357 = vmul.f32 %v318, %v336
      %v358 = vmul.f32 %v319, %v336
      %v359 = vmul.f32 %v320, %v336
      %v360 = vmul.f32 %v321, %v336
      %v361 = vmul.f32 %v322, %v336
      %v362 = vmul.f32 %v323, %v336
      %v363 = vmul.f32 %v324, %v336
      %v364 = vmul.f32 %v325, %v336
      %v365 = vmul.f32 %v326, %v336
      %v366 = vmul.f32 %v327, %v336
      %v367 = vmul.f32 %v328, %v336
      %v368 = vmul.f32 %v329, %v336
      %v369 = vmul.f32 %v330, %v336
      %v370 = vld [vmem:[%s2] sm:$0x1]
      %v372 = vlaneseq
      %v373 = vshrl.u32 %v372, 7
      %v374 = vsub.s32 0, %v373
      %v375 = vrot.slane %v370, %v374
      %v377 = vadd.f32 %v338, %v375
      %v378 = vadd.f32 %v339, %v375
      %v379 = vadd.f32 %v340, %v375
      %v380 = vadd.f32 %v341, %v375
      %v381 = vadd.f32 %v342, %v375
      %v382 = vadd.f32 %v343, %v375
      %v383 = vadd.f32 %v344, %v375
      %v384 = vadd.f32 %v345, %v375
      %v385 = vadd.f32 %v346, %v375
      %v386 = vadd.f32 %v347, %v375
      %v387 = vadd.f32 %v348, %v375
      %v388 = vadd.f32 %v349, %v375
      %v389 = vadd.f32 %v350, %v375
      %v390 = vadd.f32 %v351, %v375
      %v391 = vadd.f32 %v352, %v375
      %v392 = vadd.f32 %v353, %v375
      %v393 = vadd.f32 %v354, %v375
      %v394 = vadd.f32 %v355, %v375
      %v395 = vadd.f32 %v356, %v375
      %v396 = vadd.f32 %v357, %v375
      %v397 = vadd.f32 %v358, %v375
      %v398 = vadd.f32 %v359, %v375
      %v399 = vadd.f32 %v360, %v375
      %v400 = vadd.f32 %v361, %v375
      %v401 = vadd.f32 %v362, %v375
      %v402 = vadd.f32 %v363, %v375
      %v403 = vadd.f32 %v364, %v375
      %v404 = vadd.f32 %v365, %v375
      %v405 = vadd.f32 %v366, %v375
      %v406 = vadd.f32 %v367, %v375
      %v407 = vadd.f32 %v368, %v375
      %v408 = vadd.f32 %v369, %v375
      %v409 = vmax.f32 %v377, 0.0
      %v410 = vmax.f32 %v378, 0.0
      %v411 = vmax.f32 %v379, 0.0
      %v412 = vmax.f32 %v380, 0.0
      %v413 = vmax.f32 %v381, 0.0
      %v414 = vmax.f32 %v382, 0.0
      %v415 = vmax.f32 %v383, 0.0
      %v416 = vmax.f32 %v384, 0.0
      %v417 = vmax.f32 %v385, 0.0
      %v418 = vmax.f32 %v386, 0.0
      %v419 = vmax.f32 %v387, 0.0
      %v420 = vmax.f32 %v388, 0.0
      %v421 = vmax.f32 %v389, 0.0
      %v422 = vmax.f32 %v390, 0.0
      %v423 = vmax.f32 %v391, 0.0
      %v424 = vmax.f32 %v392, 0.0
      %v425 = vmax.f32 %v393, 0.0
      %v426 = vmax.f32 %v394, 0.0
      %v427 = vmax.f32 %v395, 0.0
      %v428 = vmax.f32 %v396, 0.0
      %v429 = vmax.f32 %v397, 0.0
      %v430 = vmax.f32 %v398, 0.0
      %v431 = vmax.f32 %v399, 0.0
      %v432 = vmax.f32 %v400, 0.0
      %v433 = vmax.f32 %v401, 0.0
      %v434 = vmax.f32 %v402, 0.0
      %v435 = vmax.f32 %v403, 0.0
      %v436 = vmax.f32 %v404, 0.0
      %v437 = vmax.f32 %v405, 0.0
      %v438 = vmax.f32 %v406, 0.0
      %v439 = vmax.f32 %v407, 0.0
      %v440 = vmax.f32 %v408, 0.0
      %vm441 = vcmask 261120
      %442 = vst.msk [vmem:[#allocation2] sm:$0xff] %vm441, 0.0
      %443 = vst.msk [vmem:[#allocation2 + $0x8] sm:$0xff] %vm441, 0.0
      %vm444 = vcmask 253952
      %445 = vst.msk [vmem:[#allocation2 + $0x10] sm:$0x1] %vm444, 0.0
      %446 = vst.msk [vmem:[#allocation2 + $0x111] sm:$0xff] %vm441, 0.0
      %447 = vst.msk [vmem:[#allocation2 + $0x119] sm:$0xff] %vm441, 0.0
      %448 = vst.msk [vmem:[#allocation2 + $0x121] sm:$0x1] %vm444, 0.0
      %449 = vst.msk [vmem:[#allocation2 + $0x11] sm:$0xff] %vm441, %v409
      %450 = vst.msk [vmem:[#allocation2 + $0x19] sm:$0xff] %vm441, %v410
      %451 = vst.msk [vmem:[#allocation2 + $0x21] sm:$0xff] %vm441, %v411
      %452 = vst.msk [vmem:[#allocation2 + $0x29] sm:$0xff] %vm441, %v412
      %453 = vst.msk [vmem:[#allocation2 + $0x31] sm:$0xff] %vm441, %v413
      %454 = vst.msk [vmem:[#allocation2 + $0x39] sm:$0xff] %vm441, %v414
      %455 = vst.msk [vmem:[#allocation2 + $0x41] sm:$0xff] %vm441, %v415
      %456 = vst.msk [vmem:[#allocation2 + $0x49] sm:$0xff] %vm441, %v416
      %457 = vst.msk [vmem:[#allocation2 + $0x51] sm:$0xff] %vm441, %v417
      %458 = vst.msk [vmem:[#allocation2 + $0x59] sm:$0xff] %vm441, %v418
      %459 = vst.msk [vmem:[#allocation2 + $0x61] sm:$0xff] %vm441, %v419
      %460 = vst.msk [vmem:[#allocation2 + $0x69] sm:$0xff] %vm441, %v420
      %461 = vst.msk [vmem:[#allocation2 + $0x71] sm:$0xff] %vm441, %v421
      %462 = vst.msk [vmem:[#allocation2 + $0x79] sm:$0xff] %vm441, %v422
      %463 = vst.msk [vmem:[#allocation2 + $0x81] sm:$0xff] %vm441, %v423
      %464 = vst.msk [vmem:[#allocation2 + $0x89] sm:$0xff] %vm441, %v424
      %465 = vst.msk [vmem:[#allocation2 + $0x91] sm:$0xff] %vm441, %v425
      %466 = vst.msk [vmem:[#allocation2 + $0x99] sm:$0xff] %vm441, %v426
      %467 = vst.msk [vmem:[#allocation2 + $0xa1] sm:$0xff] %vm441, %v427
      %468 = vst.msk [vmem:[#allocation2 + $0xa9] sm:$0xff] %vm441, %v428
      %469 = vst.msk [vmem:[#allocation2 + $0xb1] sm:$0xff] %vm441, %v429
      %470 = vst.msk [vmem:[#allocation2 + $0xb9] sm:$0xff] %vm441, %v430
      %471 = vst.msk [vmem:[#allocation2 + $0xc1] sm:$0xff] %vm441, %v431
      %472 = vst.msk [vmem:[#allocation2 + $0xc9] sm:$0xff] %vm441, %v432
      %473 = vst.msk [vmem:[#allocation2 + $0xd1] sm:$0xff] %vm441, %v433
      %474 = vst.msk [vmem:[#allocation2 + $0xd9] sm:$0xff] %vm441, %v434
      %475 = vst.msk [vmem:[#allocation2 + $0xe1] sm:$0xff] %vm441, %v435
      %476 = vst.msk [vmem:[#allocation2 + $0xe9] sm:$0xff] %vm441, %v436
      %477 = vst.msk [vmem:[#allocation2 + $0xf1] sm:$0xff] %vm441, %v437
      %478 = vst.msk [vmem:[#allocation2 + $0xf9] sm:$0xff] %vm441, %v438
      %479 = vst.msk [vmem:[#allocation2 + $0x101] sm:$0xff] %vm441, %v439
      %480 = vst.msk [vmem:[#allocation2 + $0x109] sm:$0xff] %vm441, %v440
      %v481 = vlaneseq
      %v482 = vshrl.u32 %v481, 7
      %v483 = vadd.s32 %v482, 8
      %v484 = vadd.s32 %v482, 16
      %v485 = vadd.s32 %v482, 24
      %v486 = vadd.s32 %v482, 32
      %v487 = vadd.s32 %v482, 40
      %v488 = vadd.s32 %v482, 48
      %v489 = vadd.s32 %v482, 56
      %v490 = vadd.s32 %v482, 64
      %v491 = vadd.s32 %v482, 72
      %v492 = vadd.s32 %v482, 80
      %v493 = vadd.s32 %v482, 88
      %v494 = vadd.s32 %v482, 96
      %v495 = vadd.s32 %v482, 104
      %v496 = vadd.s32 %v482, 112
      %v497 = vadd.s32 %v482, 120
      %v498 = vadd.s32 %v482, 128
      %v499 = vadd.s32 %v482, 136
      %v500 = vadd.s32 %v482, 144
      %v501 = vadd.s32 %v482, 152
      %v502 = vadd.s32 %v482, 160
      %v503 = vadd.s32 %v482, 168
      %v504 = vadd.s32 %v482, 176
      %v505 = vadd.s32 %v482, 184
      %v506 = vadd.s32 %v482, 192
      %v507 = vadd.s32 %v482, 200
      %v508 = vadd.s32 %v482, 208
      %v509 = vadd.s32 %v482, 216
      %v510 = vadd.s32 %v482, 224
      %v511 = vadd.s32 %v482, 232
      %v512 = vadd.s32 %v482, 240
      %v513 = vadd.s32 %v482, 248
      %vm514 = vcmp.lt.s32.totalorder %v482, 0
      %v515 = vsub.s32 0, %v482
      %v516 = vsel %vm514, %v515, %v482
      %v517 = vshrl.u32 %v516, 4
      %v518 = vand.u32 %v516, 15
      %v519 = vsub.s32 0, %v518
      %v520 = vsel %vm514, %v519, %v518
      %vm521 = vcmp.lt.s32.totalorder %v483, 0
      %v522 = vsub.s32 0, %v483
      %v523 = vsel %vm521, %v522, %v483
      %v524 = vshrl.u32 %v523, 4
      %v525 = vand.u32 %v523, 15
      %v526 = vsub.s32 0, %v525
      %v527 = vsel %vm521, %v526, %v525
      %vm528 = vcmp.lt.s32.totalorder %v484, 0
      %v529 = vsub.s32 0, %v484
      %v530 = vsel %vm528, %v529, %v484
      %v531 = vshrl.u32 %v530, 4
      %v532 = vand.u32 %v530, 15
      %v533 = vsub.s32 0, %v532
      %v534 = vsel %vm528, %v533, %v532
      %vm535 = vcmp.lt.s32.totalorder %v485, 0
      %v536 = vsub.s32 0, %v485
      %v537 = vsel %vm535, %v536, %v485
      %v538 = vshrl.u32 %v537, 4
      %v539 = vand.u32 %v537, 15
      %v540 = vsub.s32 0, %v539
      %v541 = vsel %vm535, %v540, %v539
      %vm542 = vcmp.lt.s32.totalorder %v486, 0
      %v543 = vsub.s32 0, %v486
      %v544 = vsel %vm542, %v543, %v486
      %v545 = vshrl.u32 %v544, 4
      %v546 = vand.u32 %v544, 15
      %v547 = vsub.s32 0, %v546
      %v548 = vsel %vm542, %v547, %v546
      %vm549 = vcmp.lt.s32.totalorder %v487, 0
      %v550 = vsub.s32 0, %v487
      %v551 = vsel %vm549, %v550, %v487
      %v552 = vshrl.u32 %v551, 4
      %v553 = vand.u32 %v551, 15
      %v554 = vsub.s32 0, %v553
      %v555 = vsel %vm549, %v554, %v553
      %vm556 = vcmp.lt.s32.totalorder %v488, 0
      %v557 = vsub.s32 0, %v488
      %v558 = vsel %vm556, %v557, %v488
      %v559 = vshrl.u32 %v558, 4
      %v560 = vand.u32 %v558, 15
      %v561 = vsub.s32 0, %v560
      %v562 = vsel %vm556, %v561, %v560
      %vm563 = vcmp.lt.s32.totalorder %v489, 0
      %v564 = vsub.s32 0, %v489
      %v565 = vsel %vm563, %v564, %v489
      %v566 = vshrl.u32 %v565, 4
      %v567 = vand.u32 %v565, 15
      %v568 = vsub.s32 0, %v567
      %v569 = vsel %vm563, %v568, %v567
      %vm570 = vcmp.lt.s32.totalorder %v490, 0
      %v571 = vsub.s32 0, %v490
      %v572 = vsel %vm570, %v571, %v490
      %v573 = vshrl.u32 %v572, 4
      %v574 = vand.u32 %v572, 15
      %v575 = vsub.s32 0, %v574
      %v576 = vsel %vm570, %v575, %v574
      %vm577 = vcmp.lt.s32.totalorder %v491, 0
      %v578 = vsub.s32 0, %v491
      %v579 = vsel %vm577, %v578, %v491
      %v580 = vshrl.u32 %v579, 4
      %v581 = vand.u32 %v579, 15
      %v582 = vsub.s32 0, %v581
      %v583 = vsel %vm577, %v582, %v581
      %vm584 = vcmp.lt.s32.totalorder %v492, 0
      %v585 = vsub.s32 0, %v492
      %v586 = vsel %vm584, %v585, %v492
      %v587 = vshrl.u32 %v586, 4
      %v588 = vand.u32 %v586, 15
      %v589 = vsub.s32 0, %v588
      %v590 = vsel %vm584, %v589, %v588
      %vm591 = vcmp.lt.s32.totalorder %v493, 0
      %v592 = vsub.s32 0, %v493
      %v593 = vsel %vm591, %v592, %v493
      %v594 = vshrl.u32 %v593, 4
      %v595 = vand.u32 %v593, 15
      %v596 = vsub.s32 0, %v595
      %v597 = vsel %vm591, %v596, %v595
      %vm598 = vcmp.lt.s32.totalorder %v494, 0
      %v599 = vsub.s32 0, %v494
      %v600 = vsel %vm598, %v599, %v494
      %v601 = vshrl.u32 %v600, 4
      %v602 = vand.u32 %v600, 15
      %v603 = vsub.s32 0, %v602
      %v604 = vsel %vm598, %v603, %v602
      %vm605 = vcmp.lt.s32.totalorder %v495, 0
      %v606 = vsub.s32 0, %v495
      %v607 = vsel %vm605, %v606, %v495
      %v608 = vshrl.u32 %v607, 4
      %v609 = vand.u32 %v607, 15
      %v610 = vsub.s32 0, %v609
      %v611 = vsel %vm605, %v610, %v609
      %vm612 = vcmp.lt.s32.totalorder %v496, 0
      %v613 = vsub.s32 0, %v496
      %v614 = vsel %vm612, %v613, %v496
      %v615 = vshrl.u32 %v614, 4
      %v616 = vand.u32 %v614, 15
      %v617 = vsub.s32 0, %v616
      %v618 = vsel %vm612, %v617, %v616
      %vm619 = vcmp.lt.s32.totalorder %v497, 0
      %v620 = vsub.s32 0, %v497
      %v621 = vsel %vm619, %v620, %v497
      %v622 = vshrl.u32 %v621, 4
      %v623 = vand.u32 %v621, 15
      %v624 = vsub.s32 0, %v623
      %v625 = vsel %vm619, %v624, %v623
      %vm626 = vcmp.lt.s32.totalorder %v498, 0
      %v627 = vsub.s32 0, %v498
      %v628 = vsel %vm626, %v627, %v498
      %v629 = vshrl.u32 %v628, 4
      %v630 = vand.u32 %v628, 15
      %v631 = vsub.s32 0, %v630
      %v632 = vsel %vm626, %v631, %v630
      %vm633 = vcmp.lt.s32.totalorder %v499, 0
      %v634 = vsub.s32 0, %v499
      %v635 = vsel %vm633, %v634, %v499
      %v636 = vshrl.u32 %v635, 4
      %v637 = vand.u32 %v635, 15
      %v638 = vsub.s32 0, %v637
      %v639 = vsel %vm633, %v638, %v637
      %vm640 = vcmp.lt.s32.totalorder %v500, 0
      %v641 = vsub.s32 0, %v500
      %v642 = vsel %vm640, %v641, %v500
      %v643 = vshrl.u32 %v642, 4
      %v644 = vand.u32 %v642, 15
      %v645 = vsub.s32 0, %v644
      %v646 = vsel %vm640, %v645, %v644
      %vm647 = vcmp.lt.s32.totalorder %v501, 0
      %v648 = vsub.s32 0, %v501
      %v649 = vsel %vm647, %v648, %v501
      %v650 = vshrl.u32 %v649, 4
      %v651 = vand.u32 %v649, 15
      %v652 = vsub.s32 0, %v651
      %v653 = vsel %vm647, %v652, %v651
      %vm654 = vcmp.lt.s32.totalorder %v502, 0
      %v655 = vsub.s32 0, %v502
      %v656 = vsel %vm654, %v655, %v502
      %v657 = vshrl.u32 %v656, 4
      %v658 = vand.u32 %v656, 15
      %v659 = vsub.s32 0, %v658
      %v660 = vsel %vm654, %v659, %v658
      %vm661 = vcmp.lt.s32.totalorder %v503, 0
      %v662 = vsub.s32 0, %v503
      %v663 = vsel %vm661, %v662, %v503
      %v664 = vshrl.u32 %v663, 4
      %v665 = vand.u32 %v663, 15
      %v666 = vsub.s32 0, %v665
      %v667 = vsel %vm661, %v666, %v665
      %vm668 = vcmp.lt.s32.totalorder %v504, 0
      %v669 = vsub.s32 0, %v504
      %v670 = vsel %vm668, %v669, %v504
      %v671 = vshrl.u32 %v670, 4
      %v672 = vand.u32 %v670, 15
      %v673 = vsub.s32 0, %v672
      %v674 = vsel %vm668, %v673, %v672
      %vm675 = vcmp.lt.s32.totalorder %v505, 0
      %v676 = vsub.s32 0, %v505
      %v677 = vsel %vm675, %v676, %v505
      %v678 = vshrl.u32 %v677, 4
      %v679 = vand.u32 %v677, 15
      %v680 = vsub.s32 0, %v679
      %v681 = vsel %vm675, %v680, %v679
      %vm682 = vcmp.lt.s32.totalorder %v506, 0
      %v683 = vsub.s32 0, %v506
      %v684 = vsel %vm682, %v683, %v506
      %v685 = vshrl.u32 %v684, 4
      %v686 = vand.u32 %v684, 15
      %v687 = vsub.s32 0, %v686
      %v688 = vsel %vm682, %v687, %v686
      %vm689 = vcmp.lt.s32.totalorder %v507, 0
      %v690 = vsub.s32 0, %v507
      %v691 = vsel %vm689, %v690, %v507
      %v692 = vshrl.u32 %v691, 4
      %v693 = vand.u32 %v691, 15
      %v694 = vsub.s32 0, %v693
      %v695 = vsel %vm689, %v694, %v693
      %vm696 = vcmp.lt.s32.totalorder %v508, 0
      %v697 = vsub.s32 0, %v508
      %v698 = vsel %vm696, %v697, %v508
      %v699 = vshrl.u32 %v698, 4
      %v700 = vand.u32 %v698, 15
      %v701 = vsub.s32 0, %v700
      %v702 = vsel %vm696, %v701, %v700
      %vm703 = vcmp.lt.s32.totalorder %v509, 0
      %v704 = vsub.s32 0, %v509
      %v705 = vsel %vm703, %v704, %v509
      %v706 = vshrl.u32 %v705, 4
      %v707 = vand.u32 %v705, 15
      %v708 = vsub.s32 0, %v707
      %v709 = vsel %vm703, %v708, %v707
      %vm710 = vcmp.lt.s32.totalorder %v510, 0
      %v711 = vsub.s32 0, %v510
      %v712 = vsel %vm710, %v711, %v510
      %v713 = vshrl.u32 %v712, 4
      %v714 = vand.u32 %v712, 15
      %v715 = vsub.s32 0, %v714
      %v716 = vsel %vm710, %v715, %v714
      %vm717 = vcmp.lt.s32.totalorder %v511, 0
      %v718 = vsub.s32 0, %v511
      %v719 = vsel %vm717, %v718, %v511
      %v720 = vshrl.u32 %v719, 4
      %v721 = vand.u32 %v719, 15
      %v722 = vsub.s32 0, %v721
      %v723 = vsel %vm717, %v722, %v721
      %vm724 = vcmp.lt.s32.totalorder %v512, 0
      %v725 = vsub.s32 0, %v512
      %v726 = vsel %vm724, %v725, %v512
      %v727 = vshrl.u32 %v726, 4
      %v728 = vand.u32 %v726, 15
      %v729 = vsub.s32 0, %v728
      %v730 = vsel %vm724, %v729, %v728
      %vm731 = vcmp.lt.s32.totalorder %v513, 0
      %v732 = vsub.s32 0, %v513
      %v733 = vsel %vm731, %v732, %v513
      %v734 = vshrl.u32 %v733, 4
      %v735 = vand.u32 %v733, 15
      %v736 = vsub.s32 0, %v735
      %v737 = vsel %vm731, %v736, %v735
      %vm738 = vcmp.ne.s32.totalorder %v520, 0
      %vm739 = vcmp.ne.s32.totalorder %v527, 0
      %vm740 = vcmp.ne.s32.totalorder %v534, 0
      %vm741 = vcmp.ne.s32.totalorder %v541, 0
      %vm742 = vcmp.ne.s32.totalorder %v548, 0
      %vm743 = vcmp.ne.s32.totalorder %v555, 0
      %vm744 = vcmp.ne.s32.totalorder %v562, 0
      %vm745 = vcmp.ne.s32.totalorder %v569, 0
      %vm746 = vcmp.ne.s32.totalorder %v576, 0
      %vm747 = vcmp.ne.s32.totalorder %v583, 0
      %vm748 = vcmp.ne.s32.totalorder %v590, 0
      %vm749 = vcmp.ne.s32.totalorder %v597, 0
      %vm750 = vcmp.ne.s32.totalorder %v604, 0
      %vm751 = vcmp.ne.s32.totalorder %v611, 0
      %vm752 = vcmp.ne.s32.totalorder %v618, 0
      %vm753 = vcmp.ne.s32.totalorder %v625, 0
      %vm754 = vcmp.ne.s32.totalorder %v632, 0
      %vm755 = vcmp.ne.s32.totalorder %v639, 0
      %vm756 = vcmp.ne.s32.totalorder %v646, 0
      %vm757 = vcmp.ne.s32.totalorder %v653, 0
      %vm758 = vcmp.ne.s32.totalorder %v660, 0
      %vm759 = vcmp.ne.s32.totalorder %v667, 0
      %vm760 = vcmp.ne.s32.totalorder %v674, 0
      %vm761 = vcmp.ne.s32.totalorder %v681, 0
      %vm762 = vcmp.ne.s32.totalorder %v688, 0
      %vm763 = vcmp.ne.s32.totalorder %v695, 0
      %vm764 = vcmp.ne.s32.totalorder %v702, 0
      %vm765 = vcmp.ne.s32.totalorder %v709, 0
      %vm766 = vcmp.ne.s32.totalorder %v716, 0
      %vm767 = vcmp.ne.s32.totalorder %v723, 0
      %vm768 = vcmp.ne.s32.totalorder %v730, 0
      %vm769 = vcmp.ne.s32.totalorder %v737, 0
      %vm770 = vcmp.lt.s32.totalorder %v520, 0
      %vm771 = vcmp.lt.s32.totalorder %v527, 0
      %vm772 = vcmp.lt.s32.totalorder %v534, 0
      %vm773 = vcmp.lt.s32.totalorder %v541, 0
      %vm774 = vcmp.lt.s32.totalorder %v548, 0
      %vm775 = vcmp.lt.s32.totalorder %v555, 0
      %vm776 = vcmp.lt.s32.totalorder %v562, 0
      %vm777 = vcmp.lt.s32.totalorder %v569, 0
      %vm778 = vcmp.lt.s32.totalorder %v576, 0
      %vm779 = vcmp.lt.s32.totalorder %v583, 0
      %vm780 = vcmp.lt.s32.totalorder %v590, 0
      %vm781 = vcmp.lt.s32.totalorder %v597, 0
      %vm782 = vcmp.lt.s32.totalorder %v604, 0
      %vm783 = vcmp.lt.s32.totalorder %v611, 0
      %vm784 = vcmp.lt.s32.totalorder %v618, 0
      %vm785 = vcmp.lt.s32.totalorder %v625, 0
      %vm786 = vcmp.lt.s32.totalorder %v632, 0
      %vm787 = vcmp.lt.s32.totalorder %v639, 0
      %vm788 = vcmp.lt.s32.totalorder %v646, 0
      %vm789 = vcmp.lt.s32.totalorder %v653, 0
      %vm790 = vcmp.lt.s32.totalorder %v660, 0
      %vm791 = vcmp.lt.s32.totalorder %v667, 0
      %vm792 = vcmp.lt.s32.totalorder %v674, 0
      %vm793 = vcmp.lt.s32.totalorder %v681, 0
      %vm794 = vcmp.lt.s32.totalorder %v688, 0
      %vm795 = vcmp.lt.s32.totalorder %v695, 0
      %vm796 = vcmp.lt.s32.totalorder %v702, 0
      %vm797 = vcmp.lt.s32.totalorder %v709, 0
      %vm798 = vcmp.lt.s32.totalorder %v716, 0
      %vm799 = vcmp.lt.s32.totalorder %v723, 0
      %vm800 = vcmp.lt.s32.totalorder %v730, 0
      %vm801 = vcmp.lt.s32.totalorder %v737, 0
      %vm802 = vmand %vm770, %vm738
      %vm803 = vmand %vm771, %vm739
      %vm804 = vmand %vm772, %vm740
      %vm805 = vmand %vm773, %vm741
      %vm806 = vmand %vm774, %vm742
      %vm807 = vmand %vm775, %vm743
      %vm808 = vmand %vm776, %vm744
      %vm809 = vmand %vm777, %vm745
      %vm810 = vmand %vm778, %vm746
      %vm811 = vmand %vm779, %vm747
      %vm812 = vmand %vm780, %vm748
      %vm813 = vmand %vm781, %vm749
      %vm814 = vmand %vm782, %vm750
      %vm815 = vmand %vm783, %vm751
      %vm816 = vmand %vm784, %vm752
      %vm817 = vmand %vm785, %vm753
      %vm818 = vmand %vm786, %vm754
      %vm819 = vmand %vm787, %vm755
      %vm820 = vmand %vm788, %vm756
      %vm821 = vmand %vm789, %vm757
      %vm822 = vmand %vm790, %vm758
      %vm823 = vmand %vm791, %vm759
      %vm824 = vmand %vm792, %vm760
      %vm825 = vmand %vm793, %vm761
      %vm826 = vmand %vm794, %vm762
      %vm827 = vmand %vm795, %vm763
      %vm828 = vmand %vm796, %vm764
      %vm829 = vmand %vm797, %vm765
      %vm830 = vmand %vm798, %vm766
      %vm831 = vmand %vm799, %vm767
      %vm832 = vmand %vm800, %vm768
      %vm833 = vmand %vm801, %vm769
      %v834 = vadd.s32 %v520, 16
      %v835 = vadd.s32 %v527, 16
      %v836 = vadd.s32 %v534, 16
      %v837 = vadd.s32 %v541, 16
      %v838 = vadd.s32 %v548, 16
      %v839 = vadd.s32 %v555, 16
      %v840 = vadd.s32 %v562, 16
      %v841 = vadd.s32 %v569, 16
      %v842 = vadd.s32 %v576, 16
      %v843 = vadd.s32 %v583, 16
      %v844 = vadd.s32 %v590, 16
      %v845 = vadd.s32 %v597, 16
      %v846 = vadd.s32 %v604, 16
      %v847 = vadd.s32 %v611, 16
      %v848 = vadd.s32 %v618, 16
      %v849 = vadd.s32 %v625, 16
      %v850 = vadd.s32 %v632, 16
      %v851 = vadd.s32 %v639, 16
      %v852 = vadd.s32 %v646, 16
      %v853 = vadd.s32 %v653, 16
      %v854 = vadd.s32 %v660, 16
      %v855 = vadd.s32 %v667, 16
      %v856 = vadd.s32 %v674, 16
      %v857 = vadd.s32 %v681, 16
      %v858 = vadd.s32 %v688, 16
      %v859 = vadd.s32 %v695, 16
      %v860 = vadd.s32 %v702, 16
      %v861 = vadd.s32 %v709, 16
      %v862 = vadd.s32 %v716, 16
      %v863 = vadd.s32 %v723, 16
      %v864 = vadd.s32 %v730, 16
      %v865 = vadd.s32 %v737, 16
      %v866 = vsel %vm802, %v834, %v520
      %v867 = vsel %vm803, %v835, %v527
      %v868 = vsel %vm804, %v836, %v534
      %v869 = vsel %vm805, %v837, %v541
      %v870 = vsel %vm806, %v838, %v548
      %v871 = vsel %vm807, %v839, %v555
      %v872 = vsel %vm808, %v840, %v562
      %v873 = vsel %vm809, %v841, %v569
      %v874 = vsel %vm810, %v842, %v576
      %v875 = vsel %vm811, %v843, %v583
      %v876 = vsel %vm812, %v844, %v590
      %v877 = vsel %vm813, %v845, %v597
      %v878 = vsel %vm814, %v846, %v604
      %v879 = vsel %vm815, %v847, %v611
      %v880 = vsel %vm816, %v848, %v618
      %v881 = vsel %vm817, %v849, %v625
      %v882 = vsel %vm818, %v850, %v632
      %v883 = vsel %vm819, %v851, %v639
      %v884 = vsel %vm820, %v852, %v646
      %v885 = vsel %vm821, %v853, %v653
      %v886 = vsel %vm822, %v854, %v660
      %v887 = vsel %vm823, %v855, %v667
      %v888 = vsel %vm824, %v856, %v674
      %v889 = vsel %vm825, %v857, %v681
      %v890 = vsel %vm826, %v858, %v688
      %v891 = vsel %vm827, %v859, %v695
      %v892 = vsel %vm828, %v860, %v702
      %v893 = vsel %vm829, %v861, %v709
      %v894 = vsel %vm830, %v862, %v716
      %v895 = vsel %vm831, %v863, %v723
      %v896 = vsel %vm832, %v864, %v730
      %v897 = vsel %vm833, %v865, %v737
      %vm898 = vcmp.ne.s32.totalorder %v866, 0
      %vm899 = vcmp.ne.s32.totalorder %v867, 0
      %vm900 = vcmp.ne.s32.totalorder %v868, 0
      %vm901 = vcmp.ne.s32.totalorder %v869, 0
      %vm902 = vcmp.ne.s32.totalorder %v870, 0
      %vm903 = vcmp.ne.s32.totalorder %v871, 0
      %vm904 = vcmp.ne.s32.totalorder %v872, 0
      %vm905 = vcmp.ne.s32.totalorder %v873, 0
      %vm906 = vcmp.ne.s32.totalorder %v874, 0
      %vm907 = vcmp.ne.s32.totalorder %v875, 0
      %vm908 = vcmp.ne.s32.totalorder %v876, 0
      %vm909 = vcmp.ne.s32.totalorder %v877, 0
      %vm910 = vcmp.ne.s32.totalorder %v878, 0
      %vm911 = vcmp.ne.s32.totalorder %v879, 0
      %vm912 = vcmp.ne.s32.totalorder %v880, 0
      %vm913 = vcmp.ne.s32.totalorder %v881, 0
      %vm914 = vcmp.ne.s32.totalorder %v882, 0
      %vm915 = vcmp.ne.s32.totalorder %v883, 0
      %vm916 = vcmp.ne.s32.totalorder %v884, 0
      %vm917 = vcmp.ne.s32.totalorder %v885, 0
      %vm918 = vcmp.ne.s32.totalorder %v886, 0
      %vm919 = vcmp.ne.s32.totalorder %v887, 0
      %vm920 = vcmp.ne.s32.totalorder %v888, 0
      %vm921 = vcmp.ne.s32.totalorder %v889, 0
      %vm922 = vcmp.ne.s32.totalorder %v890, 0
      %vm923 = vcmp.ne.s32.totalorder %v891, 0
      %vm924 = vcmp.ne.s32.totalorder %v892, 0
      %vm925 = vcmp.ne.s32.totalorder %v893, 0
      %vm926 = vcmp.ne.s32.totalorder %v894, 0
      %vm927 = vcmp.ne.s32.totalorder %v895, 0
      %vm928 = vcmp.ne.s32.totalorder %v896, 0
      %vm929 = vcmp.ne.s32.totalorder %v897, 0
      %vm930 = vcmp.ne.s32.totalorder %v866, 15
      %vm931 = vcmp.ne.s32.totalorder %v867, 15
      %vm932 = vcmp.ne.s32.totalorder %v868, 15
      %vm933 = vcmp.ne.s32.totalorder %v869, 15
      %vm934 = vcmp.ne.s32.totalorder %v870, 15
      %vm935 = vcmp.ne.s32.totalorder %v871, 15
      %vm936 = vcmp.ne.s32.totalorder %v872, 15
      %vm937 = vcmp.ne.s32.totalorder %v873, 15
      %vm938 = vcmp.ne.s32.totalorder %v874, 15
      %vm939 = vcmp.ne.s32.totalorder %v875, 15
      %vm940 = vcmp.ne.s32.totalorder %v876, 15
      %vm941 = vcmp.ne.s32.totalorder %v877, 15
      %vm942 = vcmp.ne.s32.totalorder %v878, 15
      %vm943 = vcmp.ne.s32.totalorder %v879, 15
      %vm944 = vcmp.ne.s32.totalorder %v880, 15
      %vm945 = vcmp.ne.s32.totalorder %v881, 15
      %vm946 = vcmp.ne.s32.totalorder %v882, 15
      %vm947 = vcmp.ne.s32.totalorder %v883, 15
      %vm948 = vcmp.ne.s32.totalorder %v884, 15
      %vm949 = vcmp.ne.s32.totalorder %v885, 15
      %vm950 = vcmp.ne.s32.totalorder %v886, 15
      %vm951 = vcmp.ne.s32.totalorder %v887, 15
      %vm952 = vcmp.ne.s32.totalorder %v888, 15
      %vm953 = vcmp.ne.s32.totalorder %v889, 15
      %vm954 = vcmp.ne.s32.totalorder %v890, 15
      %vm955 = vcmp.ne.s32.totalorder %v891, 15
      %vm956 = vcmp.ne.s32.totalorder %v892, 15
      %vm957 = vcmp.ne.s32.totalorder %v893, 15
      %vm958 = vcmp.ne.s32.totalorder %v894, 15
      %vm959 = vcmp.ne.s32.totalorder %v895, 15
      %vm960 = vcmp.ne.s32.totalorder %v896, 15
      %vm961 = vcmp.ne.s32.totalorder %v897, 15
      %v962 = vld [vmem:[#allocation2] sm:$0xff]
      %v963 = vld [vmem:[#allocation2 + $0x8] sm:$0xff]
      %v964 = vld [vmem:[#allocation2 + $0x10] sm:$0xff]
      %v965 = vld [vmem:[#allocation2 + $0x18] sm:$0xff]
      %v966 = vld [vmem:[#allocation2 + $0x20] sm:$0xff]
      %v967 = vld [vmem:[#allocation2 + $0x28] sm:$0xff]
      %v968 = vld [vmem:[#allocation2 + $0x30] sm:$0xff]
      %v969 = vld [vmem:[#allocation2 + $0x38] sm:$0xff]
      %v970 = vld [vmem:[#allocation2 + $0x40] sm:$0xff]
      %v971 = vld [vmem:[#allocation2 + $0x48] sm:$0xff]
      %v972 = vld [vmem:[#allocation2 + $0x50] sm:$0xff]
      %v973 = vld [vmem:[#allocation2 + $0x58] sm:$0xff]
      %v974 = vld [vmem:[#allocation2 + $0x60] sm:$0xff]
      %v975 = vld [vmem:[#allocation2 + $0x68] sm:$0xff]
      %v976 = vld [vmem:[#allocation2 + $0x70] sm:$0xff]
      %v977 = vld [vmem:[#allocation2 + $0x78] sm:$0xff]
      %v978 = vld [vmem:[#allocation2 + $0x80] sm:$0xff]
      %v979 = vld [vmem:[#allocation2 + $0x88] sm:$0xff]
      %v980 = vld [vmem:[#allocation2 + $0x90] sm:$0xff]
      %v981 = vld [vmem:[#allocation2 + $0x98] sm:$0xff]
      %v982 = vld [vmem:[#allocation2 + $0xa0] sm:$0xff]
      %v983 = vld [vmem:[#allocation2 + $0xa8] sm:$0xff]
      %v984 = vld [vmem:[#allocation2 + $0xb0] sm:$0xff]
      %v985 = vld [vmem:[#allocation2 + $0xb8] sm:$0xff]
      %v986 = vld [vmem:[#allocation2 + $0xc0] sm:$0xff]
      %v987 = vld [vmem:[#allocation2 + $0xc8] sm:$0xff]
      %v988 = vld [vmem:[#allocation2 + $0xd0] sm:$0xff]
      %v989 = vld [vmem:[#allocation2 + $0xd8] sm:$0xff]
      %v990 = vld [vmem:[#allocation2 + $0xe0] sm:$0xff]
      %v991 = vld [vmem:[#allocation2 + $0xe8] sm:$0xff]
      %v992 = vld [vmem:[#allocation2 + $0xf0] sm:$0xff]
      %v993 = vld [vmem:[#allocation2 + $0xf8] sm:$0xff]
      %v994 = vsel %vm898, 1, 0
      %v995 = vsel %vm899, 1, 0
      %v996 = vsel %vm900, 1, 0
      %v997 = vsel %vm901, 1, 0
      %v998 = vsel %vm902, 1, 0
      %v999 = vsel %vm903, 1, 0
      %v1000 = vsel %vm904, 1, 0
      %v1001 = vsel %vm905, 1, 0
      %v1002 = vsel %vm906, 1, 0
      %v1003 = vsel %vm907, 1, 0
      %v1004 = vsel %vm908, 1, 0
      %v1005 = vsel %vm909, 1, 0
      %v1006 = vsel %vm910, 1, 0
      %v1007 = vsel %vm911, 1, 0
      %v1008 = vsel %vm912, 1, 0
      %v1009 = vsel %vm913, 1, 0
      %v1010 = vsel %vm914, 1, 0
      %v1011 = vsel %vm915, 1, 0
      %v1012 = vsel %vm916, 1, 0
      %v1013 = vsel %vm917, 1, 0
      %v1014 = vsel %vm918, 1, 0
      %v1015 = vsel %vm919, 1, 0
      %v1016 = vsel %vm920, 1, 0
      %v1017 = vsel %vm921, 1, 0
      %v1018 = vsel %vm922, 1, 0
      %v1019 = vsel %vm923, 1, 0
      %v1020 = vsel %vm924, 1, 0
      %v1021 = vsel %vm925, 1, 0
      %v1022 = vsel %vm926, 1, 0
      %v1023 = vsel %vm927, 1, 0
      %v1024 = vsel %vm928, 1, 0
      %v1025 = vsel %vm929, 1, 0
      %vm1026 = vcmp.eq.s32.totalorder %v994, 1
      %vm1027 = vcmp.eq.s32.totalorder %v995, 1
      %vm1028 = vcmp.eq.s32.totalorder %v996, 1
      %vm1029 = vcmp.eq.s32.totalorder %v997, 1
      %vm1030 = vcmp.eq.s32.totalorder %v998, 1
      %vm1031 = vcmp.eq.s32.totalorder %v999, 1
      %vm1032 = vcmp.eq.s32.totalorder %v1000, 1
      %vm1033 = vcmp.eq.s32.totalorder %v1001, 1
      %vm1034 = vcmp.eq.s32.totalorder %v1002, 1
      %vm1035 = vcmp.eq.s32.totalorder %v1003, 1
      %vm1036 = vcmp.eq.s32.totalorder %v1004, 1
      %vm1037 = vcmp.eq.s32.totalorder %v1005, 1
      %vm1038 = vcmp.eq.s32.totalorder %v1006, 1
      %vm1039 = vcmp.eq.s32.totalorder %v1007, 1
      %vm1040 = vcmp.eq.s32.totalorder %v1008, 1
      %vm1041 = vcmp.eq.s32.totalorder %v1009, 1
      %vm1042 = vcmp.eq.s32.totalorder %v1010, 1
      %vm1043 = vcmp.eq.s32.totalorder %v1011, 1
      %vm1044 = vcmp.eq.s32.totalorder %v1012, 1
      %vm1045 = vcmp.eq.s32.totalorder %v1013, 1
      %vm1046 = vcmp.eq.s32.totalorder %v1014, 1
      %vm1047 = vcmp.eq.s32.totalorder %v1015, 1
      %vm1048 = vcmp.eq.s32.totalorder %v1016, 1
      %vm1049 = vcmp.eq.s32.totalorder %v1017, 1
      %vm1050 = vcmp.eq.s32.totalorder %v1018, 1
      %vm1051 = vcmp.eq.s32.totalorder %v1019, 1
      %vm1052 = vcmp.eq.s32.totalorder %v1020, 1
      %vm1053 = vcmp.eq.s32.totalorder %v1021, 1
      %vm1054 = vcmp.eq.s32.totalorder %v1022, 1
      %vm1055 = vcmp.eq.s32.totalorder %v1023, 1
      %vm1056 = vcmp.eq.s32.totalorder %v1024, 1
      %vm1057 = vcmp.eq.s32.totalorder %v1025, 1
      %v1058 = vsel %vm1026, %v962, 0.0
      %v1059 = vsel %vm1027, %v963, 0.0
      %v1060 = vsel %vm1028, %v964, 0.0
      %v1061 = vsel %vm1029, %v965, 0.0
      %v1062 = vsel %vm1030, %v966, 0.0
      %v1063 = vsel %vm1031, %v967, 0.0
      %v1064 = vsel %vm1032, %v968, 0.0
      %v1065 = vsel %vm1033, %v969, 0.0
      %v1066 = vsel %vm1034, %v970, 0.0
      %v1067 = vsel %vm1035, %v971, 0.0
      %v1068 = vsel %vm1036, %v972, 0.0
      %v1069 = vsel %vm1037, %v973, 0.0
      %v1070 = vsel %vm1038, %v974, 0.0
      %v1071 = vsel %vm1039, %v975, 0.0
      %v1072 = vsel %vm1040, %v976, 0.0
      %v1073 = vsel %vm1041, %v977, 0.0
      %v1074 = vsel %vm1042, %v978, 0.0
      %v1075 = vsel %vm1043, %v979, 0.0
      %v1076 = vsel %vm1044, %v980, 0.0
      %v1077 = vsel %vm1045, %v981, 0.0
      %v1078 = vsel %vm1046, %v982, 0.0
      %v1079 = vsel %vm1047, %v983, 0.0
      %v1080 = vsel %vm1048, %v984, 0.0
      %v1081 = vsel %vm1049, %v985, 0.0
      %v1082 = vsel %vm1050, %v986, 0.0
      %v1083 = vsel %vm1051, %v987, 0.0
      %v1084 = vsel %vm1052, %v988, 0.0
      %v1085 = vsel %vm1053, %v989, 0.0
      %v1086 = vsel %vm1054, %v990, 0.0
      %v1087 = vsel %vm1055, %v991, 0.0
      %v1088 = vsel %vm1056, %v992, 0.0
      %v1089 = vsel %vm1057, %v993, 0.0
      %v1090 = vpack.c.bf16 %v1059, %v1058
      %v1091 = vpack.c.bf16 %v1061, %v1060
      %v1092 = vpack.c.bf16 %v1063, %v1062
      %v1093 = vpack.c.bf16 %v1065, %v1064
      %v1094 = vpack.c.bf16 %v1067, %v1066
      %v1095 = vpack.c.bf16 %v1069, %v1068
      %v1096 = vpack.c.bf16 %v1071, %v1070
      %v1097 = vpack.c.bf16 %v1073, %v1072
      %v1098 = vpack.c.bf16 %v1075, %v1074
      %v1099 = vpack.c.bf16 %v1077, %v1076
      %v1100 = vpack.c.bf16 %v1079, %v1078
      %v1101 = vpack.c.bf16 %v1081, %v1080
      %v1102 = vpack.c.bf16 %v1083, %v1082
      %v1103 = vpack.c.bf16 %v1085, %v1084
      %v1104 = vpack.c.bf16 %v1087, %v1086
      %v1105 = vpack.c.bf16 %v1089, %v1088
      %v1122 = vunpack.c.l.b16 %v1090
      %v1123 = vunpack.c.h.b16 %v1090
      %v1124 = vunpack.c.l.b16 %v1091
      %v1125 = vunpack.c.h.b16 %v1091
      %v1126 = vunpack.c.l.b16 %v1092
      %v1127 = vunpack.c.h.b16 %v1092
      %v1128 = vunpack.c.l.b16 %v1093
      %v1129 = vunpack.c.h.b16 %v1093
      %v1130 = vunpack.c.l.b16 %v1094
      %v1131 = vunpack.c.h.b16 %v1094
      %v1132 = vunpack.c.l.b16 %v1095
      %v1133 = vunpack.c.h.b16 %v1095
      %v1134 = vunpack.c.l.b16 %v1096
      %v1135 = vunpack.c.h.b16 %v1096
      %v1136 = vunpack.c.l.b16 %v1097
      %v1137 = vunpack.c.h.b16 %v1097
      %v1138 = vunpack.c.l.b16 %v1098
      %v1139 = vunpack.c.h.b16 %v1098
      %v1140 = vunpack.c.l.b16 %v1099
      %v1141 = vunpack.c.h.b16 %v1099
      %v1142 = vunpack.c.l.b16 %v1100
      %v1143 = vunpack.c.h.b16 %v1100
      %v1144 = vunpack.c.l.b16 %v1101
      %v1145 = vunpack.c.h.b16 %v1101
      %v1146 = vunpack.c.l.b16 %v1102
      %v1147 = vunpack.c.h.b16 %v1102
      %v1148 = vunpack.c.l.b16 %v1103
      %v1149 = vunpack.c.h.b16 %v1103
      %v1150 = vunpack.c.l.b16 %v1104
      %v1151 = vunpack.c.h.b16 %v1104
      %v1152 = vunpack.c.l.b16 %v1105
      %v1153 = vunpack.c.h.b16 %v1105
      %v1154 = vpack.c.b16 %v1122, %v1122
      %v1155 = vpack.c.b16 %v1123, %v1123
      %v1156 = vpack.c.b16 %v1124, %v1124
      %v1157 = vpack.c.b16 %v1125, %v1125
      %v1158 = vpack.c.b16 %v1126, %v1126
      %v1159 = vpack.c.b16 %v1127, %v1127
      %v1160 = vpack.c.b16 %v1128, %v1128
      %v1161 = vpack.c.b16 %v1129, %v1129
      %v1162 = vpack.c.b16 %v1130, %v1130
      %v1163 = vpack.c.b16 %v1131, %v1131
      %v1164 = vpack.c.b16 %v1132, %v1132
      %v1165 = vpack.c.b16 %v1133, %v1133
      %v1166 = vpack.c.b16 %v1134, %v1134
      %v1167 = vpack.c.b16 %v1135, %v1135
      %v1168 = vpack.c.b16 %v1136, %v1136
      %v1169 = vpack.c.b16 %v1137, %v1137
      %v1170 = vpack.c.b16 %v1138, %v1138
      %v1171 = vpack.c.b16 %v1139, %v1139
      %v1172 = vpack.c.b16 %v1140, %v1140
      %v1173 = vpack.c.b16 %v1141, %v1141
      %v1174 = vpack.c.b16 %v1142, %v1142
      %v1175 = vpack.c.b16 %v1143, %v1143
      %v1176 = vpack.c.b16 %v1144, %v1144
      %v1177 = vpack.c.b16 %v1145, %v1145
      %v1178 = vpack.c.b16 %v1146, %v1146
      %v1179 = vpack.c.b16 %v1147, %v1147
      %v1180 = vpack.c.b16 %v1148, %v1148
      %v1181 = vpack.c.b16 %v1149, %v1149
      %v1182 = vpack.c.b16 %v1150, %v1150
      %v1183 = vpack.c.b16 %v1151, %v1151
      %v1184 = vpack.c.b16 %v1152, %v1152
      %v1185 = vpack.c.b16 %v1153, %v1153
      %vm1218 = vcmask 257024
      %1219 = vst.msk [vmem:[#allocation3] sm:$0xf] %vm1218, %v1154
      %1220 = vst.msk [vmem:[#allocation3 + $0xc] sm:$0xf] %vm1218, %v1155
      %1221 = vst.msk [vmem:[#allocation3 + $0x18] sm:$0xf] %vm1218, %v1156
      %1222 = vst.msk [vmem:[#allocation3 + $0x24] sm:$0xf] %vm1218, %v1157
      %1223 = vst.msk [vmem:[#allocation3 + $0x30] sm:$0xf] %vm1218, %v1158
      %1224 = vst.msk [vmem:[#allocation3 + $0x3c] sm:$0xf] %vm1218, %v1159
      %1225 = vst.msk [vmem:[#allocation3 + $0x48] sm:$0xf] %vm1218, %v1160
      %1226 = vst.msk [vmem:[#allocation3 + $0x54] sm:$0xf] %vm1218, %v1161
      %1227 = vst.msk [vmem:[#allocation3 + $0x60] sm:$0xf] %vm1218, %v1162
      %1228 = vst.msk [vmem:[#allocation3 + $0x6c] sm:$0xf] %vm1218, %v1163
      %1229 = vst.msk [vmem:[#allocation3 + $0x78] sm:$0xf] %vm1218, %v1164
      %1230 = vst.msk [vmem:[#allocation3 + $0x84] sm:$0xf] %vm1218, %v1165
      %1231 = vst.msk [vmem:[#allocation3 + $0x90] sm:$0xf] %vm1218, %v1166
      %1232 = vst.msk [vmem:[#allocation3 + $0x9c] sm:$0xf] %vm1218, %v1167
      %1233 = vst.msk [vmem:[#allocation3 + $0xa8] sm:$0xf] %vm1218, %v1168
      %1234 = vst.msk [vmem:[#allocation3 + $0xb4] sm:$0xf] %vm1218, %v1169
      %1235 = vst.msk [vmem:[#allocation3 + $0xc0] sm:$0xf] %vm1218, %v1170
      %1236 = vst.msk [vmem:[#allocation3 + $0xcc] sm:$0xf] %vm1218, %v1171
      %1237 = vst.msk [vmem:[#allocation3 + $0xd8] sm:$0xf] %vm1218, %v1172
      %1238 = vst.msk [vmem:[#allocation3 + $0xe4] sm:$0xf] %vm1218, %v1173
      %1239 = vst.msk [vmem:[#allocation3 + $0xf0] sm:$0xf] %vm1218, %v1174
      %1240 = vst.msk [vmem:[#allocation3 + $0xfc] sm:$0xf] %vm1218, %v1175
      %1241 = vst.msk [vmem:[#allocation3 + $0x108] sm:$0xf] %vm1218, %v1176
      %1242 = vst.msk [vmem:[#allocation3 + $0x114] sm:$0xf] %vm1218, %v1177
      %1243 = vst.msk [vmem:[#allocation3 + $0x120] sm:$0xf] %vm1218, %v1178
      %1244 = vst.msk [vmem:[#allocation3 + $0x12c] sm:$0xf] %vm1218, %v1179
      %1245 = vst.msk [vmem:[#allocation3 + $0x138] sm:$0xf] %vm1218, %v1180
      %1246 = vst.msk [vmem:[#allocation3 + $0x144] sm:$0xf] %vm1218, %v1181
      %1247 = vst.msk [vmem:[#allocation3 + $0x150] sm:$0xf] %vm1218, %v1182
      %1248 = vst.msk [vmem:[#allocation3 + $0x15c] sm:$0xf] %vm1218, %v1183
      %1249 = vst.msk [vmem:[#allocation3 + $0x168] sm:$0xf] %vm1218, %v1184
      %1250 = vst.msk [vmem:[#allocation3 + $0x174] sm:$0xf] %vm1218, %v1185
      %v1251 = vld [vmem:[#allocation2 + $0x1] sm:$0xff]
      %v1252 = vld [vmem:[#allocation2 + $0x9] sm:$0xff]
      %v1253 = vld [vmem:[#allocation2 + $0x11] sm:$0xff]
      %v1254 = vld [vmem:[#allocation2 + $0x19] sm:$0xff]
      %v1255 = vld [vmem:[#allocation2 + $0x21] sm:$0xff]
      %v1256 = vld [vmem:[#allocation2 + $0x29] sm:$0xff]
      %v1257 = vld [vmem:[#allocation2 + $0x31] sm:$0xff]
      %v1258 = vld [vmem:[#allocation2 + $0x39] sm:$0xff]
      %v1259 = vld [vmem:[#allocation2 + $0x41] sm:$0xff]
      %v1260 = vld [vmem:[#allocation2 + $0x49] sm:$0xff]
      %v1261 = vld [vmem:[#allocation2 + $0x51] sm:$0xff]
      %v1262 = vld [vmem:[#allocation2 + $0x59] sm:$0xff]
      %v1263 = vld [vmem:[#allocation2 + $0x61] sm:$0xff]
      %v1264 = vld [vmem:[#allocation2 + $0x69] sm:$0xff]
      %v1265 = vld [vmem:[#allocation2 + $0x71] sm:$0xff]
      %v1266 = vld [vmem:[#allocation2 + $0x79] sm:$0xff]
      %v1267 = vld [vmem:[#allocation2 + $0x81] sm:$0xff]
      %v1268 = vld [vmem:[#allocation2 + $0x89] sm:$0xff]
      %v1269 = vld [vmem:[#allocation2 + $0x91] sm:$0xff]
      %v1270 = vld [vmem:[#allocation2 + $0x99] sm:$0xff]
      %v1271 = vld [vmem:[#allocation2 + $0xa1] sm:$0xff]
      %v1272 = vld [vmem:[#allocation2 + $0xa9] sm:$0xff]
      %v1273 = vld [vmem:[#allocation2 + $0xb1] sm:$0xff]
      %v1274 = vld [vmem:[#allocation2 + $0xb9] sm:$0xff]
      %v1275 = vld [vmem:[#allocation2 + $0xc1] sm:$0xff]
      %v1276 = vld [vmem:[#allocation2 + $0xc9] sm:$0xff]
      %v1277 = vld [vmem:[#allocation2 + $0xd1] sm:$0xff]
      %v1278 = vld [vmem:[#allocation2 + $0xd9] sm:$0xff]
      %v1279 = vld [vmem:[#allocation2 + $0xe1] sm:$0xff]
      %v1280 = vld [vmem:[#allocation2 + $0xe9] sm:$0xff]
      %v1281 = vld [vmem:[#allocation2 + $0xf1] sm:$0xff]
      %v1282 = vld [vmem:[#allocation2 + $0xf9] sm:$0xff]
      %v1283 = vpack.c.bf16 %v1252, %v1251
      %v1284 = vpack.c.bf16 %v1254, %v1253
      %v1285 = vpack.c.bf16 %v1256, %v1255
      %v1286 = vpack.c.bf16 %v1258, %v1257
      %v1287 = vpack.c.bf16 %v1260, %v1259
      %v1288 = vpack.c.bf16 %v1262, %v1261
      %v1289 = vpack.c.bf16 %v1264, %v1263
      %v1290 = vpack.c.bf16 %v1266, %v1265
      %v1291 = vpack.c.bf16 %v1268, %v1267
      %v1292 = vpack.c.bf16 %v1270, %v1269
      %v1293 = vpack.c.bf16 %v1272, %v1271
      %v1294 = vpack.c.bf16 %v1274, %v1273
      %v1295 = vpack.c.bf16 %v1276, %v1275
      %v1296 = vpack.c.bf16 %v1278, %v1277
      %v1297 = vpack.c.bf16 %v1280, %v1279
      %v1298 = vpack.c.bf16 %v1282, %v1281
      %v1315 = vunpack.c.l.b16 %v1283
      %v1316 = vunpack.c.h.b16 %v1283
      %v1317 = vunpack.c.l.b16 %v1284
      %v1318 = vunpack.c.h.b16 %v1284
      %v1319 = vunpack.c.l.b16 %v1285
      %v1320 = vunpack.c.h.b16 %v1285
      %v1321 = vunpack.c.l.b16 %v1286
      %v1322 = vunpack.c.h.b16 %v1286
      %v1323 = vunpack.c.l.b16 %v1287
      %v1324 = vunpack.c.h.b16 %v1287
      %v1325 = vunpack.c.l.b16 %v1288
      %v1326 = vunpack.c.h.b16 %v1288
      %v1327 = vunpack.c.l.b16 %v1289
      %v1328 = vunpack.c.h.b16 %v1289
      %v1329 = vunpack.c.l.b16 %v1290
      %v1330 = vunpack.c.h.b16 %v1290
      %v1331 = vunpack.c.l.b16 %v1291
      %v1332 = vunpack.c.h.b16 %v1291
      %v1333 = vunpack.c.l.b16 %v1292
      %v1334 = vunpack.c.h.b16 %v1292
      %v1335 = vunpack.c.l.b16 %v1293
      %v1336 = vunpack.c.h.b16 %v1293
      %v1337 = vunpack.c.l.b16 %v1294
      %v1338 = vunpack.c.h.b16 %v1294
      %v1339 = vunpack.c.l.b16 %v1295
      %v1340 = vunpack.c.h.b16 %v1295
      %v1341 = vunpack.c.l.b16 %v1296
      %v1342 = vunpack.c.h.b16 %v1296
      %v1343 = vunpack.c.l.b16 %v1297
      %v1344 = vunpack.c.h.b16 %v1297
      %v1345 = vunpack.c.l.b16 %v1298
      %v1346 = vunpack.c.h.b16 %v1298
      %v1347 = vpack.c.b16 %v1315, %v1315
      %v1348 = vpack.c.b16 %v1316, %v1316
      %v1349 = vpack.c.b16 %v1317, %v1317
      %v1350 = vpack.c.b16 %v1318, %v1318
      %v1351 = vpack.c.b16 %v1319, %v1319
      %v1352 = vpack.c.b16 %v1320, %v1320
      %v1353 = vpack.c.b16 %v1321, %v1321
      %v1354 = vpack.c.b16 %v1322, %v1322
      %v1355 = vpack.c.b16 %v1323, %v1323
      %v1356 = vpack.c.b16 %v1324, %v1324
      %v1357 = vpack.c.b16 %v1325, %v1325
      %v1358 = vpack.c.b16 %v1326, %v1326
      %v1359 = vpack.c.b16 %v1327, %v1327
      %v1360 = vpack.c.b16 %v1328, %v1328
      %v1361 = vpack.c.b16 %v1329, %v1329
      %v1362 = vpack.c.b16 %v1330, %v1330
      %v1363 = vpack.c.b16 %v1331, %v1331
      %v1364 = vpack.c.b16 %v1332, %v1332
      %v1365 = vpack.c.b16 %v1333, %v1333
      %v1366 = vpack.c.b16 %v1334, %v1334
      %v1367 = vpack.c.b16 %v1335, %v1335
      %v1368 = vpack.c.b16 %v1336, %v1336
      %v1369 = vpack.c.b16 %v1337, %v1337
      %v1370 = vpack.c.b16 %v1338, %v1338
      %v1371 = vpack.c.b16 %v1339, %v1339
      %v1372 = vpack.c.b16 %v1340, %v1340
      %v1373 = vpack.c.b16 %v1341, %v1341
      %v1374 = vpack.c.b16 %v1342, %v1342
      %v1375 = vpack.c.b16 %v1343, %v1343
      %v1376 = vpack.c.b16 %v1344, %v1344
      %v1377 = vpack.c.b16 %v1345, %v1345
      %v1378 = vpack.c.b16 %v1346, %v1346
      %1379 = vrot.lane.b32.xlu0 %v1347, 32
      %v1380 = vpop.permute.xlu0 %1379
      %1381 = vrot.lane.b32.xlu0 %v1348, 32
      %v1382 = vpop.permute.xlu0 %1381
      %1383 = vrot.lane.b32.xlu0 %v1349, 32
      %v1384 = vpop.permute.xlu0 %1383
      %1385 = vrot.lane.b32.xlu0 %v1350, 32
      %v1386 = vpop.permute.xlu0 %1385
      %1387 = vrot.lane.b32.xlu0 %v1351, 32
      %v1388 = vpop.permute.xlu0 %1387
      %1389 = vrot.lane.b32.xlu0 %v1352, 32
      %v1390 = vpop.permute.xlu0 %1389
      %1391 = vrot.lane.b32.xlu0 %v1353, 32
      %v1392 = vpop.permute.xlu0 %1391
      %1393 = vrot.lane.b32.xlu0 %v1354, 32
      %v1394 = vpop.permute.xlu0 %1393
      %1395 = vrot.lane.b32.xlu0 %v1355, 32
      %v1396 = vpop.permute.xlu0 %1395
      %1397 = vrot.lane.b32.xlu0 %v1356, 32
      %v1398 = vpop.permute.xlu0 %1397
      %1399 = vrot.lane.b32.xlu0 %v1357, 32
      %v1400 = vpop.permute.xlu0 %1399
      %1401 = vrot.lane.b32.xlu0 %v1358, 32
      %v1402 = vpop.permute.xlu0 %1401
      %1403 = vrot.lane.b32.xlu0 %v1359, 32
      %v1404 = vpop.permute.xlu0 %1403
      %1405 = vrot.lane.b32.xlu0 %v1360, 32
      %v1406 = vpop.permute.xlu0 %1405
      %1407 = vrot.lane.b32.xlu0 %v1361, 32
      %v1408 = vpop.permute.xlu0 %1407
      %1409 = vrot.lane.b32.xlu0 %v1362, 32
      %v1410 = vpop.permute.xlu0 %1409
      %1411 = vrot.lane.b32.xlu0 %v1363, 32
      %v1412 = vpop.permute.xlu0 %1411
      %1413 = vrot.lane.b32.xlu0 %v1364, 32
      %v1414 = vpop.permute.xlu0 %1413
      %1415 = vrot.lane.b32.xlu0 %v1365, 32
      %v1416 = vpop.permute.xlu0 %1415
      %1417 = vrot.lane.b32.xlu0 %v1366, 32
      %v1418 = vpop.permute.xlu0 %1417
      %1419 = vrot.lane.b32.xlu0 %v1367, 32
      %v1420 = vpop.permute.xlu0 %1419
      %1421 = vrot.lane.b32.xlu0 %v1368, 32
      %v1422 = vpop.permute.xlu0 %1421
      %1423 = vrot.lane.b32.xlu0 %v1369, 32
      %v1424 = vpop.permute.xlu0 %1423
      %1425 = vrot.lane.b32.xlu0 %v1370, 32
      %v1426 = vpop.permute.xlu0 %1425
      %1427 = vrot.lane.b32.xlu0 %v1371, 32
      %v1428 = vpop.permute.xlu0 %1427
      %1429 = vrot.lane.b32.xlu0 %v1372, 32
      %v1430 = vpop.permute.xlu0 %1429
      %1431 = vrot.lane.b32.xlu0 %v1373, 32
      %v1432 = vpop.permute.xlu0 %1431
      %1433 = vrot.lane.b32.xlu0 %v1374, 32
      %v1434 = vpop.permute.xlu0 %1433
      %1435 = vrot.lane.b32.xlu0 %v1375, 32
      %v1436 = vpop.permute.xlu0 %1435
      %1437 = vrot.lane.b32.xlu0 %v1376, 32
      %v1438 = vpop.permute.xlu0 %1437
      %1439 = vrot.lane.b32.xlu0 %v1377, 32
      %v1440 = vpop.permute.xlu0 %1439
      %1441 = vrot.lane.b32.xlu0 %v1378, 32
      %v1442 = vpop.permute.xlu0 %1441
      %vm1475 = vcmask 519424
      %1476 = vst.msk [vmem:[#allocation3] sm:$0xf] %vm1475, %v1380
      %1477 = vst.msk [vmem:[#allocation3 + $0xc] sm:$0xf] %vm1475, %v1382
      %1478 = vst.msk [vmem:[#allocation3 + $0x18] sm:$0xf] %vm1475, %v1384
      %1479 = vst.msk [vmem:[#allocation3 + $0x24] sm:$0xf] %vm1475, %v1386
      %1480 = vst.msk [vmem:[#allocation3 + $0x30] sm:$0xf] %vm1475, %v1388
      %1481 = vst.msk [vmem:[#allocation3 + $0x3c] sm:$0xf] %vm1475, %v1390
      %1482 = vst.msk [vmem:[#allocation3 + $0x48] sm:$0xf] %vm1475, %v1392
      %1483 = vst.msk [vmem:[#allocation3 + $0x54] sm:$0xf] %vm1475, %v1394
      %1484 = vst.msk [vmem:[#allocation3 + $0x60] sm:$0xf] %vm1475, %v1396
      %1485 = vst.msk [vmem:[#allocation3 + $0x6c] sm:$0xf] %vm1475, %v1398
      %1486 = vst.msk [vmem:[#allocation3 + $0x78] sm:$0xf] %vm1475, %v1400
      %1487 = vst.msk [vmem:[#allocation3 + $0x84] sm:$0xf] %vm1475, %v1402
      %1488 = vst.msk [vmem:[#allocation3 + $0x90] sm:$0xf] %vm1475, %v1404
      %1489 = vst.msk [vmem:[#allocation3 + $0x9c] sm:$0xf] %vm1475, %v1406
      %1490 = vst.msk [vmem:[#allocation3 + $0xa8] sm:$0xf] %vm1475, %v1408
      %1491 = vst.msk [vmem:[#allocation3 + $0xb4] sm:$0xf] %vm1475, %v1410
      %1492 = vst.msk [vmem:[#allocation3 + $0xc0] sm:$0xf] %vm1475, %v1412
      %1493 = vst.msk [vmem:[#allocation3 + $0xcc] sm:$0xf] %vm1475, %v1414
      %1494 = vst.msk [vmem:[#allocation3 + $0xd8] sm:$0xf] %vm1475, %v1416
      %1495 = vst.msk [vmem:[#allocation3 + $0xe4] sm:$0xf] %vm1475, %v1418
      %1496 = vst.msk [vmem:[#allocation3 + $0xf0] sm:$0xf] %vm1475, %v1420
      %1497 = vst.msk [vmem:[#allocation3 + $0xfc] sm:$0xf] %vm1475, %v1422
      %1498 = vst.msk [vmem:[#allocation3 + $0x108] sm:$0xf] %vm1475, %v1424
      %1499 = vst.msk [vmem:[#allocation3 + $0x114] sm:$0xf] %vm1475, %v1426
      %1500 = vst.msk [vmem:[#allocation3 + $0x120] sm:$0xf] %vm1475, %v1428
      %1501 = vst.msk [vmem:[#allocation3 + $0x12c] sm:$0xf] %vm1475, %v1430
      %1502 = vst.msk [vmem:[#allocation3 + $0x138] sm:$0xf] %vm1475, %v1432
      %1503 = vst.msk [vmem:[#allocation3 + $0x144] sm:$0xf] %vm1475, %v1434
      %1504 = vst.msk [vmem:[#allocation3 + $0x150] sm:$0xf] %vm1475, %v1436
      %1505 = vst.msk [vmem:[#allocation3 + $0x15c] sm:$0xf] %vm1475, %v1438
      %1506 = vst.msk [vmem:[#allocation3 + $0x168] sm:$0xf] %vm1475, %v1440
      %1507 = vst.msk [vmem:[#allocation3 + $0x174] sm:$0xf] %vm1475, %v1442
      %v1508 = vld [vmem:[#allocation2 + $0x2] sm:$0xff]
      %v1509 = vld [vmem:[#allocation2 + $0xa] sm:$0xff]
      %v1510 = vld [vmem:[#allocation2 + $0x12] sm:$0xff]
      %v1511 = vld [vmem:[#allocation2 + $0x1a] sm:$0xff]
      %v1512 = vld [vmem:[#allocation2 + $0x22] sm:$0xff]
      %v1513 = vld [vmem:[#allocation2 + $0x2a] sm:$0xff]
      %v1514 = vld [vmem:[#allocation2 + $0x32] sm:$0xff]
      %v1515 = vld [vmem:[#allocation2 + $0x3a] sm:$0xff]
      %v1516 = vld [vmem:[#allocation2 + $0x42] sm:$0xff]
      %v1517 = vld [vmem:[#allocation2 + $0x4a] sm:$0xff]
      %v1518 = vld [vmem:[#allocation2 + $0x52] sm:$0xff]
      %v1519 = vld [vmem:[#allocation2 + $0x5a] sm:$0xff]
      %v1520 = vld [vmem:[#allocation2 + $0x62] sm:$0xff]
      %v1521 = vld [vmem:[#allocation2 + $0x6a] sm:$0xff]
      %v1522 = vld [vmem:[#allocation2 + $0x72] sm:$0xff]
      %v1523 = vld [vmem:[#allocation2 + $0x7a] sm:$0xff]
      %v1524 = vld [vmem:[#allocation2 + $0x82] sm:$0xff]
      %v1525 = vld [vmem:[#allocation2 + $0x8a] sm:$0xff]
      %v1526 = vld [vmem:[#allocation2 + $0x92] sm:$0xff]
      %v1527 = vld [vmem:[#allocation2 + $0x9a] sm:$0xff]
      %v1528 = vld [vmem:[#allocation2 + $0xa2] sm:$0xff]
      %v1529 = vld [vmem:[#allocation2 + $0xaa] sm:$0xff]
      %v1530 = vld [vmem:[#allocation2 + $0xb2] sm:$0xff]
      %v1531 = vld [vmem:[#allocation2 + $0xba] sm:$0xff]
      %v1532 = vld [vmem:[#allocation2 + $0xc2] sm:$0xff]
      %v1533 = vld [vmem:[#allocation2 + $0xca] sm:$0xff]
      %v1534 = vld [vmem:[#allocation2 + $0xd2] sm:$0xff]
      %v1535 = vld [vmem:[#allocation2 + $0xda] sm:$0xff]
      %v1536 = vld [vmem:[#allocation2 + $0xe2] sm:$0xff]
      %v1537 = vld [vmem:[#allocation2 + $0xea] sm:$0xff]
      %v1538 = vld [vmem:[#allocation2 + $0xf2] sm:$0xff]
      %v1539 = vld [vmem:[#allocation2 + $0xfa] sm:$0xff]
      %v1540 = vsel %vm930, 1, 0
      %v1541 = vsel %vm931, 1, 0
      %v1542 = vsel %vm932, 1, 0
      %v1543 = vsel %vm933, 1, 0
      %v1544 = vsel %vm934, 1, 0
      %v1545 = vsel %vm935, 1, 0
      %v1546 = vsel %vm936, 1, 0
      %v1547 = vsel %vm937, 1, 0
      %v1548 = vsel %vm938, 1, 0
      %v1549 = vsel %vm939, 1, 0
      %v1550 = vsel %vm940, 1, 0
      %v1551 = vsel %vm941, 1, 0
      %v1552 = vsel %vm942, 1, 0
      %v1553 = vsel %vm943, 1, 0
      %v1554 = vsel %vm944, 1, 0
      %v1555 = vsel %vm945, 1, 0
      %v1556 = vsel %vm946, 1, 0
      %v1557 = vsel %vm947, 1, 0
      %v1558 = vsel %vm948, 1, 0
      %v1559 = vsel %vm949, 1, 0
      %v1560 = vsel %vm950, 1, 0
      %v1561 = vsel %vm951, 1, 0
      %v1562 = vsel %vm952, 1, 0
      %v1563 = vsel %vm953, 1, 0
      %v1564 = vsel %vm954, 1, 0
      %v1565 = vsel %vm955, 1, 0
      %v1566 = vsel %vm956, 1, 0
      %v1567 = vsel %vm957, 1, 0
      %v1568 = vsel %vm958, 1, 0
      %v1569 = vsel %vm959, 1, 0
      %v1570 = vsel %vm960, 1, 0
      %v1571 = vsel %vm961, 1, 0
      %vm1572 = vcmp.eq.s32.totalorder %v1540, 1
      %vm1573 = vcmp.eq.s32.totalorder %v1541, 1
      %vm1574 = vcmp.eq.s32.totalorder %v1542, 1
      %vm1575 = vcmp.eq.s32.totalorder %v1543, 1
      %vm1576 = vcmp.eq.s32.totalorder %v1544, 1
      %vm1577 = vcmp.eq.s32.totalorder %v1545, 1
      %vm1578 = vcmp.eq.s32.totalorder %v1546, 1
      %vm1579 = vcmp.eq.s32.totalorder %v1547, 1
      %vm1580 = vcmp.eq.s32.totalorder %v1548, 1
      %vm1581 = vcmp.eq.s32.totalorder %v1549, 1
      %vm1582 = vcmp.eq.s32.totalorder %v1550, 1
      %vm1583 = vcmp.eq.s32.totalorder %v1551, 1
      %vm1584 = vcmp.eq.s32.totalorder %v1552, 1
      %vm1585 = vcmp.eq.s32.totalorder %v1553, 1
      %vm1586 = vcmp.eq.s32.totalorder %v1554, 1
      %vm1587 = vcmp.eq.s32.totalorder %v1555, 1
      %vm1588 = vcmp.eq.s32.totalorder %v1556, 1
      %vm1589 = vcmp.eq.s32.totalorder %v1557, 1
      %vm1590 = vcmp.eq.s32.totalorder %v1558, 1
      %vm1591 = vcmp.eq.s32.totalorder %v1559, 1
      %vm1592 = vcmp.eq.s32.totalorder %v1560, 1
      %vm1593 = vcmp.eq.s32.totalorder %v1561, 1
      %vm1594 = vcmp.eq.s32.totalorder %v1562, 1
      %vm1595 = vcmp.eq.s32.totalorder %v1563, 1
      %vm1596 = vcmp.eq.s32.totalorder %v1564, 1
      %vm1597 = vcmp.eq.s32.totalorder %v1565, 1
      %vm1598 = vcmp.eq.s32.totalorder %v1566, 1
      %vm1599 = vcmp.eq.s32.totalorder %v1567, 1
      %vm1600 = vcmp.eq.s32.totalorder %v1568, 1
      %vm1601 = vcmp.eq.s32.totalorder %v1569, 1
      %vm1602 = vcmp.eq.s32.totalorder %v1570, 1
      %vm1603 = vcmp.eq.s32.totalorder %v1571, 1
      %v1604 = vsel %vm1572, %v1508, 0.0
      %v1605 = vsel %vm1573, %v1509, 0.0
      %v1606 = vsel %vm1574, %v1510, 0.0
      %v1607 = vsel %vm1575, %v1511, 0.0
      %v1608 = vsel %vm1576, %v1512, 0.0
      %v1609 = vsel %vm1577, %v1513, 0.0
      %v1610 = vsel %vm1578, %v1514, 0.0
      %v1611 = vsel %vm1579, %v1515, 0.0
      %v1612 = vsel %vm1580, %v1516, 0.0
      %v1613 = vsel %vm1581, %v1517, 0.0
      %v1614 = vsel %vm1582, %v1518, 0.0
      %v1615 = vsel %vm1583, %v1519, 0.0
      %v1616 = vsel %vm1584, %v1520, 0.0
      %v1617 = vsel %vm1585, %v1521, 0.0
      %v1618 = vsel %vm1586, %v1522, 0.0
      %v1619 = vsel %vm1587, %v1523, 0.0
      %v1620 = vsel %vm1588, %v1524, 0.0
      %v1621 = vsel %vm1589, %v1525, 0.0
      %v1622 = vsel %vm1590, %v1526, 0.0
      %v1623 = vsel %vm1591, %v1527, 0.0
      %v1624 = vsel %vm1592, %v1528, 0.0
      %v1625 = vsel %vm1593, %v1529, 0.0
      %v1626 = vsel %vm1594, %v1530, 0.0
      %v1627 = vsel %vm1595, %v1531, 0.0
      %v1628 = vsel %vm1596, %v1532, 0.0
      %v1629 = vsel %vm1597, %v1533, 0.0
      %v1630 = vsel %vm1598, %v1534, 0.0
      %v1631 = vsel %vm1599, %v1535, 0.0
      %v1632 = vsel %vm1600, %v1536, 0.0
      %v1633 = vsel %vm1601, %v1537, 0.0
      %v1634 = vsel %vm1602, %v1538, 0.0
      %v1635 = vsel %vm1603, %v1539, 0.0
      %v1636 = vpack.c.bf16 %v1605, %v1604
      %v1637 = vpack.c.bf16 %v1607, %v1606
      %v1638 = vpack.c.bf16 %v1609, %v1608
      %v1639 = vpack.c.bf16 %v1611, %v1610
      %v1640 = vpack.c.bf16 %v1613, %v1612
      %v1641 = vpack.c.bf16 %v1615, %v1614
      %v1642 = vpack.c.bf16 %v1617, %v1616
      %v1643 = vpack.c.bf16 %v1619, %v1618
      %v1644 = vpack.c.bf16 %v1621, %v1620
      %v1645 = vpack.c.bf16 %v1623, %v1622
      %v1646 = vpack.c.bf16 %v1625, %v1624
      %v1647 = vpack.c.bf16 %v1627, %v1626
      %v1648 = vpack.c.bf16 %v1629, %v1628
      %v1649 = vpack.c.bf16 %v1631, %v1630
      %v1650 = vpack.c.bf16 %v1633, %v1632
      %v1651 = vpack.c.bf16 %v1635, %v1634
      %v1668 = vunpack.c.l.b16 %v1636
      %v1669 = vunpack.c.h.b16 %v1636
      %v1670 = vunpack.c.l.b16 %v1637
      %v1671 = vunpack.c.h.b16 %v1637
      %v1672 = vunpack.c.l.b16 %v1638
      %v1673 = vunpack.c.h.b16 %v1638
      %v1674 = vunpack.c.l.b16 %v1639
      %v1675 = vunpack.c.h.b16 %v1639
      %v1676 = vunpack.c.l.b16 %v1640
      %v1677 = vunpack.c.h.b16 %v1640
      %v1678 = vunpack.c.l.b16 %v1641
      %v1679 = vunpack.c.h.b16 %v1641
      %v1680 = vunpack.c.l.b16 %v1642
      %v1681 = vunpack.c.h.b16 %v1642
      %v1682 = vunpack.c.l.b16 %v1643
      %v1683 = vunpack.c.h.b16 %v1643
      %v1684 = vunpack.c.l.b16 %v1644
      %v1685 = vunpack.c.h.b16 %v1644
      %v1686 = vunpack.c.l.b16 %v1645
      %v1687 = vunpack.c.h.b16 %v1645
      %v1688 = vunpack.c.l.b16 %v1646
      %v1689 = vunpack.c.h.b16 %v1646
      %v1690 = vunpack.c.l.b16 %v1647
      %v1691 = vunpack.c.h.b16 %v1647
      %v1692 = vunpack.c.l.b16 %v1648
      %v1693 = vunpack.c.h.b16 %v1648
      %v1694 = vunpack.c.l.b16 %v1649
      %v1695 = vunpack.c.h.b16 %v1649
      %v1696 = vunpack.c.l.b16 %v1650
      %v1697 = vunpack.c.h.b16 %v1650
      %v1698 = vunpack.c.l.b16 %v1651
      %v1699 = vunpack.c.h.b16 %v1651
      %v1700 = vpack.c.b16 %v1668, %v1668
      %v1701 = vpack.c.b16 %v1669, %v1669
      %v1702 = vpack.c.b16 %v1670, %v1670
      %v1703 = vpack.c.b16 %v1671, %v1671
      %v1704 = vpack.c.b16 %v1672, %v1672
      %v1705 = vpack.c.b16 %v1673, %v1673
      %v1706 = vpack.c.b16 %v1674, %v1674
      %v1707 = vpack.c.b16 %v1675, %v1675
      %v1708 = vpack.c.b16 %v1676, %v1676
      %v1709 = vpack.c.b16 %v1677, %v1677
      %v1710 = vpack.c.b16 %v1678, %v1678
      %v1711 = vpack.c.b16 %v1679, %v1679
      %v1712 = vpack.c.b16 %v1680, %v1680
      %v1713 = vpack.c.b16 %v1681, %v1681
      %v1714 = vpack.c.b16 %v1682, %v1682
      %v1715 = vpack.c.b16 %v1683, %v1683
      %v1716 = vpack.c.b16 %v1684, %v1684
      %v1717 = vpack.c.b16 %v1685, %v1685
      %v1718 = vpack.c.b16 %v1686, %v1686
      %v1719 = vpack.c.b16 %v1687, %v1687
      %v1720 = vpack.c.b16 %v1688, %v1688
      %v1721 = vpack.c.b16 %v1689, %v1689
      %v1722 = vpack.c.b16 %v1690, %v1690
      %v1723 = vpack.c.b16 %v1691, %v1691
      %v1724 = vpack.c.b16 %v1692, %v1692
      %v1725 = vpack.c.b16 %v1693, %v1693
      %v1726 = vpack.c.b16 %v1694, %v1694
      %v1727 = vpack.c.b16 %v1695, %v1695
      %v1728 = vpack.c.b16 %v1696, %v1696
      %v1729 = vpack.c.b16 %v1697, %v1697
      %v1730 = vpack.c.b16 %v1698, %v1698
      %v1731 = vpack.c.b16 %v1699, %v1699
      %1732 = vrot.lane.b32.xlu0 %v1700, 64
      %v1733 = vpop.permute.xlu0 %1732
      %1734 = vrot.lane.b32.xlu0 %v1701, 64
      %v1735 = vpop.permute.xlu0 %1734
      %1736 = vrot.lane.b32.xlu0 %v1702, 64
      %v1737 = vpop.permute.xlu0 %1736
      %1738 = vrot.lane.b32.xlu0 %v1703, 64
      %v1739 = vpop.permute.xlu0 %1738
      %1740 = vrot.lane.b32.xlu0 %v1704, 64
      %v1741 = vpop.permute.xlu0 %1740
      %1742 = vrot.lane.b32.xlu0 %v1705, 64
      %v1743 = vpop.permute.xlu0 %1742
      %1744 = vrot.lane.b32.xlu0 %v1706, 64
      %v1745 = vpop.permute.xlu0 %1744
      %1746 = vrot.lane.b32.xlu0 %v1707, 64
      %v1747 = vpop.permute.xlu0 %1746
      %1748 = vrot.lane.b32.xlu0 %v1708, 64
      %v1749 = vpop.permute.xlu0 %1748
      %1750 = vrot.lane.b32.xlu0 %v1709, 64
      %v1751 = vpop.permute.xlu0 %1750
      %1752 = vrot.lane.b32.xlu0 %v1710, 64
      %v1753 = vpop.permute.xlu0 %1752
      %1754 = vrot.lane.b32.xlu0 %v1711, 64
      %v1755 = vpop.permute.xlu0 %1754
      %1756 = vrot.lane.b32.xlu0 %v1712, 64
      %v1757 = vpop.permute.xlu0 %1756
      %1758 = vrot.lane.b32.xlu0 %v1713, 64
      %v1759 = vpop.permute.xlu0 %1758
      %1760 = vrot.lane.b32.xlu0 %v1714, 64
      %v1761 = vpop.permute.xlu0 %1760
      %1762 = vrot.lane.b32.xlu0 %v1715, 64
      %v1763 = vpop.permute.xlu0 %1762
      %1764 = vrot.lane.b32.xlu0 %v1716, 64
      %v1765 = vpop.permute.xlu0 %1764
      %1766 = vrot.lane.b32.xlu0 %v1717, 64
      %v1767 = vpop.permute.xlu0 %1766
      %1768 = vrot.lane.b32.xlu0 %v1718, 64
      %v1769 = vpop.permute.xlu0 %1768
      %1770 = vrot.lane.b32.xlu0 %v1719, 64
      %v1771 = vpop.permute.xlu0 %1770
      %1772 = vrot.lane.b32.xlu0 %v1720, 64
      %v1773 = vpop.permute.xlu0 %1772
      %1774 = vrot.lane.b32.xlu0 %v1721, 64
      %v1775 = vpop.permute.xlu0 %1774
      %1776 = vrot.lane.b32.xlu0 %v1722, 64
      %v1777 = vpop.permute.xlu0 %1776
      %1778 = vrot.lane.b32.xlu0 %v1723, 64
      %v1779 = vpop.permute.xlu0 %1778
      %1780 = vrot.lane.b32.xlu0 %v1724, 64
      %v1781 = vpop.permute.xlu0 %1780
      %1782 = vrot.lane.b32.xlu0 %v1725, 64
      %v1783 = vpop.permute.xlu0 %1782
      %1784 = vrot.lane.b32.xlu0 %v1726, 64
      %v1785 = vpop.permute.xlu0 %1784
      %1786 = vrot.lane.b32.xlu0 %v1727, 64
      %v1787 = vpop.permute.xlu0 %1786
      %1788 = vrot.lane.b32.xlu0 %v1728, 64
      %v1789 = vpop.permute.xlu0 %1788
      %1790 = vrot.lane.b32.xlu0 %v1729, 64
      %v1791 = vpop.permute.xlu0 %1790
      %1792 = vrot.lane.b32.xlu0 %v1730, 64
      %v1793 = vpop.permute.xlu0 %1792
      %1794 = vrot.lane.b32.xlu0 %v1731, 64
      %v1795 = vpop.permute.xlu0 %1794
      %vm1828 = vcmask 781824
      %1829 = vst.msk [vmem:[#allocation3] sm:$0xf] %vm1828, %v1733
      %1830 = vst.msk [vmem:[#allocation3 + $0xc] sm:$0xf] %vm1828, %v1735
      %1831 = vst.msk [vmem:[#allocation3 + $0x18] sm:$0xf] %vm1828, %v1737
      %1832 = vst.msk [vmem:[#allocation3 + $0x24] sm:$0xf] %vm1828, %v1739
      %1833 = vst.msk [vmem:[#allocation3 + $0x30] sm:$0xf] %vm1828, %v1741
      %1834 = vst.msk [vmem:[#allocation3 + $0x3c] sm:$0xf] %vm1828, %v1743
      %1835 = vst.msk [vmem:[#allocation3 + $0x48] sm:$0xf] %vm1828, %v1745
      %1836 = vst.msk [vmem:[#allocation3 + $0x54] sm:$0xf] %vm1828, %v1747
      %1837 = vst.msk [vmem:[#allocation3 + $0x60] sm:$0xf] %vm1828, %v1749
      %1838 = vst.msk [vmem:[#allocation3 + $0x6c] sm:$0xf] %vm1828, %v1751
      %1839 = vst.msk [vmem:[#allocation3 + $0x78] sm:$0xf] %vm1828, %v1753
      %1840 = vst.msk [vmem:[#allocation3 + $0x84] sm:$0xf] %vm1828, %v1755
      %1841 = vst.msk [vmem:[#allocation3 + $0x90] sm:$0xf] %vm1828, %v1757
      %1842 = vst.msk [vmem:[#allocation3 + $0x9c] sm:$0xf] %vm1828, %v1759
      %1843 = vst.msk [vmem:[#allocation3 + $0xa8] sm:$0xf] %vm1828, %v1761
      %1844 = vst.msk [vmem:[#allocation3 + $0xb4] sm:$0xf] %vm1828, %v1763
      %1845 = vst.msk [vmem:[#allocation3 + $0xc0] sm:$0xf] %vm1828, %v1765
      %1846 = vst.msk [vmem:[#allocation3 + $0xcc] sm:$0xf] %vm1828, %v1767
      %1847 = vst.msk [vmem:[#allocation3 + $0xd8] sm:$0xf] %vm1828, %v1769
      %1848 = vst.msk [vmem:[#allocation3 + $0xe4] sm:$0xf] %vm1828, %v1771
      %1849 = vst.msk [vmem:[#allocation3 + $0xf0] sm:$0xf] %vm1828, %v1773
      %1850 = vst.msk [vmem:[#allocation3 + $0xfc] sm:$0xf] %vm1828, %v1775
      %1851 = vst.msk [vmem:[#allocation3 + $0x108] sm:$0xf] %vm1828, %v1777
      %1852 = vst.msk [vmem:[#allocation3 + $0x114] sm:$0xf] %vm1828, %v1779
      %1853 = vst.msk [vmem:[#allocation3 + $0x120] sm:$0xf] %vm1828, %v1781
      %1854 = vst.msk [vmem:[#allocation3 + $0x12c] sm:$0xf] %vm1828, %v1783
      %1855 = vst.msk [vmem:[#allocation3 + $0x138] sm:$0xf] %vm1828, %v1785
      %1856 = vst.msk [vmem:[#allocation3 + $0x144] sm:$0xf] %vm1828, %v1787
      %1857 = vst.msk [vmem:[#allocation3 + $0x150] sm:$0xf] %vm1828, %v1789
      %1858 = vst.msk [vmem:[#allocation3 + $0x15c] sm:$0xf] %vm1828, %v1791
      %1859 = vst.msk [vmem:[#allocation3 + $0x168] sm:$0xf] %vm1828, %v1793
      %1860 = vst.msk [vmem:[#allocation3 + $0x174] sm:$0xf] %vm1828, %v1795
      %v1861 = vld [vmem:[#allocation2 + $0x10] sm:$0xff]
      %v1862 = vld [vmem:[#allocation2 + $0x18] sm:$0xff]
      %v1863 = vld [vmem:[#allocation2 + $0x20] sm:$0xff]
      %v1864 = vld [vmem:[#allocation2 + $0x28] sm:$0xff]
      %v1865 = vld [vmem:[#allocation2 + $0x30] sm:$0xff]
      %v1866 = vld [vmem:[#allocation2 + $0x38] sm:$0xff]
      %v1867 = vld [vmem:[#allocation2 + $0x40] sm:$0xff]
      %v1868 = vld [vmem:[#allocation2 + $0x48] sm:$0xff]
      %v1869 = vld [vmem:[#allocation2 + $0x50] sm:$0xff]
      %v1870 = vld [vmem:[#allocation2 + $0x58] sm:$0xff]
      %v1871 = vld [vmem:[#allocation2 + $0x60] sm:$0xff]
      %v1872 = vld [vmem:[#allocation2 + $0x68] sm:$0xff]
      %v1873 = vld [vmem:[#allocation2 + $0x70] sm:$0xff]
      %v1874 = vld [vmem:[#allocation2 + $0x78] sm:$0xff]
      %v1875 = vld [vmem:[#allocation2 + $0x80] sm:$0xff]
      %v1876 = vld [vmem:[#allocation2 + $0x88] sm:$0xff]
      %v1877 = vld [vmem:[#allocation2 + $0x90] sm:$0xff]
      %v1878 = vld [vmem:[#allocation2 + $0x98] sm:$0xff]
      %v1879 = vld [vmem:[#allocation2 + $0xa0] sm:$0xff]
      %v1880 = vld [vmem:[#allocation2 + $0xa8] sm:$0xff]
      %v1881 = vld [vmem:[#allocation2 + $0xb0] sm:$0xff]
      %v1882 = vld [vmem:[#allocation2 + $0xb8] sm:$0xff]
      %v1883 = vld [vmem:[#allocation2 + $0xc0] sm:$0xff]
      %v1884 = vld [vmem:[#allocation2 + $0xc8] sm:$0xff]
      %v1885 = vld [vmem:[#allocation2 + $0xd0] sm:$0xff]
      %v1886 = vld [vmem:[#allocation2 + $0xd8] sm:$0xff]
      %v1887 = vld [vmem:[#allocation2 + $0xe0] sm:$0xff]
      %v1888 = vld [vmem:[#allocation2 + $0xe8] sm:$0xff]
      %v1889 = vld [vmem:[#allocation2 + $0xf0] sm:$0xff]
      %v1890 = vld [vmem:[#allocation2 + $0xf8] sm:$0xff]
      %v1891 = vld [vmem:[#allocation2 + $0x100] sm:$0xff]
      %v1892 = vld [vmem:[#allocation2 + $0x108] sm:$0xff]
      %v1893 = vsel %vm1026, %v1861, 0.0
      %v1894 = vsel %vm1027, %v1862, 0.0
      %v1895 = vsel %vm1028, %v1863, 0.0
      %v1896 = vsel %vm1029, %v1864, 0.0
      %v1897 = vsel %vm1030, %v1865, 0.0
      %v1898 = vsel %vm1031, %v1866, 0.0
      %v1899 = vsel %vm1032, %v1867, 0.0
      %v1900 = vsel %vm1033, %v1868, 0.0
      %v1901 = vsel %vm1034, %v1869, 0.0
      %v1902 = vsel %vm1035, %v1870, 0.0
      %v1903 = vsel %vm1036, %v1871, 0.0
      %v1904 = vsel %vm1037, %v1872, 0.0
      %v1905 = vsel %vm1038, %v1873, 0.0
      %v1906 = vsel %vm1039, %v1874, 0.0
      %v1907 = vsel %vm1040, %v1875, 0.0
      %v1908 = vsel %vm1041, %v1876, 0.0
      %v1909 = vsel %vm1042, %v1877, 0.0
      %v1910 = vsel %vm1043, %v1878, 0.0
      %v1911 = vsel %vm1044, %v1879, 0.0
      %v1912 = vsel %vm1045, %v1880, 0.0
      %v1913 = vsel %vm1046, %v1881, 0.0
      %v1914 = vsel %vm1047, %v1882, 0.0
      %v1915 = vsel %vm1048, %v1883, 0.0
      %v1916 = vsel %vm1049, %v1884, 0.0
      %v1917 = vsel %vm1050, %v1885, 0.0
      %v1918 = vsel %vm1051, %v1886, 0.0
      %v1919 = vsel %vm1052, %v1887, 0.0
      %v1920 = vsel %vm1053, %v1888, 0.0
      %v1921 = vsel %vm1054, %v1889, 0.0
      %v1922 = vsel %vm1055, %v1890, 0.0
      %v1923 = vsel %vm1056, %v1891, 0.0
      %v1924 = vsel %vm1057, %v1892, 0.0
      %v1925 = vpack.c.bf16 %v1894, %v1893
      %v1926 = vpack.c.bf16 %v1896, %v1895
      %v1927 = vpack.c.bf16 %v1898, %v1897
      %v1928 = vpack.c.bf16 %v1900, %v1899
      %v1929 = vpack.c.bf16 %v1902, %v1901
      %v1930 = vpack.c.bf16 %v1904, %v1903
      %v1931 = vpack.c.bf16 %v1906, %v1905
      %v1932 = vpack.c.bf16 %v1908, %v1907
      %v1933 = vpack.c.bf16 %v1910, %v1909
      %v1934 = vpack.c.bf16 %v1912, %v1911
      %v1935 = vpack.c.bf16 %v1914, %v1913
      %v1936 = vpack.c.bf16 %v1916, %v1915
      %v1937 = vpack.c.bf16 %v1918, %v1917
      %v1938 = vpack.c.bf16 %v1920, %v1919
      %v1939 = vpack.c.bf16 %v1922, %v1921
      %v1940 = vpack.c.bf16 %v1924, %v1923
      %v1957 = vunpack.c.l.b16 %v1925
      %v1958 = vunpack.c.h.b16 %v1925
      %v1959 = vunpack.c.l.b16 %v1926
      %v1960 = vunpack.c.h.b16 %v1926
      %v1961 = vunpack.c.l.b16 %v1927
      %v1962 = vunpack.c.h.b16 %v1927
      %v1963 = vunpack.c.l.b16 %v1928
      %v1964 = vunpack.c.h.b16 %v1928
      %v1965 = vunpack.c.l.b16 %v1929
      %v1966 = vunpack.c.h.b16 %v1929
      %v1967 = vunpack.c.l.b16 %v1930
      %v1968 = vunpack.c.h.b16 %v1930
      %v1969 = vunpack.c.l.b16 %v1931
      %v1970 = vunpack.c.h.b16 %v1931
      %v1971 = vunpack.c.l.b16 %v1932
      %v1972 = vunpack.c.h.b16 %v1932
      %v1973 = vunpack.c.l.b16 %v1933
      %v1974 = vunpack.c.h.b16 %v1933
      %v1975 = vunpack.c.l.b16 %v1934
      %v1976 = vunpack.c.h.b16 %v1934
      %v1977 = vunpack.c.l.b16 %v1935
      %v1978 = vunpack.c.h.b16 %v1935
      %v1979 = vunpack.c.l.b16 %v1936
      %v1980 = vunpack.c.h.b16 %v1936
      %v1981 = vunpack.c.l.b16 %v1937
      %v1982 = vunpack.c.h.b16 %v1937
      %v1983 = vunpack.c.l.b16 %v1938
      %v1984 = vunpack.c.h.b16 %v1938
      %v1985 = vunpack.c.l.b16 %v1939
      %v1986 = vunpack.c.h.b16 %v1939
      %v1987 = vunpack.c.l.b16 %v1940
      %v1988 = vunpack.c.h.b16 %v1940
      %v1989 = vpack.c.b16 %v1957, %v1957
      %v1990 = vpack.c.b16 %v1958, %v1958
      %v1991 = vpack.c.b16 %v1959, %v1959
      %v1992 = vpack.c.b16 %v1960, %v1960
      %v1993 = vpack.c.b16 %v1961, %v1961
      %v1994 = vpack.c.b16 %v1962, %v1962
      %v1995 = vpack.c.b16 %v1963, %v1963
      %v1996 = vpack.c.b16 %v1964, %v1964
      %v1997 = vpack.c.b16 %v1965, %v1965
      %v1998 = vpack.c.b16 %v1966, %v1966
      %v1999 = vpack.c.b16 %v1967, %v1967
      %v2000 = vpack.c.b16 %v1968, %v1968
      %v2001 = vpack.c.b16 %v1969, %v1969
      %v2002 = vpack.c.b16 %v1970, %v1970
      %v2003 = vpack.c.b16 %v1971, %v1971
      %v2004 = vpack.c.b16 %v1972, %v1972
      %v2005 = vpack.c.b16 %v1973, %v1973
      %v2006 = vpack.c.b16 %v1974, %v1974
      %v2007 = vpack.c.b16 %v1975, %v1975
      %v2008 = vpack.c.b16 %v1976, %v1976
      %v2009 = vpack.c.b16 %v1977, %v1977
      %v2010 = vpack.c.b16 %v1978, %v1978
      %v2011 = vpack.c.b16 %v1979, %v1979
      %v2012 = vpack.c.b16 %v1980, %v1980
      %v2013 = vpack.c.b16 %v1981, %v1981
      %v2014 = vpack.c.b16 %v1982, %v1982
      %v2015 = vpack.c.b16 %v1983, %v1983
      %v2016 = vpack.c.b16 %v1984, %v1984
      %v2017 = vpack.c.b16 %v1985, %v1985
      %v2018 = vpack.c.b16 %v1986, %v1986
      %v2019 = vpack.c.b16 %v1987, %v1987
      %v2020 = vpack.c.b16 %v1988, %v1988
      %2021 = vrot.lane.b32.xlu0 %v1989, 96
      %v2022 = vpop.permute.xlu0 %2021
      %2023 = vrot.lane.b32.xlu0 %v1990, 96
      %v2024 = vpop.permute.xlu0 %2023
      %2025 = vrot.lane.b32.xlu0 %v1991, 96
      %v2026 = vpop.permute.xlu0 %2025
      %2027 = vrot.lane.b32.xlu0 %v1992, 96
      %v2028 = vpop.permute.xlu0 %2027
      %2029 = vrot.lane.b32.xlu0 %v1993, 96
      %v2030 = vpop.permute.xlu0 %2029
      %2031 = vrot.lane.b32.xlu0 %v1994, 96
      %v2032 = vpop.permute.xlu0 %2031
      %2033 = vrot.lane.b32.xlu0 %v1995, 96
      %v2034 = vpop.permute.xlu0 %2033
      %2035 = vrot.lane.b32.xlu0 %v1996, 96
      %v2036 = vpop.permute.xlu0 %2035
      %2037 = vrot.lane.b32.xlu0 %v1997, 96
      %v2038 = vpop.permute.xlu0 %2037
      %2039 = vrot.lane.b32.xlu0 %v1998, 96
      %v2040 = vpop.permute.xlu0 %2039
      %2041 = vrot.lane.b32.xlu0 %v1999, 96
      %v2042 = vpop.permute.xlu0 %2041
      %2043 = vrot.lane.b32.xlu0 %v2000, 96
      %v2044 = vpop.permute.xlu0 %2043
      %2045 = vrot.lane.b32.xlu0 %v2001, 96
      %v2046 = vpop.permute.xlu0 %2045
      %2047 = vrot.lane.b32.xlu0 %v2002, 96
      %v2048 = vpop.permute.xlu0 %2047
      %2049 = vrot.lane.b32.xlu0 %v2003, 96
      %v2050 = vpop.permute.xlu0 %2049
      %2051 = vrot.lane.b32.xlu0 %v2004, 96
      %v2052 = vpop.permute.xlu0 %2051
      %2053 = vrot.lane.b32.xlu0 %v2005, 96
      %v2054 = vpop.permute.xlu0 %2053
      %2055 = vrot.lane.b32.xlu0 %v2006, 96
      %v2056 = vpop.permute.xlu0 %2055
      %2057 = vrot.lane.b32.xlu0 %v2007, 96
      %v2058 = vpop.permute.xlu0 %2057
      %2059 = vrot.lane.b32.xlu0 %v2008, 96
      %v2060 = vpop.permute.xlu0 %2059
      %2061 = vrot.lane.b32.xlu0 %v2009, 96
      %v2062 = vpop.permute.xlu0 %2061
      %2063 = vrot.lane.b32.xlu0 %v2010, 96
      %v2064 = vpop.permute.xlu0 %2063
      %2065 = vrot.lane.b32.xlu0 %v2011, 96
      %v2066 = vpop.permute.xlu0 %2065
      %2067 = vrot.lane.b32.xlu0 %v2012, 96
      %v2068 = vpop.permute.xlu0 %2067
      %2069 = vrot.lane.b32.xlu0 %v2013, 96
      %v2070 = vpop.permute.xlu0 %2069
      %2071 = vrot.lane.b32.xlu0 %v2014, 96
      %v2072 = vpop.permute.xlu0 %2071
      %2073 = vrot.lane.b32.xlu0 %v2015, 96
      %v2074 = vpop.permute.xlu0 %2073
      %2075 = vrot.lane.b32.xlu0 %v2016, 96
      %v2076 = vpop.permute.xlu0 %2075
      %2077 = vrot.lane.b32.xlu0 %v2017, 96
      %v2078 = vpop.permute.xlu0 %2077
      %2079 = vrot.lane.b32.xlu0 %v2018, 96
      %v2080 = vpop.permute.xlu0 %2079
      %2081 = vrot.lane.b32.xlu0 %v2019, 96
      %v2082 = vpop.permute.xlu0 %2081
      %2083 = vrot.lane.b32.xlu0 %v2020, 96
      %v2084 = vpop.permute.xlu0 %2083
      %vm2117 = vcmask 1044224
      %2118 = vst.msk [vmem:[#allocation3] sm:$0xf] %vm2117, %v2022
      %2119 = vst.msk [vmem:[#allocation3 + $0xc] sm:$0xf] %vm2117, %v2024
      %2120 = vst.msk [vmem:[#allocation3 + $0x18] sm:$0xf] %vm2117, %v2026
      %2121 = vst.msk [vmem:[#allocation3 + $0x24] sm:$0xf] %vm2117, %v2028
      %2122 = vst.msk [vmem:[#allocation3 + $0x30] sm:$0xf] %vm2117, %v2030
      %2123 = vst.msk [vmem:[#allocation3 + $0x3c] sm:$0xf] %vm2117, %v2032
      %2124 = vst.msk [vmem:[#allocation3 + $0x48] sm:$0xf] %vm2117, %v2034
      %2125 = vst.msk [vmem:[#allocation3 + $0x54] sm:$0xf] %vm2117, %v2036
      %2126 = vst.msk [vmem:[#allocation3 + $0x60] sm:$0xf] %vm2117, %v2038
      %2127 = vst.msk [vmem:[#allocation3 + $0x6c] sm:$0xf] %vm2117, %v2040
      %2128 = vst.msk [vmem:[#allocation3 + $0x78] sm:$0xf] %vm2117, %v2042
      %2129 = vst.msk [vmem:[#allocation3 + $0x84] sm:$0xf] %vm2117, %v2044
      %2130 = vst.msk [vmem:[#allocation3 + $0x90] sm:$0xf] %vm2117, %v2046
      %2131 = vst.msk [vmem:[#allocation3 + $0x9c] sm:$0xf] %vm2117, %v2048
      %2132 = vst.msk [vmem:[#allocation3 + $0xa8] sm:$0xf] %vm2117, %v2050
      %2133 = vst.msk [vmem:[#allocation3 + $0xb4] sm:$0xf] %vm2117, %v2052
      %2134 = vst.msk [vmem:[#allocation3 + $0xc0] sm:$0xf] %vm2117, %v2054
      %2135 = vst.msk [vmem:[#allocation3 + $0xcc] sm:$0xf] %vm2117, %v2056
      %2136 = vst.msk [vmem:[#allocation3 + $0xd8] sm:$0xf] %vm2117, %v2058
      %2137 = vst.msk [vmem:[#allocation3 + $0xe4] sm:$0xf] %vm2117, %v2060
      %2138 = vst.msk [vmem:[#allocation3 + $0xf0] sm:$0xf] %vm2117, %v2062
      %2139 = vst.msk [vmem:[#allocation3 + $0xfc] sm:$0xf] %vm2117, %v2064
      %2140 = vst.msk [vmem:[#allocation3 + $0x108] sm:$0xf] %vm2117, %v2066
      %2141 = vst.msk [vmem:[#allocation3 + $0x114] sm:$0xf] %vm2117, %v2068
      %2142 = vst.msk [vmem:[#allocation3 + $0x120] sm:$0xf] %vm2117, %v2070
      %2143 = vst.msk [vmem:[#allocation3 + $0x12c] sm:$0xf] %vm2117, %v2072
      %2144 = vst.msk [vmem:[#allocation3 + $0x138] sm:$0xf] %vm2117, %v2074
      %2145 = vst.msk [vmem:[#allocation3 + $0x144] sm:$0xf] %vm2117, %v2076
      %2146 = vst.msk [vmem:[#allocation3 + $0x150] sm:$0xf] %vm2117, %v2078
      %2147 = vst.msk [vmem:[#allocation3 + $0x15c] sm:$0xf] %vm2117, %v2080
      %2148 = vst.msk [vmem:[#allocation3 + $0x168] sm:$0xf] %vm2117, %v2082
      %2149 = vst.msk [vmem:[#allocation3 + $0x174] sm:$0xf] %vm2117, %v2084
      %v2150 = vld [vmem:[#allocation2 + $0x11] sm:$0xff]
      %v2151 = vld [vmem:[#allocation2 + $0x19] sm:$0xff]
      %v2152 = vld [vmem:[#allocation2 + $0x21] sm:$0xff]
      %v2153 = vld [vmem:[#allocation2 + $0x29] sm:$0xff]
      %v2154 = vld [vmem:[#allocation2 + $0x31] sm:$0xff]
      %v2155 = vld [vmem:[#allocation2 + $0x39] sm:$0xff]
      %v2156 = vld [vmem:[#allocation2 + $0x41] sm:$0xff]
      %v2157 = vld [vmem:[#allocation2 + $0x49] sm:$0xff]
      %v2158 = vld [vmem:[#allocation2 + $0x51] sm:$0xff]
      %v2159 = vld [vmem:[#allocation2 + $0x59] sm:$0xff]
      %v2160 = vld [vmem:[#allocation2 + $0x61] sm:$0xff]
      %v2161 = vld [vmem:[#allocation2 + $0x69] sm:$0xff]
      %v2162 = vld [vmem:[#allocation2 + $0x71] sm:$0xff]
      %v2163 = vld [vmem:[#allocation2 + $0x79] sm:$0xff]
      %v2164 = vld [vmem:[#allocation2 + $0x81] sm:$0xff]
      %v2165 = vld [vmem:[#allocation2 + $0x89] sm:$0xff]
      %v2166 = vld [vmem:[#allocation2 + $0x91] sm:$0xff]
      %v2167 = vld [vmem:[#allocation2 + $0x99] sm:$0xff]
      %v2168 = vld [vmem:[#allocation2 + $0xa1] sm:$0xff]
      %v2169 = vld [vmem:[#allocation2 + $0xa9] sm:$0xff]
      %v2170 = vld [vmem:[#allocation2 + $0xb1] sm:$0xff]
      %v2171 = vld [vmem:[#allocation2 + $0xb9] sm:$0xff]
      %v2172 = vld [vmem:[#allocation2 + $0xc1] sm:$0xff]
      %v2173 = vld [vmem:[#allocation2 + $0xc9] sm:$0xff]
      %v2174 = vld [vmem:[#allocation2 + $0xd1] sm:$0xff]
      %v2175 = vld [vmem:[#allocation2 + $0xd9] sm:$0xff]
      %v2176 = vld [vmem:[#allocation2 + $0xe1] sm:$0xff]
      %v2177 = vld [vmem:[#allocation2 + $0xe9] sm:$0xff]
      %v2178 = vld [vmem:[#allocation2 + $0xf1] sm:$0xff]
      %v2179 = vld [vmem:[#allocation2 + $0xf9] sm:$0xff]
      %v2180 = vld [vmem:[#allocation2 + $0x101] sm:$0xff]
      %v2181 = vld [vmem:[#allocation2 + $0x109] sm:$0xff]
      %v2182 = vpack.c.bf16 %v2151, %v2150
      %v2183 = vpack.c.bf16 %v2153, %v2152
      %v2184 = vpack.c.bf16 %v2155, %v2154
      %v2185 = vpack.c.bf16 %v2157, %v2156
      %v2186 = vpack.c.bf16 %v2159, %v2158
      %v2187 = vpack.c.bf16 %v2161, %v2160
      %v2188 = vpack.c.bf16 %v2163, %v2162
      %v2189 = vpack.c.bf16 %v2165, %v2164
      %v2190 = vpack.c.bf16 %v2167, %v2166
      %v2191 = vpack.c.bf16 %v2169, %v2168
      %v2192 = vpack.c.bf16 %v2171, %v2170
      %v2193 = vpack.c.bf16 %v2173, %v2172
      %v2194 = vpack.c.bf16 %v2175, %v2174
      %v2195 = vpack.c.bf16 %v2177, %v2176
      %v2196 = vpack.c.bf16 %v2179, %v2178
      %v2197 = vpack.c.bf16 %v2181, %v2180
      %v2214 = vunpack.c.l.b16 %v2182
      %v2215 = vunpack.c.h.b16 %v2182
      %v2216 = vunpack.c.l.b16 %v2183
      %v2217 = vunpack.c.h.b16 %v2183
      %v2218 = vunpack.c.l.b16 %v2184
      %v2219 = vunpack.c.h.b16 %v2184
      %v2220 = vunpack.c.l.b16 %v2185
      %v2221 = vunpack.c.h.b16 %v2185
      %v2222 = vunpack.c.l.b16 %v2186
      %v2223 = vunpack.c.h.b16 %v2186
      %v2224 = vunpack.c.l.b16 %v2187
      %v2225 = vunpack.c.h.b16 %v2187
      %v2226 = vunpack.c.l.b16 %v2188
      %v2227 = vunpack.c.h.b16 %v2188
      %v2228 = vunpack.c.l.b16 %v2189
      %v2229 = vunpack.c.h.b16 %v2189
      %v2230 = vunpack.c.l.b16 %v2190
      %v2231 = vunpack.c.h.b16 %v2190
      %v2232 = vunpack.c.l.b16 %v2191
      %v2233 = vunpack.c.h.b16 %v2191
      %v2234 = vunpack.c.l.b16 %v2192
      %v2235 = vunpack.c.h.b16 %v2192
      %v2236 = vunpack.c.l.b16 %v2193
      %v2237 = vunpack.c.h.b16 %v2193
      %v2238 = vunpack.c.l.b16 %v2194
      %v2239 = vunpack.c.h.b16 %v2194
      %v2240 = vunpack.c.l.b16 %v2195
      %v2241 = vunpack.c.h.b16 %v2195
      %v2242 = vunpack.c.l.b16 %v2196
      %v2243 = vunpack.c.h.b16 %v2196
      %v2244 = vunpack.c.l.b16 %v2197
      %v2245 = vunpack.c.h.b16 %v2197
      %v2246 = vpack.c.b16 %v2214, %v2214
      %v2247 = vpack.c.b16 %v2215, %v2215
      %v2248 = vpack.c.b16 %v2216, %v2216
      %v2249 = vpack.c.b16 %v2217, %v2217
      %v2250 = vpack.c.b16 %v2218, %v2218
      %v2251 = vpack.c.b16 %v2219, %v2219
      %v2252 = vpack.c.b16 %v2220, %v2220
      %v2253 = vpack.c.b16 %v2221, %v2221
      %v2254 = vpack.c.b16 %v2222, %v2222
      %v2255 = vpack.c.b16 %v2223, %v2223
      %v2256 = vpack.c.b16 %v2224, %v2224
      %v2257 = vpack.c.b16 %v2225, %v2225
      %v2258 = vpack.c.b16 %v2226, %v2226
      %v2259 = vpack.c.b16 %v2227, %v2227
      %v2260 = vpack.c.b16 %v2228, %v2228
      %v2261 = vpack.c.b16 %v2229, %v2229
      %v2262 = vpack.c.b16 %v2230, %v2230
      %v2263 = vpack.c.b16 %v2231, %v2231
      %v2264 = vpack.c.b16 %v2232, %v2232
      %v2265 = vpack.c.b16 %v2233, %v2233
      %v2266 = vpack.c.b16 %v2234, %v2234
      %v2267 = vpack.c.b16 %v2235, %v2235
      %v2268 = vpack.c.b16 %v2236, %v2236
      %v2269 = vpack.c.b16 %v2237, %v2237
      %v2270 = vpack.c.b16 %v2238, %v2238
      %v2271 = vpack.c.b16 %v2239, %v2239
      %v2272 = vpack.c.b16 %v2240, %v2240
      %v2273 = vpack.c.b16 %v2241, %v2241
      %v2274 = vpack.c.b16 %v2242, %v2242
      %v2275 = vpack.c.b16 %v2243, %v2243
      %v2276 = vpack.c.b16 %v2244, %v2244
      %v2277 = vpack.c.b16 %v2245, %v2245
      %2310 = vst.msk [vmem:[#allocation3 + $0x4] sm:$0xf] %vm1218, %v2246
      %2311 = vst.msk [vmem:[#allocation3 + $0x10] sm:$0xf] %vm1218, %v2247
      %2312 = vst.msk [vmem:[#allocation3 + $0x1c] sm:$0xf] %vm1218, %v2248
      %2313 = vst.msk [vmem:[#allocation3 + $0x28] sm:$0xf] %vm1218, %v2249
      %2314 = vst.msk [vmem:[#allocation3 + $0x34] sm:$0xf] %vm1218, %v2250
      %2315 = vst.msk [vmem:[#allocation3 + $0x40] sm:$0xf] %vm1218, %v2251
      %2316 = vst.msk [vmem:[#allocation3 + $0x4c] sm:$0xf] %vm1218, %v2252
      %2317 = vst.msk [vmem:[#allocation3 + $0x58] sm:$0xf] %vm1218, %v2253
      %2318 = vst.msk [vmem:[#allocation3 + $0x64] sm:$0xf] %vm1218, %v2254
      %2319 = vst.msk [vmem:[#allocation3 + $0x70] sm:$0xf] %vm1218, %v2255
      %2320 = vst.msk [vmem:[#allocation3 + $0x7c] sm:$0xf] %vm1218, %v2256
      %2321 = vst.msk [vmem:[#allocation3 + $0x88] sm:$0xf] %vm1218, %v2257
      %2322 = vst.msk [vmem:[#allocation3 + $0x94] sm:$0xf] %vm1218, %v2258
      %2323 = vst.msk [vmem:[#allocation3 + $0xa0] sm:$0xf] %vm1218, %v2259
      %2324 = vst.msk [vmem:[#allocation3 + $0xac] sm:$0xf] %vm1218, %v2260
      %2325 = vst.msk [vmem:[#allocation3 + $0xb8] sm:$0xf] %vm1218, %v2261
      %2326 = vst.msk [vmem:[#allocation3 + $0xc4] sm:$0xf] %vm1218, %v2262
      %2327 = vst.msk [vmem:[#allocation3 + $0xd0] sm:$0xf] %vm1218, %v2263
      %2328 = vst.msk [vmem:[#allocation3 + $0xdc] sm:$0xf] %vm1218, %v2264
      %2329 = vst.msk [vmem:[#allocation3 + $0xe8] sm:$0xf] %vm1218, %v2265
      %2330 = vst.msk [vmem:[#allocation3 + $0xf4] sm:$0xf] %vm1218, %v2266
      %2331 = vst.msk [vmem:[#allocation3 + $0x100] sm:$0xf] %vm1218, %v2267
      %2332 = vst.msk [vmem:[#allocation3 + $0x10c] sm:$0xf] %vm1218, %v2268
      %2333 = vst.msk [vmem:[#allocation3 + $0x118] sm:$0xf] %vm1218, %v2269
      %2334 = vst.msk [vmem:[#allocation3 + $0x124] sm:$0xf] %vm1218, %v2270
      %2335 = vst.msk [vmem:[#allocation3 + $0x130] sm:$0xf] %vm1218, %v2271
      %2336 = vst.msk [vmem:[#allocation3 + $0x13c] sm:$0xf] %vm1218, %v2272
      %2337 = vst.msk [vmem:[#allocation3 + $0x148] sm:$0xf] %vm1218, %v2273
      %2338 = vst.msk [vmem:[#allocation3 + $0x154] sm:$0xf] %vm1218, %v2274
      %2339 = vst.msk [vmem:[#allocation3 + $0x160] sm:$0xf] %vm1218, %v2275
      %2340 = vst.msk [vmem:[#allocation3 + $0x16c] sm:$0xf] %vm1218, %v2276
      %2341 = vst.msk [vmem:[#allocation3 + $0x178] sm:$0xf] %vm1218, %v2277
      %v2342 = vld [vmem:[#allocation2 + $0x12] sm:$0xff]
      %v2343 = vld [vmem:[#allocation2 + $0x1a] sm:$0xff]
      %v2344 = vld [vmem:[#allocation2 + $0x22] sm:$0xff]
      %v2345 = vld [vmem:[#allocation2 + $0x2a] sm:$0xff]
      %v2346 = vld [vmem:[#allocation2 + $0x32] sm:$0xff]
      %v2347 = vld [vmem:[#allocation2 + $0x3a] sm:$0xff]
      %v2348 = vld [vmem:[#allocation2 + $0x42] sm:$0xff]
      %v2349 = vld [vmem:[#allocation2 + $0x4a] sm:$0xff]
      %v2350 = vld [vmem:[#allocation2 + $0x52] sm:$0xff]
      %v2351 = vld [vmem:[#allocation2 + $0x5a] sm:$0xff]
      %v2352 = vld [vmem:[#allocation2 + $0x62] sm:$0xff]
      %v2353 = vld [vmem:[#allocation2 + $0x6a] sm:$0xff]
      %v2354 = vld [vmem:[#allocation2 + $0x72] sm:$0xff]
      %v2355 = vld [vmem:[#allocation2 + $0x7a] sm:$0xff]
      %v2356 = vld [vmem:[#allocation2 + $0x82] sm:$0xff]
      %v2357 = vld [vmem:[#allocation2 + $0x8a] sm:$0xff]
      %v2358 = vld [vmem:[#allocation2 + $0x92] sm:$0xff]
      %v2359 = vld [vmem:[#allocation2 + $0x9a] sm:$0xff]
      %v2360 = vld [vmem:[#allocation2 + $0xa2] sm:$0xff]
      %v2361 = vld [vmem:[#allocation2 + $0xaa] sm:$0xff]
      %v2362 = vld [vmem:[#allocation2 + $0xb2] sm:$0xff]
      %v2363 = vld [vmem:[#allocation2 + $0xba] sm:$0xff]
      %v2364 = vld [vmem:[#allocation2 + $0xc2] sm:$0xff]
      %v2365 = vld [vmem:[#allocation2 + $0xca] sm:$0xff]
      %v2366 = vld [vmem:[#allocation2 + $0xd2] sm:$0xff]
      %v2367 = vld [vmem:[#allocation2 + $0xda] sm:$0xff]
      %v2368 = vld [vmem:[#allocation2 + $0xe2] sm:$0xff]
      %v2369 = vld [vmem:[#allocation2 + $0xea] sm:$0xff]
      %v2370 = vld [vmem:[#allocation2 + $0xf2] sm:$0xff]
      %v2371 = vld [vmem:[#allocation2 + $0xfa] sm:$0xff]
      %v2372 = vld [vmem:[#allocation2 + $0x102] sm:$0xff]
      %v2373 = vld [vmem:[#allocation2 + $0x10a] sm:$0xff]
      %v2374 = vsel %vm1572, %v2342, 0.0
      %v2375 = vsel %vm1573, %v2343, 0.0
      %v2376 = vsel %vm1574, %v2344, 0.0
      %v2377 = vsel %vm1575, %v2345, 0.0
      %v2378 = vsel %vm1576, %v2346, 0.0
      %v2379 = vsel %vm1577, %v2347, 0.0
      %v2380 = vsel %vm1578, %v2348, 0.0
      %v2381 = vsel %vm1579, %v2349, 0.0
      %v2382 = vsel %vm1580, %v2350, 0.0
      %v2383 = vsel %vm1581, %v2351, 0.0
      %v2384 = vsel %vm1582, %v2352, 0.0
      %v2385 = vsel %vm1583, %v2353, 0.0
      %v2386 = vsel %vm1584, %v2354, 0.0
      %v2387 = vsel %vm1585, %v2355, 0.0
      %v2388 = vsel %vm1586, %v2356, 0.0
      %v2389 = vsel %vm1587, %v2357, 0.0
      %v2390 = vsel %vm1588, %v2358, 0.0
      %v2391 = vsel %vm1589, %v2359, 0.0
      %v2392 = vsel %vm1590, %v2360, 0.0
      %v2393 = vsel %vm1591, %v2361, 0.0
      %v2394 = vsel %vm1592, %v2362, 0.0
      %v2395 = vsel %vm1593, %v2363, 0.0
      %v2396 = vsel %vm1594, %v2364, 0.0
      %v2397 = vsel %vm1595, %v2365, 0.0
      %v2398 = vsel %vm1596, %v2366, 0.0
      %v2399 = vsel %vm1597, %v2367, 0.0
      %v2400 = vsel %vm1598, %v2368, 0.0
      %v2401 = vsel %vm1599, %v2369, 0.0
      %v2402 = vsel %vm1600, %v2370, 0.0
      %v2403 = vsel %vm1601, %v2371, 0.0
      %v2404 = vsel %vm1602, %v2372, 0.0
      %v2405 = vsel %vm1603, %v2373, 0.0
      %v2406 = vpack.c.bf16 %v2375, %v2374
      %v2407 = vpack.c.bf16 %v2377, %v2376
      %v2408 = vpack.c.bf16 %v2379, %v2378
      %v2409 = vpack.c.bf16 %v2381, %v2380
      %v2410 = vpack.c.bf16 %v2383, %v2382
      %v2411 = vpack.c.bf16 %v2385, %v2384
      %v2412 = vpack.c.bf16 %v2387, %v2386
      %v2413 = vpack.c.bf16 %v2389, %v2388
      %v2414 = vpack.c.bf16 %v2391, %v2390
      %v2415 = vpack.c.bf16 %v2393, %v2392
      %v2416 = vpack.c.bf16 %v2395, %v2394
      %v2417 = vpack.c.bf16 %v2397, %v2396
      %v2418 = vpack.c.bf16 %v2399, %v2398
      %v2419 = vpack.c.bf16 %v2401, %v2400
      %v2420 = vpack.c.bf16 %v2403, %v2402
      %v2421 = vpack.c.bf16 %v2405, %v2404
      %v2438 = vunpack.c.l.b16 %v2406
      %v2439 = vunpack.c.h.b16 %v2406
      %v2440 = vunpack.c.l.b16 %v2407
      %v2441 = vunpack.c.h.b16 %v2407
      %v2442 = vunpack.c.l.b16 %v2408
      %v2443 = vunpack.c.h.b16 %v2408
      %v2444 = vunpack.c.l.b16 %v2409
      %v2445 = vunpack.c.h.b16 %v2409
      %v2446 = vunpack.c.l.b16 %v2410
      %v2447 = vunpack.c.h.b16 %v2410
      %v2448 = vunpack.c.l.b16 %v2411
      %v2449 = vunpack.c.h.b16 %v2411
      %v2450 = vunpack.c.l.b16 %v2412
      %v2451 = vunpack.c.h.b16 %v2412
      %v2452 = vunpack.c.l.b16 %v2413
      %v2453 = vunpack.c.h.b16 %v2413
      %v2454 = vunpack.c.l.b16 %v2414
      %v2455 = vunpack.c.h.b16 %v2414
      %v2456 = vunpack.c.l.b16 %v2415
      %v2457 = vunpack.c.h.b16 %v2415
      %v2458 = vunpack.c.l.b16 %v2416
      %v2459 = vunpack.c.h.b16 %v2416
      %v2460 = vunpack.c.l.b16 %v2417
      %v2461 = vunpack.c.h.b16 %v2417
      %v2462 = vunpack.c.l.b16 %v2418
      %v2463 = vunpack.c.h.b16 %v2418
      %v2464 = vunpack.c.l.b16 %v2419
      %v2465 = vunpack.c.h.b16 %v2419
      %v2466 = vunpack.c.l.b16 %v2420
      %v2467 = vunpack.c.h.b16 %v2420
      %v2468 = vunpack.c.l.b16 %v2421
      %v2469 = vunpack.c.h.b16 %v2421
      %v2470 = vpack.c.b16 %v2438, %v2438
      %v2471 = vpack.c.b16 %v2439, %v2439
      %v2472 = vpack.c.b16 %v2440, %v2440
      %v2473 = vpack.c.b16 %v2441, %v2441
      %v2474 = vpack.c.b16 %v2442, %v2442
      %v2475 = vpack.c.b16 %v2443, %v2443
      %v2476 = vpack.c.b16 %v2444, %v2444
      %v2477 = vpack.c.b16 %v2445, %v2445
      %v2478 = vpack.c.b16 %v2446, %v2446
      %v2479 = vpack.c.b16 %v2447, %v2447
      %v2480 = vpack.c.b16 %v2448, %v2448
      %v2481 = vpack.c.b16 %v2449, %v2449
      %v2482 = vpack.c.b16 %v2450, %v2450
      %v2483 = vpack.c.b16 %v2451, %v2451
      %v2484 = vpack.c.b16 %v2452, %v2452
      %v2485 = vpack.c.b16 %v2453, %v2453
      %v2486 = vpack.c.b16 %v2454, %v2454
      %v2487 = vpack.c.b16 %v2455, %v2455
      %v2488 = vpack.c.b16 %v2456, %v2456
      %v2489 = vpack.c.b16 %v2457, %v2457
      %v2490 = vpack.c.b16 %v2458, %v2458
      %v2491 = vpack.c.b16 %v2459, %v2459
      %v2492 = vpack.c.b16 %v2460, %v2460
      %v2493 = vpack.c.b16 %v2461, %v2461
      %v2494 = vpack.c.b16 %v2462, %v2462
      %v2495 = vpack.c.b16 %v2463, %v2463
      %v2496 = vpack.c.b16 %v2464, %v2464
      %v2497 = vpack.c.b16 %v2465, %v2465
      %v2498 = vpack.c.b16 %v2466, %v2466
      %v2499 = vpack.c.b16 %v2467, %v2467
      %v2500 = vpack.c.b16 %v2468, %v2468
      %v2501 = vpack.c.b16 %v2469, %v2469
      %2502 = vrot.lane.b32.xlu0 %v2470, 32
      %v2503 = vpop.permute.xlu0 %2502
      %2504 = vrot.lane.b32.xlu0 %v2471, 32
      %v2505 = vpop.permute.xlu0 %2504
      %2506 = vrot.lane.b32.xlu0 %v2472, 32
      %v2507 = vpop.permute.xlu0 %2506
      %2508 = vrot.lane.b32.xlu0 %v2473, 32
      %v2509 = vpop.permute.xlu0 %2508
      %2510 = vrot.lane.b32.xlu0 %v2474, 32
      %v2511 = vpop.permute.xlu0 %2510
      %2512 = vrot.lane.b32.xlu0 %v2475, 32
      %v2513 = vpop.permute.xlu0 %2512
      %2514 = vrot.lane.b32.xlu0 %v2476, 32
      %v2515 = vpop.permute.xlu0 %2514
      %2516 = vrot.lane.b32.xlu0 %v2477, 32
      %v2517 = vpop.permute.xlu0 %2516
      %2518 = vrot.lane.b32.xlu0 %v2478, 32
      %v2519 = vpop.permute.xlu0 %2518
      %2520 = vrot.lane.b32.xlu0 %v2479, 32
      %v2521 = vpop.permute.xlu0 %2520
      %2522 = vrot.lane.b32.xlu0 %v2480, 32
      %v2523 = vpop.permute.xlu0 %2522
      %2524 = vrot.lane.b32.xlu0 %v2481, 32
      %v2525 = vpop.permute.xlu0 %2524
      %2526 = vrot.lane.b32.xlu0 %v2482, 32
      %v2527 = vpop.permute.xlu0 %2526
      %2528 = vrot.lane.b32.xlu0 %v2483, 32
      %v2529 = vpop.permute.xlu0 %2528
      %2530 = vrot.lane.b32.xlu0 %v2484, 32
      %v2531 = vpop.permute.xlu0 %2530
      %2532 = vrot.lane.b32.xlu0 %v2485, 32
      %v2533 = vpop.permute.xlu0 %2532
      %2534 = vrot.lane.b32.xlu0 %v2486, 32
      %v2535 = vpop.permute.xlu0 %2534
      %2536 = vrot.lane.b32.xlu0 %v2487, 32
      %v2537 = vpop.permute.xlu0 %2536
      %2538 = vrot.lane.b32.xlu0 %v2488, 32
      %v2539 = vpop.permute.xlu0 %2538
      %2540 = vrot.lane.b32.xlu0 %v2489, 32
      %v2541 = vpop.permute.xlu0 %2540
      %2542 = vrot.lane.b32.xlu0 %v2490, 32
      %v2543 = vpop.permute.xlu0 %2542
      %2544 = vrot.lane.b32.xlu0 %v2491, 32
      %v2545 = vpop.permute.xlu0 %2544
      %2546 = vrot.lane.b32.xlu0 %v2492, 32
      %v2547 = vpop.permute.xlu0 %2546
      %2548 = vrot.lane.b32.xlu0 %v2493, 32
      %v2549 = vpop.permute.xlu0 %2548
      %2550 = vrot.lane.b32.xlu0 %v2494, 32
      %v2551 = vpop.permute.xlu0 %2550
      %2552 = vrot.lane.b32.xlu0 %v2495, 32
      %v2553 = vpop.permute.xlu0 %2552
      %2554 = vrot.lane.b32.xlu0 %v2496, 32
      %v2555 = vpop.permute.xlu0 %2554
      %2556 = vrot.lane.b32.xlu0 %v2497, 32
      %v2557 = vpop.permute.xlu0 %2556
      %2558 = vrot.lane.b32.xlu0 %v2498, 32
      %v2559 = vpop.permute.xlu0 %2558
      %2560 = vrot.lane.b32.xlu0 %v2499, 32
      %v2561 = vpop.permute.xlu0 %2560
      %2562 = vrot.lane.b32.xlu0 %v2500, 32
      %v2563 = vpop.permute.xlu0 %2562
      %2564 = vrot.lane.b32.xlu0 %v2501, 32
      %v2565 = vpop.permute.xlu0 %2564
      %2598 = vst.msk [vmem:[#allocation3 + $0x4] sm:$0xf] %vm1475, %v2503
      %2599 = vst.msk [vmem:[#allocation3 + $0x10] sm:$0xf] %vm1475, %v2505
      %2600 = vst.msk [vmem:[#allocation3 + $0x1c] sm:$0xf] %vm1475, %v2507
      %2601 = vst.msk [vmem:[#allocation3 + $0x28] sm:$0xf] %vm1475, %v2509
      %2602 = vst.msk [vmem:[#allocation3 + $0x34] sm:$0xf] %vm1475, %v2511
      %2603 = vst.msk [vmem:[#allocation3 + $0x40] sm:$0xf] %vm1475, %v2513
      %2604 = vst.msk [vmem:[#allocation3 + $0x4c] sm:$0xf] %vm1475, %v2515
      %2605 = vst.msk [vmem:[#allocation3 + $0x58] sm:$0xf] %vm1475, %v2517
      %2606 = vst.msk [vmem:[#allocation3 + $0x64] sm:$0xf] %vm1475, %v2519
      %2607 = vst.msk [vmem:[#allocation3 + $0x70] sm:$0xf] %vm1475, %v2521
      %2608 = vst.msk [vmem:[#allocation3 + $0x7c] sm:$0xf] %vm1475, %v2523
      %2609 = vst.msk [vmem:[#allocation3 + $0x88] sm:$0xf] %vm1475, %v2525
      %2610 = vst.msk [vmem:[#allocation3 + $0x94] sm:$0xf] %vm1475, %v2527
      %2611 = vst.msk [vmem:[#allocation3 + $0xa0] sm:$0xf] %vm1475, %v2529
      %2612 = vst.msk [vmem:[#allocation3 + $0xac] sm:$0xf] %vm1475, %v2531
      %2613 = vst.msk [vmem:[#allocation3 + $0xb8] sm:$0xf] %vm1475, %v2533
      %2614 = vst.msk [vmem:[#allocation3 + $0xc4] sm:$0xf] %vm1475, %v2535
      %2615 = vst.msk [vmem:[#allocation3 + $0xd0] sm:$0xf] %vm1475, %v2537
      %2616 = vst.msk [vmem:[#allocation3 + $0xdc] sm:$0xf] %vm1475, %v2539
      %2617 = vst.msk [vmem:[#allocation3 + $0xe8] sm:$0xf] %vm1475, %v2541
      %2618 = vst.msk [vmem:[#allocation3 + $0xf4] sm:$0xf] %vm1475, %v2543
      %2619 = vst.msk [vmem:[#allocation3 + $0x100] sm:$0xf] %vm1475, %v2545
      %2620 = vst.msk [vmem:[#allocation3 + $0x10c] sm:$0xf] %vm1475, %v2547
      %2621 = vst.msk [vmem:[#allocation3 + $0x118] sm:$0xf] %vm1475, %v2549
      %2622 = vst.msk [vmem:[#allocation3 + $0x124] sm:$0xf] %vm1475, %v2551
      %2623 = vst.msk [vmem:[#allocation3 + $0x130] sm:$0xf] %vm1475, %v2553
      %2624 = vst.msk [vmem:[#allocation3 + $0x13c] sm:$0xf] %vm1475, %v2555
      %2625 = vst.msk [vmem:[#allocation3 + $0x148] sm:$0xf] %vm1475, %v2557
      %2626 = vst.msk [vmem:[#allocation3 + $0x154] sm:$0xf] %vm1475, %v2559
      %2627 = vst.msk [vmem:[#allocation3 + $0x160] sm:$0xf] %vm1475, %v2561
      %2628 = vst.msk [vmem:[#allocation3 + $0x16c] sm:$0xf] %vm1475, %v2563
      %2629 = vst.msk [vmem:[#allocation3 + $0x178] sm:$0xf] %vm1475, %v2565
      %v2630 = vld [vmem:[#allocation2 + $0x20] sm:$0xff]
      %v2631 = vld [vmem:[#allocation2 + $0x28] sm:$0xff]
      %v2632 = vld [vmem:[#allocation2 + $0x30] sm:$0xff]
      %v2633 = vld [vmem:[#allocation2 + $0x38] sm:$0xff]
      %v2634 = vld [vmem:[#allocation2 + $0x40] sm:$0xff]
      %v2635 = vld [vmem:[#allocation2 + $0x48] sm:$0xff]
      %v2636 = vld [vmem:[#allocation2 + $0x50] sm:$0xff]
      %v2637 = vld [vmem:[#allocation2 + $0x58] sm:$0xff]
      %v2638 = vld [vmem:[#allocation2 + $0x60] sm:$0xff]
      %v2639 = vld [vmem:[#allocation2 + $0x68] sm:$0xff]
      %v2640 = vld [vmem:[#allocation2 + $0x70] sm:$0xff]
      %v2641 = vld [vmem:[#allocation2 + $0x78] sm:$0xff]
      %v2642 = vld [vmem:[#allocation2 + $0x80] sm:$0xff]
      %v2643 = vld [vmem:[#allocation2 + $0x88] sm:$0xff]
      %v2644 = vld [vmem:[#allocation2 + $0x90] sm:$0xff]
      %v2645 = vld [vmem:[#allocation2 + $0x98] sm:$0xff]
      %v2646 = vld [vmem:[#allocation2 + $0xa0] sm:$0xff]
      %v2647 = vld [vmem:[#allocation2 + $0xa8] sm:$0xff]
      %v2648 = vld [vmem:[#allocation2 + $0xb0] sm:$0xff]
      %v2649 = vld [vmem:[#allocation2 + $0xb8] sm:$0xff]
      %v2650 = vld [vmem:[#allocation2 + $0xc0] sm:$0xff]
      %v2651 = vld [vmem:[#allocation2 + $0xc8] sm:$0xff]
      %v2652 = vld [vmem:[#allocation2 + $0xd0] sm:$0xff]
      %v2653 = vld [vmem:[#allocation2 + $0xd8] sm:$0xff]
      %v2654 = vld [vmem:[#allocation2 + $0xe0] sm:$0xff]
      %v2655 = vld [vmem:[#allocation2 + $0xe8] sm:$0xff]
      %v2656 = vld [vmem:[#allocation2 + $0xf0] sm:$0xff]
      %v2657 = vld [vmem:[#allocation2 + $0xf8] sm:$0xff]
      %v2658 = vld [vmem:[#allocation2 + $0x100] sm:$0xff]
      %v2659 = vld [vmem:[#allocation2 + $0x108] sm:$0xff]
      %v2660 = vld [vmem:[#allocation2 + $0x110] sm:$0xff]
      %v2661 = vld [vmem:[#allocation2 + $0x118] sm:$0xff]
      %v2662 = vsel %vm1026, %v2630, 0.0
      %v2663 = vsel %vm1027, %v2631, 0.0
      %v2664 = vsel %vm1028, %v2632, 0.0
      %v2665 = vsel %vm1029, %v2633, 0.0
      %v2666 = vsel %vm1030, %v2634, 0.0
      %v2667 = vsel %vm1031, %v2635, 0.0
      %v2668 = vsel %vm1032, %v2636, 0.0
      %v2669 = vsel %vm1033, %v2637, 0.0
      %v2670 = vsel %vm1034, %v2638, 0.0
      %v2671 = vsel %vm1035, %v2639, 0.0
      %v2672 = vsel %vm1036, %v2640, 0.0
      %v2673 = vsel %vm1037, %v2641, 0.0
      %v2674 = vsel %vm1038, %v2642, 0.0
      %v2675 = vsel %vm1039, %v2643, 0.0
      %v2676 = vsel %vm1040, %v2644, 0.0
      %v2677 = vsel %vm1041, %v2645, 0.0
      %v2678 = vsel %vm1042, %v2646, 0.0
      %v2679 = vsel %vm1043, %v2647, 0.0
      %v2680 = vsel %vm1044, %v2648, 0.0
      %v2681 = vsel %vm1045, %v2649, 0.0
      %v2682 = vsel %vm1046, %v2650, 0.0
      %v2683 = vsel %vm1047, %v2651, 0.0
      %v2684 = vsel %vm1048, %v2652, 0.0
      %v2685 = vsel %vm1049, %v2653, 0.0
      %v2686 = vsel %vm1050, %v2654, 0.0
      %v2687 = vsel %vm1051, %v2655, 0.0
      %v2688 = vsel %vm1052, %v2656, 0.0
      %v2689 = vsel %vm1053, %v2657, 0.0
      %v2690 = vsel %vm1054, %v2658, 0.0
      %v2691 = vsel %vm1055, %v2659, 0.0
      %v2692 = vsel %vm1056, %v2660, 0.0
      %v2693 = vsel %vm1057, %v2661, 0.0
      %v2694 = vpack.c.bf16 %v2663, %v2662
      %v2695 = vpack.c.bf16 %v2665, %v2664
      %v2696 = vpack.c.bf16 %v2667, %v2666
      %v2697 = vpack.c.bf16 %v2669, %v2668
      %v2698 = vpack.c.bf16 %v2671, %v2670
      %v2699 = vpack.c.bf16 %v2673, %v2672
      %v2700 = vpack.c.bf16 %v2675, %v2674
      %v2701 = vpack.c.bf16 %v2677, %v2676
      %v2702 = vpack.c.bf16 %v2679, %v2678
      %v2703 = vpack.c.bf16 %v2681, %v2680
      %v2704 = vpack.c.bf16 %v2683, %v2682
      %v2705 = vpack.c.bf16 %v2685, %v2684
      %v2706 = vpack.c.bf16 %v2687, %v2686
      %v2707 = vpack.c.bf16 %v2689, %v2688
      %v2708 = vpack.c.bf16 %v2691, %v2690
      %v2709 = vpack.c.bf16 %v2693, %v2692
      %v2726 = vunpack.c.l.b16 %v2694
      %v2727 = vunpack.c.h.b16 %v2694
      %v2728 = vunpack.c.l.b16 %v2695
      %v2729 = vunpack.c.h.b16 %v2695
      %v2730 = vunpack.c.l.b16 %v2696
      %v2731 = vunpack.c.h.b16 %v2696
      %v2732 = vunpack.c.l.b16 %v2697
      %v2733 = vunpack.c.h.b16 %v2697
      %v2734 = vunpack.c.l.b16 %v2698
      %v2735 = vunpack.c.h.b16 %v2698
      %v2736 = vunpack.c.l.b16 %v2699
      %v2737 = vunpack.c.h.b16 %v2699
      %v2738 = vunpack.c.l.b16 %v2700
      %v2739 = vunpack.c.h.b16 %v2700
      %v2740 = vunpack.c.l.b16 %v2701
      %v2741 = vunpack.c.h.b16 %v2701
      %v2742 = vunpack.c.l.b16 %v2702
      %v2743 = vunpack.c.h.b16 %v2702
      %v2744 = vunpack.c.l.b16 %v2703
      %v2745 = vunpack.c.h.b16 %v2703
      %v2746 = vunpack.c.l.b16 %v2704
      %v2747 = vunpack.c.h.b16 %v2704
      %v2748 = vunpack.c.l.b16 %v2705
      %v2749 = vunpack.c.h.b16 %v2705
      %v2750 = vunpack.c.l.b16 %v2706
      %v2751 = vunpack.c.h.b16 %v2706
      %v2752 = vunpack.c.l.b16 %v2707
      %v2753 = vunpack.c.h.b16 %v2707
      %v2754 = vunpack.c.l.b16 %v2708
      %v2755 = vunpack.c.h.b16 %v2708
      %v2756 = vunpack.c.l.b16 %v2709
      %v2757 = vunpack.c.h.b16 %v2709
      %v2758 = vpack.c.b16 %v2726, %v2726
      %v2759 = vpack.c.b16 %v2727, %v2727
      %v2760 = vpack.c.b16 %v2728, %v2728
      %v2761 = vpack.c.b16 %v2729, %v2729
      %v2762 = vpack.c.b16 %v2730, %v2730
      %v2763 = vpack.c.b16 %v2731, %v2731
      %v2764 = vpack.c.b16 %v2732, %v2732
      %v2765 = vpack.c.b16 %v2733, %v2733
      %v2766 = vpack.c.b16 %v2734, %v2734
      %v2767 = vpack.c.b16 %v2735, %v2735
      %v2768 = vpack.c.b16 %v2736, %v2736
      %v2769 = vpack.c.b16 %v2737, %v2737
      %v2770 = vpack.c.b16 %v2738, %v2738
      %v2771 = vpack.c.b16 %v2739, %v2739
      %v2772 = vpack.c.b16 %v2740, %v2740
      %v2773 = vpack.c.b16 %v2741, %v2741
      %v2774 = vpack.c.b16 %v2742, %v2742
      %v2775 = vpack.c.b16 %v2743, %v2743
      %v2776 = vpack.c.b16 %v2744, %v2744
      %v2777 = vpack.c.b16 %v2745, %v2745
      %v2778 = vpack.c.b16 %v2746, %v2746
      %v2779 = vpack.c.b16 %v2747, %v2747
      %v2780 = vpack.c.b16 %v2748, %v2748
      %v2781 = vpack.c.b16 %v2749, %v2749
      %v2782 = vpack.c.b16 %v2750, %v2750
      %v2783 = vpack.c.b16 %v2751, %v2751
      %v2784 = vpack.c.b16 %v2752, %v2752
      %v2785 = vpack.c.b16 %v2753, %v2753
      %v2786 = vpack.c.b16 %v2754, %v2754
      %v2787 = vpack.c.b16 %v2755, %v2755
      %v2788 = vpack.c.b16 %v2756, %v2756
      %v2789 = vpack.c.b16 %v2757, %v2757
      %2790 = vrot.lane.b32.xlu0 %v2758, 64
      %v2791 = vpop.permute.xlu0 %2790
      %2792 = vrot.lane.b32.xlu0 %v2759, 64
      %v2793 = vpop.permute.xlu0 %2792
      %2794 = vrot.lane.b32.xlu0 %v2760, 64
      %v2795 = vpop.permute.xlu0 %2794
      %2796 = vrot.lane.b32.xlu0 %v2761, 64
      %v2797 = vpop.permute.xlu0 %2796
      %2798 = vrot.lane.b32.xlu0 %v2762, 64
      %v2799 = vpop.permute.xlu0 %2798
      %2800 = vrot.lane.b32.xlu0 %v2763, 64
      %v2801 = vpop.permute.xlu0 %2800
      %2802 = vrot.lane.b32.xlu0 %v2764, 64
      %v2803 = vpop.permute.xlu0 %2802
      %2804 = vrot.lane.b32.xlu0 %v2765, 64
      %v2805 = vpop.permute.xlu0 %2804
      %2806 = vrot.lane.b32.xlu0 %v2766, 64
      %v2807 = vpop.permute.xlu0 %2806
      %2808 = vrot.lane.b32.xlu0 %v2767, 64
      %v2809 = vpop.permute.xlu0 %2808
      %2810 = vrot.lane.b32.xlu0 %v2768, 64
      %v2811 = vpop.permute.xlu0 %2810
      %2812 = vrot.lane.b32.xlu0 %v2769, 64
      %v2813 = vpop.permute.xlu0 %2812
      %2814 = vrot.lane.b32.xlu0 %v2770, 64
      %v2815 = vpop.permute.xlu0 %2814
      %2816 = vrot.lane.b32.xlu0 %v2771, 64
      %v2817 = vpop.permute.xlu0 %2816
      %2818 = vrot.lane.b32.xlu0 %v2772, 64
      %v2819 = vpop.permute.xlu0 %2818
      %2820 = vrot.lane.b32.xlu0 %v2773, 64
      %v2821 = vpop.permute.xlu0 %2820
      %2822 = vrot.lane.b32.xlu0 %v2774, 64
      %v2823 = vpop.permute.xlu0 %2822
      %2824 = vrot.lane.b32.xlu0 %v2775, 64
      %v2825 = vpop.permute.xlu0 %2824
      %2826 = vrot.lane.b32.xlu0 %v2776, 64
      %v2827 = vpop.permute.xlu0 %2826
      %2828 = vrot.lane.b32.xlu0 %v2777, 64
      %v2829 = vpop.permute.xlu0 %2828
      %2830 = vrot.lane.b32.xlu0 %v2778, 64
      %v2831 = vpop.permute.xlu0 %2830
      %2832 = vrot.lane.b32.xlu0 %v2779, 64
      %v2833 = vpop.permute.xlu0 %2832
      %2834 = vrot.lane.b32.xlu0 %v2780, 64
      %v2835 = vpop.permute.xlu0 %2834
      %2836 = vrot.lane.b32.xlu0 %v2781, 64
      %v2837 = vpop.permute.xlu0 %2836
      %2838 = vrot.lane.b32.xlu0 %v2782, 64
      %v2839 = vpop.permute.xlu0 %2838
      %2840 = vrot.lane.b32.xlu0 %v2783, 64
      %v2841 = vpop.permute.xlu0 %2840
      %2842 = vrot.lane.b32.xlu0 %v2784, 64
      %v2843 = vpop.permute.xlu0 %2842
      %2844 = vrot.lane.b32.xlu0 %v2785, 64
      %v2845 = vpop.permute.xlu0 %2844
      %2846 = vrot.lane.b32.xlu0 %v2786, 64
      %v2847 = vpop.permute.xlu0 %2846
      %2848 = vrot.lane.b32.xlu0 %v2787, 64
      %v2849 = vpop.permute.xlu0 %2848
      %2850 = vrot.lane.b32.xlu0 %v2788, 64
      %v2851 = vpop.permute.xlu0 %2850
      %2852 = vrot.lane.b32.xlu0 %v2789, 64
      %v2853 = vpop.permute.xlu0 %2852
      %2886 = vst.msk [vmem:[#allocation3 + $0x4] sm:$0xf] %vm1828, %v2791
      %2887 = vst.msk [vmem:[#allocation3 + $0x10] sm:$0xf] %vm1828, %v2793
      %2888 = vst.msk [vmem:[#allocation3 + $0x1c] sm:$0xf] %vm1828, %v2795
      %2889 = vst.msk [vmem:[#allocation3 + $0x28] sm:$0xf] %vm1828, %v2797
      %2890 = vst.msk [vmem:[#allocation3 + $0x34] sm:$0xf] %vm1828, %v2799
      %2891 = vst.msk [vmem:[#allocation3 + $0x40] sm:$0xf] %vm1828, %v2801
      %2892 = vst.msk [vmem:[#allocation3 + $0x4c] sm:$0xf] %vm1828, %v2803
      %2893 = vst.msk [vmem:[#allocation3 + $0x58] sm:$0xf] %vm1828, %v2805
      %2894 = vst.msk [vmem:[#allocation3 + $0x64] sm:$0xf] %vm1828, %v2807
      %2895 = vst.msk [vmem:[#allocation3 + $0x70] sm:$0xf] %vm1828, %v2809
      %2896 = vst.msk [vmem:[#allocation3 + $0x7c] sm:$0xf] %vm1828, %v2811
      %2897 = vst.msk [vmem:[#allocation3 + $0x88] sm:$0xf] %vm1828, %v2813
      %2898 = vst.msk [vmem:[#allocation3 + $0x94] sm:$0xf] %vm1828, %v2815
      %2899 = vst.msk [vmem:[#allocation3 + $0xa0] sm:$0xf] %vm1828, %v2817
      %2900 = vst.msk [vmem:[#allocation3 + $0xac] sm:$0xf] %vm1828, %v2819
      %2901 = vst.msk [vmem:[#allocation3 + $0xb8] sm:$0xf] %vm1828, %v2821
      %2902 = vst.msk [vmem:[#allocation3 + $0xc4] sm:$0xf] %vm1828, %v2823
      %2903 = vst.msk [vmem:[#allocation3 + $0xd0] sm:$0xf] %vm1828, %v2825
      %2904 = vst.msk [vmem:[#allocation3 + $0xdc] sm:$0xf] %vm1828, %v2827
      %2905 = vst.msk [vmem:[#allocation3 + $0xe8] sm:$0xf] %vm1828, %v2829
      %2906 = vst.msk [vmem:[#allocation3 + $0xf4] sm:$0xf] %vm1828, %v2831
      %2907 = vst.msk [vmem:[#allocation3 + $0x100] sm:$0xf] %vm1828, %v2833
      %2908 = vst.msk [vmem:[#allocation3 + $0x10c] sm:$0xf] %vm1828, %v2835
      %2909 = vst.msk [vmem:[#allocation3 + $0x118] sm:$0xf] %vm1828, %v2837
      %2910 = vst.msk [vmem:[#allocation3 + $0x124] sm:$0xf] %vm1828, %v2839
      %2911 = vst.msk [vmem:[#allocation3 + $0x130] sm:$0xf] %vm1828, %v2841
      %2912 = vst.msk [vmem:[#allocation3 + $0x13c] sm:$0xf] %vm1828, %v2843
      %2913 = vst.msk [vmem:[#allocation3 + $0x148] sm:$0xf] %vm1828, %v2845
      %2914 = vst.msk [vmem:[#allocation3 + $0x154] sm:$0xf] %vm1828, %v2847
      %2915 = vst.msk [vmem:[#allocation3 + $0x160] sm:$0xf] %vm1828, %v2849
      %2916 = vst.msk [vmem:[#allocation3 + $0x16c] sm:$0xf] %vm1828, %v2851
      %2917 = vst.msk [vmem:[#allocation3 + $0x178] sm:$0xf] %vm1828, %v2853
      %v2918 = vld [vmem:[#allocation2 + $0x21] sm:$0xff]
      %v2919 = vld [vmem:[#allocation2 + $0x29] sm:$0xff]
      %v2920 = vld [vmem:[#allocation2 + $0x31] sm:$0xff]
      %v2921 = vld [vmem:[#allocation2 + $0x39] sm:$0xff]
      %v2922 = vld [vmem:[#allocation2 + $0x41] sm:$0xff]
      %v2923 = vld [vmem:[#allocation2 + $0x49] sm:$0xff]
      %v2924 = vld [vmem:[#allocation2 + $0x51] sm:$0xff]
      %v2925 = vld [vmem:[#allocation2 + $0x59] sm:$0xff]
      %v2926 = vld [vmem:[#allocation2 + $0x61] sm:$0xff]
      %v2927 = vld [vmem:[#allocation2 + $0x69] sm:$0xff]
      %v2928 = vld [vmem:[#allocation2 + $0x71] sm:$0xff]
      %v2929 = vld [vmem:[#allocation2 + $0x79] sm:$0xff]
      %v2930 = vld [vmem:[#allocation2 + $0x81] sm:$0xff]
      %v2931 = vld [vmem:[#allocation2 + $0x89] sm:$0xff]
      %v2932 = vld [vmem:[#allocation2 + $0x91] sm:$0xff]
      %v2933 = vld [vmem:[#allocation2 + $0x99] sm:$0xff]
      %v2934 = vld [vmem:[#allocation2 + $0xa1] sm:$0xff]
      %v2935 = vld [vmem:[#allocation2 + $0xa9] sm:$0xff]
      %v2936 = vld [vmem:[#allocation2 + $0xb1] sm:$0xff]
      %v2937 = vld [vmem:[#allocation2 + $0xb9] sm:$0xff]
      %v2938 = vld [vmem:[#allocation2 + $0xc1] sm:$0xff]
      %v2939 = vld [vmem:[#allocation2 + $0xc9] sm:$0xff]
      %v2940 = vld [vmem:[#allocation2 + $0xd1] sm:$0xff]
      %v2941 = vld [vmem:[#allocation2 + $0xd9] sm:$0xff]
      %v2942 = vld [vmem:[#allocation2 + $0xe1] sm:$0xff]
      %v2943 = vld [vmem:[#allocation2 + $0xe9] sm:$0xff]
      %v2944 = vld [vmem:[#allocation2 + $0xf1] sm:$0xff]
      %v2945 = vld [vmem:[#allocation2 + $0xf9] sm:$0xff]
      %v2946 = vld [vmem:[#allocation2 + $0x101] sm:$0xff]
      %v2947 = vld [vmem:[#allocation2 + $0x109] sm:$0xff]
      %v2948 = vld [vmem:[#allocation2 + $0x111] sm:$0xff]
      %v2949 = vld [vmem:[#allocation2 + $0x119] sm:$0xff]
      %v2950 = vpack.c.bf16 %v2919, %v2918
      %v2951 = vpack.c.bf16 %v2921, %v2920
      %v2952 = vpack.c.bf16 %v2923, %v2922
      %v2953 = vpack.c.bf16 %v2925, %v2924
      %v2954 = vpack.c.bf16 %v2927, %v2926
      %v2955 = vpack.c.bf16 %v2929, %v2928
      %v2956 = vpack.c.bf16 %v2931, %v2930
      %v2957 = vpack.c.bf16 %v2933, %v2932
      %v2958 = vpack.c.bf16 %v2935, %v2934
      %v2959 = vpack.c.bf16 %v2937, %v2936
      %v2960 = vpack.c.bf16 %v2939, %v2938
      %v2961 = vpack.c.bf16 %v2941, %v2940
      %v2962 = vpack.c.bf16 %v2943, %v2942
      %v2963 = vpack.c.bf16 %v2945, %v2944
      %v2964 = vpack.c.bf16 %v2947, %v2946
      %v2965 = vpack.c.bf16 %v2949, %v2948
      %v2982 = vunpack.c.l.b16 %v2950
      %v2983 = vunpack.c.h.b16 %v2950
      %v2984 = vunpack.c.l.b16 %v2951
      %v2985 = vunpack.c.h.b16 %v2951
      %v2986 = vunpack.c.l.b16 %v2952
      %v2987 = vunpack.c.h.b16 %v2952
      %v2988 = vunpack.c.l.b16 %v2953
      %v2989 = vunpack.c.h.b16 %v2953
      %v2990 = vunpack.c.l.b16 %v2954
      %v2991 = vunpack.c.h.b16 %v2954
      %v2992 = vunpack.c.l.b16 %v2955
      %v2993 = vunpack.c.h.b16 %v2955
      %v2994 = vunpack.c.l.b16 %v2956
      %v2995 = vunpack.c.h.b16 %v2956
      %v2996 = vunpack.c.l.b16 %v2957
      %v2997 = vunpack.c.h.b16 %v2957
      %v2998 = vunpack.c.l.b16 %v2958
      %v2999 = vunpack.c.h.b16 %v2958
      %v3000 = vunpack.c.l.b16 %v2959
      %v3001 = vunpack.c.h.b16 %v2959
      %v3002 = vunpack.c.l.b16 %v2960
      %v3003 = vunpack.c.h.b16 %v2960
      %v3004 = vunpack.c.l.b16 %v2961
      %v3005 = vunpack.c.h.b16 %v2961
      %v3006 = vunpack.c.l.b16 %v2962
      %v3007 = vunpack.c.h.b16 %v2962
      %v3008 = vunpack.c.l.b16 %v2963
      %v3009 = vunpack.c.h.b16 %v2963
      %v3010 = vunpack.c.l.b16 %v2964
      %v3011 = vunpack.c.h.b16 %v2964
      %v3012 = vunpack.c.l.b16 %v2965
      %v3013 = vunpack.c.h.b16 %v2965
      %v3014 = vpack.c.b16 %v2982, %v2982
      %v3015 = vpack.c.b16 %v2983, %v2983
      %v3016 = vpack.c.b16 %v2984, %v2984
      %v3017 = vpack.c.b16 %v2985, %v2985
      %v3018 = vpack.c.b16 %v2986, %v2986
      %v3019 = vpack.c.b16 %v2987, %v2987
      %v3020 = vpack.c.b16 %v2988, %v2988
      %v3021 = vpack.c.b16 %v2989, %v2989
      %v3022 = vpack.c.b16 %v2990, %v2990
      %v3023 = vpack.c.b16 %v2991, %v2991
      %v3024 = vpack.c.b16 %v2992, %v2992
      %v3025 = vpack.c.b16 %v2993, %v2993
      %v3026 = vpack.c.b16 %v2994, %v2994
      %v3027 = vpack.c.b16 %v2995, %v2995
      %v3028 = vpack.c.b16 %v2996, %v2996
      %v3029 = vpack.c.b16 %v2997, %v2997
      %v3030 = vpack.c.b16 %v2998, %v2998
      %v3031 = vpack.c.b16 %v2999, %v2999
      %v3032 = vpack.c.b16 %v3000, %v3000
      %v3033 = vpack.c.b16 %v3001, %v3001
      %v3034 = vpack.c.b16 %v3002, %v3002
      %v3035 = vpack.c.b16 %v3003, %v3003
      %v3036 = vpack.c.b16 %v3004, %v3004
      %v3037 = vpack.c.b16 %v3005, %v3005
      %v3038 = vpack.c.b16 %v3006, %v3006
      %v3039 = vpack.c.b16 %v3007, %v3007
      %v3040 = vpack.c.b16 %v3008, %v3008
      %v3041 = vpack.c.b16 %v3009, %v3009
      %v3042 = vpack.c.b16 %v3010, %v3010
      %v3043 = vpack.c.b16 %v3011, %v3011
      %v3044 = vpack.c.b16 %v3012, %v3012
      %v3045 = vpack.c.b16 %v3013, %v3013
      %3046 = vrot.lane.b32.xlu0 %v3014, 96
      %v3047 = vpop.permute.xlu0 %3046
      %3048 = vrot.lane.b32.xlu0 %v3015, 96
      %v3049 = vpop.permute.xlu0 %3048
      %3050 = vrot.lane.b32.xlu0 %v3016, 96
      %v3051 = vpop.permute.xlu0 %3050
      %3052 = vrot.lane.b32.xlu0 %v3017, 96
      %v3053 = vpop.permute.xlu0 %3052
      %3054 = vrot.lane.b32.xlu0 %v3018, 96
      %v3055 = vpop.permute.xlu0 %3054
      %3056 = vrot.lane.b32.xlu0 %v3019, 96
      %v3057 = vpop.permute.xlu0 %3056
      %3058 = vrot.lane.b32.xlu0 %v3020, 96
      %v3059 = vpop.permute.xlu0 %3058
      %3060 = vrot.lane.b32.xlu0 %v3021, 96
      %v3061 = vpop.permute.xlu0 %3060
      %3062 = vrot.lane.b32.xlu0 %v3022, 96
      %v3063 = vpop.permute.xlu0 %3062
      %3064 = vrot.lane.b32.xlu0 %v3023, 96
      %v3065 = vpop.permute.xlu0 %3064
      %3066 = vrot.lane.b32.xlu0 %v3024, 96
      %v3067 = vpop.permute.xlu0 %3066
      %3068 = vrot.lane.b32.xlu0 %v3025, 96
      %v3069 = vpop.permute.xlu0 %3068
      %3070 = vrot.lane.b32.xlu0 %v3026, 96
      %v3071 = vpop.permute.xlu0 %3070
      %3072 = vrot.lane.b32.xlu0 %v3027, 96
      %v3073 = vpop.permute.xlu0 %3072
      %3074 = vrot.lane.b32.xlu0 %v3028, 96
      %v3075 = vpop.permute.xlu0 %3074
      %3076 = vrot.lane.b32.xlu0 %v3029, 96
      %v3077 = vpop.permute.xlu0 %3076
      %3078 = vrot.lane.b32.xlu0 %v3030, 96
      %v3079 = vpop.permute.xlu0 %3078
      %3080 = vrot.lane.b32.xlu0 %v3031, 96
      %v3081 = vpop.permute.xlu0 %3080
      %3082 = vrot.lane.b32.xlu0 %v3032, 96
      %v3083 = vpop.permute.xlu0 %3082
      %3084 = vrot.lane.b32.xlu0 %v3033, 96
      %v3085 = vpop.permute.xlu0 %3084
      %3086 = vrot.lane.b32.xlu0 %v3034, 96
      %v3087 = vpop.permute.xlu0 %3086
      %3088 = vrot.lane.b32.xlu0 %v3035, 96
      %v3089 = vpop.permute.xlu0 %3088
      %3090 = vrot.lane.b32.xlu0 %v3036, 96
      %v3091 = vpop.permute.xlu0 %3090
      %3092 = vrot.lane.b32.xlu0 %v3037, 96
      %v3093 = vpop.permute.xlu0 %3092
      %3094 = vrot.lane.b32.xlu0 %v3038, 96
      %v3095 = vpop.permute.xlu0 %3094
      %3096 = vrot.lane.b32.xlu0 %v3039, 96
      %v3097 = vpop.permute.xlu0 %3096
      %3098 = vrot.lane.b32.xlu0 %v3040, 96
      %v3099 = vpop.permute.xlu0 %3098
      %3100 = vrot.lane.b32.xlu0 %v3041, 96
      %v3101 = vpop.permute.xlu0 %3100
      %3102 = vrot.lane.b32.xlu0 %v3042, 96
      %v3103 = vpop.permute.xlu0 %3102
      %3104 = vrot.lane.b32.xlu0 %v3043, 96
      %v3105 = vpop.permute.xlu0 %3104
      %3106 = vrot.lane.b32.xlu0 %v3044, 96
      %v3107 = vpop.permute.xlu0 %3106
      %3108 = vrot.lane.b32.xlu0 %v3045, 96
      %v3109 = vpop.permute.xlu0 %3108
      %3142 = vst.msk [vmem:[#allocation3 + $0x4] sm:$0xf] %vm2117, %v3047
      %3143 = vst.msk [vmem:[#allocation3 + $0x10] sm:$0xf] %vm2117, %v3049
      %3144 = vst.msk [vmem:[#allocation3 + $0x1c] sm:$0xf] %vm2117, %v3051
      %3145 = vst.msk [vmem:[#allocation3 + $0x28] sm:$0xf] %vm2117, %v3053
      %3146 = vst.msk [vmem:[#allocation3 + $0x34] sm:$0xf] %vm2117, %v3055
      %3147 = vst.msk [vmem:[#allocation3 + $0x40] sm:$0xf] %vm2117, %v3057
      %3148 = vst.msk [vmem:[#allocation3 + $0x4c] sm:$0xf] %vm2117, %v3059
      %3149 = vst.msk [vmem:[#allocation3 + $0x58] sm:$0xf] %vm2117, %v3061
      %3150 = vst.msk [vmem:[#allocation3 + $0x64] sm:$0xf] %vm2117, %v3063
      %3151 = vst.msk [vmem:[#allocation3 + $0x70] sm:$0xf] %vm2117, %v3065
      %3152 = vst.msk [vmem:[#allocation3 + $0x7c] sm:$0xf] %vm2117, %v3067
      %3153 = vst.msk [vmem:[#allocation3 + $0x88] sm:$0xf] %vm2117, %v3069
      %3154 = vst.msk [vmem:[#allocation3 + $0x94] sm:$0xf] %vm2117, %v3071
      %3155 = vst.msk [vmem:[#allocation3 + $0xa0] sm:$0xf] %vm2117, %v3073
      %3156 = vst.msk [vmem:[#allocation3 + $0xac] sm:$0xf] %vm2117, %v3075
      %3157 = vst.msk [vmem:[#allocation3 + $0xb8] sm:$0xf] %vm2117, %v3077
      %3158 = vst.msk [vmem:[#allocation3 + $0xc4] sm:$0xf] %vm2117, %v3079
      %3159 = vst.msk [vmem:[#allocation3 + $0xd0] sm:$0xf] %vm2117, %v3081
      %3160 = vst.msk [vmem:[#allocation3 + $0xdc] sm:$0xf] %vm2117, %v3083
      %3161 = vst.msk [vmem:[#allocation3 + $0xe8] sm:$0xf] %vm2117, %v3085
      %3162 = vst.msk [vmem:[#allocation3 + $0xf4] sm:$0xf] %vm2117, %v3087
      %3163 = vst.msk [vmem:[#allocation3 + $0x100] sm:$0xf] %vm2117, %v3089
      %3164 = vst.msk [vmem:[#allocation3 + $0x10c] sm:$0xf] %vm2117, %v3091
      %3165 = vst.msk [vmem:[#allocation3 + $0x118] sm:$0xf] %vm2117, %v3093
      %3166 = vst.msk [vmem:[#allocation3 + $0x124] sm:$0xf] %vm2117, %v3095
      %3167 = vst.msk [vmem:[#allocation3 + $0x130] sm:$0xf] %vm2117, %v3097
      %3168 = vst.msk [vmem:[#allocation3 + $0x13c] sm:$0xf] %vm2117, %v3099
      %3169 = vst.msk [vmem:[#allocation3 + $0x148] sm:$0xf] %vm2117, %v3101
      %3170 = vst.msk [vmem:[#allocation3 + $0x154] sm:$0xf] %vm2117, %v3103
      %3171 = vst.msk [vmem:[#allocation3 + $0x160] sm:$0xf] %vm2117, %v3105
      %3172 = vst.msk [vmem:[#allocation3 + $0x16c] sm:$0xf] %vm2117, %v3107
      %3173 = vst.msk [vmem:[#allocation3 + $0x178] sm:$0xf] %vm2117, %v3109
      %v3174 = vld [vmem:[#allocation2 + $0x22] sm:$0xff]
      %v3175 = vld [vmem:[#allocation2 + $0x2a] sm:$0xff]
      %v3176 = vld [vmem:[#allocation2 + $0x32] sm:$0xff]
      %v3177 = vld [vmem:[#allocation2 + $0x3a] sm:$0xff]
      %v3178 = vld [vmem:[#allocation2 + $0x42] sm:$0xff]
      %v3179 = vld [vmem:[#allocation2 + $0x4a] sm:$0xff]
      %v3180 = vld [vmem:[#allocation2 + $0x52] sm:$0xff]
      %v3181 = vld [vmem:[#allocation2 + $0x5a] sm:$0xff]
      %v3182 = vld [vmem:[#allocation2 + $0x62] sm:$0xff]
      %v3183 = vld [vmem:[#allocation2 + $0x6a] sm:$0xff]
      %v3184 = vld [vmem:[#allocation2 + $0x72] sm:$0xff]
      %v3185 = vld [vmem:[#allocation2 + $0x7a] sm:$0xff]
      %v3186 = vld [vmem:[#allocation2 + $0x82] sm:$0xff]
      %v3187 = vld [vmem:[#allocation2 + $0x8a] sm:$0xff]
      %v3188 = vld [vmem:[#allocation2 + $0x92] sm:$0xff]
      %v3189 = vld [vmem:[#allocation2 + $0x9a] sm:$0xff]
      %v3190 = vld [vmem:[#allocation2 + $0xa2] sm:$0xff]
      %v3191 = vld [vmem:[#allocation2 + $0xaa] sm:$0xff]
      %v3192 = vld [vmem:[#allocation2 + $0xb2] sm:$0xff]
      %v3193 = vld [vmem:[#allocation2 + $0xba] sm:$0xff]
      %v3194 = vld [vmem:[#allocation2 + $0xc2] sm:$0xff]
      %v3195 = vld [vmem:[#allocation2 + $0xca] sm:$0xff]
      %v3196 = vld [vmem:[#allocation2 + $0xd2] sm:$0xff]
      %v3197 = vld [vmem:[#allocation2 + $0xda] sm:$0xff]
      %v3198 = vld [vmem:[#allocation2 + $0xe2] sm:$0xff]
      %v3199 = vld [vmem:[#allocation2 + $0xea] sm:$0xff]
      %v3200 = vld [vmem:[#allocation2 + $0xf2] sm:$0xff]
      %v3201 = vld [vmem:[#allocation2 + $0xfa] sm:$0xff]
      %v3202 = vld [vmem:[#allocation2 + $0x102] sm:$0xff]
      %v3203 = vld [vmem:[#allocation2 + $0x10a] sm:$0xff]
      %v3204 = vld [vmem:[#allocation2 + $0x112] sm:$0xff]
      %v3205 = vld [vmem:[#allocation2 + $0x11a] sm:$0xff]
      %v3206 = vsel %vm1572, %v3174, 0.0
      %v3207 = vsel %vm1573, %v3175, 0.0
      %v3208 = vsel %vm1574, %v3176, 0.0
      %v3209 = vsel %vm1575, %v3177, 0.0
      %v3210 = vsel %vm1576, %v3178, 0.0
      %v3211 = vsel %vm1577, %v3179, 0.0
      %v3212 = vsel %vm1578, %v3180, 0.0
      %v3213 = vsel %vm1579, %v3181, 0.0
      %v3214 = vsel %vm1580, %v3182, 0.0
      %v3215 = vsel %vm1581, %v3183, 0.0
      %v3216 = vsel %vm1582, %v3184, 0.0
      %v3217 = vsel %vm1583, %v3185, 0.0
      %v3218 = vsel %vm1584, %v3186, 0.0
      %v3219 = vsel %vm1585, %v3187, 0.0
      %v3220 = vsel %vm1586, %v3188, 0.0
      %v3221 = vsel %vm1587, %v3189, 0.0
      %v3222 = vsel %vm1588, %v3190, 0.0
      %v3223 = vsel %vm1589, %v3191, 0.0
      %v3224 = vsel %vm1590, %v3192, 0.0
      %v3225 = vsel %vm1591, %v3193, 0.0
      %v3226 = vsel %vm1592, %v3194, 0.0
      %v3227 = vsel %vm1593, %v3195, 0.0
      %v3228 = vsel %vm1594, %v3196, 0.0
      %v3229 = vsel %vm1595, %v3197, 0.0
      %v3230 = vsel %vm1596, %v3198, 0.0
      %v3231 = vsel %vm1597, %v3199, 0.0
      %v3232 = vsel %vm1598, %v3200, 0.0
      %v3233 = vsel %vm1599, %v3201, 0.0
      %v3234 = vsel %vm1600, %v3202, 0.0
      %v3235 = vsel %vm1601, %v3203, 0.0
      %v3236 = vsel %vm1602, %v3204, 0.0
      %v3237 = vsel %vm1603, %v3205, 0.0
      %v3238 = vpack.c.bf16 %v3207, %v3206
      %v3239 = vpack.c.bf16 %v3209, %v3208
      %v3240 = vpack.c.bf16 %v3211, %v3210
      %v3241 = vpack.c.bf16 %v3213, %v3212
      %v3242 = vpack.c.bf16 %v3215, %v3214
      %v3243 = vpack.c.bf16 %v3217, %v3216
      %v3244 = vpack.c.bf16 %v3219, %v3218
      %v3245 = vpack.c.bf16 %v3221, %v3220
      %v3246 = vpack.c.bf16 %v3223, %v3222
      %v3247 = vpack.c.bf16 %v3225, %v3224
      %v3248 = vpack.c.bf16 %v3227, %v3226
      %v3249 = vpack.c.bf16 %v3229, %v3228
      %v3250 = vpack.c.bf16 %v3231, %v3230
      %v3251 = vpack.c.bf16 %v3233, %v3232
      %v3252 = vpack.c.bf16 %v3235, %v3234
      %v3253 = vpack.c.bf16 %v3237, %v3236
      %v3270 = vunpack.c.l.b16 %v3238
      %v3271 = vunpack.c.h.b16 %v3238
      %v3272 = vunpack.c.l.b16 %v3239
      %v3273 = vunpack.c.h.b16 %v3239
      %v3274 = vunpack.c.l.b16 %v3240
      %v3275 = vunpack.c.h.b16 %v3240
      %v3276 = vunpack.c.l.b16 %v3241
      %v3277 = vunpack.c.h.b16 %v3241
      %v3278 = vunpack.c.l.b16 %v3242
      %v3279 = vunpack.c.h.b16 %v3242
      %v3280 = vunpack.c.l.b16 %v3243
      %v3281 = vunpack.c.h.b16 %v3243
      %v3282 = vunpack.c.l.b16 %v3244
      %v3283 = vunpack.c.h.b16 %v3244
      %v3284 = vunpack.c.l.b16 %v3245
      %v3285 = vunpack.c.h.b16 %v3245
      %v3286 = vunpack.c.l.b16 %v3246
      %v3287 = vunpack.c.h.b16 %v3246
      %v3288 = vunpack.c.l.b16 %v3247
      %v3289 = vunpack.c.h.b16 %v3247
      %v3290 = vunpack.c.l.b16 %v3248
      %v3291 = vunpack.c.h.b16 %v3248
      %v3292 = vunpack.c.l.b16 %v3249
      %v3293 = vunpack.c.h.b16 %v3249
      %v3294 = vunpack.c.l.b16 %v3250
      %v3295 = vunpack.c.h.b16 %v3250
      %v3296 = vunpack.c.l.b16 %v3251
      %v3297 = vunpack.c.h.b16 %v3251
      %v3298 = vunpack.c.l.b16 %v3252
      %v3299 = vunpack.c.h.b16 %v3252
      %v3300 = vunpack.c.l.b16 %v3253
      %v3301 = vunpack.c.h.b16 %v3253
      %v3302 = vpack.c.b16 %v3270, %v3270
      %v3303 = vpack.c.b16 %v3271, %v3271
      %v3304 = vpack.c.b16 %v3272, %v3272
      %v3305 = vpack.c.b16 %v3273, %v3273
      %v3306 = vpack.c.b16 %v3274, %v3274
      %v3307 = vpack.c.b16 %v3275, %v3275
      %v3308 = vpack.c.b16 %v3276, %v3276
      %v3309 = vpack.c.b16 %v3277, %v3277
      %v3310 = vpack.c.b16 %v3278, %v3278
      %v3311 = vpack.c.b16 %v3279, %v3279
      %v3312 = vpack.c.b16 %v3280, %v3280
      %v3313 = vpack.c.b16 %v3281, %v3281
      %v3314 = vpack.c.b16 %v3282, %v3282
      %v3315 = vpack.c.b16 %v3283, %v3283
      %v3316 = vpack.c.b16 %v3284, %v3284
      %v3317 = vpack.c.b16 %v3285, %v3285
      %v3318 = vpack.c.b16 %v3286, %v3286
      %v3319 = vpack.c.b16 %v3287, %v3287
      %v3320 = vpack.c.b16 %v3288, %v3288
      %v3321 = vpack.c.b16 %v3289, %v3289
      %v3322 = vpack.c.b16 %v3290, %v3290
      %v3323 = vpack.c.b16 %v3291, %v3291
      %v3324 = vpack.c.b16 %v3292, %v3292
      %v3325 = vpack.c.b16 %v3293, %v3293
      %v3326 = vpack.c.b16 %v3294, %v3294
      %v3327 = vpack.c.b16 %v3295, %v3295
      %v3328 = vpack.c.b16 %v3296, %v3296
      %v3329 = vpack.c.b16 %v3297, %v3297
      %v3330 = vpack.c.b16 %v3298, %v3298
      %v3331 = vpack.c.b16 %v3299, %v3299
      %v3332 = vpack.c.b16 %v3300, %v3300
      %v3333 = vpack.c.b16 %v3301, %v3301
      %3366 = vst.msk [vmem:[#allocation3 + $0x8] sm:$0xf] %vm1218, %v3302
      %3367 = vst.msk [vmem:[#allocation3 + $0x14] sm:$0xf] %vm1218, %v3303
      %3368 = vst.msk [vmem:[#allocation3 + $0x20] sm:$0xf] %vm1218, %v3304
      %3369 = vst.msk [vmem:[#allocation3 + $0x2c] sm:$0xf] %vm1218, %v3305
      %3370 = vst.msk [vmem:[#allocation3 + $0x38] sm:$0xf] %vm1218, %v3306
      %3371 = vst.msk [vmem:[#allocation3 + $0x44] sm:$0xf] %vm1218, %v3307
      %3372 = vst.msk [vmem:[#allocation3 + $0x50] sm:$0xf] %vm1218, %v3308
      %3373 = vst.msk [vmem:[#allocation3 + $0x5c] sm:$0xf] %vm1218, %v3309
      %3374 = vst.msk [vmem:[#allocation3 + $0x68] sm:$0xf] %vm1218, %v3310
      %3375 = vst.msk [vmem:[#allocation3 + $0x74] sm:$0xf] %vm1218, %v3311
      %3376 = vst.msk [vmem:[#allocation3 + $0x80] sm:$0xf] %vm1218, %v3312
      %3377 = vst.msk [vmem:[#allocation3 + $0x8c] sm:$0xf] %vm1218, %v3313
      %3378 = vst.msk [vmem:[#allocation3 + $0x98] sm:$0xf] %vm1218, %v3314
      %3379 = vst.msk [vmem:[#allocation3 + $0xa4] sm:$0xf] %vm1218, %v3315
      %3380 = vst.msk [vmem:[#allocation3 + $0xb0] sm:$0xf] %vm1218, %v3316
      %3381 = vst.msk [vmem:[#allocation3 + $0xbc] sm:$0xf] %vm1218, %v3317
      %3382 = vst.msk [vmem:[#allocation3 + $0xc8] sm:$0xf] %vm1218, %v3318
      %3383 = vst.msk [vmem:[#allocation3 + $0xd4] sm:$0xf] %vm1218, %v3319
      %3384 = vst.msk [vmem:[#allocation3 + $0xe0] sm:$0xf] %vm1218, %v3320
      %3385 = vst.msk [vmem:[#allocation3 + $0xec] sm:$0xf] %vm1218, %v3321
      %3386 = vst.msk [vmem:[#allocation3 + $0xf8] sm:$0xf] %vm1218, %v3322
      %3387 = vst.msk [vmem:[#allocation3 + $0x104] sm:$0xf] %vm1218, %v3323
      %3388 = vst.msk [vmem:[#allocation3 + $0x110] sm:$0xf] %vm1218, %v3324
      %3389 = vst.msk [vmem:[#allocation3 + $0x11c] sm:$0xf] %vm1218, %v3325
      %3390 = vst.msk [vmem:[#allocation3 + $0x128] sm:$0xf] %vm1218, %v3326
      %3391 = vst.msk [vmem:[#allocation3 + $0x134] sm:$0xf] %vm1218, %v3327
      %3392 = vst.msk [vmem:[#allocation3 + $0x140] sm:$0xf] %vm1218, %v3328
      %3393 = vst.msk [vmem:[#allocation3 + $0x14c] sm:$0xf] %vm1218, %v3329
      %3394 = vst.msk [vmem:[#allocation3 + $0x158] sm:$0xf] %vm1218, %v3330
      %3395 = vst.msk [vmem:[#allocation3 + $0x164] sm:$0xf] %vm1218, %v3331
      %3396 = vst.msk [vmem:[#allocation3 + $0x170] sm:$0xf] %vm1218, %v3332
      %3397 = vst.msk [vmem:[#allocation3 + $0x17c] sm:$0xf] %vm1218, %v3333
      %v3398 = vld [vmem:[#allocation3] sm:$0xff]
      %v3399 = vld [vmem:[#allocation3 + $0x8] sm:$0xf]
      %v3400 = vld [vmem:[#allocation3 + $0xc] sm:$0xff]
      %v3401 = vld [vmem:[#allocation3 + $0x14] sm:$0xf]
      %v3402 = vld [vmem:[#allocation3 + $0x18] sm:$0xff]
      %v3403 = vld [vmem:[#allocation3 + $0x20] sm:$0xf]
      %v3404 = vld [vmem:[#allocation3 + $0x24] sm:$0xff]
      %v3405 = vld [vmem:[#allocation3 + $0x2c] sm:$0xf]
      %v3406 = vld [vmem:[#allocation3 + $0x30] sm:$0xff]
      %v3407 = vld [vmem:[#allocation3 + $0x38] sm:$0xf]
      %v3408 = vld [vmem:[#allocation3 + $0x3c] sm:$0xff]
      %v3409 = vld [vmem:[#allocation3 + $0x44] sm:$0xf]
      %v3410 = vld [vmem:[#allocation3 + $0x48] sm:$0xff]
      %v3411 = vld [vmem:[#allocation3 + $0x50] sm:$0xf]
      %v3412 = vld [vmem:[#allocation3 + $0x54] sm:$0xff]
      %v3413 = vld [vmem:[#allocation3 + $0x5c] sm:$0xf]
      %v3414 = vld [vmem:[#allocation3 + $0x60] sm:$0xff]
      %v3415 = vld [vmem:[#allocation3 + $0x68] sm:$0xf]
      %v3416 = vld [vmem:[#allocation3 + $0x6c] sm:$0xff]
      %v3417 = vld [vmem:[#allocation3 + $0x74] sm:$0xf]
      %v3418 = vld [vmem:[#allocation3 + $0x78] sm:$0xff]
      %v3419 = vld [vmem:[#allocation3 + $0x80] sm:$0xf]
      %v3420 = vld [vmem:[#allocation3 + $0x84] sm:$0xff]
      %v3421 = vld [vmem:[#allocation3 + $0x8c] sm:$0xf]
      %v3422 = vld [vmem:[#allocation3 + $0x90] sm:$0xff]
      %v3423 = vld [vmem:[#allocation3 + $0x98] sm:$0xf]
      %v3424 = vld [vmem:[#allocation3 + $0x9c] sm:$0xff]
      %v3425 = vld [vmem:[#allocation3 + $0xa4] sm:$0xf]
      %v3426 = vld [vmem:[#allocation3 + $0xa8] sm:$0xff]
      %v3427 = vld [vmem:[#allocation3 + $0xb0] sm:$0xf]
      %v3428 = vld [vmem:[#allocation3 + $0xb4] sm:$0xff]
      %v3429 = vld [vmem:[#allocation3 + $0xbc] sm:$0xf]
      %v3430 = vld [vmem:[#allocation3 + $0xc0] sm:$0xff]
      %v3431 = vld [vmem:[#allocation3 + $0xc8] sm:$0xf]
      %v3432 = vld [vmem:[#allocation3 + $0xcc] sm:$0xff]
      %v3433 = vld [vmem:[#allocation3 + $0xd4] sm:$0xf]
      %v3434 = vld [vmem:[#allocation3 + $0xd8] sm:$0xff]
      %v3435 = vld [vmem:[#allocation3 + $0xe0] sm:$0xf]
      %v3436 = vld [vmem:[#allocation3 + $0xe4] sm:$0xff]
      %v3437 = vld [vmem:[#allocation3 + $0xec] sm:$0xf]
      %v3438 = vld [vmem:[#allocation3 + $0xf0] sm:$0xff]
      %v3439 = vld [vmem:[#allocation3 + $0xf8] sm:$0xf]
      %v3440 = vld [vmem:[#allocation3 + $0xfc] sm:$0xff]
      %v3441 = vld [vmem:[#allocation3 + $0x104] sm:$0xf]
      %v3442 = vld [vmem:[#allocation3 + $0x108] sm:$0xff]
      %v3443 = vld [vmem:[#allocation3 + $0x110] sm:$0xf]
      %v3444 = vld [vmem:[#allocation3 + $0x114] sm:$0xff]
      %v3445 = vld [vmem:[#allocation3 + $0x11c] sm:$0xf]
      %v3446 = vld [vmem:[#allocation3 + $0x120] sm:$0xff]
      %v3447 = vld [vmem:[#allocation3 + $0x128] sm:$0xf]
      %v3448 = vld [vmem:[#allocation3 + $0x12c] sm:$0xff]
      %v3449 = vld [vmem:[#allocation3 + $0x134] sm:$0xf]
      %v3450 = vld [vmem:[#allocation3 + $0x138] sm:$0xff]
      %v3451 = vld [vmem:[#allocation3 + $0x140] sm:$0xf]
      %v3452 = vld [vmem:[#allocation3 + $0x144] sm:$0xff]
      %v3453 = vld [vmem:[#allocation3 + $0x14c] sm:$0xf]
      %v3454 = vld [vmem:[#allocation3 + $0x150] sm:$0xff]
      %v3455 = vld [vmem:[#allocation3 + $0x158] sm:$0xf]
      %v3456 = vld [vmem:[#allocation3 + $0x15c] sm:$0xff]
      %v3457 = vld [vmem:[#allocation3 + $0x164] sm:$0xf]
      %v3458 = vld [vmem:[#allocation3 + $0x168] sm:$0xff]
      %v3459 = vld [vmem:[#allocation3 + $0x170] sm:$0xf]
      %v3460 = vld [vmem:[#allocation3 + $0x174] sm:$0xff]
      %v3461 = vld [vmem:[#allocation3 + $0x17c] sm:$0xf]
      %v3462 = vld [vmem:[%s3] sm:$0xf]
      %v3463 = vld [vmem:[%s3 + $0x4] sm:$0xf]
      %v3464 = vld [vmem:[%s3 + $0x8] sm:$0xf]
      %v3465 = vld [vmem:[%s3 + $0xc] sm:$0xf]
      %v3466 = vld [vmem:[%s3 + $0x10] sm:$0xf]
      %v3467 = vld [vmem:[%s3 + $0x14] sm:$0xf]
      %v3468 = vld [vmem:[%s3 + $0x18] sm:$0xf]
      %v3469 = vld [vmem:[%s3 + $0x1c] sm:$0xf]
      %v3470 = vld [vmem:[%s3 + $0x20] sm:$0xf]
      %v3471 = vld [vmem:[%s3 + $0x24] sm:$0xf]
      %v3472 = vld [vmem:[%s3 + $0x28] sm:$0xf]
      %v3473 = vld [vmem:[%s3 + $0x2c] sm:$0xf]
      %v3474 = vld [vmem:[%s3 + $0x30] sm:$0xf]
      %v3475 = vld [vmem:[%s3 + $0x34] sm:$0xf]
      %v3476 = vld [vmem:[%s3 + $0x38] sm:$0xf]
      %v3477 = vld [vmem:[%s3 + $0x3c] sm:$0xf]
      %v3478 = vld [vmem:[%s3 + $0x40] sm:$0xf]
      %v3479 = vld [vmem:[%s3 + $0x44] sm:$0xf]
      %v3480 = vld [vmem:[%s3 + $0x48] sm:$0xf]
      %v3481 = vld [vmem:[%s3 + $0x4c] sm:$0xf]
      %v3482 = vld [vmem:[%s3 + $0x50] sm:$0xf]
      %v3483 = vld [vmem:[%s3 + $0x54] sm:$0xf]
      %v3484 = vld [vmem:[%s3 + $0x58] sm:$0xf]
      %v3485 = vld [vmem:[%s3 + $0x5c] sm:$0xf]
      %v3486 = vld [vmem:[%s3 + $0x60] sm:$0xf]
      %v3487 = vld [vmem:[%s3 + $0x64] sm:$0xf]
      %v3488 = vld [vmem:[%s3 + $0x68] sm:$0xf]
      %v3489 = vld [vmem:[%s3 + $0x6c] sm:$0xf]
      %v3490 = vld [vmem:[%s3 + $0x70] sm:$0xf]
      %v3491 = vld [vmem:[%s3 + $0x74] sm:$0xf]
      %v3492 = vld [vmem:[%s3 + $0x78] sm:$0xf]
      %v3493 = vld [vmem:[%s3 + $0x7c] sm:$0xf]
      %v3494 = vld [vmem:[%s3 + $0x80] sm:$0xf]
      %v3495 = vld [vmem:[%s3 + $0x84] sm:$0xf]
      %v3496 = vld [vmem:[%s3 + $0x88] sm:$0xf]
      %v3497 = vld [vmem:[%s3 + $0x8c] sm:$0xf]
      %v3498 = vld [vmem:[%s4] sm:$0x1]
      %v3500 = vlaneseq
      %v3501 = vshrl.u32 %v3500, 7
      %v3502 = vsub.s32 0, %v3501
      %v3503 = vrot.slane %v3498, %v3502
      %v3569 = vunpack.c.l.b16 %v3398
      %v3570 = vunpack.c.h.b16 %v3398
      %v3571 = vunpack.c.l.b16 %v3399
      %v3572 = vunpack.c.l.b16 %v3400
      %v3573 = vunpack.c.h.b16 %v3400
      %v3574 = vunpack.c.l.b16 %v3401
      %v3575 = vunpack.c.l.b16 %v3402
      %v3576 = vunpack.c.h.b16 %v3402
      %v3577 = vunpack.c.l.b16 %v3403
      %v3578 = vunpack.c.l.b16 %v3404
      %v3579 = vunpack.c.h.b16 %v3404
      %v3580 = vunpack.c.l.b16 %v3405
      %v3581 = vunpack.c.l.b16 %v3406
      %v3582 = vunpack.c.h.b16 %v3406
      %v3583 = vunpack.c.l.b16 %v3407
      %v3584 = vunpack.c.l.b16 %v3408
      %v3585 = vunpack.c.h.b16 %v3408
      %v3586 = vunpack.c.l.b16 %v3409
      %v3587 = vunpack.c.l.b16 %v3410
      %v3588 = vunpack.c.h.b16 %v3410
      %v3589 = vunpack.c.l.b16 %v3411
      %v3590 = vunpack.c.l.b16 %v3412
      %v3591 = vunpack.c.h.b16 %v3412
      %v3592 = vunpack.c.l.b16 %v3413
      %v3593 = vunpack.c.l.b16 %v3414
      %v3594 = vunpack.c.h.b16 %v3414
      %v3595 = vunpack.c.l.b16 %v3415
      %v3596 = vunpack.c.l.b16 %v3416
      %v3597 = vunpack.c.h.b16 %v3416
      %v3598 = vunpack.c.l.b16 %v3417
      %v3599 = vunpack.c.l.b16 %v3418
      %v3600 = vunpack.c.h.b16 %v3418
      %v3601 = vunpack.c.l.b16 %v3419
      %v3602 = vunpack.c.l.b16 %v3420
      %v3603 = vunpack.c.h.b16 %v3420
      %v3604 = vunpack.c.l.b16 %v3421
      %v3605 = vunpack.c.l.b16 %v3422
      %v3606 = vunpack.c.h.b16 %v3422
      %v3607 = vunpack.c.l.b16 %v3423
      %v3608 = vunpack.c.l.b16 %v3424
      %v3609 = vunpack.c.h.b16 %v3424
      %v3610 = vunpack.c.l.b16 %v3425
      %v3611 = vunpack.c.l.b16 %v3426
      %v3612 = vunpack.c.h.b16 %v3426
      %v3613 = vunpack.c.l.b16 %v3427
      %v3614 = vunpack.c.l.b16 %v3428
      %v3615 = vunpack.c.h.b16 %v3428
      %v3616 = vunpack.c.l.b16 %v3429
      %v3617 = vunpack.c.l.b16 %v3430
      %v3618 = vunpack.c.h.b16 %v3430
      %v3619 = vunpack.c.l.b16 %v3431
      %v3620 = vunpack.c.l.b16 %v3432
      %v3621 = vunpack.c.h.b16 %v3432
      %v3622 = vunpack.c.l.b16 %v3433
      %v3623 = vunpack.c.l.b16 %v3434
      %v3624 = vunpack.c.h.b16 %v3434
      %v3625 = vunpack.c.l.b16 %v3435
      %v3626 = vunpack.c.l.b16 %v3436
      %v3627 = vunpack.c.h.b16 %v3436
      %v3628 = vunpack.c.l.b16 %v3437
      %v3629 = vunpack.c.l.b16 %v3438
      %v3630 = vunpack.c.h.b16 %v3438
      %v3631 = vunpack.c.l.b16 %v3439
      %v3632 = vunpack.c.l.b16 %v3440
      %v3633 = vunpack.c.h.b16 %v3440
      %v3634 = vunpack.c.l.b16 %v3441
      %v3635 = vunpack.c.l.b16 %v3442
      %v3636 = vunpack.c.h.b16 %v3442
      %v3637 = vunpack.c.l.b16 %v3443
      %v3638 = vunpack.c.l.b16 %v3444
      %v3639 = vunpack.c.h.b16 %v3444
      %v3640 = vunpack.c.l.b16 %v3445
      %v3641 = vunpack.c.l.b16 %v3446
      %v3642 = vunpack.c.h.b16 %v3446
      %v3643 = vunpack.c.l.b16 %v3447
      %v3644 = vunpack.c.l.b16 %v3448
      %v3645 = vunpack.c.h.b16 %v3448
      %v3646 = vunpack.c.l.b16 %v3449
      %v3647 = vunpack.c.l.b16 %v3450
      %v3648 = vunpack.c.h.b16 %v3450
      %v3649 = vunpack.c.l.b16 %v3451
      %v3650 = vunpack.c.l.b16 %v3452
      %v3651 = vunpack.c.h.b16 %v3452
      %v3652 = vunpack.c.l.b16 %v3453
      %v3653 = vunpack.c.l.b16 %v3454
      %v3654 = vunpack.c.h.b16 %v3454
      %v3655 = vunpack.c.l.b16 %v3455
      %v3656 = vunpack.c.l.b16 %v3456
      %v3657 = vunpack.c.h.b16 %v3456
      %v3658 = vunpack.c.l.b16 %v3457
      %v3659 = vunpack.c.l.b16 %v3458
      %v3660 = vunpack.c.h.b16 %v3458
      %v3661 = vunpack.c.l.b16 %v3459
      %v3662 = vunpack.c.l.b16 %v3460
      %v3663 = vunpack.c.h.b16 %v3460
      %v3664 = vunpack.c.l.b16 %v3461
      %v3665 = vpack.c.b16 %v3572, %v3569
      %v3666 = vpack.c.b16 %v3573, %v3570
      %v3667 = vpack.c.b16 %v3574, %v3571
      %v3668 = vpack.c.b16 %v3578, %v3575
      %v3669 = vpack.c.b16 %v3579, %v3576
      %v3670 = vpack.c.b16 %v3580, %v3577
      %v3671 = vpack.c.b16 %v3584, %v3581
      %v3672 = vpack.c.b16 %v3585, %v3582
      %v3673 = vpack.c.b16 %v3586, %v3583
      %v3674 = vpack.c.b16 %v3590, %v3587
      %v3675 = vpack.c.b16 %v3591, %v3588
      %v3676 = vpack.c.b16 %v3592, %v3589
      %v3677 = vpack.c.b16 %v3596, %v3593
      %v3678 = vpack.c.b16 %v3597, %v3594
      %v3679 = vpack.c.b16 %v3598, %v3595
      %v3680 = vpack.c.b16 %v3602, %v3599
      %v3681 = vpack.c.b16 %v3603, %v3600
      %v3682 = vpack.c.b16 %v3604, %v3601
      %v3683 = vpack.c.b16 %v3608, %v3605
      %v3684 = vpack.c.b16 %v3609, %v3606
      %v3685 = vpack.c.b16 %v3610, %v3607
      %v3686 = vpack.c.b16 %v3614, %v3611
      %v3687 = vpack.c.b16 %v3615, %v3612
      %v3688 = vpack.c.b16 %v3616, %v3613
      %v3689 = vpack.c.b16 %v3620, %v3617
      %v3690 = vpack.c.b16 %v3621, %v3618
      %v3691 = vpack.c.b16 %v3622, %v3619
      %v3692 = vpack.c.b16 %v3626, %v3623
      %v3693 = vpack.c.b16 %v3627, %v3624
      %v3694 = vpack.c.b16 %v3628, %v3625
      %v3695 = vpack.c.b16 %v3632, %v3629
      %v3696 = vpack.c.b16 %v3633, %v3630
      %v3697 = vpack.c.b16 %v3634, %v3631
      %v3698 = vpack.c.b16 %v3638, %v3635
      %v3699 = vpack.c.b16 %v3639, %v3636
      %v3700 = vpack.c.b16 %v3640, %v3637
      %v3701 = vpack.c.b16 %v3644, %v3641
      %v3702 = vpack.c.b16 %v3645, %v3642
      %v3703 = vpack.c.b16 %v3646, %v3643
      %v3704 = vpack.c.b16 %v3650, %v3647
      %v3705 = vpack.c.b16 %v3651, %v3648
      %v3706 = vpack.c.b16 %v3652, %v3649
      %v3707 = vpack.c.b16 %v3656, %v3653
      %v3708 = vpack.c.b16 %v3657, %v3654
      %v3709 = vpack.c.b16 %v3658, %v3655
      %v3710 = vpack.c.b16 %v3662, %v3659
      %v3711 = vpack.c.b16 %v3663, %v3660
      %v3712 = vpack.c.b16 %v3664, %v3661
      %v3781 = vunpack.c.l.b16 %v3462
      %v3782 = vunpack.c.l.b16 %v3463
      %v3783 = vunpack.c.l.b16 %v3464
      %v3784 = vunpack.c.l.b16 %v3465
      %v3785 = vunpack.c.l.b16 %v3466
      %v3786 = vunpack.c.l.b16 %v3467
      %v3787 = vunpack.c.l.b16 %v3468
      %v3788 = vunpack.c.l.b16 %v3469
      %v3789 = vunpack.c.l.b16 %v3470
      %v3790 = vunpack.c.l.b16 %v3471
      %v3791 = vunpack.c.l.b16 %v3472
      %v3792 = vunpack.c.l.b16 %v3473
      %v3793 = vunpack.c.l.b16 %v3474
      %v3794 = vunpack.c.l.b16 %v3475
      %v3795 = vunpack.c.l.b16 %v3476
      %v3796 = vunpack.c.l.b16 %v3477
      %v3797 = vunpack.c.l.b16 %v3478
      %v3798 = vunpack.c.l.b16 %v3479
      %v3799 = vunpack.c.l.b16 %v3480
      %v3800 = vunpack.c.l.b16 %v3481
      %v3801 = vunpack.c.l.b16 %v3482
      %v3802 = vunpack.c.l.b16 %v3483
      %v3803 = vunpack.c.l.b16 %v3484
      %v3804 = vunpack.c.l.b16 %v3485
      %v3805 = vunpack.c.l.b16 %v3486
      %v3806 = vunpack.c.l.b16 %v3487
      %v3807 = vunpack.c.l.b16 %v3488
      %v3808 = vunpack.c.l.b16 %v3489
      %v3809 = vunpack.c.l.b16 %v3490
      %v3810 = vunpack.c.l.b16 %v3491
      %v3811 = vunpack.c.l.b16 %v3492
      %v3812 = vunpack.c.l.b16 %v3493
      %v3813 = vunpack.c.l.b16 %v3494
      %v3814 = vunpack.c.l.b16 %v3495
      %v3815 = vunpack.c.l.b16 %v3496
      %v3816 = vunpack.c.l.b16 %v3497
      %v3817 = vpack.c.b16 %v3782, %v3781
      %v3818 = vpack.c.b16 %v3784, %v3783
      %v3819 = vpack.c.b16 %v3786, %v3785
      %v3820 = vpack.c.b16 %v3788, %v3787
      %v3821 = vpack.c.b16 %v3790, %v3789
      %v3822 = vpack.c.b16 %v3792, %v3791
      %v3823 = vpack.c.b16 %v3794, %v3793
      %v3824 = vpack.c.b16 %v3796, %v3795
      %v3825 = vpack.c.b16 %v3798, %v3797
      %v3826 = vpack.c.b16 %v3800, %v3799
      %v3827 = vpack.c.b16 %v3802, %v3801
      %v3828 = vpack.c.b16 %v3804, %v3803
      %v3829 = vpack.c.b16 %v3806, %v3805
      %v3830 = vpack.c.b16 %v3808, %v3807
      %v3831 = vpack.c.b16 %v3810, %v3809
      %v3832 = vpack.c.b16 %v3812, %v3811
      %v3833 = vpack.c.b16 %v3814, %v3813
      %v3834 = vpack.c.b16 %v3816, %v3815
      %v3854 = vsel %vm441, %v3667, 0
      %v3857 = vsel %vm441, %v3670, 0
      %v3860 = vsel %vm441, %v3673, 0
      %v3863 = vsel %vm441, %v3676, 0
      %v3866 = vsel %vm441, %v3679, 0
      %v3869 = vsel %vm441, %v3682, 0
      %v3872 = vsel %vm441, %v3685, 0
      %v3875 = vsel %vm441, %v3688, 0
      %v3878 = vsel %vm441, %v3691, 0
      %v3881 = vsel %vm441, %v3694, 0
      %v3884 = vsel %vm441, %v3697, 0
      %v3887 = vsel %vm441, %v3700, 0
      %v3890 = vsel %vm441, %v3703, 0
      %v3893 = vsel %vm441, %v3706, 0
      %v3896 = vsel %vm441, %v3709, 0
      %v3899 = vsel %vm441, %v3712, 0
      %3901 = vmatprep.subr.bf16.mxu0 0
      %3902 = vmatpush1.bf16.msra.mxu0 %v3824
      %3903 = vmatprep.subr.bf16.mxu0 0
      %3904 = vmatpush1.bf16.msra.mxu0 %v3823
      %3905 = vmatprep.subr.bf16.mxu0 0
      %3906 = vmatpush1.bf16.msra.mxu0 %v3822
      %3907 = vmatprep.subr.bf16.mxu0 0
      %3908 = vmatpush1.bf16.msra.mxu0 %v3821
      %3909 = vmatprep.subr.bf16.mxu0 0
      %3910 = vmatpush1.bf16.msra.mxu0 %v3820
      %3911 = vmatprep.subr.bf16.mxu0 0
      %3912 = vmatpush1.bf16.msra.mxu0 %v3819
      %3913 = vmatprep.subr.bf16.mxu0 0
      %3914 = vmatpush1.bf16.msra.mxu0 %v3818
      %3915 = vmatprep.subr.bf16.mxu0 0
      %3916 = vmatpush1.bf16.msra.mxu0 %v3817
      %3917 = vmatprep.subr.bf16.mxu0 0
      %3918 = vmatpush2.bf16.msra.mxu0 %v3832
      %3919 = vmatprep.subr.bf16.mxu0 0
      %3920 = vmatpush2.bf16.msra.mxu0 %v3831
      %3921 = vmatprep.subr.bf16.mxu0 0
      %3922 = vmatpush2.bf16.msra.mxu0 %v3830
      %3923 = vmatprep.subr.bf16.mxu0 0
      %3924 = vmatpush2.bf16.msra.mxu0 %v3829
      %3925 = vmatprep.subr.bf16.mxu0 0
      %3926 = vmatpush2.bf16.msra.mxu0 %v3828
      %3927 = vmatprep.subr.bf16.mxu0 0
      %3928 = vmatpush2.bf16.msra.mxu0 %v3827
      %3929 = vmatprep.subr.bf16.mxu0 0
      %3930 = vmatpush2.bf16.msra.mxu0 %v3826
      %3931 = vmatprep.subr.bf16.mxu0 0
      %3932 = vmatpush2.bf16.msra.mxu0 %v3825
      %3933 = vmatprep.mubr.bf16.mxu0 %v3666
      %3934 = vmatmul.mubr.bf16.gmra.mxu0 %v3665
      %v3935 = vpop.f32.mrf.mxu0
      %v3936 = vadd.f32 %v3503, %v3935
      %v3937 = vpop.f32.mrf.mxu0
      %v3938 = vpop.f32.mrf.mxu0
      %v3939 = vadd.f32 %v3503, %v3938
      %v3940 = vpop.f32.mrf.mxu0
      %3941 = vmatprep.mubr.bf16.mxu0 %v3669
      %3942 = vmatmul.mubr.bf16.gmra.mxu0 %v3668
      %v3943 = vpop.f32.mrf.mxu0
      %v3944 = vadd.f32 %v3503, %v3943
      %v3945 = vpop.f32.mrf.mxu0
      %v3946 = vpop.f32.mrf.mxu0
      %v3947 = vadd.f32 %v3503, %v3946
      %v3948 = vpop.f32.mrf.mxu0
      %3949 = vmatprep.mubr.bf16.mxu0 %v3672
      %3950 = vmatmul.mubr.bf16.gmra.mxu0 %v3671
      %v3951 = vpop.f32.mrf.mxu0
      %v3952 = vadd.f32 %v3503, %v3951
      %v3953 = vpop.f32.mrf.mxu0
      %v3954 = vpop.f32.mrf.mxu0
      %v3955 = vadd.f32 %v3503, %v3954
      %v3956 = vpop.f32.mrf.mxu0
      %3957 = vmatprep.mubr.bf16.mxu0 %v3675
      %3958 = vmatmul.mubr.bf16.gmra.mxu0 %v3674
      %v3959 = vpop.f32.mrf.mxu0
      %v3960 = vadd.f32 %v3503, %v3959
      %v3961 = vpop.f32.mrf.mxu0
      %v3962 = vpop.f32.mrf.mxu0
      %v3963 = vadd.f32 %v3503, %v3962
      %v3964 = vpop.f32.mrf.mxu0
      %3965 = vmatprep.mubr.bf16.mxu0 %v3678
      %3966 = vmatmul.mubr.bf16.gmra.mxu0 %v3677
      %v3967 = vpop.f32.mrf.mxu0
      %v3968 = vadd.f32 %v3503, %v3967
      %v3969 = vpop.f32.mrf.mxu0
      %v3970 = vpop.f32.mrf.mxu0
      %v3971 = vadd.f32 %v3503, %v3970
      %v3972 = vpop.f32.mrf.mxu0
      %3973 = vmatprep.mubr.bf16.mxu0 %v3681
      %3974 = vmatmul.mubr.bf16.gmra.mxu0 %v3680
      %v3975 = vpop.f32.mrf.mxu0
      %v3976 = vadd.f32 %v3503, %v3975
      %v3977 = vpop.f32.mrf.mxu0
      %v3978 = vpop.f32.mrf.mxu0
      %v3979 = vadd.f32 %v3503, %v3978
      %v3980 = vpop.f32.mrf.mxu0
      %3981 = vmatprep.mubr.bf16.mxu0 %v3684
      %3982 = vmatmul.mubr.bf16.gmra.mxu0 %v3683
      %v3983 = vpop.f32.mrf.mxu0
      %v3984 = vadd.f32 %v3503, %v3983
      %v3985 = vpop.f32.mrf.mxu0
      %v3986 = vpop.f32.mrf.mxu0
      %v3987 = vadd.f32 %v3503, %v3986
      %v3988 = vpop.f32.mrf.mxu0
      %3989 = vmatprep.mubr.bf16.mxu0 %v3687
      %3990 = vmatmul.mubr.bf16.gmra.mxu0 %v3686
      %v3991 = vpop.f32.mrf.mxu0
      %v3992 = vadd.f32 %v3503, %v3991
      %v3993 = vpop.f32.mrf.mxu0
      %v3994 = vpop.f32.mrf.mxu0
      %v3995 = vadd.f32 %v3503, %v3994
      %v3996 = vpop.f32.mrf.mxu0
      %3997 = vmatprep.mubr.bf16.mxu0 %v3690
      %3998 = vmatmul.mubr.bf16.gmra.mxu0 %v3689
      %v3999 = vpop.f32.mrf.mxu0
      %v4000 = vadd.f32 %v3503, %v3999
      %v4001 = vpop.f32.mrf.mxu0
      %v4002 = vpop.f32.mrf.mxu0
      %v4003 = vadd.f32 %v3503, %v4002
      %v4004 = vpop.f32.mrf.mxu0
      %4005 = vmatprep.mubr.bf16.mxu0 %v3693
      %4006 = vmatmul.mubr.bf16.gmra.mxu0 %v3692
      %v4007 = vpop.f32.mrf.mxu0
      %v4008 = vadd.f32 %v3503, %v4007
      %v4009 = vpop.f32.mrf.mxu0
      %v4010 = vpop.f32.mrf.mxu0
      %v4011 = vadd.f32 %v3503, %v4010
      %v4012 = vpop.f32.mrf.mxu0
      %4013 = vmatprep.mubr.bf16.mxu0 %v3696
      %4014 = vmatmul.mubr.bf16.gmra.mxu0 %v3695
      %v4015 = vpop.f32.mrf.mxu0
      %v4016 = vadd.f32 %v3503, %v4015
      %v4017 = vpop.f32.mrf.mxu0
      %v4018 = vpop.f32.mrf.mxu0
      %v4019 = vadd.f32 %v3503, %v4018
      %v4020 = vpop.f32.mrf.mxu0
      %4021 = vmatprep.mubr.bf16.mxu0 %v3699
      %4022 = vmatmul.mubr.bf16.gmra.mxu0 %v3698
      %v4023 = vpop.f32.mrf.mxu0
      %v4024 = vadd.f32 %v3503, %v4023
      %v4025 = vpop.f32.mrf.mxu0
      %v4026 = vpop.f32.mrf.mxu0
      %v4027 = vadd.f32 %v3503, %v4026
      %v4028 = vpop.f32.mrf.mxu0
      %4029 = vmatprep.mubr.bf16.mxu0 %v3702
      %4030 = vmatmul.mubr.bf16.gmra.mxu0 %v3701
      %v4031 = vpop.f32.mrf.mxu0
      %v4032 = vadd.f32 %v3503, %v4031
      %v4033 = vpop.f32.mrf.mxu0
      %v4034 = vpop.f32.mrf.mxu0
      %v4035 = vadd.f32 %v3503, %v4034
      %v4036 = vpop.f32.mrf.mxu0
      %4037 = vmatprep.mubr.bf16.mxu0 %v3705
      %4038 = vmatmul.mubr.bf16.gmra.mxu0 %v3704
      %v4039 = vpop.f32.mrf.mxu0
      %v4040 = vadd.f32 %v3503, %v4039
      %v4041 = vpop.f32.mrf.mxu0
      %v4042 = vpop.f32.mrf.mxu0
      %v4043 = vadd.f32 %v3503, %v4042
      %v4044 = vpop.f32.mrf.mxu0
      %4045 = vmatprep.mubr.bf16.mxu0 %v3708
      %4046 = vmatmul.mubr.bf16.gmra.mxu0 %v3707
      %v4047 = vpop.f32.mrf.mxu0
      %v4048 = vadd.f32 %v3503, %v4047
      %v4049 = vpop.f32.mrf.mxu0
      %v4050 = vpop.f32.mrf.mxu0
      %v4051 = vadd.f32 %v3503, %v4050
      %v4052 = vpop.f32.mrf.mxu0
      %4053 = vmatprep.mubr.bf16.mxu0 %v3711
      %4054 = vmatmul.mubr.bf16.gmra.mxu0 %v3710
      %v4055 = vpop.f32.mrf.mxu0
      %v4056 = vadd.f32 %v3503, %v4055
      %v4057 = vpop.f32.mrf.mxu0
      %v4058 = vpop.f32.mrf.mxu0
      %v4059 = vadd.f32 %v3503, %v4058
      %v4060 = vpop.f32.mrf.mxu0
      %4061 = vdwg.mxu0
      %4062 = vmatprep.subr.bf16.mxu0 0
      %4063 = vmatpush1.bf16.msra.mxu0 0
      %4064 = vmatprep.subr.bf16.mxu0 0
      %4065 = vmatpush1.bf16.msra.mxu0 0
      %4066 = vmatprep.subr.bf16.mxu0 0
      %4067 = vmatpush1.bf16.msra.mxu0 0
      %4068 = vmatprep.subr.bf16.mxu0 0
      %4069 = vmatpush1.bf16.msra.mxu0 0
      %4070 = vmatprep.subr.bf16.mxu0 0
      %4071 = vmatpush1.bf16.msra.mxu0 0
      %4072 = vmatprep.subr.bf16.mxu0 0
      %4073 = vmatpush1.bf16.msra.mxu0 0
      %4074 = vmatprep.subr.bf16.mxu0 0
      %4075 = vmatpush1.bf16.msra.mxu0 %v3834
      %4076 = vmatprep.subr.bf16.mxu0 0
      %4077 = vmatpush1.bf16.msra.mxu0 %v3833
      %4078 = vmatprep.subr.bf16.mxu0 0
      %4079 = vmatpush2.bf16.msra.mxu0 0
      %4080 = vmatprep.subr.bf16.mxu0 0
      %4081 = vmatpush2.bf16.msra.mxu0 0
      %4082 = vmatprep.subr.bf16.mxu0 0
      %4083 = vmatpush2.bf16.msra.mxu0 0
      %4084 = vmatprep.subr.bf16.mxu0 0
      %4085 = vmatpush2.bf16.msra.mxu0 0
      %4086 = vmatprep.subr.bf16.mxu0 0
      %4087 = vmatpush2.bf16.msra.mxu0 0
      %4088 = vmatprep.subr.bf16.mxu0 0
      %4089 = vmatpush2.bf16.msra.mxu0 0
      %4090 = vmatprep.subr.bf16.mxu0 0
      %4091 = vmatpush2.bf16.msra.mxu0 0
      %4092 = vmatprep.subr.bf16.mxu0 0
      %4093 = vmatpush2.bf16.msra.mxu0 0
      %4094 = vmatprep.mubr.bf16.mxu0 0
      %4095 = vmatmul.mubr.bf16.gmra.mxu0 %v3854
      %v4096 = vpop.f32.mrf.mxu0
      %v4097 = vadd.f32 %v3936, %v4096
      %v4098 = vpop.f32.mrf.mxu0
      %v4099 = vpop.f32.mrf.mxu0
      %v4100 = vadd.f32 %v3939, %v4099
      %v4101 = vpop.f32.mrf.mxu0
      %4102 = vmatprep.mubr.bf16.mxu0 0
      %4103 = vmatmul.mubr.bf16.gmra.mxu0 %v3857
      %v4104 = vpop.f32.mrf.mxu0
      %v4105 = vadd.f32 %v3944, %v4104
      %v4106 = vpop.f32.mrf.mxu0
      %v4107 = vpop.f32.mrf.mxu0
      %v4108 = vadd.f32 %v3947, %v4107
      %v4109 = vpop.f32.mrf.mxu0
      %4110 = vmatprep.mubr.bf16.mxu0 0
      %4111 = vmatmul.mubr.bf16.gmra.mxu0 %v3860
      %v4112 = vpop.f32.mrf.mxu0
      %v4113 = vadd.f32 %v3952, %v4112
      %v4114 = vpop.f32.mrf.mxu0
      %v4115 = vpop.f32.mrf.mxu0
      %v4116 = vadd.f32 %v3955, %v4115
      %v4117 = vpop.f32.mrf.mxu0
      %4118 = vmatprep.mubr.bf16.mxu0 0
      %4119 = vmatmul.mubr.bf16.gmra.mxu0 %v3863
      %v4120 = vpop.f32.mrf.mxu0
      %v4121 = vadd.f32 %v3960, %v4120
      %v4122 = vpop.f32.mrf.mxu0
      %v4123 = vpop.f32.mrf.mxu0
      %v4124 = vadd.f32 %v3963, %v4123
      %v4125 = vpop.f32.mrf.mxu0
      %4126 = vmatprep.mubr.bf16.mxu0 0
      %4127 = vmatmul.mubr.bf16.gmra.mxu0 %v3866
      %v4128 = vpop.f32.mrf.mxu0
      %v4129 = vadd.f32 %v3968, %v4128
      %v4130 = vpop.f32.mrf.mxu0
      %v4131 = vpop.f32.mrf.mxu0
      %v4132 = vadd.f32 %v3971, %v4131
      %v4133 = vpop.f32.mrf.mxu0
      %4134 = vmatprep.mubr.bf16.mxu0 0
      %4135 = vmatmul.mubr.bf16.gmra.mxu0 %v3869
      %v4136 = vpop.f32.mrf.mxu0
      %v4137 = vadd.f32 %v3976, %v4136
      %v4138 = vpop.f32.mrf.mxu0
      %v4139 = vpop.f32.mrf.mxu0
      %v4140 = vadd.f32 %v3979, %v4139
      %v4141 = vpop.f32.mrf.mxu0
      %4142 = vmatprep.mubr.bf16.mxu0 0
      %4143 = vmatmul.mubr.bf16.gmra.mxu0 %v3872
      %v4144 = vpop.f32.mrf.mxu0
      %v4145 = vadd.f32 %v3984, %v4144
      %v4146 = vpop.f32.mrf.mxu0
      %v4147 = vpop.f32.mrf.mxu0
      %v4148 = vadd.f32 %v3987, %v4147
      %v4149 = vpop.f32.mrf.mxu0
      %4150 = vmatprep.mubr.bf16.mxu0 0
      %4151 = vmatmul.mubr.bf16.gmra.mxu0 %v3875
      %v4152 = vpop.f32.mrf.mxu0
      %v4153 = vadd.f32 %v3992, %v4152
      %v4154 = vpop.f32.mrf.mxu0
      %v4155 = vpop.f32.mrf.mxu0
      %v4156 = vadd.f32 %v3995, %v4155
      %v4157 = vpop.f32.mrf.mxu0
      %4158 = vmatprep.mubr.bf16.mxu0 0
      %4159 = vmatmul.mubr.bf16.gmra.mxu0 %v3878
      %v4160 = vpop.f32.mrf.mxu0
      %v4161 = vadd.f32 %v4000, %v4160
      %v4162 = vpop.f32.mrf.mxu0
      %v4163 = vpop.f32.mrf.mxu0
      %v4164 = vadd.f32 %v4003, %v4163
      %v4165 = vpop.f32.mrf.mxu0
      %4166 = vmatprep.mubr.bf16.mxu0 0
      %4167 = vmatmul.mubr.bf16.gmra.mxu0 %v3881
      %v4168 = vpop.f32.mrf.mxu0
      %v4169 = vadd.f32 %v4008, %v4168
      %v4170 = vpop.f32.mrf.mxu0
      %v4171 = vpop.f32.mrf.mxu0
      %v4172 = vadd.f32 %v4011, %v4171
      %v4173 = vpop.f32.mrf.mxu0
      %4174 = vmatprep.mubr.bf16.mxu0 0
      %4175 = vmatmul.mubr.bf16.gmra.mxu0 %v3884
      %v4176 = vpop.f32.mrf.mxu0
      %v4177 = vadd.f32 %v4016, %v4176
      %v4178 = vpop.f32.mrf.mxu0
      %v4179 = vpop.f32.mrf.mxu0
      %v4180 = vadd.f32 %v4019, %v4179
      %v4181 = vpop.f32.mrf.mxu0
      %4182 = vmatprep.mubr.bf16.mxu0 0
      %4183 = vmatmul.mubr.bf16.gmra.mxu0 %v3887
      %v4184 = vpop.f32.mrf.mxu0
      %v4185 = vadd.f32 %v4024, %v4184
      %v4186 = vpop.f32.mrf.mxu0
      %v4187 = vpop.f32.mrf.mxu0
      %v4188 = vadd.f32 %v4027, %v4187
      %v4189 = vpop.f32.mrf.mxu0
      %4190 = vmatprep.mubr.bf16.mxu0 0
      %4191 = vmatmul.mubr.bf16.gmra.mxu0 %v3890
      %v4192 = vpop.f32.mrf.mxu0
      %v4193 = vadd.f32 %v4032, %v4192
      %v4194 = vpop.f32.mrf.mxu0
      %v4195 = vpop.f32.mrf.mxu0
      %v4196 = vadd.f32 %v4035, %v4195
      %v4197 = vpop.f32.mrf.mxu0
      %4198 = vmatprep.mubr.bf16.mxu0 0
      %4199 = vmatmul.mubr.bf16.gmra.mxu0 %v3893
      %v4200 = vpop.f32.mrf.mxu0
      %v4201 = vadd.f32 %v4040, %v4200
      %v4202 = vpop.f32.mrf.mxu0
      %v4203 = vpop.f32.mrf.mxu0
      %v4204 = vadd.f32 %v4043, %v4203
      %v4205 = vpop.f32.mrf.mxu0
      %4206 = vmatprep.mubr.bf16.mxu0 0
      %4207 = vmatmul.mubr.bf16.gmra.mxu0 %v3896
      %v4208 = vpop.f32.mrf.mxu0
      %v4209 = vadd.f32 %v4048, %v4208
      %v4210 = vpop.f32.mrf.mxu0
      %v4211 = vpop.f32.mrf.mxu0
      %v4212 = vadd.f32 %v4051, %v4211
      %v4213 = vpop.f32.mrf.mxu0
      %4214 = vmatprep.mubr.bf16.mxu0 0
      %4215 = vmatmul.mubr.bf16.gmra.mxu0 %v3899
      %v4216 = vpop.f32.mrf.mxu0
      %v4217 = vadd.f32 %v4056, %v4216
      %v4218 = vpop.f32.mrf.mxu0
      %v4219 = vpop.f32.mrf.mxu0
      %v4220 = vadd.f32 %v4059, %v4219
      %v4221 = vpop.f32.mrf.mxu0
      %4222 = vdwg.mxu0
      %v4223 = vpack.c.bf16 %v4100, %v4097
      %v4224 = vpack.c.bf16 %v4108, %v4105
      %v4225 = vpack.c.bf16 %v4116, %v4113
      %v4226 = vpack.c.bf16 %v4124, %v4121
      %v4227 = vpack.c.bf16 %v4132, %v4129
      %v4228 = vpack.c.bf16 %v4140, %v4137
      %v4229 = vpack.c.bf16 %v4148, %v4145
      %v4230 = vpack.c.bf16 %v4156, %v4153
      %v4231 = vpack.c.bf16 %v4164, %v4161
      %v4232 = vpack.c.bf16 %v4172, %v4169
      %v4233 = vpack.c.bf16 %v4180, %v4177
      %v4234 = vpack.c.bf16 %v4188, %v4185
      %v4235 = vpack.c.bf16 %v4196, %v4193
      %v4236 = vpack.c.bf16 %v4204, %v4201
      %v4237 = vpack.c.bf16 %v4212, %v4209
      %v4238 = vpack.c.bf16 %v4220, %v4217
      %v4255 = vunpack.c.l.b16 %v4223
      %v4256 = vunpack.c.h.b16 %v4223
      %v4257 = vunpack.c.l.b16 %v4224
      %v4258 = vunpack.c.h.b16 %v4224
      %v4259 = vunpack.c.l.b16 %v4225
      %v4260 = vunpack.c.h.b16 %v4225
      %v4261 = vunpack.c.l.b16 %v4226
      %v4262 = vunpack.c.h.b16 %v4226
      %v4263 = vunpack.c.l.b16 %v4227
      %v4264 = vunpack.c.h.b16 %v4227
      %v4265 = vunpack.c.l.b16 %v4228
      %v4266 = vunpack.c.h.b16 %v4228
      %v4267 = vunpack.c.l.b16 %v4229
      %v4268 = vunpack.c.h.b16 %v4229
      %v4269 = vunpack.c.l.b16 %v4230
      %v4270 = vunpack.c.h.b16 %v4230
      %v4271 = vunpack.c.l.b16 %v4231
      %v4272 = vunpack.c.h.b16 %v4231
      %v4273 = vunpack.c.l.b16 %v4232
      %v4274 = vunpack.c.h.b16 %v4232
      %v4275 = vunpack.c.l.b16 %v4233
      %v4276 = vunpack.c.h.b16 %v4233
      %v4277 = vunpack.c.l.b16 %v4234
      %v4278 = vunpack.c.h.b16 %v4234
      %v4279 = vunpack.c.l.b16 %v4235
      %v4280 = vunpack.c.h.b16 %v4235
      %v4281 = vunpack.c.l.b16 %v4236
      %v4282 = vunpack.c.h.b16 %v4236
      %v4283 = vunpack.c.l.b16 %v4237
      %v4284 = vunpack.c.h.b16 %v4237
      %v4285 = vunpack.c.l.b16 %v4238
      %v4286 = vunpack.c.h.b16 %v4238
      %v4287 = vpack.c.b16 %v4255, %v4255
      %v4288 = vpack.c.b16 %v4256, %v4256
      %v4289 = vpack.c.b16 %v4257, %v4257
      %v4290 = vpack.c.b16 %v4258, %v4258
      %v4291 = vpack.c.b16 %v4259, %v4259
      %v4292 = vpack.c.b16 %v4260, %v4260
      %v4293 = vpack.c.b16 %v4261, %v4261
      %v4294 = vpack.c.b16 %v4262, %v4262
      %v4295 = vpack.c.b16 %v4263, %v4263
      %v4296 = vpack.c.b16 %v4264, %v4264
      %v4297 = vpack.c.b16 %v4265, %v4265
      %v4298 = vpack.c.b16 %v4266, %v4266
      %v4299 = vpack.c.b16 %v4267, %v4267
      %v4300 = vpack.c.b16 %v4268, %v4268
      %v4301 = vpack.c.b16 %v4269, %v4269
      %v4302 = vpack.c.b16 %v4270, %v4270
      %v4303 = vpack.c.b16 %v4271, %v4271
      %v4304 = vpack.c.b16 %v4272, %v4272
      %v4305 = vpack.c.b16 %v4273, %v4273
      %v4306 = vpack.c.b16 %v4274, %v4274
      %v4307 = vpack.c.b16 %v4275, %v4275
      %v4308 = vpack.c.b16 %v4276, %v4276
      %v4309 = vpack.c.b16 %v4277, %v4277
      %v4310 = vpack.c.b16 %v4278, %v4278
      %v4311 = vpack.c.b16 %v4279, %v4279
      %v4312 = vpack.c.b16 %v4280, %v4280
      %v4313 = vpack.c.b16 %v4281, %v4281
      %v4314 = vpack.c.b16 %v4282, %v4282
      %v4315 = vpack.c.b16 %v4283, %v4283
      %v4316 = vpack.c.b16 %v4284, %v4284
      %v4317 = vpack.c.b16 %v4285, %v4285
      %v4318 = vpack.c.b16 %v4286, %v4286
      %4351 = vst.msk [vmem:[%s260] sm:$0xf] %vm1218, %v4287
      %4352 = vst.msk [vmem:[%s260 + $0x4] sm:$0xf] %vm1218, %v4288
      %4353 = vst.msk [vmem:[%s260 + $0x8] sm:$0xf] %vm1218, %v4289
      %4354 = vst.msk [vmem:[%s260 + $0xc] sm:$0xf] %vm1218, %v4290
      %4355 = vst.msk [vmem:[%s260 + $0x10] sm:$0xf] %vm1218, %v4291
      %4356 = vst.msk [vmem:[%s260 + $0x14] sm:$0xf] %vm1218, %v4292
      %4357 = vst.msk [vmem:[%s260 + $0x18] sm:$0xf] %vm1218, %v4293
      %4358 = vst.msk [vmem:[%s260 + $0x1c] sm:$0xf] %vm1218, %v4294
      %4359 = vst.msk [vmem:[%s260 + $0x20] sm:$0xf] %vm1218, %v4295
      %4360 = vst.msk [vmem:[%s260 + $0x24] sm:$0xf] %vm1218, %v4296
      %4361 = vst.msk [vmem:[%s260 + $0x28] sm:$0xf] %vm1218, %v4297
      %4362 = vst.msk [vmem:[%s260 + $0x2c] sm:$0xf] %vm1218, %v4298
      %4363 = vst.msk [vmem:[%s260 + $0x30] sm:$0xf] %vm1218, %v4299
      %4364 = vst.msk [vmem:[%s260 + $0x34] sm:$0xf] %vm1218, %v4300
      %4365 = vst.msk [vmem:[%s260 + $0x38] sm:$0xf] %vm1218, %v4301
      %4366 = vst.msk [vmem:[%s260 + $0x3c] sm:$0xf] %vm1218, %v4302
      %4367 = vst.msk [vmem:[%s260 + $0x40] sm:$0xf] %vm1218, %v4303
      %4368 = vst.msk [vmem:[%s260 + $0x44] sm:$0xf] %vm1218, %v4304
      %4369 = vst.msk [vmem:[%s260 + $0x48] sm:$0xf] %vm1218, %v4305
      %4370 = vst.msk [vmem:[%s260 + $0x4c] sm:$0xf] %vm1218, %v4306
      %4371 = vst.msk [vmem:[%s260 + $0x50] sm:$0xf] %vm1218, %v4307
      %4372 = vst.msk [vmem:[%s260 + $0x54] sm:$0xf] %vm1218, %v4308
      %4373 = vst.msk [vmem:[%s260 + $0x58] sm:$0xf] %vm1218, %v4309
      %4374 = vst.msk [vmem:[%s260 + $0x5c] sm:$0xf] %vm1218, %v4310
      %4375 = vst.msk [vmem:[%s260 + $0x60] sm:$0xf] %vm1218, %v4311
      %4376 = vst.msk [vmem:[%s260 + $0x64] sm:$0xf] %vm1218, %v4312
      %4377 = vst.msk [vmem:[%s260 + $0x68] sm:$0xf] %vm1218, %v4313
      %4378 = vst.msk [vmem:[%s260 + $0x6c] sm:$0xf] %vm1218, %v4314
      %4379 = vst.msk [vmem:[%s260 + $0x70] sm:$0xf] %vm1218, %v4315
      %4380 = vst.msk [vmem:[%s260 + $0x74] sm:$0xf] %vm1218, %v4316
      %4381 = vst.msk [vmem:[%s260 + $0x78] sm:$0xf] %vm1218, %v4317
      %4382 = vst.msk [vmem:[%s260 + $0x7c] sm:$0xf] %vm1218, %v4318
      %v4383 = vsel %vm441, %v4097, 0.0
      %v4384 = vsel %vm441, %v4100, 0.0
      %v4385 = vadd.f32 %v4383, %v4384
      %v4386 = vsel %vm441, %v4105, 0.0
      %v4387 = vadd.f32 %v4385, %v4386
      %v4388 = vsel %vm441, %v4108, 0.0
      %v4389 = vadd.f32 %v4387, %v4388
      %v4390 = vsel %vm441, %v4113, 0.0
      %v4391 = vadd.f32 %v4389, %v4390
      %v4392 = vsel %vm441, %v4116, 0.0
      %v4393 = vadd.f32 %v4391, %v4392
      %v4394 = vsel %vm441, %v4121, 0.0
      %v4395 = vadd.f32 %v4393, %v4394
      %v4396 = vsel %vm441, %v4124, 0.0
      %v4397 = vadd.f32 %v4395, %v4396
      %v4398 = vsel %vm441, %v4129, 0.0
      %v4399 = vadd.f32 %v4397, %v4398
      %v4400 = vsel %vm441, %v4132, 0.0
      %v4401 = vadd.f32 %v4399, %v4400
      %v4402 = vsel %vm441, %v4137, 0.0
      %v4403 = vadd.f32 %v4401, %v4402
      %v4404 = vsel %vm441, %v4140, 0.0
      %v4405 = vadd.f32 %v4403, %v4404
      %v4406 = vsel %vm441, %v4145, 0.0
      %v4407 = vadd.f32 %v4405, %v4406
      %v4408 = vsel %vm441, %v4148, 0.0
      %v4409 = vadd.f32 %v4407, %v4408
      %v4410 = vsel %vm441, %v4153, 0.0
      %v4411 = vadd.f32 %v4409, %v4410
      %v4412 = vsel %vm441, %v4156, 0.0
      %v4413 = vadd.f32 %v4411, %v4412
      %v4414 = vsel %vm441, %v4161, 0.0
      %v4415 = vadd.f32 %v4413, %v4414
      %v4416 = vsel %vm441, %v4164, 0.0
      %v4417 = vadd.f32 %v4415, %v4416
      %v4418 = vsel %vm441, %v4169, 0.0
      %v4419 = vadd.f32 %v4417, %v4418
      %v4420 = vsel %vm441, %v4172, 0.0
      %v4421 = vadd.f32 %v4419, %v4420
      %v4422 = vsel %vm441, %v4177, 0.0
      %v4423 = vadd.f32 %v4421, %v4422
      %v4424 = vsel %vm441, %v4180, 0.0
      %v4425 = vadd.f32 %v4423, %v4424
      %v4426 = vsel %vm441, %v4185, 0.0
      %v4427 = vadd.f32 %v4425, %v4426
      %v4428 = vsel %vm441, %v4188, 0.0
      %v4429 = vadd.f32 %v4427, %v4428
      %v4430 = vsel %vm441, %v4193, 0.0
      %v4431 = vadd.f32 %v4429, %v4430
      %v4432 = vsel %vm441, %v4196, 0.0
      %v4433 = vadd.f32 %v4431, %v4432
      %v4434 = vsel %vm441, %v4201, 0.0
      %v4435 = vadd.f32 %v4433, %v4434
      %v4436 = vsel %vm441, %v4204, 0.0
      %v4437 = vadd.f32 %v4435, %v4436
      %v4438 = vsel %vm441, %v4209, 0.0
      %v4439 = vadd.f32 %v4437, %v4438
      %v4440 = vsel %vm441, %v4212, 0.0
      %v4441 = vadd.f32 %v4439, %v4440
      %v4442 = vsel %vm441, %v4217, 0.0
      %v4443 = vadd.f32 %v4441, %v4442
      %v4444 = vsel %vm441, %v4220, 0.0
      %v4445 = vadd.f32 %v4443, %v4444
      %v4446 = vrot.slane %v4445, 4
      %v4447 = vadd.f32 %v4445, %v4446
      %v4448 = vrot.slane %v4447, 2
      %v4449 = vadd.f32 %v4447, %v4448
      %v4450 = vrot.slane %v4449, 1
      %v4451 = vadd.f32 %v4449, %v4450
      %v4452 = vmul.f32 %v4097, %v4097
      %v4453 = vmul.f32 %v4100, %v4100
      %v4454 = vmul.f32 %v4105, %v4105
      %v4455 = vmul.f32 %v4108, %v4108
      %v4456 = vmul.f32 %v4113, %v4113
      %v4457 = vmul.f32 %v4116, %v4116
      %v4458 = vmul.f32 %v4121, %v4121
      %v4459 = vmul.f32 %v4124, %v4124
      %v4460 = vmul.f32 %v4129, %v4129
      %v4461 = vmul.f32 %v4132, %v4132
      %v4462 = vmul.f32 %v4137, %v4137
      %v4463 = vmul.f32 %v4140, %v4140
      %v4464 = vmul.f32 %v4145, %v4145
      %v4465 = vmul.f32 %v4148, %v4148
      %v4466 = vmul.f32 %v4153, %v4153
      %v4467 = vmul.f32 %v4156, %v4156
      %v4468 = vmul.f32 %v4161, %v4161
      %v4469 = vmul.f32 %v4164, %v4164
      %v4470 = vmul.f32 %v4169, %v4169
      %v4471 = vmul.f32 %v4172, %v4172
      %v4472 = vmul.f32 %v4177, %v4177
      %v4473 = vmul.f32 %v4180, %v4180
      %v4474 = vmul.f32 %v4185, %v4185
      %v4475 = vmul.f32 %v4188, %v4188
      %v4476 = vmul.f32 %v4193, %v4193
      %v4477 = vmul.f32 %v4196, %v4196
      %v4478 = vmul.f32 %v4201, %v4201
      %v4479 = vmul.f32 %v4204, %v4204
      %v4480 = vmul.f32 %v4209, %v4209
      %v4481 = vmul.f32 %v4212, %v4212
      %v4482 = vmul.f32 %v4217, %v4217
      %v4483 = vmul.f32 %v4220, %v4220
      %v4484 = vsel %vm441, %v4452, 0.0
      %v4485 = vsel %vm441, %v4453, 0.0
      %v4486 = vadd.f32 %v4484, %v4485
      %v4487 = vsel %vm441, %v4454, 0.0
      %v4488 = vadd.f32 %v4486, %v4487
      %v4489 = vsel %vm441, %v4455, 0.0
      %v4490 = vadd.f32 %v4488, %v4489
      %v4491 = vsel %vm441, %v4456, 0.0
      %v4492 = vadd.f32 %v4490, %v4491
      %v4493 = vsel %vm441, %v4457, 0.0
      %v4494 = vadd.f32 %v4492, %v4493
      %v4495 = vsel %vm441, %v4458, 0.0
      %v4496 = vadd.f32 %v4494, %v4495
      %v4497 = vsel %vm441, %v4459, 0.0
      %v4498 = vadd.f32 %v4496, %v4497
      %v4499 = vsel %vm441, %v4460, 0.0
      %v4500 = vadd.f32 %v4498, %v4499
      %v4501 = vsel %vm441, %v4461, 0.0
      %v4502 = vadd.f32 %v4500, %v4501
      %v4503 = vsel %vm441, %v4462, 0.0
      %v4504 = vadd.f32 %v4502, %v4503
      %v4505 = vsel %vm441, %v4463, 0.0
      %v4506 = vadd.f32 %v4504, %v4505
      %v4507 = vsel %vm441, %v4464, 0.0
      %v4508 = vadd.f32 %v4506, %v4507
      %v4509 = vsel %vm441, %v4465, 0.0
      %v4510 = vadd.f32 %v4508, %v4509
      %v4511 = vsel %vm441, %v4466, 0.0
      %v4512 = vadd.f32 %v4510, %v4511
      %v4513 = vsel %vm441, %v4467, 0.0
      %v4514 = vadd.f32 %v4512, %v4513
      %v4515 = vsel %vm441, %v4468, 0.0
      %v4516 = vadd.f32 %v4514, %v4515
      %v4517 = vsel %vm441, %v4469, 0.0
      %v4518 = vadd.f32 %v4516, %v4517
      %v4519 = vsel %vm441, %v4470, 0.0
      %v4520 = vadd.f32 %v4518, %v4519
      %v4521 = vsel %vm441, %v4471, 0.0
      %v4522 = vadd.f32 %v4520, %v4521
      %v4523 = vsel %vm441, %v4472, 0.0
      %v4524 = vadd.f32 %v4522, %v4523
      %v4525 = vsel %vm441, %v4473, 0.0
      %v4526 = vadd.f32 %v4524, %v4525
      %v4527 = vsel %vm441, %v4474, 0.0
      %v4528 = vadd.f32 %v4526, %v4527
      %v4529 = vsel %vm441, %v4475, 0.0
      %v4530 = vadd.f32 %v4528, %v4529
      %v4531 = vsel %vm441, %v4476, 0.0
      %v4532 = vadd.f32 %v4530, %v4531
      %v4533 = vsel %vm441, %v4477, 0.0
      %v4534 = vadd.f32 %v4532, %v4533
      %v4535 = vsel %vm441, %v4478, 0.0
      %v4536 = vadd.f32 %v4534, %v4535
      %v4537 = vsel %vm441, %v4479, 0.0
      %v4538 = vadd.f32 %v4536, %v4537
      %v4539 = vsel %vm441, %v4480, 0.0
      %v4540 = vadd.f32 %v4538, %v4539
      %v4541 = vsel %vm441, %v4481, 0.0
      %v4542 = vadd.f32 %v4540, %v4541
      %v4543 = vsel %vm441, %v4482, 0.0
      %v4544 = vadd.f32 %v4542, %v4543
      %v4545 = vsel %vm441, %v4483, 0.0
      %v4546 = vadd.f32 %v4544, %v4545
      %v4547 = vrot.slane %v4546, 4
      %v4548 = vadd.f32 %v4546, %v4547
      %v4549 = vrot.slane %v4548, 2
      %v4550 = vadd.f32 %v4548, %v4549
      %v4551 = vrot.slane %v4550, 1
      %v4552 = vadd.f32 %v4550, %v4551
      %vm4553 = vcmask 1040384
      %v4554 = vsel %vm4553, %v4451, %v4552
      %vm4555 = vcmask 254976
      %4556 = vst.msk [vmem:[%s265] sm:$0x3] %vm4555, %v4554
      %s4557 = smul.u32 32, %s18
      %p4558 = scmp.lt.s32.totalorder %s4557, 63
      %s4559 = scalar_select %p4558, %s4557, 63
      %s4560 = smul.addr %s4559, 4
      %s4561 = scalar_lea.vmem %s5, %s4560
      %p4562 = scmp.lt.s32.totalorder %s18, 1
      %s4563 = scalar_select %p4562, %s18, 1
      %s4564 = smul.addr %s4563, 2
      %s4565 = scalar_lea.vmem %s6, %s4564
      // Predicated region
      $region41: #{double_conv_fwd.4} parent=39 // pred_check
        %p4566 = pneg %p146
      $region42: #{double_conv_fwd.4} parent=39 // pred_check_branch
        %4568 = sbr.rel (%p4566) target = $region44
      $region43: #{double_conv_fwd.4} parent=39 // pred_region
        %s4569 = smul.u32 32, %s18
      $region44: #{double_conv_fwd.4} parent=39 // pred_fallthru
        _
      // Predicated region
      $region45: #{double_conv_fwd.4} parent=39 // pred_check
        %p4570 = pneg %p172
      $region46: #{double_conv_fwd.4} parent=39 // pred_check_branch
        %4572 = sbr.rel (%p4570) target = $region48
      $region47: #{double_conv_fwd.4} parent=39 // pred_region
        _
      $region48: #{double_conv_fwd.4} parent=39 // pred_fallthru
        _
    $region40: #{double_conv_fwd.4} parent=5 // pred_fallthru
      _
    %p4573 = scmp.le.s32.totalorder 2, %s13
    // Predicated region
    $region49: #{double_conv_fwd.4} parent=5 // pred_check
      %p4574 = pneg %p4573
    $region50: #{double_conv_fwd.4} parent=5 // pred_check_branch
      %4576 = sbr.rel (%p4574) target = $region52
    $region51: #{double_conv_fwd.4} parent=5 // pred_region
      %s4577 = ssub.s32 %s13, 2
      // Predicated region
      $region53: #{double_conv_fwd.4} parent=51 // pred_check
        %p4578 = pneg %p152
      $region54: #{double_conv_fwd.4} parent=51 // pred_check_branch
        %4580 = sbr.rel (%p4578) target = $region56
      $region55: #{double_conv_fwd.4} parent=51 // pred_region
        %s4581 = smul.u32 32, %s19
        %p4582 = scmp.lt.s32.totalorder %s4581, 63
        %s4583 = scalar_select %p4582, %s4581, 63
        %s4584 = smul.addr %s4583, 4
        %s4585 = scalar_lea.vmem %s5, %s4584
      $region56: #{double_conv_fwd.4} parent=51 // pred_fallthru
        _
      // Predicated region
      $region57: #{double_conv_fwd.4} parent=51 // pred_check
        %p4586 = pneg %p178
      $region58: #{double_conv_fwd.4} parent=51 // pred_check_branch
        %4588 = sbr.rel (%p4586) target = $region60
      $region59: #{double_conv_fwd.4} parent=51 // pred_region
        %p4589 = scmp.lt.s32.totalorder %s19, 1
        %s4590 = scalar_select %p4589, %s19, 1
        %s4591 = smul.addr %s4590, 2
        %s4592 = scalar_lea.vmem %s6, %s4591
      $region60: #{double_conv_fwd.4} parent=51 // pred_fallthru
        _
    $region52: #{double_conv_fwd.4} parent=5 // pred_fallthru
      _
  $region6: #{double_conv_fwd.4} parent=0 // loop_footer
    %s17 = sadd.s32 1, %s13
  $region7: #{double_conv_fwd.4} parent=0 // loop_footer_branch
    %12 = sbr.rel target = $region3
  $region8: #{double_conv_fwd.4} parent=0 // loop_exit
    _

</llo_original>
